<compile_context>
chip_gen: v7x
topology: tpu7x:2x2x1
jax: 0.10.0
libtpu: 0.0.40
codegen_flags: <defaults>
</compile_context>

<pallas_src>
import jax
import jax.numpy as jnp
from jax.experimental import pallas as pl
from jax.experimental.pallas import tpu as pltpu
from functools import partial

BN_EPS_BACKBONE = 1e-3   # partial(nn.BatchNorm2d, eps=0.001, momentum=0.01)
BN_EPS_DECONV = 1e-5     # nn.BatchNorm2d(planes, momentum=BN_MOMENTUM)
NUM_JOINTS = 8


def _make_divisible(v, divisor=8, min_value=None):
    if min_value is None:
        min_value = divisor
    new_v = max(min_value, int(v + divisor / 2) // divisor * divisor)
    if new_v < 0.9 * v:
        new_v += divisor
    return new_v


# ----------------------------- activations (in-kernel) ----------------------
def _relu(x):
    return jnp.maximum(x, 0.0)


def _hardswish(x):
    return x * jnp.clip(x + 3.0, 0.0, 6.0) * (1.0 / 6.0)


def _hardsigmoid(x):
    return jnp.clip(x + 3.0, 0.0, 6.0) * (1.0 / 6.0)


def _se_scale(y, sw1, sb1, sw2, sb2):
    # Squeeze-Excitation entirely on the VPU/XLU: the two M=1 FCs are
    # broadcast-multiply + reduce (no serialized MXU round trips).
    m = jnp.mean(y, axis=0, keepdims=True)                              # (1, C)
    t1 = _relu(jnp.sum(m * sw1, axis=1, keepdims=True) + sb1)           # (Csq, 1)
    s = _hardsigmoid(jnp.sum(t1 * sw2, axis=0, keepdims=True) + sb2)    # (1, C)
    return y * s


# ----------------------------- Pallas kernels -------------------------------
def _stem_kernel(x_ref, w_ref, b_ref, o_ref, *, OH, OW):
    # 3x3 s2 conv as ONE (OH*OW, 27) x (27, 16) MXU matmul over the
    # wrapper-built im2col slab + folded BN + hardswish.
    Cout = w_ref.shape[-1]
    taps = x_ref[...].reshape(OH * OW, w_ref.shape[0])
    acc = jnp.dot(taps, w_ref[...], preferred_element_type=jnp.float32)
    o_ref[...] = _hardswish(acc + b_ref[...]).reshape(1, OH, OW, Cout)


def _block1_kernel(xph_ref, wdw_ref, bdw_ref, sw1_ref, sb1_ref, sw2_ref,
                   sb2_ref, wpe_ref, bpe_ref, o_ref, *, OH, OW):
    # block1: dw3x3 s2 + ReLU -> SE (VPU) -> fused (1x1 proj @ 1x1 expand) + ReLU
    C = xph_ref.shape[-1]
    acc = jnp.zeros((OH, OW, C), jnp.float32)
    for di in range(3):
        for dj in range(3):
            p = (di % 2) * 2 + (dj % 2)
            tap = xph_ref[p, di // 2:di // 2 + OH, dj // 2:dj // 2 + OW, :]
            acc = acc + tap * wdw_ref[di * 3 + dj]
    y = _relu(acc + bdw_ref[...]).reshape(OH * OW, C)
    y = _se_scale(y, sw1_ref[...], sb1_ref[...], sw2_ref[...], sb2_ref[...])
    # (block1 1x1 project) @ (block2 1x1 expand) pre-multiplied at prep time
    z = _relu(jnp.dot(y.astype(jnp.bfloat16), wpe_ref[...],
                      preferred_element_type=jnp.float32) + bpe_ref[...])
    o_ref[...] = z.reshape(1, OH, OW, z.shape[-1])


def _block23_kernel(xph_ref,
                    w2dw_ref, b2dw_ref, w2p_ref, b2p_ref,
                    wpe_ref, bpe_ref, w3dw_ref, b3dw_ref,
                    sw1_ref, sb1_ref, sw2_ref, sb2_ref,
                    w3p_ref, b3p_ref, wl_ref, bl_ref,
                    o_ref, pad_ref, *, OH, OW):
    Cexp = xph_ref.shape[-1]
    # block2: dw3x3 stride-2 + ReLU (phase-split padded expand output)
    acc = jnp.zeros((OH, OW, Cexp), jnp.float32)
    for di in range(3):
        for dj in range(3):
            p = (di % 2) * 2 + (dj % 2)
            tap = xph_ref[p, di // 2:di // 2 + OH, dj // 2:dj // 2 + OW, :]
            acc = acc + tap * w2dw_ref[di * 3 + dj]
    y = _relu(acc + b2dw_ref[...]).reshape(OH * OW, Cexp)
    yb = y.astype(jnp.bfloat16)
    # block2: 1x1 project 32->24 (linear, kept for the residual)
    x24 = jnp.dot(yb, w2p_ref[...], preferred_element_type=jnp.float32) \
        + b2p_ref[...]
    # fused (block2 project) @ (block3 expand) + hardswish (one matmul from y)
    e = _hardswish(jnp.dot(yb, wpe_ref[...],
                           preferred_element_type=jnp.float32) + bpe_ref[...])
    # block3: dw3x3 stride-1 pad-1 + hardswish via padded VMEM scratch.
    # Only the 1-pixel border is zeroed each step; interior is overwritten.
    zrow = jnp.zeros((1, OW + 2, Cexp), jnp.float32)
    zcol = jnp.zeros((OH, 1, Cexp), jnp.float32)
    pad_ref[0:1] = zrow
    pad_ref[OH + 1:OH + 2] = zrow
    pad_ref[1:OH + 1, 0:1] = zcol
    pad_ref[1:OH + 1, OW + 1:OW + 2] = zcol
    pad_ref[1:OH + 1, 1:OW + 1] = e.reshape(OH, OW, Cexp)
    acc3 = jnp.zeros((OH, OW, Cexp), jnp.float32)
    for di in range(3):
        for dj in range(3):
            acc3 = acc3 + pad_ref[di:di + OH, dj:dj + OW, :] * w3dw_ref[di * 3 + dj]
    h = _hardswish(acc3 + b3dw_ref[...]).reshape(OH * OW, Cexp)
    # block3: SE (VPU), project + residual, then last backbone conv 24->144
    h = _se_scale(h, sw1_ref[...], sb1_ref[...], sw2_ref[...], sb2_ref[...])
    r = jnp.dot(h.astype(jnp.bfloat16), w3p_ref[...],
                preferred_element_type=jnp.float32) + b3p_ref[...] + x24
    z = _hardswish(jnp.dot(r.astype(jnp.bfloat16), wl_ref[...],
                           preferred_element_type=jnp.float32) + bl_ref[...])
    o_ref[...] = z.astype(o_ref.dtype).reshape(1, OH, OW, z.shape[-1])


def _deconv_kernel(*refs, Hin, Win, fuse_final):
    # ConvTranspose2d(k=4, s=2, p=1) + folded BN + ReLU as a 3x3-window conv
    # with the 4 output parities folded along N (one matmul, lane-dense out).
    # Tap slab built in VMEM once per step; optional fused final 1x1 head
    # (block-diagonal over the 4 parities).
    if fuse_final:
        x_ref, w_ref, b_ref, wf_ref, bf_ref, o_ref, slab_ref = refs
    else:
        x_ref, w_ref, b_ref, o_ref, slab_ref = refs
    Cin = x_ref.shape[-1]
    for di in range(3):
        for dj in range(3):
            t = di * 3 + dj
            slab_ref[:, :, t * Cin:(t + 1) * Cin] = \
                x_ref[0, di:di + Hin, dj:dj + Win, :]
    taps = slab_ref[...].reshape(Hin * Win, 9 * Cin)
    y = _relu(jnp.dot(taps, w_ref[...], preferred_element_type=jnp.float32)
              + b_ref[...])
    if fuse_final:
        y = jnp.dot(y.astype(jnp.bfloat16), wf_ref[...],
                    preferred_element_type=jnp.float32) + bf_ref[...]
    o_ref[...] = y.astype(o_ref.dtype).reshape(1, Hin * Win, y.shape[-1])


# ----------------------------- pallas_call wrappers --------------------------
def _wspec(a):
    nd = a.ndim
    return pl.BlockSpec(a.shape, lambda b: (0,) * nd)


def _cost(flops, bytes_accessed):
    return pl.CostEstimate(flops=int(flops), transcendentals=0,
                           bytes_accessed=int(bytes_accessed))


_PARALLEL = pltpu.CompilerParams(dimension_semantics=("parallel",))


def _stem_call(prep, slab, B, OH, OW):
    _, _, _, K = slab.shape
    Cout = prep['stem_b'].shape[-1]
    return pl.pallas_call(
        partial(_stem_kernel, OH=OH, OW=OW),
        out_shape=jax.ShapeDtypeStruct((B, OH, OW, Cout), jnp.float32),
        grid=(B,),
        in_specs=[pl.BlockSpec((1, OH, OW, K), lambda b: (b, 0, 0, 0)),
                  _wspec(prep['stem_w']), _wspec(prep['stem_b'])],
        out_specs=pl.BlockSpec((1, OH, OW, Cout), lambda b: (b, 0, 0, 0)),
        compiler_params=_PARALLEL,
        cost_estimate=_cost(2 * B * OH * OW * K * Cout,
                            slab.size * 2 + B * OH * OW * Cout * 4),
    )(slab, prep['stem_w'], prep['stem_b'])


def _block1_call(prep, xph, B, OH, OW):
    _, Hp, Wp, C = xph.shape
    sw1, sb1, sw2, sb2 = prep['b1_se']
    Cout = prep['b1_pe_b'].shape[-1]
    args = (xph, prep['b1_dw_w'], prep['b1_dw_b'], sw1, sb1, sw2, sb2,
            prep['b1_pe_w'], prep['b1_pe_b'])
    in_specs = [pl.BlockSpec((4, Hp, Wp, C), lambda b: (b, 0, 0, 0))] + \
               [_wspec(a) for a in args[1:]]
    return pl.pallas_call(
        partial(_block1_kernel, OH=OH, OW=OW),
        out_shape=jax.ShapeDtypeStruct((B, OH, OW, Cout), jnp.float32),
        grid=(B,),
        in_specs=in_specs,
        out_specs=pl.BlockSpec((1, OH, OW, Cout), lambda b: (b, 0, 0, 0)),
        compiler_params=_PARALLEL,
        cost_estimate=_cost(B * OH * OW * C * (18 + 2 * Cout),
                            xph.size * 4 + B * OH * OW * Cout * 4),
    )(*args)


def _block23_call(prep, xph, B, OH, OW):
    _, Hp, Wp, Cexp = xph.shape
    Clast = prep['last_b'].shape[-1]
    sw1, sb1, sw2, sb2 = prep['b3_se']
    args = (xph,
            prep['b2_dw_w'], prep['b2_dw_b'], prep['b2_proj_w'], prep['b2_proj_b'],
            prep['b23_pe_w'], prep['b23_pe_b'], prep['b3_dw_w'], prep['b3_dw_b'],
            sw1, sb1, sw2, sb2,
            prep['b3_proj_w'], prep['b3_proj_b'], prep['last_w'], prep['last_b'])
    in_specs = [pl.BlockSpec((4, Hp, Wp, Cexp), lambda b: (b, 0, 0, 0))] + \
               [_wspec(a) for a in args[1:]]
    return pl.pallas_call(
        partial(_block23_kernel, OH=OH, OW=OW),
        out_shape=jax.ShapeDtypeStruct((B, OH, OW, Clast), jnp.bfloat16),
        grid=(B,),
        in_specs=in_specs,
        out_specs=pl.BlockSpec((1, OH, OW, Clast), lambda b: (b, 0, 0, 0)),
        scratch_shapes=[pltpu.VMEM((OH + 2, OW + 2, Cexp), jnp.float32)],
        compiler_params=_PARALLEL,
        cost_estimate=_cost(B * OH * OW * Cexp * (36 + 4 * 24 + 2 * Cexp)
                            + 2 * B * OH * OW * 24 * Clast,
                            xph.size * 4 + B * OH * OW * Clast * 2),
    )(*args)


def _deconv_call(prep, wkey, bkey, xpad, B, Hin, Win, final=False):
    _, Hp, Wp, Cin = xpad.shape
    wd, bd = prep[wkey], prep[bkey]
    args = [xpad, wd, bd]
    if final:
        args += [prep['final_w'], prep['final_b']]
        Nout, odtype = prep['final_b'].shape[-1], jnp.float32
    else:
        Nout, odtype = bd.shape[-1], jnp.bfloat16
    in_specs = [pl.BlockSpec((1, Hp, Wp, Cin), lambda b: (b, 0, 0, 0))] + \
               [_wspec(a) for a in args[1:]]
    flops = 2 * B * Hin * Win * 9 * Cin * bd.shape[-1]
    if final:
        flops += 2 * B * Hin * Win * bd.shape[-1] * Nout
    bytes_acc = (xpad.size * xpad.dtype.itemsize + wd.size * 2
                 + B * Hin * Win * Nout * (4 if final else 2))
    return pl.pallas_call(
        partial(_deconv_kernel, Hin=Hin, Win=Win, fuse_final=final),
        out_shape=jax.ShapeDtypeStruct((B, Hin * Win, Nout), odtype),
        grid=(B,),
        in_specs=in_specs,
        out_specs=pl.BlockSpec((1, Hin * Win, Nout), lambda b: (b, 0, 0)),
        scratch_shapes=[pltpu.VMEM((Hin, Win, 9 * Cin), jnp.bfloat16)],
        compiler_params=_PARALLEL,
        cost_estimate=_cost(flops, bytes_acc),
    )(*args)


# ----------------------------- layout glue (cheap XLA ops) -------------------
def _pad_phase_split(x):
    # (B,H,W,C) -> pad by 1 -> 4 parity planes: (B*4, H/2+1, W/2+1, C)
    B, H, W, C = x.shape
    xp = jnp.pad(x, ((0, 0), (1, 1), (1, 1), (0, 0)))
    Hp, Wp = H + 2, W + 2
    ph = xp.reshape(B, Hp // 2, 2, Wp // 2, 2, C).transpose(0, 2, 4, 1, 3, 5)
    return ph.reshape(B * 4, Hp // 2, Wp // 2, C)


# ----------------------------- parameter prep (hoisted, one-time) ------------
def _bn_scale_bias(C, eps):
    # fresh init: gamma=1, beta=0, running_mean=0, running_var=1 (eval-mode)
    gamma = jnp.ones((C,), jnp.float32)
    beta = jnp.zeros((C,), jnp.float32)
    mean = jnp.zeros((C,), jnp.float32)
    var = jnp.ones((C,), jnp.float32)
    scale = gamma / jnp.sqrt(var + eps)
    bias = beta - mean * scale
    return scale, bias


def _fold_conv1x1(w, eps):
    # torch (Cout, Cin, 1, 1) -> folded f32 (Cin, Cout), bias (1, Cout)
    Cout, Cin = w.shape[:2]
    s, bb = _bn_scale_bias(Cout, eps)
    return jnp.transpose(w.reshape(Cout, Cin)) * s[None, :], bb.reshape(1, Cout)


def _fold_dw3x3(w, eps):
    # torch (C, 1, 3, 3) -> per-tap (9, 1, 1, C) f32, bias (1, 1, C)
    C = w.shape[0]
    s, bb = _bn_scale_bias(C, eps)
    wt = jnp.transpose(w.reshape(C, 9)).reshape(9, 1, 1, C) * s.reshape(1, 1, 1, C)
    return wt.astype(jnp.float32), bb.reshape(1, 1, C)


def _fold_deconv4x4(w, eps):
    # torch ConvTranspose2d weight (Cin, Cout, 4, 4) -> 3x3-window form with
    # the 4 output parities folded along N: (9*Cin, 4*Cout) bf16 (structural
    # zeros), bias tiled per parity (1, 4*Cout) f32.
    Cin, Cout = w.shape[:2]
    s, bb = _bn_scale_bias(Cout, eps)
    rmap = ({0: 3, 1: 1}, {1: 2, 2: 0})   # rmap[parity][window tap] = kernel idx
    W9 = jnp.zeros((9 * Cin, 4 * Cout), jnp.float32)
    for di in range(3):
        for dj in range(3):
            for pi in range(2):
                for pj in range(2):
                    if di in rmap[pi] and dj in rmap[pj]:
                        blk = w[:, :, rmap[pi][di], rmap[pj][dj]] * s[None, :]
                        W9 = W9.at[(di * 3 + dj) * Cin:(di * 3 + dj + 1) * Cin,
                                   (pi * 2 + pj) * Cout:(pi * 2 + pj + 1) * Cout
                                   ].set(blk)
    return W9.astype(jnp.bfloat16), jnp.tile(bb, 4).reshape(1, 4 * Cout)


def _prep_se(w1, b1, w2, b2):
    # layouts chosen so the in-kernel SE needs no transposes:
    # sw1 (Csq, C), sb1 (Csq, 1), sw2 (Csq, C) [= torch w2.T], sb2 (1, C)
    Csq, C = w1.shape[:2]
    return (w1.reshape(Csq, C).astype(jnp.float32),
            b1.reshape(Csq, 1).astype(jnp.float32),
            jnp.transpose(w2.reshape(C, Csq)).astype(jnp.float32),
            b2.reshape(1, C).astype(jnp.float32))


def prepare_params(p):
    w = {}
    # stem: taps stacked along K -> (27, 16)
    s, bb = _bn_scale_bias(16, BN_EPS_BACKBONE)
    w['stem_w'] = (jnp.transpose(p['stem_w'], (2, 3, 1, 0)).reshape(27, 16)
                   * s).astype(jnp.bfloat16)
    w['stem_b'] = bb.reshape(1, 16)
    # block1 (+ fused block2 expand)
    w['b1_dw_w'], w['b1_dw_b'] = _fold_dw3x3(p['b1_dw_w'], BN_EPS_BACKBONE)
    w['b1_se'] = _prep_se(p['b1_se_w1'], p['b1_se_b1'], p['b1_se_w2'], p['b1_se_b2'])
    wp, bp = _fold_conv1x1(p['b1_proj_w'], BN_EPS_BACKBONE)
    we, be = _fold_conv1x1(p['b2_exp_w'], BN_EPS_BACKBONE)
    w['b1_pe_w'] = (wp @ we).astype(jnp.bfloat16)        # linear proj @ expand
    w['b1_pe_b'] = bp @ we + be
    # block2 / block3 / last conv
    w['b2_dw_w'], w['b2_dw_b'] = _fold_dw3x3(p['b2_dw_w'], BN_EPS_BACKBONE)
    w2p, b2p = _fold_conv1x1(p['b2_proj_w'], BN_EPS_BACKBONE)
    w3e, b3e = _fold_conv1x1(p['b3_exp_w'], BN_EPS_BACKBONE)
    w['b2_proj_w'] = w2p.astype(jnp.bfloat16)
    w['b2_proj_b'] = b2p
    w['b23_pe_w'] = (w2p @ w3e).astype(jnp.bfloat16)      # linear proj @ expand
    w['b23_pe_b'] = b2p @ w3e + b3e
    w['b3_dw_w'], w['b3_dw_b'] = _fold_dw3x3(p['b3_dw_w'], BN_EPS_BACKBONE)
    w['b3_se'] = _prep_se(p['b3_se_w1'], p['b3_se_b1'], p['b3_se_w2'], p['b3_se_b2'])
    w3p, b3p = _fold_conv1x1(p['b3_proj_w'], BN_EPS_BACKBONE)
    w['b3_proj_w'] = w3p.astype(jnp.bfloat16)
    w['b3_proj_b'] = b3p
    wl, bl = _fold_conv1x1(p['last_w'], BN_EPS_BACKBONE)
    w['last_w'] = wl.astype(jnp.bfloat16)
    w['last_b'] = bl
    # deconvs (parities folded along N)
    w['dc1_w'], w['dc1_b'] = _fold_deconv4x4(p['dc1_w'], BN_EPS_DECONV)
    w['dc2_w'], w['dc2_b'] = _fold_deconv4x4(p['dc2_w'], BN_EPS_DECONV)
    # final 1x1 head: block-diagonal over the 4 output parities
    Cout, Cin = p['final_w'].shape[:2]
    wf = jnp.transpose(p['final_w'].reshape(Cout, Cin))
    w['final_w'] = jnp.kron(jnp.eye(4, dtype=jnp.float32), wf).astype(jnp.bfloat16)
    w['final_b'] = jnp.tile(p['final_b'], 4).reshape(1, 4 * Cout).astype(jnp.float32)
    return w


# ----------------------------- deterministic raw parameters ------------------
class KeyGen:
    def __init__(self, key):
        self.key = key

    def __call__(self):
        self.key, sub = jax.random.split(self.key)
        return sub


def kaiming(kg, shape, fan_out):
    return jax.random.normal(kg(), shape, jnp.float32) * jnp.sqrt(2.0 / fan_out)


def init_params(seed=0):
    # inverted_residual_setting:
    #   (16, 3, 16, 16, SE, RE, s2)   (16, 3, 32, 24, -, RE, s2)
    #   (24, 3, 32, 24, SE, HS, s1)
    # last_channel = 6*24 = 144 = feature_channels
    # NUM_DECONV_LAYERS=2, NUM_DECONV_FILTERS=[32,32], NUM_DECONV_KERNELS=[4,4]
    # NUM_JOINTS=8, FINAL_CONV_KERNEL=1, DECONV_WITH_BIAS=False
    kg = KeyGen(jax.random.PRNGKey(seed))
    sq16 = _make_divisible(16 // 4, 8)   # 8
    sq32 = _make_divisible(32 // 4, 8)   # 8
    p = {}
    p['stem_w'] = kaiming(kg, (16, 3, 3, 3), 16 * 9)
    p['b1_dw_w'] = kaiming(kg, (16, 1, 3, 3), 16 * 9)
    p['b1_se_w1'] = kaiming(kg, (sq16, 16, 1, 1), sq16)
    p['b1_se_b1'] = jnp.zeros((sq16,), jnp.float32)
    p['b1_se_w2'] = kaiming(kg, (16, sq16, 1, 1), 16)
    p['b1_se_b2'] = jnp.zeros((16,), jnp.float32)
    p['b1_proj_w'] = kaiming(kg, (16, 16, 1, 1), 16)
    p['b2_exp_w'] = kaiming(kg, (32, 16, 1, 1), 32)
    p['b2_dw_w'] = kaiming(kg, (32, 1, 3, 3), 32 * 9)
    p['b2_proj_w'] = kaiming(kg, (24, 32, 1, 1), 24)
    p['b3_exp_w'] = kaiming(kg, (32, 24, 1, 1), 32)
    p['b3_dw_w'] = kaiming(kg, (32, 1, 3, 3), 32 * 9)
    p['b3_se_w1'] = kaiming(kg, (sq32, 32, 1, 1), sq32)
    p['b3_se_b1'] = jnp.zeros((sq32,), jnp.float32)
    p['b3_se_w2'] = kaiming(kg, (32, sq32, 1, 1), 32)
    p['b3_se_b2'] = jnp.zeros((32,), jnp.float32)
    p['b3_proj_w'] = kaiming(kg, (24, 32, 1, 1), 24)
    p['last_w'] = kaiming(kg, (144, 24, 1, 1), 144)
    p['dc1_w'] = kaiming(kg, (144, 32, 4, 4), 144 * 16)
    p['dc2_w'] = kaiming(kg, (32, 32, 4, 4), 32 * 16)
    p['final_w'] = kaiming(kg, (NUM_JOINTS, 32, 1, 1), NUM_JOINTS)
    p['final_b'] = jnp.zeros((NUM_JOINTS,), jnp.float32)
    return p


# ----------------------------- forward ---------------------------------------
def pose_mobilenetv3_forward(prep, x_nchw):
    # input spatial dims must be divisible by 8
    x = jnp.transpose(x_nchw, (0, 2, 3, 1)).astype(jnp.float32)   # -> NHWC
    B, H, W, _ = x.shape
    # features[0]: Conv 3->16 k3 s2 p1 + BN + hardswish (single-matmul im2col)
    xp = jnp.pad(x, ((0, 0), (1, 1), (1, 1), (0, 0)))
    slab = jnp.concatenate(
        [xp[:, di:di + H:2, dj:dj + W:2, :]
         for di in range(3) for dj in range(3)], axis=-1).astype(jnp.bfloat16)
    x = _stem_call(prep, slab, B, H // 2, W // 2)
    # block1 (dw s2 + ReLU + SE + proj) fused with block2's 1x1 expand (ReLU)
    x = _block1_call(prep, _pad_phase_split(x), B, H // 4, W // 4)
    # block2 (dw s2 + ReLU + proj) + block3 (expand HS, dw s1 HS, SE, proj,
    # residual) + last backbone conv 24->144 (HS), all in one kernel
    x = _block23_call(prep, _pad_phase_split(x), B, H // 8, W // 8)
    # deconv1: ConvTranspose(144->32,k4,s2,p1)+BN+ReLU as ONE (M,1296)x(1296,128)
    # matmul (4 output parities along N -> lane-dense 128-wide bf16 output)
    Hd, Wd = H // 8, W // 8
    C1 = prep['dc1_b'].shape[-1] // 4
    y = _deconv_call(prep, 'dc1_w', 'dc1_b',
                     jnp.pad(x, ((0, 0), (1, 1), (1, 1), (0, 0))), B, Hd, Wd)
    y = y.reshape(B, Hd, Wd, 2, 2, C1).transpose(0, 1, 3, 2, 4, 5)
    y = y.reshape(B, 2 * Hd, 2 * Wd, C1)
    # deconv2 + BN + ReLU fused with the final 1x1 head (block-diag, bias)
    z = _deconv_call(prep, 'dc2_w', 'dc2_b',
                     jnp.pad(y, ((0, 0), (1, 1), (1, 1), (0, 0))),
                     B, 2 * Hd, 2 * Wd, final=True)
    z = z.reshape(B, 2 * Hd, 2 * Wd, 2, 2, NUM_JOINTS).transpose(0, 1, 3, 2, 4, 5)
    z = z.reshape(B, 4 * Hd, 4 * Wd, NUM_JOINTS)
    return jnp.transpose(z, (0, 3, 1, 2))    # -> NCHW heatmaps


if __name__ == "__main__":
    params = init_params(seed=0)
    prep = prepare_params(params)
    x = jax.random.normal(jax.random.PRNGKey(0), (2, 3, 32, 32), jnp.float32)
    fwd = jax.jit(partial(pose_mobilenetv3_forward, prep))
    out = fwd(x)
    jax.block_until_ready(out)
    assert out.shape == (2, NUM_JOINTS, 16, 16), out.shape
    assert out.dtype == jnp.float32
    print("KERNEL_OK")
</pallas_src>

<mosaic_0001>
module attributes {stable_mosaic.version = 11 : i64} {
  func.func @_stem_kernel(%arg0: i32, %arg1: memref<1x16x16x27xbf16, #tpu.memory_space<vmem>>, %arg2: memref<27x16xbf16, #tpu.memory_space<vmem>>, %arg3: memref<1x16xf32, #tpu.memory_space<vmem>>, %arg4: memref<1x16x16x16xf32, #tpu.memory_space<vmem>>) attributes {dimension_semantics = [#tpu.dimension_semantics<parallel>], iteration_bounds = array<i64: 2>, scalar_prefetch = 0 : i64, scratch_operands = 0 : i64, tpu.core_type = #tpu.core_type<tc>, window_params = [{transform_indices = @transform_0, window_bounds = array<i64: 1, 16, 16, 27>}, {pipeline_mode = #tpu.pipeline_mode<synchronous>, transform_indices = @transform_1, window_bounds = array<i64: 27, 16>}, {pipeline_mode = #tpu.pipeline_mode<synchronous>, transform_indices = @transform_2, window_bounds = array<i64: 1, 16>}, {transform_indices = @transform_3, window_bounds = array<i64: 1, 16, 16, 16>}]} {
    %c0 = arith.constant 0 : index
    %c0_0 = arith.constant 0 : index
    %c0_1 = arith.constant 0 : index
    %c0_2 = arith.constant 0 : index
    %0 = vector.load %arg1[%c0, %c0_0, %c0_1, %c0_2] : memref<1x16x16x27xbf16, #tpu.memory_space<vmem>>, vector<1x16x16x27xbf16>
    %1 = vector.shape_cast %0 : vector<1x16x16x27xbf16> to vector<256x27xbf16>
    %c0_3 = arith.constant 0 : index
    %c0_4 = arith.constant 0 : index
    %2 = vector.load %arg2[%c0_3, %c0_4] : memref<27x16xbf16, #tpu.memory_space<vmem>>, vector<27x16xbf16>
    %cst = arith.constant dense<0.000000e+00> : vector<256x16xf32>
    %3 = tpu.matmul %1, %2, %cst {dimension_numbers = #tpu.dot_dimension_numbers<[1], [0], [0], [1], [0, 0, 1, 1], [], []>} : vector<256x27xbf16>, vector<27x16xbf16>, vector<256x16xf32> -> vector<256x16xf32>
    %c0_5 = arith.constant 0 : index
    %c0_6 = arith.constant 0 : index
    %4 = vector.load %arg3[%c0_5, %c0_6] : memref<1x16xf32, #tpu.memory_space<vmem>>, vector<1x16xf32>
    %5 = vector.broadcast %4 : vector<1x16xf32> to vector<256x16xf32>
    %6 = arith.addf %3, %5 : vector<256x16xf32>
    %cst_7 = arith.constant 3.000000e+00 : f32
    %7 = vector.broadcast %cst_7 : f32 to vector<256x16xf32>
    %8 = arith.addf %6, %7 : vector<256x16xf32>
    %cst_8 = arith.constant 0.000000e+00 : f32
    %cst_9 = arith.constant 6.000000e+00 : f32
    %9 = vector.broadcast %cst_8 : f32 to vector<256x16xf32>
    %10 = arith.maximumf %9, %8 : vector<256x16xf32>
    %11 = vector.broadcast %cst_9 : f32 to vector<256x16xf32>
    %12 = arith.minimumf %11, %10 : vector<256x16xf32>
    %13 = arith.mulf %6, %12 : vector<256x16xf32>
    %cst_10 = arith.constant 0.166666672 : f32
    %14 = vector.broadcast %cst_10 : f32 to vector<256x16xf32>
    %15 = arith.mulf %13, %14 : vector<256x16xf32>
    %16 = vector.shape_cast %15 : vector<256x16xf32> to vector<1x16x16x16xf32>
    %c0_11 = arith.constant 0 : index
    %c0_12 = arith.constant 0 : index
    %c0_13 = arith.constant 0 : index
    %c0_14 = arith.constant 0 : index
    %17 = vector.load %arg4[%c0_11, %c0_12, %c0_13, %c0_14] : memref<1x16x16x16xf32, #tpu.memory_space<vmem>>, vector<1x16x16x16xf32>
    tpu.vector_store %arg4[%c0_11, %c0_12, %c0_13, %c0_14], %16 {strides = array<i32>} : memref<1x16x16x16xf32, #tpu.memory_space<vmem>>, vector<1x16x16x16xf32>,
    return
  }
  func.func @transform_0(%arg0: i32) -> (i32, i32, i32, i32) {
    %c0_i32 = arith.constant 0 : i32
    %c0_i32_0 = arith.constant 0 : i32
    %c0_i32_1 = arith.constant 0 : i32
    %c0_i32_2 = arith.constant 0 : i32
    return %arg0, %c0_i32, %c0_i32_0, %c0_i32_1 : i32, i32, i32, i32
  }
  func.func @transform_1(%arg0: i32) -> (i32, i32) {
    %c0_i32 = arith.constant 0 : i32
    %c0_i32_0 = arith.constant 0 : i32
    %c0_i32_1 = arith.constant 0 : i32
    return %c0_i32, %c0_i32_0 : i32, i32
  }
  func.func @transform_2(%arg0: i32) -> (i32, i32) {
    %c0_i32 = arith.constant 0 : i32
    %c0_i32_0 = arith.constant 0 : i32
    %c0_i32_1 = arith.constant 0 : i32
    return %c0_i32, %c0_i32_0 : i32, i32
  }
  func.func @transform_3(%arg0: i32) -> (i32, i32, i32, i32) {
    %c0_i32 = arith.constant 0 : i32
    %c0_i32_0 = arith.constant 0 : i32
    %c0_i32_1 = arith.constant 0 : i32
    %c0_i32_2 = arith.constant 0 : i32
    return %arg0, %c0_i32, %c0_i32_0, %c0_i32_1 : i32, i32, i32, i32
  }
}

module attributes {stable_mosaic.version = 11 : i64} {
  func.func @_block1_kernel(%arg0: i32, %arg1: memref<4x9x9x16xf32, #tpu.memory_space<vmem>>, %arg2: memref<9x1x1x16xf32, #tpu.memory_space<vmem>>, %arg3: memref<1x1x16xf32, #tpu.memory_space<vmem>>, %arg4: memref<8x16xf32, #tpu.memory_space<vmem>>, %arg5: memref<8x1xf32, #tpu.memory_space<vmem>>, %arg6: memref<8x16xf32, #tpu.memory_space<vmem>>, %arg7: memref<1x16xf32, #tpu.memory_space<vmem>>, %arg8: memref<16x32xbf16, #tpu.memory_space<vmem>>, %arg9: memref<1x32xf32, #tpu.memory_space<vmem>>, %arg10: memref<1x8x8x32xf32, #tpu.memory_space<vmem>>) attributes {dimension_semantics = [#tpu.dimension_semantics<parallel>], iteration_bounds = array<i64: 2>, scalar_prefetch = 0 : i64, scratch_operands = 0 : i64, tpu.core_type = #tpu.core_type<tc>, window_params = [{transform_indices = @transform_0, window_bounds = array<i64: 4, 9, 9, 16>}, {pipeline_mode = #tpu.pipeline_mode<synchronous>, transform_indices = @transform_1, window_bounds = array<i64: 9, 1, 1, 16>}, {pipeline_mode = #tpu.pipeline_mode<synchronous>, transform_indices = @transform_2, window_bounds = array<i64: 1, 1, 16>}, {pipeline_mode = #tpu.pipeline_mode<synchronous>, transform_indices = @transform_3, window_bounds = array<i64: 8, 16>}, {pipeline_mode = #tpu.pipeline_mode<synchronous>, transform_indices = @transform_4, window_bounds = array<i64: 8, 1>}, {pipeline_mode = #tpu.pipeline_mode<synchronous>, transform_indices = @transform_5, window_bounds = array<i64: 8, 16>}, {pipeline_mode = #tpu.pipeline_mode<synchronous>, transform_indices = @transform_6, window_bounds = array<i64: 1, 16>}, {pipeline_mode = #tpu.pipeline_mode<synchronous>, transform_indices = @transform_7, window_bounds = array<i64: 16, 32>}, {pipeline_mode = #tpu.pipeline_mode<synchronous>, transform_indices = @transform_8, window_bounds = array<i64: 1, 32>}, {transform_indices = @transform_9, window_bounds = array<i64: 1, 8, 8, 32>}]} {
    %cst = arith.constant 0.000000e+00 : f32
    %0 = vector.broadcast %cst : f32 to vector<8x8x16xf32>
    %c0 = arith.constant 0 : index
    %c0_0 = arith.constant 0 : index
    %c0_1 = arith.constant 0 : index
    %c0_2 = arith.constant 0 : index
    %1 = vector.load %arg1[%c0, %c0_0, %c0_1, %c0_2] : memref<4x9x9x16xf32, #tpu.memory_space<vmem>>, vector<1x8x8x16xf32>
    %2 = vector.shape_cast %1 : vector<1x8x8x16xf32> to vector<8x8x16xf32>
    %c0_3 = arith.constant 0 : index
    %c0_4 = arith.constant 0 : index
    %c0_5 = arith.constant 0 : index
    %c0_6 = arith.constant 0 : index
    %3 = vector.load %arg2[%c0_3, %c0_4, %c0_5, %c0_6] : memref<9x1x1x16xf32, #tpu.memory_space<vmem>>, vector<1x1x1x16xf32>
    %4 = vector.shape_cast %3 : vector<1x1x1x16xf32> to vector<1x1x16xf32>
    %5 = vector.broadcast %4 : vector<1x1x16xf32> to vector<8x8x16xf32>
    %6 = arith.mulf %2, %5 : vector<8x8x16xf32>
    %7 = arith.addf %0, %6 : vector<8x8x16xf32>
    %c1 = arith.constant 1 : index
    %c0_7 = arith.constant 0 : index
    %c0_8 = arith.constant 0 : index
    %c0_9 = arith.constant 0 : index
    %8 = vector.load %arg1[%c1, %c0_7, %c0_8, %c0_9] : memref<4x9x9x16xf32, #tpu.memory_space<vmem>>, vector<1x8x8x16xf32>
    %9 = vector.shape_cast %8 : vector<1x8x8x16xf32> to vector<8x8x16xf32>
    %c1_10 = arith.constant 1 : index
    %c0_11 = arith.constant 0 : index
    %c0_12 = arith.constant 0 : index
    %c0_13 = arith.constant 0 : index
    %10 = vector.load %arg2[%c1_10, %c0_11, %c0_12, %c0_13] : memref<9x1x1x16xf32, #tpu.memory_space<vmem>>, vector<1x1x1x16xf32>
    %11 = vector.shape_cast %10 : vector<1x1x1x16xf32> to vector<1x1x16xf32>
    %12 = vector.broadcast %11 : vector<1x1x16xf32> to vector<8x8x16xf32>
    %13 = arith.mulf %9, %12 : vector<8x8x16xf32>
    %14 = arith.addf %7, %13 : vector<8x8x16xf32>
    %c0_14 = arith.constant 0 : index
    %c0_15 = arith.constant 0 : index
    %c1_16 = arith.constant 1 : index
    %c0_17 = arith.constant 0 : index
    %15 = vector.load %arg1[%c0_14, %c0_15, %c1_16, %c0_17] : memref<4x9x9x16xf32, #tpu.memory_space<vmem>>, vector<1x8x8x16xf32>
    %16 = vector.shape_cast %15 : vector<1x8x8x16xf32> to vector<8x8x16xf32>
    %c2 = arith.constant 2 : index
    %c0_18 = arith.constant 0 : index
    %c0_19 = arith.constant 0 : index
    %c0_20 = arith.constant 0 : index
    %17 = vector.load %arg2[%c2, %c0_18, %c0_19, %c0_20] : memref<9x1x1x16xf32, #tpu.memory_space<vmem>>, vector<1x1x1x16xf32>
    %18 = vector.shape_cast %17 : vector<1x1x1x16xf32> to vector<1x1x16xf32>
    %19 = vector.broadcast %18 : vector<1x1x16xf32> to vector<8x8x16xf32>
    %20 = arith.mulf %16, %19 : vector<8x8x16xf32>
    %21 = arith.addf %14, %20 : vector<8x8x16xf32>
    %c2_21 = arith.constant 2 : index
    %c0_22 = arith.constant 0 : index
    %c0_23 = arith.constant 0 : index
    %c0_24 = arith.constant 0 : index
    %22 = vector.load %arg1[%c2_21, %c0_22, %c0_23, %c0_24] : memref<4x9x9x16xf32, #tpu.memory_space<vmem>>, vector<1x8x8x16xf32>
    %23 = vector.shape_cast %22 : vector<1x8x8x16xf32> to vector<8x8x16xf32>
    %c3 = arith.constant 3 : index
    %c0_25 = arith.constant 0 : index
    %c0_26 = arith.constant 0 : index
    %c0_27 = arith.constant 0 : index
    %24 = vector.load %arg2[%c3, %c0_25, %c0_26, %c0_27] : memref<9x1x1x16xf32, #tpu.memory_space<vmem>>, vector<1x1x1x16xf32>
    %25 = vector.shape_cast %24 : vector<1x1x1x16xf32> to vector<1x1x16xf32>
    %26 = vector.broadcast %25 : vector<1x1x16xf32> to vector<8x8x16xf32>
    %27 = arith.mulf %23, %26 : vector<8x8x16xf32>
    %28 = arith.addf %21, %27 : vector<8x8x16xf32>
    %c3_28 = arith.constant 3 : index
    %c0_29 = arith.constant 0 : index
    %c0_30 = arith.constant 0 : index
    %c0_31 = arith.constant 0 : index
    %29 = vector.load %arg1[%c3_28, %c0_29, %c0_30, %c0_31] : memref<4x9x9x16xf32, #tpu.memory_space<vmem>>, vector<1x8x8x16xf32>
    %30 = vector.shape_cast %29 : vector<1x8x8x16xf32> to vector<8x8x16xf32>
    %c4 = arith.constant 4 : index
    %c0_32 = arith.constant 0 : index
    %c0_33 = arith.constant 0 : index
    %c0_34 = arith.constant 0 : index
    %31 = vector.load %arg2[%c4, %c0_32, %c0_33, %c0_34] : memref<9x1x1x16xf32, #tpu.memory_space<vmem>>, vector<1x1x1x16xf32>
    %32 = vector.shape_cast %31 : vector<1x1x1x16xf32> to vector<1x1x16xf32>
    %33 = vector.broadcast %32 : vector<1x1x16xf32> to vector<8x8x16xf32>
    %34 = arith.mulf %30, %33 : vector<8x8x16xf32>
    %35 = arith.addf %28, %34 : vector<8x8x16xf32>
    %c2_35 = arith.constant 2 : index
    %c0_36 = arith.constant 0 : index
    %c1_37 = arith.constant 1 : index
    %c0_38 = arith.constant 0 : index
    %36 = vector.load %arg1[%c2_35, %c0_36, %c1_37, %c0_38] : memref<4x9x9x16xf32, #tpu.memory_space<vmem>>, vector<1x8x8x16xf32>
    %37 = vector.shape_cast %36 : vector<1x8x8x16xf32> to vector<8x8x16xf32>
    %c5 = arith.constant 5 : index
    %c0_39 = arith.constant 0 : index
    %c0_40 = arith.constant 0 : index
    %c0_41 = arith.constant 0 : index
    %38 = vector.load %arg2[%c5, %c0_39, %c0_40, %c0_41] : memref<9x1x1x16xf32, #tpu.memory_space<vmem>>, vector<1x1x1x16xf32>
    %39 = vector.shape_cast %38 : vector<1x1x1x16xf32> to vector<1x1x16xf32>
    %40 = vector.broadcast %39 : vector<1x1x16xf32> to vector<8x8x16xf32>
    %41 = arith.mulf %37, %40 : vector<8x8x16xf32>
    %42 = arith.addf %35, %41 : vector<8x8x16xf32>
    %c0_42 = arith.constant 0 : index
    %c1_43 = arith.constant 1 : index
    %c0_44 = arith.constant 0 : index
    %c0_45 = arith.constant 0 : index
    %43 = vector.load %arg1[%c0_42, %c1_43, %c0_44, %c0_45] : memref<4x9x9x16xf32, #tpu.memory_space<vmem>>, vector<1x8x8x16xf32>
    %44 = vector.shape_cast %43 : vector<1x8x8x16xf32> to vector<8x8x16xf32>
    %c6 = arith.constant 6 : index
    %c0_46 = arith.constant 0 : index
    %c0_47 = arith.constant 0 : index
    %c0_48 = arith.constant 0 : index
    %45 = vector.load %arg2[%c6, %c0_46, %c0_47, %c0_48] : memref<9x1x1x16xf32, #tpu.memory_space<vmem>>, vector<1x1x1x16xf32>
    %46 = vector.shape_cast %45 : vector<1x1x1x16xf32> to vector<1x1x16xf32>
    %47 = vector.broadcast %46 : vector<1x1x16xf32> to vector<8x8x16xf32>
    %48 = arith.mulf %44, %47 : vector<8x8x16xf32>
    %49 = arith.addf %42, %48 : vector<8x8x16xf32>
    %c1_49 = arith.constant 1 : index
    %c1_50 = arith.constant 1 : index
    %c0_51 = arith.constant 0 : index
    %c0_52 = arith.constant 0 : index
    %50 = vector.load %arg1[%c1_49, %c1_50, %c0_51, %c0_52] : memref<4x9x9x16xf32, #tpu.memory_space<vmem>>, vector<1x8x8x16xf32>
    %51 = vector.shape_cast %50 : vector<1x8x8x16xf32> to vector<8x8x16xf32>
    %c7 = arith.constant 7 : index
    %c0_53 = arith.constant 0 : index
    %c0_54 = arith.constant 0 : index
    %c0_55 = arith.constant 0 : index
    %52 = vector.load %arg2[%c7, %c0_53, %c0_54, %c0_55] : memref<9x1x1x16xf32, #tpu.memory_space<vmem>>, vector<1x1x1x16xf32>
    %53 = vector.shape_cast %52 : vector<1x1x1x16xf32> to vector<1x1x16xf32>
    %54 = vector.broadcast %53 : vector<1x1x16xf32> to vector<8x8x16xf32>
    %55 = arith.mulf %51, %54 : vector<8x8x16xf32>
    %56 = arith.addf %49, %55 : vector<8x8x16xf32>
    %c0_56 = arith.constant 0 : index
    %c1_57 = arith.constant 1 : index
    %c1_58 = arith.constant 1 : index
    %c0_59 = arith.constant 0 : index
    %57 = vector.load %arg1[%c0_56, %c1_57, %c1_58, %c0_59] : memref<4x9x9x16xf32, #tpu.memory_space<vmem>>, vector<1x8x8x16xf32>
    %58 = vector.shape_cast %57 : vector<1x8x8x16xf32> to vector<8x8x16xf32>
    %c8 = arith.constant 8 : index
    %c0_60 = arith.constant 0 : index
    %c0_61 = arith.constant 0 : index
    %c0_62 = arith.constant 0 : index
    %59 = vector.load %arg2[%c8, %c0_60, %c0_61, %c0_62] : memref<9x1x1x16xf32, #tpu.memory_space<vmem>>, vector<1x1x1x16xf32>
    %60 = vector.shape_cast %59 : vector<1x1x1x16xf32> to vector<1x1x16xf32>
    %61 = vector.broadcast %60 : vector<1x1x16xf32> to vector<8x8x16xf32>
    %62 = arith.mulf %58, %61 : vector<8x8x16xf32>
    %63 = arith.addf %56, %62 : vector<8x8x16xf32>
    %c0_63 = arith.constant 0 : index
    %c0_64 = arith.constant 0 : index
    %c0_65 = arith.constant 0 : index
    %64 = vector.load %arg3[%c0_63, %c0_64, %c0_65] : memref<1x1x16xf32, #tpu.memory_space<vmem>>, vector<1x1x16xf32>
    %65 = vector.broadcast %64 : vector<1x1x16xf32> to vector<8x8x16xf32>
    %66 = arith.addf %63, %65 : vector<8x8x16xf32>
    %cst_66 = arith.constant 0.000000e+00 : f32
    %67 = vector.broadcast %cst_66 : f32 to vector<8x8x16xf32>
    %68 = arith.maximumf %66, %67 : vector<8x8x16xf32>
    %69 = vector.shape_cast %68 : vector<8x8x16xf32> to vector<64x16xf32>
    %c0_67 = arith.constant 0 : index
    %c0_68 = arith.constant 0 : index
    %70 = vector.load %arg4[%c0_67, %c0_68] : memref<8x16xf32, #tpu.memory_space<vmem>>, vector<8x16xf32>
    %c0_69 = arith.constant 0 : index
    %c0_70 = arith.constant 0 : index
    %71 = vector.load %arg5[%c0_69, %c0_70] : memref<8x1xf32, #tpu.memory_space<vmem>>, vector<8x1xf32>
    %c0_71 = arith.constant 0 : index
    %c0_72 = arith.constant 0 : index
    %72 = vector.load %arg6[%c0_71, %c0_72] : memref<8x16xf32, #tpu.memory_space<vmem>>, vector<8x16xf32>
    %c0_73 = arith.constant 0 : index
    %c0_74 = arith.constant 0 : index
    %73 = vector.load %arg7[%c0_73, %c0_74] : memref<1x16xf32, #tpu.memory_space<vmem>>, vector<1x16xf32>
    %cst_75 = arith.constant dense<0.000000e+00> : vector<16xf32>
    %74 = vector.multi_reduction <add>, %69, %cst_75 [0] : vector<64x16xf32> to vector<16xf32>
    %75 = vector.shape_cast %74 : vector<16xf32> to vector<1x16xf32>
    %cst_76 = arith.constant 6.400000e+01 : f32
    %76 = vector.broadcast %cst_76 : f32 to vector<1x16xf32>
    %77 = arith.divf %75, %76 : vector<1x16xf32>
    %78 = vector.broadcast %77 : vector<1x16xf32> to vector<8x16xf32>
    %79 = arith.mulf %78, %70 : vector<8x16xf32>
    %cst_77 = arith.constant dense<0.000000e+00> : vector<8xf32>
    %80 = vector.multi_reduction <add>, %79, %cst_77 [1] : vector<8x16xf32> to vector<8xf32>
    %81 = vector.shape_cast %80 : vector<8xf32> to vector<8x1xf32>
    %82 = arith.addf %81, %71 : vector<8x1xf32>
    %cst_78 = arith.constant 0.000000e+00 : f32
    %83 = vector.broadcast %cst_78 : f32 to vector<8x1xf32>
    %84 = arith.maximumf %82, %83 : vector<8x1xf32>
    %85 = vector.broadcast %84 : vector<8x1xf32> to vector<8x16xf32>
    %86 = arith.mulf %85, %72 : vector<8x16xf32>
    %cst_79 = arith.constant dense<0.000000e+00> : vector<16xf32>
    %87 = vector.multi_reduction <add>, %86, %cst_79 [0] : vector<8x16xf32> to vector<16xf32>
    %88 = vector.shape_cast %87 : vector<16xf32> to vector<1x16xf32>
    %89 = arith.addf %88, %73 : vector<1x16xf32>
    %cst_80 = arith.constant 3.000000e+00 : f32
    %90 = vector.broadcast %cst_80 : f32 to vector<1x16xf32>
    %91 = arith.addf %89, %90 : vector<1x16xf32>
    %cst_81 = arith.constant 0.000000e+00 : f32
    %cst_82 = arith.constant 6.000000e+00 : f32
    %92 = vector.broadcast %cst_81 : f32 to vector<1x16xf32>
    %93 = arith.maximumf %92, %91 : vector<1x16xf32>
    %94 = vector.broadcast %cst_82 : f32 to vector<1x16xf32>
    %95 = arith.minimumf %94, %93 : vector<1x16xf32>
    %cst_83 = arith.constant 0.166666672 : f32
    %96 = vector.broadcast %cst_83 : f32 to vector<1x16xf32>
    %97 = arith.mulf %95, %96 : vector<1x16xf32>
    %98 = vector.broadcast %97 : vector<1x16xf32> to vector<64x16xf32>
    %99 = arith.mulf %69, %98 : vector<64x16xf32>
    %100 = arith.truncf %99 : vector<64x16xf32> to vector<64x16xbf16>
    %c0_84 = arith.constant 0 : index
    %c0_85 = arith.constant 0 : index
    %101 = vector.load %arg8[%c0_84, %c0_85] : memref<16x32xbf16, #tpu.memory_space<vmem>>, vector<16x32xbf16>
    %cst_86 = arith.constant dense<0.000000e+00> : vector<64x32xf32>
    %102 = tpu.matmul %100, %101, %cst_86 {dimension_numbers = #tpu.dot_dimension_numbers<[1], [0], [0], [1], [0, 0, 1, 1], [], []>} : vector<64x16xbf16>, vector<16x32xbf16>, vector<64x32xf32> -> vector<64x32xf32>
    %c0_87 = arith.constant 0 : index
    %c0_88 = arith.constant 0 : index
    %103 = vector.load %arg9[%c0_87, %c0_88] : memref<1x32xf32, #tpu.memory_space<vmem>>, vector<1x32xf32>
    %104 = vector.broadcast %103 : vector<1x32xf32> to vector<64x32xf32>
    %105 = arith.addf %102, %104 : vector<64x32xf32>
    %cst_89 = arith.constant 0.000000e+00 : f32
    %106 = vector.broadcast %cst_89 : f32 to vector<64x32xf32>
    %107 = arith.maximumf %105, %106 : vector<64x32xf32>
    %108 = vector.shape_cast %107 : vector<64x32xf32> to vector<1x8x8x32xf32>
    %c0_90 = arith.constant 0 : index
    %c0_91 = arith.constant 0 : index
    %c0_92 = arith.constant 0 : index
    %c0_93 = arith.constant 0 : index
    %109 = vector.load %arg10[%c0_90, %c0_91, %c0_92, %c0_93] : memref<1x8x8x32xf32, #tpu.memory_space<vmem>>, vector<1x8x8x32xf32>
    tpu.vector_store %arg10[%c0_90, %c0_91, %c0_92, %c0_93], %108 {strides = array<i32>} : memref<1x8x8x32xf32, #tpu.memory_space<vmem>>, vector<1x8x8x32xf32>,
    return
  }
  func.func @transform_0(%arg0: i32) -> (i32, i32, i32, i32) {
    %c0_i32 = arith.constant 0 : i32
    %c0_i32_0 = arith.constant 0 : i32
    %c0_i32_1 = arith.constant 0 : i32
    %c0_i32_2 = arith.constant 0 : i32
    return %arg0, %c0_i32, %c0_i32_0, %c0_i32_1 : i32, i32, i32, i32
  }
  func.func @transform_1(%arg0: i32) -> (i32, i32, i32, i32) {
    %c0_i32 = arith.constant 0 : i32
    %c0_i32_0 = arith.constant 0 : i32
    %c0_i32_1 = arith.constant 0 : i32
    %c0_i32_2 = arith.constant 0 : i32
    %c0_i32_3 = arith.constant 0 : i32
    return %c0_i32, %c0_i32_0, %c0_i32_1, %c0_i32_2 : i32, i32, i32, i32
  }
  func.func @transform_2(%arg0: i32) -> (i32, i32, i32) {
    %c0_i32 = arith.constant 0 : i32
    %c0_i32_0 = arith.constant 0 : i32
    %c0_i32_1 = arith.constant 0 : i32
    %c0_i32_2 = arith.constant 0 : i32
    return %c0_i32, %c0_i32_0, %c0_i32_1 : i32, i32, i32
  }
  func.func @transform_3(%arg0: i32) -> (i32, i32) {
    %c0_i32 = arith.constant 0 : i32
    %c0_i32_0 = arith.constant 0 : i32
    %c0_i32_1 = arith.constant 0 : i32
    return %c0_i32, %c0_i32_0 : i32, i32
  }
  func.func @transform_4(%arg0: i32) -> (i32, i32) {
    %c0_i32 = arith.constant 0 : i32
    %c0_i32_0 = arith.constant 0 : i32
    %c0_i32_1 = arith.constant 0 : i32
    return %c0_i32, %c0_i32_0 : i32, i32
  }
  func.func @transform_5(%arg0: i32) -> (i32, i32) {
    %c0_i32 = arith.constant 0 : i32
    %c0_i32_0 = arith.constant 0 : i32
    %c0_i32_1 = arith.constant 0 : i32
    return %c0_i32, %c0_i32_0 : i32, i32
  }
  func.func @transform_6(%arg0: i32) -> (i32, i32) {
    %c0_i32 = arith.constant 0 : i32
    %c0_i32_0 = arith.constant 0 : i32
    %c0_i32_1 = arith.constant 0 : i32
    return %c0_i32, %c0_i32_0 : i32, i32
  }
  func.func @transform_7(%arg0: i32) -> (i32, i32) {
    %c0_i32 = arith.constant 0 : i32
    %c0_i32_0 = arith.constant 0 : i32
    %c0_i32_1 = arith.constant 0 : i32
    return %c0_i32, %c0_i32_0 : i32, i32
  }
  func.func @transform_8(%arg0: i32) -> (i32, i32) {
    %c0_i32 = arith.constant 0 : i32
    %c0_i32_0 = arith.constant 0 : i32
    %c0_i32_1 = arith.constant 0 : i32
    return %c0_i32, %c0_i32_0 : i32, i32
  }
  func.func @transform_9(%arg0: i32) -> (i32, i32, i32, i32) {
    %c0_i32 = arith.constant 0 : i32
    %c0_i32_0 = arith.constant 0 : i32
    %c0_i32_1 = arith.constant 0 : i32
    %c0_i32_2 = arith.constant 0 : i32
    return %arg0, %c0_i32, %c0_i32_0, %c0_i32_1 : i32, i32, i32, i32
  }
}

module attributes {stable_mosaic.version = 11 : i64} {
  func.func @_block23_kernel(%arg0: i32, %arg1: memref<4x5x5x32xf32, #tpu.memory_space<vmem>>, %arg2: memref<9x1x1x32xf32, #tpu.memory_space<vmem>>, %arg3: memref<1x1x32xf32, #tpu.memory_space<vmem>>, %arg4: memref<32x24xbf16, #tpu.memory_space<vmem>>, %arg5: memref<1x24xf32, #tpu.memory_space<vmem>>, %arg6: memref<32x32xbf16, #tpu.memory_space<vmem>>, %arg7: memref<1x32xf32, #tpu.memory_space<vmem>>, %arg8: memref<9x1x1x32xf32, #tpu.memory_space<vmem>>, %arg9: memref<1x1x32xf32, #tpu.memory_space<vmem>>, %arg10: memref<8x32xf32, #tpu.memory_space<vmem>>, %arg11: memref<8x1xf32, #tpu.memory_space<vmem>>, %arg12: memref<8x32xf32, #tpu.memory_space<vmem>>, %arg13: memref<1x32xf32, #tpu.memory_space<vmem>>, %arg14: memref<32x24xbf16, #tpu.memory_space<vmem>>, %arg15: memref<1x24xf32, #tpu.memory_space<vmem>>, %arg16: memref<24x144xbf16, #tpu.memory_space<vmem>>, %arg17: memref<1x144xf32, #tpu.memory_space<vmem>>, %arg18: memref<1x4x4x144xbf16, #tpu.memory_space<vmem>>, %arg19: memref<6x6x32xf32, #tpu.memory_space<vmem>>) attributes {dimension_semantics = [#tpu.dimension_semantics<parallel>], iteration_bounds = array<i64: 2>, scalar_prefetch = 0 : i64, scratch_operands = 1 : i64, tpu.core_type = #tpu.core_type<tc>, window_params = [{transform_indices = @transform_0, window_bounds = array<i64: 4, 5, 5, 32>}, {pipeline_mode = #tpu.pipeline_mode<synchronous>, transform_indices = @transform_1, window_bounds = array<i64: 9, 1, 1, 32>}, {pipeline_mode = #tpu.pipeline_mode<synchronous>, transform_indices = @transform_2, window_bounds = array<i64: 1, 1, 32>}, {pipeline_mode = #tpu.pipeline_mode<synchronous>, transform_indices = @transform_3, window_bounds = array<i64: 32, 24>}, {pipeline_mode = #tpu.pipeline_mode<synchronous>, transform_indices = @transform_4, window_bounds = array<i64: 1, 24>}, {pipeline_mode = #tpu.pipeline_mode<synchronous>, transform_indices = @transform_5, window_bounds = array<i64: 32, 32>}, {pipeline_mode = #tpu.pipeline_mode<synchronous>, transform_indices = @transform_6, window_bounds = array<i64: 1, 32>}, {pipeline_mode = #tpu.pipeline_mode<synchronous>, transform_indices = @transform_7, window_bounds = array<i64: 9, 1, 1, 32>}, {pipeline_mode = #tpu.pipeline_mode<synchronous>, transform_indices = @transform_8, window_bounds = array<i64: 1, 1, 32>}, {pipeline_mode = #tpu.pipeline_mode<synchronous>, transform_indices = @transform_9, window_bounds = array<i64: 8, 32>}, {pipeline_mode = #tpu.pipeline_mode<synchronous>, transform_indices = @transform_10, window_bounds = array<i64: 8, 1>}, {pipeline_mode = #tpu.pipeline_mode<synchronous>, transform_indices = @transform_11, window_bounds = array<i64: 8, 32>}, {pipeline_mode = #tpu.pipeline_mode<synchronous>, transform_indices = @transform_12, window_bounds = array<i64: 1, 32>}, {pipeline_mode = #tpu.pipeline_mode<synchronous>, transform_indices = @transform_13, window_bounds = array<i64: 32, 24>}, {pipeline_mode = #tpu.pipeline_mode<synchronous>, transform_indices = @transform_14, window_bounds = array<i64: 1, 24>}, {pipeline_mode = #tpu.pipeline_mode<synchronous>, transform_indices = @transform_15, window_bounds = array<i64: 24, 144>}, {pipeline_mode = #tpu.pipeline_mode<synchronous>, transform_indices = @transform_16, window_bounds = array<i64: 1, 144>}, {transform_indices = @transform_17, window_bounds = array<i64: 1, 4, 4, 144>}]} {
    %cst = arith.constant 0.000000e+00 : f32
    %0 = vector.broadcast %cst : f32 to vector<4x4x32xf32>
    %c0 = arith.constant 0 : index
    %c0_0 = arith.constant 0 : index
    %c0_1 = arith.constant 0 : index
    %c0_2 = arith.constant 0 : index
    %1 = vector.load %arg1[%c0, %c0_0, %c0_1, %c0_2] : memref<4x5x5x32xf32, #tpu.memory_space<vmem>>, vector<1x4x4x32xf32>
    %2 = vector.shape_cast %1 : vector<1x4x4x32xf32> to vector<4x4x32xf32>
    %c0_3 = arith.constant 0 : index
    %c0_4 = arith.constant 0 : index
    %c0_5 = arith.constant 0 : index
    %c0_6 = arith.constant 0 : index
    %3 = vector.load %arg2[%c0_3, %c0_4, %c0_5, %c0_6] : memref<9x1x1x32xf32, #tpu.memory_space<vmem>>, vector<1x1x1x32xf32>
    %4 = vector.shape_cast %3 : vector<1x1x1x32xf32> to vector<1x1x32xf32>
    %5 = vector.broadcast %4 : vector<1x1x32xf32> to vector<4x4x32xf32>
    %6 = arith.mulf %2, %5 : vector<4x4x32xf32>
    %7 = arith.addf %0, %6 : vector<4x4x32xf32>
    %c1 = arith.constant 1 : index
    %c0_7 = arith.constant 0 : index
    %c0_8 = arith.constant 0 : index
    %c0_9 = arith.constant 0 : index
    %8 = vector.load %arg1[%c1, %c0_7, %c0_8, %c0_9] : memref<4x5x5x32xf32, #tpu.memory_space<vmem>>, vector<1x4x4x32xf32>
    %9 = vector.shape_cast %8 : vector<1x4x4x32xf32> to vector<4x4x32xf32>
    %c1_10 = arith.constant 1 : index
    %c0_11 = arith.constant 0 : index
    %c0_12 = arith.constant 0 : index
    %c0_13 = arith.constant 0 : index
    %10 = vector.load %arg2[%c1_10, %c0_11, %c0_12, %c0_13] : memref<9x1x1x32xf32, #tpu.memory_space<vmem>>, vector<1x1x1x32xf32>
    %11 = vector.shape_cast %10 : vector<1x1x1x32xf32> to vector<1x1x32xf32>
    %12 = vector.broadcast %11 : vector<1x1x32xf32> to vector<4x4x32xf32>
    %13 = arith.mulf %9, %12 : vector<4x4x32xf32>
    %14 = arith.addf %7, %13 : vector<4x4x32xf32>
    %c0_14 = arith.constant 0 : index
    %c0_15 = arith.constant 0 : index
    %c1_16 = arith.constant 1 : index
    %c0_17 = arith.constant 0 : index
    %15 = vector.load %arg1[%c0_14, %c0_15, %c1_16, %c0_17] : memref<4x5x5x32xf32, #tpu.memory_space<vmem>>, vector<1x4x4x32xf32>
    %16 = vector.shape_cast %15 : vector<1x4x4x32xf32> to vector<4x4x32xf32>
    %c2 = arith.constant 2 : index
    %c0_18 = arith.constant 0 : index
    %c0_19 = arith.constant 0 : index
    %c0_20 = arith.constant 0 : index
    %17 = vector.load %arg2[%c2, %c0_18, %c0_19, %c0_20] : memref<9x1x1x32xf32, #tpu.memory_space<vmem>>, vector<1x1x1x32xf32>
    %18 = vector.shape_cast %17 : vector<1x1x1x32xf32> to vector<1x1x32xf32>
    %19 = vector.broadcast %18 : vector<1x1x32xf32> to vector<4x4x32xf32>
    %20 = arith.mulf %16, %19 : vector<4x4x32xf32>
    %21 = arith.addf %14, %20 : vector<4x4x32xf32>
    %c2_21 = arith.constant 2 : index
    %c0_22 = arith.constant 0 : index
    %c0_23 = arith.constant 0 : index
    %c0_24 = arith.constant 0 : index
    %22 = vector.load %arg1[%c2_21, %c0_22, %c0_23, %c0_24] : memref<4x5x5x32xf32, #tpu.memory_space<vmem>>, vector<1x4x4x32xf32>
    %23 = vector.shape_cast %22 : vector<1x4x4x32xf32> to vector<4x4x32xf32>
    %c3 = arith.constant 3 : index
    %c0_25 = arith.constant 0 : index
    %c0_26 = arith.constant 0 : index
    %c0_27 = arith.constant 0 : index
    %24 = vector.load %arg2[%c3, %c0_25, %c0_26, %c0_27] : memref<9x1x1x32xf32, #tpu.memory_space<vmem>>, vector<1x1x1x32xf32>
    %25 = vector.shape_cast %24 : vector<1x1x1x32xf32> to vector<1x1x32xf32>
    %26 = vector.broadcast %25 : vector<1x1x32xf32> to vector<4x4x32xf32>
    %27 = arith.mulf %23, %26 : vector<4x4x32xf32>
    %28 = arith.addf %21, %27 : vector<4x4x32xf32>
    %c3_28 = arith.constant 3 : index
    %c0_29 = arith.constant 0 : index
    %c0_30 = arith.constant 0 : index
    %c0_31 = arith.constant 0 : index
    %29 = vector.load %arg1[%c3_28, %c0_29, %c0_30, %c0_31] : memref<4x5x5x32xf32, #tpu.memory_space<vmem>>, vector<1x4x4x32xf32>
    %30 = vector.shape_cast %29 : vector<1x4x4x32xf32> to vector<4x4x32xf32>
    %c4 = arith.constant 4 : index
    %c0_32 = arith.constant 0 : index
    %c0_33 = arith.constant 0 : index
    %c0_34 = arith.constant 0 : index
    %31 = vector.load %arg2[%c4, %c0_32, %c0_33, %c0_34] : memref<9x1x1x32xf32, #tpu.memory_space<vmem>>, vector<1x1x1x32xf32>
    %32 = vector.shape_cast %31 : vector<1x1x1x32xf32> to vector<1x1x32xf32>
    %33 = vector.broadcast %32 : vector<1x1x32xf32> to vector<4x4x32xf32>
    %34 = arith.mulf %30, %33 : vector<4x4x32xf32>
    %35 = arith.addf %28, %34 : vector<4x4x32xf32>
    %c2_35 = arith.constant 2 : index
    %c0_36 = arith.constant 0 : index
    %c1_37 = arith.constant 1 : index
    %c0_38 = arith.constant 0 : index
    %36 = vector.load %arg1[%c2_35, %c0_36, %c1_37, %c0_38] : memref<4x5x5x32xf32, #tpu.memory_space<vmem>>, vector<1x4x4x32xf32>
    %37 = vector.shape_cast %36 : vector<1x4x4x32xf32> to vector<4x4x32xf32>
    %c5 = arith.constant 5 : index
    %c0_39 = arith.constant 0 : index
    %c0_40 = arith.constant 0 : index
    %c0_41 = arith.constant 0 : index
    %38 = vector.load %arg2[%c5, %c0_39, %c0_40, %c0_41] : memref<9x1x1x32xf32, #tpu.memory_space<vmem>>, vector<1x1x1x32xf32>
    %39 = vector.shape_cast %38 : vector<1x1x1x32xf32> to vector<1x1x32xf32>
    %40 = vector.broadcast %39 : vector<1x1x32xf32> to vector<4x4x32xf32>
    %41 = arith.mulf %37, %40 : vector<4x4x32xf32>
    %42 = arith.addf %35, %41 : vector<4x4x32xf32>
    %c0_42 = arith.constant 0 : index
    %c1_43 = arith.constant 1 : index
    %c0_44 = arith.constant 0 : index
    %c0_45 = arith.constant 0 : index
    %43 = vector.load %arg1[%c0_42, %c1_43, %c0_44, %c0_45] : memref<4x5x5x32xf32, #tpu.memory_space<vmem>>, vector<1x4x4x32xf32>
    %44 = vector.shape_cast %43 : vector<1x4x4x32xf32> to vector<4x4x32xf32>
    %c6 = arith.constant 6 : index
    %c0_46 = arith.constant 0 : index
    %c0_47 = arith.constant 0 : index
    %c0_48 = arith.constant 0 : index
    %45 = vector.load %arg2[%c6, %c0_46, %c0_47, %c0_48] : memref<9x1x1x32xf32, #tpu.memory_space<vmem>>, vector<1x1x1x32xf32>
    %46 = vector.shape_cast %45 : vector<1x1x1x32xf32> to vector<1x1x32xf32>
    %47 = vector.broadcast %46 : vector<1x1x32xf32> to vector<4x4x32xf32>
    %48 = arith.mulf %44, %47 : vector<4x4x32xf32>
    %49 = arith.addf %42, %48 : vector<4x4x32xf32>
    %c1_49 = arith.constant 1 : index
    %c1_50 = arith.constant 1 : index
    %c0_51 = arith.constant 0 : index
    %c0_52 = arith.constant 0 : index
    %50 = vector.load %arg1[%c1_49, %c1_50, %c0_51, %c0_52] : memref<4x5x5x32xf32, #tpu.memory_space<vmem>>, vector<1x4x4x32xf32>
    %51 = vector.shape_cast %50 : vector<1x4x4x32xf32> to vector<4x4x32xf32>
    %c7 = arith.constant 7 : index
    %c0_53 = arith.constant 0 : index
    %c0_54 = arith.constant 0 : index
    %c0_55 = arith.constant 0 : index
    %52 = vector.load %arg2[%c7, %c0_53, %c0_54, %c0_55] : memref<9x1x1x32xf32, #tpu.memory_space<vmem>>, vector<1x1x1x32xf32>
    %53 = vector.shape_cast %52 : vector<1x1x1x32xf32> to vector<1x1x32xf32>
    %54 = vector.broadcast %53 : vector<1x1x32xf32> to vector<4x4x32xf32>
    %55 = arith.mulf %51, %54 : vector<4x4x32xf32>
    %56 = arith.addf %49, %55 : vector<4x4x32xf32>
    %c0_56 = arith.constant 0 : index
    %c1_57 = arith.constant 1 : index
    %c1_58 = arith.constant 1 : index
    %c0_59 = arith.constant 0 : index
    %57 = vector.load %arg1[%c0_56, %c1_57, %c1_58, %c0_59] : memref<4x5x5x32xf32, #tpu.memory_space<vmem>>, vector<1x4x4x32xf32>
    %58 = vector.shape_cast %57 : vector<1x4x4x32xf32> to vector<4x4x32xf32>
    %c8 = arith.constant 8 : index
    %c0_60 = arith.constant 0 : index
    %c0_61 = arith.constant 0 : index
    %c0_62 = arith.constant 0 : index
    %59 = vector.load %arg2[%c8, %c0_60, %c0_61, %c0_62] : memref<9x1x1x32xf32, #tpu.memory_space<vmem>>, vector<1x1x1x32xf32>
    %60 = vector.shape_cast %59 : vector<1x1x1x32xf32> to vector<1x1x32xf32>
    %61 = vector.broadcast %60 : vector<1x1x32xf32> to vector<4x4x32xf32>
    %62 = arith.mulf %58, %61 : vector<4x4x32xf32>
    %63 = arith.addf %56, %62 : vector<4x4x32xf32>
    %c0_63 = arith.constant 0 : index
    %c0_64 = arith.constant 0 : index
    %c0_65 = arith.constant 0 : index
    %64 = vector.load %arg3[%c0_63, %c0_64, %c0_65] : memref<1x1x32xf32, #tpu.memory_space<vmem>>, vector<1x1x32xf32>
    %65 = vector.broadcast %64 : vector<1x1x32xf32> to vector<4x4x32xf32>
    %66 = arith.addf %63, %65 : vector<4x4x32xf32>
    %cst_66 = arith.constant 0.000000e+00 : f32
    %67 = vector.broadcast %cst_66 : f32 to vector<4x4x32xf32>
    %68 = arith.maximumf %66, %67 : vector<4x4x32xf32>
    %69 = vector.shape_cast %68 : vector<4x4x32xf32> to vector<16x32xf32>
    %70 = arith.truncf %69 : vector<16x32xf32> to vector<16x32xbf16>
    %c0_67 = arith.constant 0 : index
    %c0_68 = arith.constant 0 : index
    %71 = vector.load %arg4[%c0_67, %c0_68] : memref<32x24xbf16, #tpu.memory_space<vmem>>, vector<32x24xbf16>
    %cst_69 = arith.constant dense<0.000000e+00> : vector<16x24xf32>
    %72 = tpu.matmul %70, %71, %cst_69 {dimension_numbers = #tpu.dot_dimension_numbers<[1], [0], [0], [1], [0, 0, 1, 1], [], []>} : vector<16x32xbf16>, vector<32x24xbf16>, vector<16x24xf32> -> vector<16x24xf32>
    %c0_70 = arith.constant 0 : index
    %c0_71 = arith.constant 0 : index
    %73 = vector.load %arg5[%c0_70, %c0_71] : memref<1x24xf32, #tpu.memory_space<vmem>>, vector<1x24xf32>
    %74 = vector.broadcast %73 : vector<1x24xf32> to vector<16x24xf32>
    %75 = arith.addf %72, %74 : vector<16x24xf32>
    %c0_72 = arith.constant 0 : index
    %c0_73 = arith.constant 0 : index
    %76 = vector.load %arg6[%c0_72, %c0_73] : memref<32x32xbf16, #tpu.memory_space<vmem>>, vector<32x32xbf16>
    %cst_74 = arith.constant dense<0.000000e+00> : vector<16x32xf32>
    %77 = tpu.matmul %70, %76, %cst_74 {dimension_numbers = #tpu.dot_dimension_numbers<[1], [0], [0], [1], [0, 0, 1, 1], [], []>} : vector<16x32xbf16>, vector<32x32xbf16>, vector<16x32xf32> -> vector<16x32xf32>
    %c0_75 = arith.constant 0 : index
    %c0_76 = arith.constant 0 : index
    %78 = vector.load %arg7[%c0_75, %c0_76] : memref<1x32xf32, #tpu.memory_space<vmem>>, vector<1x32xf32>
    %79 = vector.broadcast %78 : vector<1x32xf32> to vector<16x32xf32>
    %80 = arith.addf %77, %79 : vector<16x32xf32>
    %cst_77 = arith.constant 3.000000e+00 : f32
    %81 = vector.broadcast %cst_77 : f32 to vector<16x32xf32>
    %82 = arith.addf %80, %81 : vector<16x32xf32>
    %cst_78 = arith.constant 0.000000e+00 : f32
    %cst_79 = arith.constant 6.000000e+00 : f32
    %83 = vector.broadcast %cst_78 : f32 to vector<16x32xf32>
    %84 = arith.maximumf %83, %82 : vector<16x32xf32>
    %85 = vector.broadcast %cst_79 : f32 to vector<16x32xf32>
    %86 = arith.minimumf %85, %84 : vector<16x32xf32>
    %87 = arith.mulf %80, %86 : vector<16x32xf32>
    %cst_80 = arith.constant 0.166666672 : f32
    %88 = vector.broadcast %cst_80 : f32 to vector<16x32xf32>
    %89 = arith.mulf %87, %88 : vector<16x32xf32>
    %cst_81 = arith.constant 0.000000e+00 : f32
    %90 = vector.broadcast %cst_81 : f32 to vector<1x6x32xf32>
    %cst_82 = arith.constant 0.000000e+00 : f32
    %91 = vector.broadcast %cst_82 : f32 to vector<4x1x32xf32>
    %c0_83 = arith.constant 0 : index
    %c0_84 = arith.constant 0 : index
    %c0_85 = arith.constant 0 : index
    %92 = vector.load %arg19[%c0_83, %c0_84, %c0_85] : memref<6x6x32xf32, #tpu.memory_space<vmem>>, vector<1x6x32xf32>
    tpu.vector_store %arg19[%c0_83, %c0_84, %c0_85], %90 {strides = array<i32>} : memref<6x6x32xf32, #tpu.memory_space<vmem>>, vector<1x6x32xf32>,
    %c5_86 = arith.constant 5 : index
    %c0_87 = arith.constant 0 : index
    %c0_88 = arith.constant 0 : index
    %93 = vector.load %arg19[%c5_86, %c0_87, %c0_88] : memref<6x6x32xf32, #tpu.memory_space<vmem>>, vector<1x6x32xf32>
    tpu.vector_store %arg19[%c5_86, %c0_87, %c0_88], %90 {strides = array<i32>} : memref<6x6x32xf32, #tpu.memory_space<vmem>>, vector<1x6x32xf32>,
    %c1_89 = arith.constant 1 : index
    %c0_90 = arith.constant 0 : index
    %c0_91 = arith.constant 0 : index
    %94 = vector.load %arg19[%c1_89, %c0_90, %c0_91] : memref<6x6x32xf32, #tpu.memory_space<vmem>>, vector<4x1x32xf32>
    tpu.vector_store %arg19[%c1_89, %c0_90, %c0_91], %91 {strides = array<i32>} : memref<6x6x32xf32, #tpu.memory_space<vmem>>, vector<4x1x32xf32>,
    %c1_92 = arith.constant 1 : index
    %c5_93 = arith.constant 5 : index
    %c0_94 = arith.constant 0 : index
    %95 = vector.load %arg19[%c1_92, %c5_93, %c0_94] : memref<6x6x32xf32, #tpu.memory_space<vmem>>, vector<4x1x32xf32>
    tpu.vector_store %arg19[%c1_92, %c5_93, %c0_94], %91 {strides = array<i32>} : memref<6x6x32xf32, #tpu.memory_space<vmem>>, vector<4x1x32xf32>,
    %96 = vector.shape_cast %89 : vector<16x32xf32> to vector<4x4x32xf32>
    %c1_95 = arith.constant 1 : index
    %c1_96 = arith.constant 1 : index
    %c0_97 = arith.constant 0 : index
    %97 = vector.load %arg19[%c1_95, %c1_96, %c0_97] : memref<6x6x32xf32, #tpu.memory_space<vmem>>, vector<4x4x32xf32>
    tpu.vector_store %arg19[%c1_95, %c1_96, %c0_97], %96 {strides = array<i32>} : memref<6x6x32xf32, #tpu.memory_space<vmem>>, vector<4x4x32xf32>,
    %cst_98 = arith.constant 0.000000e+00 : f32
    %98 = vector.broadcast %cst_98 : f32 to vector<4x4x32xf32>
    %c0_99 = arith.constant 0 : index
    %c0_100 = arith.constant 0 : index
    %c0_101 = arith.constant 0 : index
    %99 = vector.load %arg19[%c0_99, %c0_100, %c0_101] : memref<6x6x32xf32, #tpu.memory_space<vmem>>, vector<4x4x32xf32>
    %c0_102 = arith.constant 0 : index
    %c0_103 = arith.constant 0 : index
    %c0_104 = arith.constant 0 : index
    %c0_105 = arith.constant 0 : index
    %100 = vector.load %arg8[%c0_102, %c0_103, %c0_104, %c0_105] : memref<9x1x1x32xf32, #tpu.memory_space<vmem>>, vector<1x1x1x32xf32>
    %101 = vector.shape_cast %100 : vector<1x1x1x32xf32> to vector<1x1x32xf32>
    %102 = vector.broadcast %101 : vector<1x1x32xf32> to vector<4x4x32xf32>
    %103 = arith.mulf %99, %102 : vector<4x4x32xf32>
    %104 = arith.addf %98, %103 : vector<4x4x32xf32>
    %c0_106 = arith.constant 0 : index
    %c1_107 = arith.constant 1 : index
    %c0_108 = arith.constant 0 : index
    %105 = vector.load %arg19[%c0_106, %c1_107, %c0_108] : memref<6x6x32xf32, #tpu.memory_space<vmem>>, vector<4x4x32xf32>
    %c1_109 = arith.constant 1 : index
    %c0_110 = arith.constant 0 : index
    %c0_111 = arith.constant 0 : index
    %c0_112 = arith.constant 0 : index
    %106 = vector.load %arg8[%c1_109, %c0_110, %c0_111, %c0_112] : memref<9x1x1x32xf32, #tpu.memory_space<vmem>>, vector<1x1x1x32xf32>
    %107 = vector.shape_cast %106 : vector<1x1x1x32xf32> to vector<1x1x32xf32>
    %108 = vector.broadcast %107 : vector<1x1x32xf32> to vector<4x4x32xf32>
    %109 = arith.mulf %105, %108 : vector<4x4x32xf32>
    %110 = arith.addf %104, %109 : vector<4x4x32xf32>
    %c0_113 = arith.constant 0 : index
    %c2_114 = arith.constant 2 : index
    %c0_115 = arith.constant 0 : index
    %111 = vector.load %arg19[%c0_113, %c2_114, %c0_115] : memref<6x6x32xf32, #tpu.memory_space<vmem>>, vector<4x4x32xf32>
    %c2_116 = arith.constant 2 : index
    %c0_117 = arith.constant 0 : index
    %c0_118 = arith.constant 0 : index
    %c0_119 = arith.constant 0 : index
    %112 = vector.load %arg8[%c2_116, %c0_117, %c0_118, %c0_119] : memref<9x1x1x32xf32, #tpu.memory_space<vmem>>, vector<1x1x1x32xf32>
    %113 = vector.shape_cast %112 : vector<1x1x1x32xf32> to vector<1x1x32xf32>
    %114 = vector.broadcast %113 : vector<1x1x32xf32> to vector<4x4x32xf32>
    %115 = arith.mulf %111, %114 : vector<4x4x32xf32>
    %116 = arith.addf %110, %115 : vector<4x4x32xf32>
    %c1_120 = arith.constant 1 : index
    %c0_121 = arith.constant 0 : index
    %c0_122 = arith.constant 0 : index
    %117 = vector.load %arg19[%c1_120, %c0_121, %c0_122] : memref<6x6x32xf32, #tpu.memory_space<vmem>>, vector<4x4x32xf32>
    %c3_123 = arith.constant 3 : index
    %c0_124 = arith.constant 0 : index
    %c0_125 = arith.constant 0 : index
    %c0_126 = arith.constant 0 : index
    %118 = vector.load %arg8[%c3_123, %c0_124, %c0_125, %c0_126] : memref<9x1x1x32xf32, #tpu.memory_space<vmem>>, vector<1x1x1x32xf32>
    %119 = vector.shape_cast %118 : vector<1x1x1x32xf32> to vector<1x1x32xf32>
    %120 = vector.broadcast %119 : vector<1x1x32xf32> to vector<4x4x32xf32>
    %121 = arith.mulf %117, %120 : vector<4x4x32xf32>
    %122 = arith.addf %116, %121 : vector<4x4x32xf32>
    %c1_127 = arith.constant 1 : index
    %c1_128 = arith.constant 1 : index
    %c0_129 = arith.constant 0 : index
    %123 = vector.load %arg19[%c1_127, %c1_128, %c0_129] : memref<6x6x32xf32, #tpu.memory_space<vmem>>, vector<4x4x32xf32>
    %c4_130 = arith.constant 4 : index
    %c0_131 = arith.constant 0 : index
    %c0_132 = arith.constant 0 : index
    %c0_133 = arith.constant 0 : index
    %124 = vector.load %arg8[%c4_130, %c0_131, %c0_132, %c0_133] : memref<9x1x1x32xf32, #tpu.memory_space<vmem>>, vector<1x1x1x32xf32>
    %125 = vector.shape_cast %124 : vector<1x1x1x32xf32> to vector<1x1x32xf32>
    %126 = vector.broadcast %125 : vector<1x1x32xf32> to vector<4x4x32xf32>
    %127 = arith.mulf %123, %126 : vector<4x4x32xf32>
    %128 = arith.addf %122, %127 : vector<4x4x32xf32>
    %c1_134 = arith.constant 1 : index
    %c2_135 = arith.constant 2 : index
    %c0_136 = arith.constant 0 : index
    %129 = vector.load %arg19[%c1_134, %c2_135, %c0_136] : memref<6x6x32xf32, #tpu.memory_space<vmem>>, vector<4x4x32xf32>
    %c5_137 = arith.constant 5 : index
    %c0_138 = arith.constant 0 : index
    %c0_139 = arith.constant 0 : index
    %c0_140 = arith.constant 0 : index
    %130 = vector.load %arg8[%c5_137, %c0_138, %c0_139, %c0_140] : memref<9x1x1x32xf32, #tpu.memory_space<vmem>>, vector<1x1x1x32xf32>
    %131 = vector.shape_cast %130 : vector<1x1x1x32xf32> to vector<1x1x32xf32>
    %132 = vector.broadcast %131 : vector<1x1x32xf32> to vector<4x4x32xf32>
    %133 = arith.mulf %129, %132 : vector<4x4x32xf32>
    %134 = arith.addf %128, %133 : vector<4x4x32xf32>
    %c2_141 = arith.constant 2 : index
    %c0_142 = arith.constant 0 : index
    %c0_143 = arith.constant 0 : index
    %135 = vector.load %arg19[%c2_141, %c0_142, %c0_143] : memref<6x6x32xf32, #tpu.memory_space<vmem>>, vector<4x4x32xf32>
    %c6_144 = arith.constant 6 : index
    %c0_145 = arith.constant 0 : index
    %c0_146 = arith.constant 0 : index
    %c0_147 = arith.constant 0 : index
    %136 = vector.load %arg8[%c6_144, %c0_145, %c0_146, %c0_147] : memref<9x1x1x32xf32, #tpu.memory_space<vmem>>, vector<1x1x1x32xf32>
    %137 = vector.shape_cast %136 : vector<1x1x1x32xf32> to vector<1x1x32xf32>
    %138 = vector.broadcast %137 : vector<1x1x32xf32> to vector<4x4x32xf32>
    %139 = arith.mulf %135, %138 : vector<4x4x32xf32>
    %140 = arith.addf %134, %139 : vector<4x4x32xf32>
    %c2_148 = arith.constant 2 : index
    %c1_149 = arith.constant 1 : index
    %c0_150 = arith.constant 0 : index
    %141 = vector.load %arg19[%c2_148, %c1_149, %c0_150] : memref<6x6x32xf32, #tpu.memory_space<vmem>>, vector<4x4x32xf32>
    %c7_151 = arith.constant 7 : index
    %c0_152 = arith.constant 0 : index
    %c0_153 = arith.constant 0 : index
    %c0_154 = arith.constant 0 : index
    %142 = vector.load %arg8[%c7_151, %c0_152, %c0_153, %c0_154] : memref<9x1x1x32xf32, #tpu.memory_space<vmem>>, vector<1x1x1x32xf32>
    %143 = vector.shape_cast %142 : vector<1x1x1x32xf32> to vector<1x1x32xf32>
    %144 = vector.broadcast %143 : vector<1x1x32xf32> to vector<4x4x32xf32>
    %145 = arith.mulf %141, %144 : vector<4x4x32xf32>
    %146 = arith.addf %140, %145 : vector<4x4x32xf32>
    %c2_155 = arith.constant 2 : index
    %c2_156 = arith.constant 2 : index
    %c0_157 = arith.constant 0 : index
    %147 = vector.load %arg19[%c2_155, %c2_156, %c0_157] : memref<6x6x32xf32, #tpu.memory_space<vmem>>, vector<4x4x32xf32>
    %c8_158 = arith.constant 8 : index
    %c0_159 = arith.constant 0 : index
    %c0_160 = arith.constant 0 : index
    %c0_161 = arith.constant 0 : index
    %148 = vector.load %arg8[%c8_158, %c0_159, %c0_160, %c0_161] : memref<9x1x1x32xf32, #tpu.memory_space<vmem>>, vector<1x1x1x32xf32>
    %149 = vector.shape_cast %148 : vector<1x1x1x32xf32> to vector<1x1x32xf32>
    %150 = vector.broadcast %149 : vector<1x1x32xf32> to vector<4x4x32xf32>
    %151 = arith.mulf %147, %150 : vector<4x4x32xf32>
    %152 = arith.addf %146, %151 : vector<4x4x32xf32>
    %c0_162 = arith.constant 0 : index
    %c0_163 = arith.constant 0 : index
    %c0_164 = arith.constant 0 : index
    %153 = vector.load %arg9[%c0_162, %c0_163, %c0_164] : memref<1x1x32xf32, #tpu.memory_space<vmem>>, vector<1x1x32xf32>
    %154 = vector.broadcast %153 : vector<1x1x32xf32> to vector<4x4x32xf32>
    %155 = arith.addf %152, %154 : vector<4x4x32xf32>
    %cst_165 = arith.constant 3.000000e+00 : f32
    %156 = vector.broadcast %cst_165 : f32 to vector<4x4x32xf32>
    %157 = arith.addf %155, %156 : vector<4x4x32xf32>
    %cst_166 = arith.constant 0.000000e+00 : f32
    %cst_167 = arith.constant 6.000000e+00 : f32
    %158 = vector.broadcast %cst_166 : f32 to vector<4x4x32xf32>
    %159 = arith.maximumf %158, %157 : vector<4x4x32xf32>
    %160 = vector.broadcast %cst_167 : f32 to vector<4x4x32xf32>
    %161 = arith.minimumf %160, %159 : vector<4x4x32xf32>
    %162 = arith.mulf %155, %161 : vector<4x4x32xf32>
    %cst_168 = arith.constant 0.166666672 : f32
    %163 = vector.broadcast %cst_168 : f32 to vector<4x4x32xf32>
    %164 = arith.mulf %162, %163 : vector<4x4x32xf32>
    %165 = vector.shape_cast %164 : vector<4x4x32xf32> to vector<16x32xf32>
    %c0_169 = arith.constant 0 : index
    %c0_170 = arith.constant 0 : index
    %166 = vector.load %arg10[%c0_169, %c0_170] : memref<8x32xf32, #tpu.memory_space<vmem>>, vector<8x32xf32>
    %c0_171 = arith.constant 0 : index
    %c0_172 = arith.constant 0 : index
    %167 = vector.load %arg11[%c0_171, %c0_172] : memref<8x1xf32, #tpu.memory_space<vmem>>, vector<8x1xf32>
    %c0_173 = arith.constant 0 : index
    %c0_174 = arith.constant 0 : index
    %168 = vector.load %arg12[%c0_173, %c0_174] : memref<8x32xf32, #tpu.memory_space<vmem>>, vector<8x32xf32>
    %c0_175 = arith.constant 0 : index
    %c0_176 = arith.constant 0 : index
    %169 = vector.load %arg13[%c0_175, %c0_176] : memref<1x32xf32, #tpu.memory_space<vmem>>, vector<1x32xf32>
    %cst_177 = arith.constant dense<0.000000e+00> : vector<32xf32>
    %170 = vector.multi_reduction <add>, %165, %cst_177 [0] : vector<16x32xf32> to vector<32xf32>
    %171 = vector.shape_cast %170 : vector<32xf32> to vector<1x32xf32>
    %cst_178 = arith.constant 1.600000e+01 : f32
    %172 = vector.broadcast %cst_178 : f32 to vector<1x32xf32>
    %173 = arith.divf %171, %172 : vector<1x32xf32>
    %174 = vector.broadcast %173 : vector<1x32xf32> to vector<8x32xf32>
    %175 = arith.mulf %174, %166 : vector<8x32xf32>
    %cst_179 = arith.constant dense<0.000000e+00> : vector<8xf32>
    %176 = vector.multi_reduction <add>, %175, %cst_179 [1] : vector<8x32xf32> to vector<8xf32>
    %177 = vector.shape_cast %176 : vector<8xf32> to vector<8x1xf32>
    %178 = arith.addf %177, %167 : vector<8x1xf32>
    %cst_180 = arith.constant 0.000000e+00 : f32
    %179 = vector.broadcast %cst_180 : f32 to vector<8x1xf32>
    %180 = arith.maximumf %178, %179 : vector<8x1xf32>
    %181 = vector.broadcast %180 : vector<8x1xf32> to vector<8x32xf32>
    %182 = arith.mulf %181, %168 : vector<8x32xf32>
    %cst_181 = arith.constant dense<0.000000e+00> : vector<32xf32>
    %183 = vector.multi_reduction <add>, %182, %cst_181 [0] : vector<8x32xf32> to vector<32xf32>
    %184 = vector.shape_cast %183 : vector<32xf32> to vector<1x32xf32>
    %185 = arith.addf %184, %169 : vector<1x32xf32>
    %cst_182 = arith.constant 3.000000e+00 : f32
    %186 = vector.broadcast %cst_182 : f32 to vector<1x32xf32>
    %187 = arith.addf %185, %186 : vector<1x32xf32>
    %cst_183 = arith.constant 0.000000e+00 : f32
    %cst_184 = arith.constant 6.000000e+00 : f32
    %188 = vector.broadcast %cst_183 : f32 to vector<1x32xf32>
    %189 = arith.maximumf %188, %187 : vector<1x32xf32>
    %190 = vector.broadcast %cst_184 : f32 to vector<1x32xf32>
    %191 = arith.minimumf %190, %189 : vector<1x32xf32>
    %cst_185 = arith.constant 0.166666672 : f32
    %192 = vector.broadcast %cst_185 : f32 to vector<1x32xf32>
    %193 = arith.mulf %191, %192 : vector<1x32xf32>
    %194 = vector.broadcast %193 : vector<1x32xf32> to vector<16x32xf32>
    %195 = arith.mulf %165, %194 : vector<16x32xf32>
    %196 = arith.truncf %195 : vector<16x32xf32> to vector<16x32xbf16>
    %c0_186 = arith.constant 0 : index
    %c0_187 = arith.constant 0 : index
    %197 = vector.load %arg14[%c0_186, %c0_187] : memref<32x24xbf16, #tpu.memory_space<vmem>>, vector<32x24xbf16>
    %cst_188 = arith.constant dense<0.000000e+00> : vector<16x24xf32>
    %198 = tpu.matmul %196, %197, %cst_188 {dimension_numbers = #tpu.dot_dimension_numbers<[1], [0], [0], [1], [0, 0, 1, 1], [], []>} : vector<16x32xbf16>, vector<32x24xbf16>, vector<16x24xf32> -> vector<16x24xf32>
    %c0_189 = arith.constant 0 : index
    %c0_190 = arith.constant 0 : index
    %199 = vector.load %arg15[%c0_189, %c0_190] : memref<1x24xf32, #tpu.memory_space<vmem>>, vector<1x24xf32>
    %200 = vector.broadcast %199 : vector<1x24xf32> to vector<16x24xf32>
    %201 = arith.addf %198, %200 : vector<16x24xf32>
    %202 = arith.addf %201, %75 : vector<16x24xf32>
    %203 = arith.truncf %202 : vector<16x24xf32> to vector<16x24xbf16>
    %c0_191 = arith.constant 0 : index
    %c0_192 = arith.constant 0 : index
    %204 = vector.load %arg16[%c0_191, %c0_192] : memref<24x144xbf16, #tpu.memory_space<vmem>>, vector<24x144xbf16>
    %cst_193 = arith.constant dense<0.000000e+00> : vector<16x144xf32>
    %205 = tpu.matmul %203, %204, %cst_193 {dimension_numbers = #tpu.dot_dimension_numbers<[1], [0], [0], [1], [0, 0, 1, 1], [], []>} : vector<16x24xbf16>, vector<24x144xbf16>, vector<16x144xf32> -> vector<16x144xf32>
    %c0_194 = arith.constant 0 : index
    %c0_195 = arith.constant 0 : index
    %206 = vector.load %arg17[%c0_194, %c0_195] : memref<1x144xf32, #tpu.memory_space<vmem>>, vector<1x144xf32>
    %207 = vector.broadcast %206 : vector<1x144xf32> to vector<16x144xf32>
    %208 = arith.addf %205, %207 : vector<16x144xf32>
    %cst_196 = arith.constant 3.000000e+00 : f32
    %209 = vector.broadcast %cst_196 : f32 to vector<16x144xf32>
    %210 = arith.addf %208, %209 : vector<16x144xf32>
    %cst_197 = arith.constant 0.000000e+00 : f32
    %cst_198 = arith.constant 6.000000e+00 : f32
    %211 = vector.broadcast %cst_197 : f32 to vector<16x144xf32>
    %212 = arith.maximumf %211, %210 : vector<16x144xf32>
    %213 = vector.broadcast %cst_198 : f32 to vector<16x144xf32>
    %214 = arith.minimumf %213, %212 : vector<16x144xf32>
    %215 = arith.mulf %208, %214 : vector<16x144xf32>
    %cst_199 = arith.constant 0.166666672 : f32
    %216 = vector.broadcast %cst_199 : f32 to vector<16x144xf32>
    %217 = arith.mulf %215, %216 : vector<16x144xf32>
    %218 = arith.truncf %217 : vector<16x144xf32> to vector<16x144xbf16>
    %219 = vector.shape_cast %218 : vector<16x144xbf16> to vector<1x4x4x144xbf16>
    %c0_200 = arith.constant 0 : index
    %c0_201 = arith.constant 0 : index
    %c0_202 = arith.constant 0 : index
    %c0_203 = arith.constant 0 : index
    %220 = vector.load %arg18[%c0_200, %c0_201, %c0_202, %c0_203] : memref<1x4x4x144xbf16, #tpu.memory_space<vmem>>, vector<1x4x4x144xbf16>
    tpu.vector_store %arg18[%c0_200, %c0_201, %c0_202, %c0_203], %219 {strides = array<i32>} : memref<1x4x4x144xbf16, #tpu.memory_space<vmem>>, vector<1x4x4x144xbf16>,
    return
  }
  func.func @transform_0(%arg0: i32) -> (i32, i32, i32, i32) {
    %c0_i32 = arith.constant 0 : i32
    %c0_i32_0 = arith.constant 0 : i32
    %c0_i32_1 = arith.constant 0 : i32
    %c0_i32_2 = arith.constant 0 : i32
    return %arg0, %c0_i32, %c0_i32_0, %c0_i32_1 : i32, i32, i32, i32
  }
  func.func @transform_1(%arg0: i32) -> (i32, i32, i32, i32) {
    %c0_i32 = arith.constant 0 : i32
    %c0_i32_0 = arith.constant 0 : i32
    %c0_i32_1 = arith.constant 0 : i32
    %c0_i32_2 = arith.constant 0 : i32
    %c0_i32_3 = arith.constant 0 : i32
    return %c0_i32, %c0_i32_0, %c0_i32_1, %c0_i32_2 : i32, i32, i32, i32
  }
  func.func @transform_2(%arg0: i32) -> (i32, i32, i32) {
    %c0_i32 = arith.constant 0 : i32
    %c0_i32_0 = arith.constant 0 : i32
    %c0_i32_1 = arith.constant 0 : i32
    %c0_i32_2 = arith.constant 0 : i32
    return %c0_i32, %c0_i32_0, %c0_i32_1 : i32, i32, i32
  }
  func.func @transform_3(%arg0: i32) -> (i32, i32) {
    %c0_i32 = arith.constant 0 : i32
    %c0_i32_0 = arith.constant 0 : i32
    %c0_i32_1 = arith.constant 0 : i32
    return %c0_i32, %c0_i32_0 : i32, i32
  }
  func.func @transform_4(%arg0: i32) -> (i32, i32) {
    %c0_i32 = arith.constant 0 : i32
    %c0_i32_0 = arith.constant 0 : i32
    %c0_i32_1 = arith.constant 0 : i32
    return %c0_i32, %c0_i32_0 : i32, i32
  }
  func.func @transform_5(%arg0: i32) -> (i32, i32) {
    %c0_i32 = arith.constant 0 : i32
    %c0_i32_0 = arith.constant 0 : i32
    %c0_i32_1 = arith.constant 0 : i32
    return %c0_i32, %c0_i32_0 : i32, i32
  }
  func.func @transform_6(%arg0: i32) -> (i32, i32) {
    %c0_i32 = arith.constant 0 : i32
    %c0_i32_0 = arith.constant 0 : i32
    %c0_i32_1 = arith.constant 0 : i32
    return %c0_i32, %c0_i32_0 : i32, i32
  }
  func.func @transform_7(%arg0: i32) -> (i32, i32, i32, i32) {
    %c0_i32 = arith.constant 0 : i32
    %c0_i32_0 = arith.constant 0 : i32
    %c0_i32_1 = arith.constant 0 : i32
    %c0_i32_2 = arith.constant 0 : i32
    %c0_i32_3 = arith.constant 0 : i32
    return %c0_i32, %c0_i32_0, %c0_i32_1, %c0_i32_2 : i32, i32, i32, i32
  }
  func.func @transform_8(%arg0: i32) -> (i32, i32, i32) {
    %c0_i32 = arith.constant 0 : i32
    %c0_i32_0 = arith.constant 0 : i32
    %c0_i32_1 = arith.constant 0 : i32
    %c0_i32_2 = arith.constant 0 : i32
    return %c0_i32, %c0_i32_0, %c0_i32_1 : i32, i32, i32
  }
  func.func @transform_9(%arg0: i32) -> (i32, i32) {
    %c0_i32 = arith.constant 0 : i32
    %c0_i32_0 = arith.constant 0 : i32
    %c0_i32_1 = arith.constant 0 : i32
    return %c0_i32, %c0_i32_0 : i32, i32
  }
  func.func @transform_10(%arg0: i32) -> (i32, i32) {
    %c0_i32 = arith.constant 0 : i32
    %c0_i32_0 = arith.constant 0 : i32
    %c0_i32_1 = arith.constant 0 : i32
    return %c0_i32, %c0_i32_0 : i32, i32
  }
  func.func @transform_11(%arg0: i32) -> (i32, i32) {
    %c0_i32 = arith.constant 0 : i32
    %c0_i32_0 = arith.constant 0 : i32
    %c0_i32_1 = arith.constant 0 : i32
    return %c0_i32, %c0_i32_0 : i32, i32
  }
  func.func @transform_12(%arg0: i32) -> (i32, i32) {
    %c0_i32 = arith.constant 0 : i32
    %c0_i32_0 = arith.constant 0 : i32
    %c0_i32_1 = arith.constant 0 : i32
    return %c0_i32, %c0_i32_0 : i32, i32
  }
  func.func @transform_13(%arg0: i32) -> (i32, i32) {
    %c0_i32 = arith.constant 0 : i32
    %c0_i32_0 = arith.constant 0 : i32
    %c0_i32_1 = arith.constant 0 : i32
    return %c0_i32, %c0_i32_0 : i32, i32
  }
  func.func @transform_14(%arg0: i32) -> (i32, i32) {
    %c0_i32 = arith.constant 0 : i32
    %c0_i32_0 = arith.constant 0 : i32
    %c0_i32_1 = arith.constant 0 : i32
    return %c0_i32, %c0_i32_0 : i32, i32
  }
  func.func @transform_15(%arg0: i32) -> (i32, i32) {
    %c0_i32 = arith.constant 0 : i32
    %c0_i32_0 = arith.constant 0 : i32
    %c0_i32_1 = arith.constant 0 : i32
    return %c0_i32, %c0_i32_0 : i32, i32
  }
  func.func @transform_16(%arg0: i32) -> (i32, i32) {
    %c0_i32 = arith.constant 0 : i32
    %c0_i32_0 = arith.constant 0 : i32
    %c0_i32_1 = arith.constant 0 : i32
    return %c0_i32, %c0_i32_0 : i32, i32
  }
  func.func @transform_17(%arg0: i32) -> (i32, i32, i32, i32) {
    %c0_i32 = arith.constant 0 : i32
    %c0_i32_0 = arith.constant 0 : i32
    %c0_i32_1 = arith.constant 0 : i32
    %c0_i32_2 = arith.constant 0 : i32
    return %arg0, %c0_i32, %c0_i32_0, %c0_i32_1 : i32, i32, i32, i32
  }
}

module attributes {stable_mosaic.version = 11 : i64} {
  func.func @_deconv_kernel(%arg0: i32, %arg1: memref<1x6x6x144xbf16, #tpu.memory_space<vmem>>, %arg2: memref<1296x128xbf16, #tpu.memory_space<vmem>>, %arg3: memref<1x128xf32, #tpu.memory_space<vmem>>, %arg4: memref<1x16x128xbf16, #tpu.memory_space<vmem>>, %arg5: memref<4x4x1296xbf16, #tpu.memory_space<vmem>>) attributes {dimension_semantics = [#tpu.dimension_semantics<parallel>], iteration_bounds = array<i64: 2>, scalar_prefetch = 0 : i64, scratch_operands = 1 : i64, tpu.core_type = #tpu.core_type<tc>, window_params = [{transform_indices = @transform_0, window_bounds = array<i64: 1, 6, 6, 144>}, {pipeline_mode = #tpu.pipeline_mode<synchronous>, transform_indices = @transform_1, window_bounds = array<i64: 1296, 128>}, {pipeline_mode = #tpu.pipeline_mode<synchronous>, transform_indices = @transform_2, window_bounds = array<i64: 1, 128>}, {transform_indices = @transform_3, window_bounds = array<i64: 1, 16, 128>}]} {
    %c0 = arith.constant 0 : index
    %c0_0 = arith.constant 0 : index
    %c0_1 = arith.constant 0 : index
    %c0_2 = arith.constant 0 : index
    %0 = vector.load %arg1[%c0, %c0_0, %c0_1, %c0_2] : memref<1x6x6x144xbf16, #tpu.memory_space<vmem>>, vector<1x4x4x144xbf16>
    %1 = vector.shape_cast %0 : vector<1x4x4x144xbf16> to vector<4x4x144xbf16>
    %c0_3 = arith.constant 0 : index
    %c0_4 = arith.constant 0 : index
    %c0_5 = arith.constant 0 : index
    %2 = vector.load %arg5[%c0_3, %c0_4, %c0_5] : memref<4x4x1296xbf16, #tpu.memory_space<vmem>>, vector<4x4x144xbf16>
    tpu.vector_store %arg5[%c0_3, %c0_4, %c0_5], %1 {strides = array<i32>} : memref<4x4x1296xbf16, #tpu.memory_space<vmem>>, vector<4x4x144xbf16>,
    %c0_6 = arith.constant 0 : index
    %c0_7 = arith.constant 0 : index
    %c1 = arith.constant 1 : index
    %c0_8 = arith.constant 0 : index
    %3 = vector.load %arg1[%c0_6, %c0_7, %c1, %c0_8] : memref<1x6x6x144xbf16, #tpu.memory_space<vmem>>, vector<1x4x4x144xbf16>
    %4 = vector.shape_cast %3 : vector<1x4x4x144xbf16> to vector<4x4x144xbf16>
    %c0_9 = arith.constant 0 : index
    %c0_10 = arith.constant 0 : index
    %c144 = arith.constant 144 : index
    %5 = vector.load %arg5[%c0_9, %c0_10, %c144] : memref<4x4x1296xbf16, #tpu.memory_space<vmem>>, vector<4x4x144xbf16>
    tpu.vector_store %arg5[%c0_9, %c0_10, %c144], %4 {strides = array<i32>} : memref<4x4x1296xbf16, #tpu.memory_space<vmem>>, vector<4x4x144xbf16>,
    %c0_11 = arith.constant 0 : index
    %c0_12 = arith.constant 0 : index
    %c2 = arith.constant 2 : index
    %c0_13 = arith.constant 0 : index
    %6 = vector.load %arg1[%c0_11, %c0_12, %c2, %c0_13] : memref<1x6x6x144xbf16, #tpu.memory_space<vmem>>, vector<1x4x4x144xbf16>
    %7 = vector.shape_cast %6 : vector<1x4x4x144xbf16> to vector<4x4x144xbf16>
    %c0_14 = arith.constant 0 : index
    %c0_15 = arith.constant 0 : index
    %c288 = arith.constant 288 : index
    %8 = vector.load %arg5[%c0_14, %c0_15, %c288] : memref<4x4x1296xbf16, #tpu.memory_space<vmem>>, vector<4x4x144xbf16>
    tpu.vector_store %arg5[%c0_14, %c0_15, %c288], %7 {strides = array<i32>} : memref<4x4x1296xbf16, #tpu.memory_space<vmem>>, vector<4x4x144xbf16>,
    %c0_16 = arith.constant 0 : index
    %c1_17 = arith.constant 1 : index
    %c0_18 = arith.constant 0 : index
    %c0_19 = arith.constant 0 : index
    %9 = vector.load %arg1[%c0_16, %c1_17, %c0_18, %c0_19] : memref<1x6x6x144xbf16, #tpu.memory_space<vmem>>, vector<1x4x4x144xbf16>
    %10 = vector.shape_cast %9 : vector<1x4x4x144xbf16> to vector<4x4x144xbf16>
    %c0_20 = arith.constant 0 : index
    %c0_21 = arith.constant 0 : index
    %c432 = arith.constant 432 : index
    %11 = vector.load %arg5[%c0_20, %c0_21, %c432] : memref<4x4x1296xbf16, #tpu.memory_space<vmem>>, vector<4x4x144xbf16>
    tpu.vector_store %arg5[%c0_20, %c0_21, %c432], %10 {strides = array<i32>} : memref<4x4x1296xbf16, #tpu.memory_space<vmem>>, vector<4x4x144xbf16>,
    %c0_22 = arith.constant 0 : index
    %c1_23 = arith.constant 1 : index
    %c1_24 = arith.constant 1 : index
    %c0_25 = arith.constant 0 : index
    %12 = vector.load %arg1[%c0_22, %c1_23, %c1_24, %c0_25] : memref<1x6x6x144xbf16, #tpu.memory_space<vmem>>, vector<1x4x4x144xbf16>
    %13 = vector.shape_cast %12 : vector<1x4x4x144xbf16> to vector<4x4x144xbf16>
    %c0_26 = arith.constant 0 : index
    %c0_27 = arith.constant 0 : index
    %c576 = arith.constant 576 : index
    %14 = vector.load %arg5[%c0_26, %c0_27, %c576] : memref<4x4x1296xbf16, #tpu.memory_space<vmem>>, vector<4x4x144xbf16>
    tpu.vector_store %arg5[%c0_26, %c0_27, %c576], %13 {strides = array<i32>} : memref<4x4x1296xbf16, #tpu.memory_space<vmem>>, vector<4x4x144xbf16>,
    %c0_28 = arith.constant 0 : index
    %c1_29 = arith.constant 1 : index
    %c2_30 = arith.constant 2 : index
    %c0_31 = arith.constant 0 : index
    %15 = vector.load %arg1[%c0_28, %c1_29, %c2_30, %c0_31] : memref<1x6x6x144xbf16, #tpu.memory_space<vmem>>, vector<1x4x4x144xbf16>
    %16 = vector.shape_cast %15 : vector<1x4x4x144xbf16> to vector<4x4x144xbf16>
    %c0_32 = arith.constant 0 : index
    %c0_33 = arith.constant 0 : index
    %c720 = arith.constant 720 : index
    %17 = vector.load %arg5[%c0_32, %c0_33, %c720] : memref<4x4x1296xbf16, #tpu.memory_space<vmem>>, vector<4x4x144xbf16>
    tpu.vector_store %arg5[%c0_32, %c0_33, %c720], %16 {strides = array<i32>} : memref<4x4x1296xbf16, #tpu.memory_space<vmem>>, vector<4x4x144xbf16>,
    %c0_34 = arith.constant 0 : index
    %c2_35 = arith.constant 2 : index
    %c0_36 = arith.constant 0 : index
    %c0_37 = arith.constant 0 : index
    %18 = vector.load %arg1[%c0_34, %c2_35, %c0_36, %c0_37] : memref<1x6x6x144xbf16, #tpu.memory_space<vmem>>, vector<1x4x4x144xbf16>
    %19 = vector.shape_cast %18 : vector<1x4x4x144xbf16> to vector<4x4x144xbf16>
    %c0_38 = arith.constant 0 : index
    %c0_39 = arith.constant 0 : index
    %c864 = arith.constant 864 : index
    %20 = vector.load %arg5[%c0_38, %c0_39, %c864] : memref<4x4x1296xbf16, #tpu.memory_space<vmem>>, vector<4x4x144xbf16>
    tpu.vector_store %arg5[%c0_38, %c0_39, %c864], %19 {strides = array<i32>} : memref<4x4x1296xbf16, #tpu.memory_space<vmem>>, vector<4x4x144xbf16>,
    %c0_40 = arith.constant 0 : index
    %c2_41 = arith.constant 2 : index
    %c1_42 = arith.constant 1 : index
    %c0_43 = arith.constant 0 : index
    %21 = vector.load %arg1[%c0_40, %c2_41, %c1_42, %c0_43] : memref<1x6x6x144xbf16, #tpu.memory_space<vmem>>, vector<1x4x4x144xbf16>
    %22 = vector.shape_cast %21 : vector<1x4x4x144xbf16> to vector<4x4x144xbf16>
    %c0_44 = arith.constant 0 : index
    %c0_45 = arith.constant 0 : index
    %c1008 = arith.constant 1008 : index
    %23 = vector.load %arg5[%c0_44, %c0_45, %c1008] : memref<4x4x1296xbf16, #tpu.memory_space<vmem>>, vector<4x4x144xbf16>
    tpu.vector_store %arg5[%c0_44, %c0_45, %c1008], %22 {strides = array<i32>} : memref<4x4x1296xbf16, #tpu.memory_space<vmem>>, vector<4x4x144xbf16>,
    %c0_46 = arith.constant 0 : index
    %c2_47 = arith.constant 2 : index
    %c2_48 = arith.constant 2 : index
    %c0_49 = arith.constant 0 : index
    %24 = vector.load %arg1[%c0_46, %c2_47, %c2_48, %c0_49] : memref<1x6x6x144xbf16, #tpu.memory_space<vmem>>, vector<1x4x4x144xbf16>
    %25 = vector.shape_cast %24 : vector<1x4x4x144xbf16> to vector<4x4x144xbf16>
    %c0_50 = arith.constant 0 : index
    %c0_51 = arith.constant 0 : index
    %c1152 = arith.constant 1152 : index
    %26 = vector.load %arg5[%c0_50, %c0_51, %c1152] : memref<4x4x1296xbf16, #tpu.memory_space<vmem>>, vector<4x4x144xbf16>
    tpu.vector_store %arg5[%c0_50, %c0_51, %c1152], %25 {strides = array<i32>} : memref<4x4x1296xbf16, #tpu.memory_space<vmem>>, vector<4x4x144xbf16>,
    %c0_52 = arith.constant 0 : index
    %c0_53 = arith.constant 0 : index
    %c0_54 = arith.constant 0 : index
    %27 = vector.load %arg5[%c0_52, %c0_53, %c0_54] : memref<4x4x1296xbf16, #tpu.memory_space<vmem>>, vector<4x4x1296xbf16>
    %28 = vector.shape_cast %27 : vector<4x4x1296xbf16> to vector<16x1296xbf16>
    %c0_55 = arith.constant 0 : index
    %c0_56 = arith.constant 0 : index
    %29 = vector.load %arg2[%c0_55, %c0_56] : memref<1296x128xbf16, #tpu.memory_space<vmem>>, vector<1296x128xbf16>
    %cst = arith.constant dense<0.000000e+00> : vector<16x128xf32>
    %30 = tpu.matmul %28, %29, %cst {dimension_numbers = #tpu.dot_dimension_numbers<[1], [0], [0], [1], [0, 0, 1, 1], [], []>} : vector<16x1296xbf16>, vector<1296x128xbf16>, vector<16x128xf32> -> vector<16x128xf32>
    %c0_57 = arith.constant 0 : index
    %c0_58 = arith.constant 0 : index
    %31 = vector.load %arg3[%c0_57, %c0_58] : memref<1x128xf32, #tpu.memory_space<vmem>>, vector<1x128xf32>
    %32 = vector.broadcast %31 : vector<1x128xf32> to vector<16x128xf32>
    %33 = arith.addf %30, %32 : vector<16x128xf32>
    %cst_59 = arith.constant 0.000000e+00 : f32
    %34 = vector.broadcast %cst_59 : f32 to vector<16x128xf32>
    %35 = arith.maximumf %33, %34 : vector<16x128xf32>
    %36 = arith.truncf %35 : vector<16x128xf32> to vector<16x128xbf16>
    %37 = vector.shape_cast %36 : vector<16x128xbf16> to vector<1x16x128xbf16>
    %c0_60 = arith.constant 0 : index
    %c0_61 = arith.constant 0 : index
    %c0_62 = arith.constant 0 : index
    %38 = vector.load %arg4[%c0_60, %c0_61, %c0_62] : memref<1x16x128xbf16, #tpu.memory_space<vmem>>, vector<1x16x128xbf16>
    tpu.vector_store %arg4[%c0_60, %c0_61, %c0_62], %37 {strides = array<i32>} : memref<1x16x128xbf16, #tpu.memory_space<vmem>>, vector<1x16x128xbf16>,
    return
  }
  func.func @transform_0(%arg0: i32) -> (i32, i32, i32, i32) {
    %c0_i32 = arith.constant 0 : i32
    %c0_i32_0 = arith.constant 0 : i32
    %c0_i32_1 = arith.constant 0 : i32
    %c0_i32_2 = arith.constant 0 : i32
    return %arg0, %c0_i32, %c0_i32_0, %c0_i32_1 : i32, i32, i32, i32
  }
  func.func @transform_1(%arg0: i32) -> (i32, i32) {
    %c0_i32 = arith.constant 0 : i32
    %c0_i32_0 = arith.constant 0 : i32
    %c0_i32_1 = arith.constant 0 : i32
    return %c0_i32, %c0_i32_0 : i32, i32
  }
  func.func @transform_2(%arg0: i32) -> (i32, i32) {
    %c0_i32 = arith.constant 0 : i32
    %c0_i32_0 = arith.constant 0 : i32
    %c0_i32_1 = arith.constant 0 : i32
    return %c0_i32, %c0_i32_0 : i32, i32
  }
  func.func @transform_3(%arg0: i32) -> (i32, i32, i32) {
    %c0_i32 = arith.constant 0 : i32
    %c0_i32_0 = arith.constant 0 : i32
    %c0_i32_1 = arith.constant 0 : i32
    return %arg0, %c0_i32, %c0_i32_0 : i32, i32, i32
  }
}

module attributes {stable_mosaic.version = 11 : i64} {
  func.func @_deconv_kernel(%arg0: i32, %arg1: memref<1x10x10x32xbf16, #tpu.memory_space<vmem>>, %arg2: memref<288x128xbf16, #tpu.memory_space<vmem>>, %arg3: memref<1x128xf32, #tpu.memory_space<vmem>>, %arg4: memref<128x32xbf16, #tpu.memory_space<vmem>>, %arg5: memref<1x32xf32, #tpu.memory_space<vmem>>, %arg6: memref<1x64x32xf32, #tpu.memory_space<vmem>>, %arg7: memref<8x8x288xbf16, #tpu.memory_space<vmem>>) attributes {dimension_semantics = [#tpu.dimension_semantics<parallel>], iteration_bounds = array<i64: 2>, scalar_prefetch = 0 : i64, scratch_operands = 1 : i64, tpu.core_type = #tpu.core_type<tc>, window_params = [{transform_indices = @transform_0, window_bounds = array<i64: 1, 10, 10, 32>}, {pipeline_mode = #tpu.pipeline_mode<synchronous>, transform_indices = @transform_1, window_bounds = array<i64: 288, 128>}, {pipeline_mode = #tpu.pipeline_mode<synchronous>, transform_indices = @transform_2, window_bounds = array<i64: 1, 128>}, {pipeline_mode = #tpu.pipeline_mode<synchronous>, transform_indices = @transform_3, window_bounds = array<i64: 128, 32>}, {pipeline_mode = #tpu.pipeline_mode<synchronous>, transform_indices = @transform_4, window_bounds = array<i64: 1, 32>}, {transform_indices = @transform_5, window_bounds = array<i64: 1, 64, 32>}]} {
    %c0 = arith.constant 0 : index
    %c0_0 = arith.constant 0 : index
    %c0_1 = arith.constant 0 : index
    %c0_2 = arith.constant 0 : index
    %0 = vector.load %arg1[%c0, %c0_0, %c0_1, %c0_2] : memref<1x10x10x32xbf16, #tpu.memory_space<vmem>>, vector<1x8x8x32xbf16>
    %1 = vector.shape_cast %0 : vector<1x8x8x32xbf16> to vector<8x8x32xbf16>
    %c0_3 = arith.constant 0 : index
    %c0_4 = arith.constant 0 : index
    %c0_5 = arith.constant 0 : index
    %2 = vector.load %arg7[%c0_3, %c0_4, %c0_5] : memref<8x8x288xbf16, #tpu.memory_space<vmem>>, vector<8x8x32xbf16>
    tpu.vector_store %arg7[%c0_3, %c0_4, %c0_5], %1 {strides = array<i32>} : memref<8x8x288xbf16, #tpu.memory_space<vmem>>, vector<8x8x32xbf16>,
    %c0_6 = arith.constant 0 : index
    %c0_7 = arith.constant 0 : index
    %c1 = arith.constant 1 : index
    %c0_8 = arith.constant 0 : index
    %3 = vector.load %arg1[%c0_6, %c0_7, %c1, %c0_8] : memref<1x10x10x32xbf16, #tpu.memory_space<vmem>>, vector<1x8x8x32xbf16>
    %4 = vector.shape_cast %3 : vector<1x8x8x32xbf16> to vector<8x8x32xbf16>
    %c0_9 = arith.constant 0 : index
    %c0_10 = arith.constant 0 : index
    %c32 = arith.constant 32 : index
    %5 = vector.load %arg7[%c0_9, %c0_10, %c32] : memref<8x8x288xbf16, #tpu.memory_space<vmem>>, vector<8x8x32xbf16>
    tpu.vector_store %arg7[%c0_9, %c0_10, %c32], %4 {strides = array<i32>} : memref<8x8x288xbf16, #tpu.memory_space<vmem>>, vector<8x8x32xbf16>,
    %c0_11 = arith.constant 0 : index
    %c0_12 = arith.constant 0 : index
    %c2 = arith.constant 2 : index
    %c0_13 = arith.constant 0 : index
    %6 = vector.load %arg1[%c0_11, %c0_12, %c2, %c0_13] : memref<1x10x10x32xbf16, #tpu.memory_space<vmem>>, vector<1x8x8x32xbf16>
    %7 = vector.shape_cast %6 : vector<1x8x8x32xbf16> to vector<8x8x32xbf16>
    %c0_14 = arith.constant 0 : index
    %c0_15 = arith.constant 0 : index
    %c64 = arith.constant 64 : index
    %8 = vector.load %arg7[%c0_14, %c0_15, %c64] : memref<8x8x288xbf16, #tpu.memory_space<vmem>>, vector<8x8x32xbf16>
    tpu.vector_store %arg7[%c0_14, %c0_15, %c64], %7 {strides = array<i32>} : memref<8x8x288xbf16, #tpu.memory_space<vmem>>, vector<8x8x32xbf16>,
    %c0_16 = arith.constant 0 : index
    %c1_17 = arith.constant 1 : index
    %c0_18 = arith.constant 0 : index
    %c0_19 = arith.constant 0 : index
    %9 = vector.load %arg1[%c0_16, %c1_17, %c0_18, %c0_19] : memref<1x10x10x32xbf16, #tpu.memory_space<vmem>>, vector<1x8x8x32xbf16>
    %10 = vector.shape_cast %9 : vector<1x8x8x32xbf16> to vector<8x8x32xbf16>
    %c0_20 = arith.constant 0 : index
    %c0_21 = arith.constant 0 : index
    %c96 = arith.constant 96 : index
    %11 = vector.load %arg7[%c0_20, %c0_21, %c96] : memref<8x8x288xbf16, #tpu.memory_space<vmem>>, vector<8x8x32xbf16>
    tpu.vector_store %arg7[%c0_20, %c0_21, %c96], %10 {strides = array<i32>} : memref<8x8x288xbf16, #tpu.memory_space<vmem>>, vector<8x8x32xbf16>,
    %c0_22 = arith.constant 0 : index
    %c1_23 = arith.constant 1 : index
    %c1_24 = arith.constant 1 : index
    %c0_25 = arith.constant 0 : index
    %12 = vector.load %arg1[%c0_22, %c1_23, %c1_24, %c0_25] : memref<1x10x10x32xbf16, #tpu.memory_space<vmem>>, vector<1x8x8x32xbf16>
    %13 = vector.shape_cast %12 : vector<1x8x8x32xbf16> to vector<8x8x32xbf16>
    %c0_26 = arith.constant 0 : index
    %c0_27 = arith.constant 0 : index
    %c128 = arith.constant 128 : index
    %14 = vector.load %arg7[%c0_26, %c0_27, %c128] : memref<8x8x288xbf16, #tpu.memory_space<vmem>>, vector<8x8x32xbf16>
    tpu.vector_store %arg7[%c0_26, %c0_27, %c128], %13 {strides = array<i32>} : memref<8x8x288xbf16, #tpu.memory_space<vmem>>, vector<8x8x32xbf16>,
    %c0_28 = arith.constant 0 : index
    %c1_29 = arith.constant 1 : index
    %c2_30 = arith.constant 2 : index
    %c0_31 = arith.constant 0 : index
    %15 = vector.load %arg1[%c0_28, %c1_29, %c2_30, %c0_31] : memref<1x10x10x32xbf16, #tpu.memory_space<vmem>>, vector<1x8x8x32xbf16>
    %16 = vector.shape_cast %15 : vector<1x8x8x32xbf16> to vector<8x8x32xbf16>
    %c0_32 = arith.constant 0 : index
    %c0_33 = arith.constant 0 : index
    %c160 = arith.constant 160 : index
    %17 = vector.load %arg7[%c0_32, %c0_33, %c160] : memref<8x8x288xbf16, #tpu.memory_space<vmem>>, vector<8x8x32xbf16>
    tpu.vector_store %arg7[%c0_32, %c0_33, %c160], %16 {strides = array<i32>} : memref<8x8x288xbf16, #tpu.memory_space<vmem>>, vector<8x8x32xbf16>,
    %c0_34 = arith.constant 0 : index
    %c2_35 = arith.constant 2 : index
    %c0_36 = arith.constant 0 : index
    %c0_37 = arith.constant 0 : index
    %18 = vector.load %arg1[%c0_34, %c2_35, %c0_36, %c0_37] : memref<1x10x10x32xbf16, #tpu.memory_space<vmem>>, vector<1x8x8x32xbf16>
    %19 = vector.shape_cast %18 : vector<1x8x8x32xbf16> to vector<8x8x32xbf16>
    %c0_38 = arith.constant 0 : index
    %c0_39 = arith.constant 0 : index
    %c192 = arith.constant 192 : index
    %20 = vector.load %arg7[%c0_38, %c0_39, %c192] : memref<8x8x288xbf16, #tpu.memory_space<vmem>>, vector<8x8x32xbf16>
    tpu.vector_store %arg7[%c0_38, %c0_39, %c192], %19 {strides = array<i32>} : memref<8x8x288xbf16, #tpu.memory_space<vmem>>, vector<8x8x32xbf16>,
    %c0_40 = arith.constant 0 : index
    %c2_41 = arith.constant 2 : index
    %c1_42 = arith.constant 1 : index
    %c0_43 = arith.constant 0 : index
    %21 = vector.load %arg1[%c0_40, %c2_41, %c1_42, %c0_43] : memref<1x10x10x32xbf16, #tpu.memory_space<vmem>>, vector<1x8x8x32xbf16>
    %22 = vector.shape_cast %21 : vector<1x8x8x32xbf16> to vector<8x8x32xbf16>
    %c0_44 = arith.constant 0 : index
    %c0_45 = arith.constant 0 : index
    %c224 = arith.constant 224 : index
    %23 = vector.load %arg7[%c0_44, %c0_45, %c224] : memref<8x8x288xbf16, #tpu.memory_space<vmem>>, vector<8x8x32xbf16>
    tpu.vector_store %arg7[%c0_44, %c0_45, %c224], %22 {strides = array<i32>} : memref<8x8x288xbf16, #tpu.memory_space<vmem>>, vector<8x8x32xbf16>,
    %c0_46 = arith.constant 0 : index
    %c2_47 = arith.constant 2 : index
    %c2_48 = arith.constant 2 : index
    %c0_49 = arith.constant 0 : index
    %24 = vector.load %arg1[%c0_46, %c2_47, %c2_48, %c0_49] : memref<1x10x10x32xbf16, #tpu.memory_space<vmem>>, vector<1x8x8x32xbf16>
    %25 = vector.shape_cast %24 : vector<1x8x8x32xbf16> to vector<8x8x32xbf16>
    %c0_50 = arith.constant 0 : index
    %c0_51 = arith.constant 0 : index
    %c256 = arith.constant 256 : index
    %26 = vector.load %arg7[%c0_50, %c0_51, %c256] : memref<8x8x288xbf16, #tpu.memory_space<vmem>>, vector<8x8x32xbf16>
    tpu.vector_store %arg7[%c0_50, %c0_51, %c256], %25 {strides = array<i32>} : memref<8x8x288xbf16, #tpu.memory_space<vmem>>, vector<8x8x32xbf16>,
    %c0_52 = arith.constant 0 : index
    %c0_53 = arith.constant 0 : index
    %c0_54 = arith.constant 0 : index
    %27 = vector.load %arg7[%c0_52, %c0_53, %c0_54] : memref<8x8x288xbf16, #tpu.memory_space<vmem>>, vector<8x8x288xbf16>
    %28 = vector.shape_cast %27 : vector<8x8x288xbf16> to vector<64x288xbf16>
    %c0_55 = arith.constant 0 : index
    %c0_56 = arith.constant 0 : index
    %29 = vector.load %arg2[%c0_55, %c0_56] : memref<288x128xbf16, #tpu.memory_space<vmem>>, vector<288x128xbf16>
    %cst = arith.constant dense<0.000000e+00> : vector<64x128xf32>
    %30 = tpu.matmul %28, %29, %cst {dimension_numbers = #tpu.dot_dimension_numbers<[1], [0], [0], [1], [0, 0, 1, 1], [], []>} : vector<64x288xbf16>, vector<288x128xbf16>, vector<64x128xf32> -> vector<64x128xf32>
    %c0_57 = arith.constant 0 : index
    %c0_58 = arith.constant 0 : index
    %31 = vector.load %arg3[%c0_57, %c0_58] : memref<1x128xf32, #tpu.memory_space<vmem>>, vector<1x128xf32>
    %32 = vector.broadcast %31 : vector<1x128xf32> to vector<64x128xf32>
    %33 = arith.addf %30, %32 : vector<64x128xf32>
    %cst_59 = arith.constant 0.000000e+00 : f32
    %34 = vector.broadcast %cst_59 : f32 to vector<64x128xf32>
    %35 = arith.maximumf %33, %34 : vector<64x128xf32>
    %36 = arith.truncf %35 : vector<64x128xf32> to vector<64x128xbf16>
    %c0_60 = arith.constant 0 : index
    %c0_61 = arith.constant 0 : index
    %37 = vector.load %arg4[%c0_60, %c0_61] : memref<128x32xbf16, #tpu.memory_space<vmem>>, vector<128x32xbf16>
    %cst_62 = arith.constant dense<0.000000e+00> : vector<64x32xf32>
    %38 = tpu.matmul %36, %37, %cst_62 {dimension_numbers = #tpu.dot_dimension_numbers<[1], [0], [0], [1], [0, 0, 1, 1], [], []>} : vector<64x128xbf16>, vector<128x32xbf16>, vector<64x32xf32> -> vector<64x32xf32>
    %c0_63 = arith.constant 0 : index
    %c0_64 = arith.constant 0 : index
    %39 = vector.load %arg5[%c0_63, %c0_64] : memref<1x32xf32, #tpu.memory_space<vmem>>, vector<1x32xf32>
    %40 = vector.broadcast %39 : vector<1x32xf32> to vector<64x32xf32>
    %41 = arith.addf %38, %40 : vector<64x32xf32>
    %42 = vector.shape_cast %41 : vector<64x32xf32> to vector<1x64x32xf32>
    %c0_65 = arith.constant 0 : index
    %c0_66 = arith.constant 0 : index
    %c0_67 = arith.constant 0 : index
    %43 = vector.load %arg6[%c0_65, %c0_66, %c0_67] : memref<1x64x32xf32, #tpu.memory_space<vmem>>, vector<1x64x32xf32>
    tpu.vector_store %arg6[%c0_65, %c0_66, %c0_67], %42 {strides = array<i32>} : memref<1x64x32xf32, #tpu.memory_space<vmem>>, vector<1x64x32xf32>,
    return
  }
  func.func @transform_0(%arg0: i32) -> (i32, i32, i32, i32) {
    %c0_i32 = arith.constant 0 : i32
    %c0_i32_0 = arith.constant 0 : i32
    %c0_i32_1 = arith.constant 0 : i32
    %c0_i32_2 = arith.constant 0 : i32
    return %arg0, %c0_i32, %c0_i32_0, %c0_i32_1 : i32, i32, i32, i32
  }
  func.func @transform_1(%arg0: i32) -> (i32, i32) {
    %c0_i32 = arith.constant 0 : i32
    %c0_i32_0 = arith.constant 0 : i32
    %c0_i32_1 = arith.constant 0 : i32
    return %c0_i32, %c0_i32_0 : i32, i32
  }
  func.func @transform_2(%arg0: i32) -> (i32, i32) {
    %c0_i32 = arith.constant 0 : i32
    %c0_i32_0 = arith.constant 0 : i32
    %c0_i32_1 = arith.constant 0 : i32
    return %c0_i32, %c0_i32_0 : i32, i32
  }
  func.func @transform_3(%arg0: i32) -> (i32, i32) {
    %c0_i32 = arith.constant 0 : i32
    %c0_i32_0 = arith.constant 0 : i32
    %c0_i32_1 = arith.constant 0 : i32
    return %c0_i32, %c0_i32_0 : i32, i32
  }
  func.func @transform_4(%arg0: i32) -> (i32, i32) {
    %c0_i32 = arith.constant 0 : i32
    %c0_i32_0 = arith.constant 0 : i32
    %c0_i32_1 = arith.constant 0 : i32
    return %c0_i32, %c0_i32_0 : i32, i32
  }
  func.func @transform_5(%arg0: i32) -> (i32, i32, i32) {
    %c0_i32 = arith.constant 0 : i32
    %c0_i32_0 = arith.constant 0 : i32
    %c0_i32_1 = arith.constant 0 : i32
    return %arg0, %c0_i32, %c0_i32_0 : i32, i32, i32
  }
}

</mosaic_0001>

<llo_original>
// kernel: pose_mobilenetv3_forward.5
$region0: #{pose_mobilenetv3_forward.5}
  #allocation0 [shape = 'u32[]', space=smem, size = 0x4, offset = 0x4, fixed_abs, tag = 'smem constant byte address 0x4 - core index']
  #allocation1 [shape = 'u32[144,128]{1,0:T(1,128)}', space=vmem, size = 0x12000, scoped, tag = 'internal scratch']
  %s0 = inlined_call_operand.vmem [shape: bf16[2,16,16,27], index: 0, kind: input, shape index: {}]
  %s1 = inlined_call_operand.vmem [shape: bf16[27,16], index: 1, kind: input, shape index: {}]
  %s2 = inlined_call_operand.vmem [shape: f32[1,16], index: 2, kind: input, shape index: {}]
  %s3 = inlined_call_operand.vmem [shape: f32[2,16,16,16], index: 3, kind: output, shape index: {}]
  %s4 = sld [smem:[#allocation0]]
  $region45: #{pose_mobilenetv3_forward.5} parent=0
    _
  %s6 = ssub.s32 1, %s4
  %s7 = scalar_select 0, %s6, %s4
  loop: start=0, step=1, limit=4
  $region2: #{pose_mobilenetv3_forward.5} parent=0 // loop_pre_header
    _
  $region3: #{pose_mobilenetv3_forward.5} parent=0 // loop_header
    %s9 = sphi 0, %s13
    %p10 = scmp.ge.s32.totalorder %s9, 4
    %s19 = sphi 0, %s21
    %s22 = sphi 0, %s19
    %s23 = sphi 0, %s22
    %s39 = sphi 0, %s23
    %s43 = sphi 0, %s43
    %s45 = sphi 0, %s43
    %s46 = sphi 0, %s45
    %s60 = sphi 0, %s46
    %s64 = sphi 0, %s64
    %s66 = sphi 0, %s64
    %s67 = sphi 0, %s66
    %s81 = sphi 0, %s67
    %s87 = sphi 0, %s89
    %s90 = sphi 0, %s87
    %s91 = sphi 0, %s90
    %s107 = sphi 0, %s91
  $region4: #{pose_mobilenetv3_forward.5} parent=0 // loop_header_branch
    %12 = sbr.rel (%p10) target = $region8
  $region5: #{pose_mobilenetv3_forward.5} parent=0 // loop_body
    %s14 = ssub.s32 %s9, 1
    %s15 = ssub.s32 %s9, 2
    %s16 = sadd.s32 %s9, 1
    %s17 = ssub.s32 %s9, %s16
    %p18 = scmp.eq.s32.totalorder %s17, 0
    %s20 = sadd.s32 %s19, 1
    %s21 = scalar_select %p18, %s19, %s20
    %p24 = pneg %p18
    %p25 = scmp.eq.s32.totalorder %s9, 1
    %p26 = por %p24, %p25
    %p27 = scmp.ne.s32.totalorder %s19, %s22
    %p28 = scmp.eq.s32.totalorder %s9, 0
    %p29 = por %p27, %p28
    %p30 = scmp.ne.s32.totalorder %s19, %s22
    %p31 = scmp.eq.s32.totalorder %s14, 1
    %p32 = por %p30, %p31
    %p33 = scmp.ne.s32.totalorder %s22, %s23
    %p34 = scmp.eq.s32.totalorder %s14, 0
    %p35 = por %p33, %p34
    %p36 = scmp.ne.s32.totalorder %s22, %s23
    %p37 = scmp.eq.s32.totalorder %s15, 1
    %p38 = por %p36, %p37
    %p40 = scmp.ne.s32.totalorder %s23, %s39
    %p41 = scmp.eq.s32.totalorder %s15, 0
    %p42 = por %p40, %p41
    %s44 = sadd.s32 %s43, 1
    %p47 = scmp.eq.s32.totalorder %s9, 1
    %p48 = scmp.ne.s32.totalorder %s43, %s45
    %p49 = scmp.eq.s32.totalorder %s9, 0
    %p50 = por %p48, %p49
    %p51 = scmp.ne.s32.totalorder %s43, %s45
    %p52 = scmp.eq.s32.totalorder %s14, 1
    %p53 = por %p51, %p52
    %p54 = scmp.ne.s32.totalorder %s45, %s46
    %p55 = scmp.eq.s32.totalorder %s14, 0
    %p56 = por %p54, %p55
    %p57 = scmp.ne.s32.totalorder %s45, %s46
    %p58 = scmp.eq.s32.totalorder %s15, 1
    %p59 = por %p57, %p58
    %p61 = scmp.ne.s32.totalorder %s46, %s60
    %p62 = scmp.eq.s32.totalorder %s15, 0
    %p63 = por %p61, %p62
    %s65 = sadd.s32 %s64, 1
    %p68 = scmp.eq.s32.totalorder %s9, 1
    %p69 = scmp.ne.s32.totalorder %s64, %s66
    %p70 = scmp.eq.s32.totalorder %s9, 0
    %p71 = por %p69, %p70
    %p72 = scmp.ne.s32.totalorder %s64, %s66
    %p73 = scmp.eq.s32.totalorder %s14, 1
    %p74 = por %p72, %p73
    %p75 = scmp.ne.s32.totalorder %s66, %s67
    %p76 = scmp.eq.s32.totalorder %s14, 0
    %p77 = por %p75, %p76
    %p78 = scmp.ne.s32.totalorder %s66, %s67
    %p79 = scmp.eq.s32.totalorder %s15, 1
    %p80 = por %p78, %p79
    %p82 = scmp.ne.s32.totalorder %s67, %s81
    %p83 = scmp.eq.s32.totalorder %s15, 0
    %p84 = por %p82, %p83
    %s85 = ssub.s32 %s9, %s16
    %p86 = scmp.eq.s32.totalorder %s85, 0
    %s88 = sadd.s32 %s87, 1
    %s89 = scalar_select %p86, %s87, %s88
    %p92 = pneg %p86
    %p93 = scmp.eq.s32.totalorder %s9, 1
    %p94 = por %p92, %p93
    %p95 = scmp.ne.s32.totalorder %s87, %s90
    %p96 = scmp.eq.s32.totalorder %s9, 0
    %p97 = por %p95, %p96
    %p98 = scmp.ne.s32.totalorder %s87, %s90
    %p99 = scmp.eq.s32.totalorder %s14, 1
    %p100 = por %p98, %p99
    %p101 = scmp.ne.s32.totalorder %s90, %s91
    %p102 = scmp.eq.s32.totalorder %s14, 0
    %p103 = por %p101, %p102
    %p104 = scmp.ne.s32.totalorder %s90, %s91
    %p105 = scmp.eq.s32.totalorder %s15, 1
    %p106 = por %p104, %p105
    %p108 = scmp.ne.s32.totalorder %s91, %s107
    %p109 = scmp.eq.s32.totalorder %s15, 0
    %p110 = por %p108, %p109
    %p111 = scmp.le.s32.totalorder 1, %s9
    %p112 = scmp.lt.s32.totalorder %s9, 3
    %p113 = pnand %p111, %p112
    %p114 = pneg %p113
    // Predicated region
    $region9: #{pose_mobilenetv3_forward.5} parent=5 // pred_check
      _
    $region10: #{pose_mobilenetv3_forward.5} parent=5 // pred_check_branch
      %116 = sbr.rel (%p113) target = $region12
    $region11: #{pose_mobilenetv3_forward.5} parent=5 // pred_region
      %s117 = ssub.s32 %s9, 1
      // Predicated region
      $region13: #{pose_mobilenetv3_forward.5} parent=11 // pred_check
        %p118 = pneg %p56
      $region14: #{pose_mobilenetv3_forward.5} parent=11 // pred_check_branch
        %120 = sbr.rel (%p118) target = $region16
      $region15: #{pose_mobilenetv3_forward.5} parent=11 // pred_region
        _
      $region16: #{pose_mobilenetv3_forward.5} parent=11 // pred_fallthru
        _
      // Predicated region
      $region17: #{pose_mobilenetv3_forward.5} parent=11 // pred_check
        %p121 = pneg %p77
      $region18: #{pose_mobilenetv3_forward.5} parent=11 // pred_check_branch
        %123 = sbr.rel (%p121) target = $region20
      $region19: #{pose_mobilenetv3_forward.5} parent=11 // pred_region
        _
      $region20: #{pose_mobilenetv3_forward.5} parent=11 // pred_fallthru
        _
    $region12: #{pose_mobilenetv3_forward.5} parent=5 // pred_fallthru
      _
    %p124 = scmp.lt.s32.totalorder %s9, 2
    // Predicated region
    $region21: #{pose_mobilenetv3_forward.5} parent=5 // pred_check
      %p125 = pneg %p124
    $region22: #{pose_mobilenetv3_forward.5} parent=5 // pred_check_branch
      %127 = sbr.rel (%p125) target = $region24
    $region23: #{pose_mobilenetv3_forward.5} parent=5 // pred_region
      // Predicated region
      $region25: #{pose_mobilenetv3_forward.5} parent=23 // pred_check
        %p128 = pneg %p29
      $region26: #{pose_mobilenetv3_forward.5} parent=23 // pred_check_branch
        %130 = sbr.rel (%p128) target = $region28
      $region27: #{pose_mobilenetv3_forward.5} parent=23 // pred_region
        %p131 = scmp.lt.s32.totalorder %s9, 1
        %s132 = scalar_select %p131, %s9, 1
        %s133 = smul.addr %s132, 32
        %s134 = smul.addr %s133, 4
        %s135 = scalar_lea.vmem %s0, %s134
      $region28: #{pose_mobilenetv3_forward.5} parent=23 // pred_fallthru
        _
    $region24: #{pose_mobilenetv3_forward.5} parent=5 // pred_fallthru
      _
    %p136 = scmp.le.s32.totalorder 1, %s9
    %p137 = scmp.lt.s32.totalorder %s9, 3
    %p138 = pnand %p136, %p137
    %p139 = pneg %p138
    // Predicated region
    $region29: #{pose_mobilenetv3_forward.5} parent=5 // pred_check
      _
    $region30: #{pose_mobilenetv3_forward.5} parent=5 // pred_check_branch
      %141 = sbr.rel (%p138) target = $region32
    $region31: #{pose_mobilenetv3_forward.5} parent=5 // pred_region
      %s142 = ssub.s32 %s9, 1
      %p143 = scmp.lt.s32.totalorder %s14, 1
      %s144 = scalar_select %p143, %s14, 1
      %s145 = smul.addr %s144, 32
      %s146 = smul.addr %s145, 4
      %s147 = scalar_lea.vmem %s0, %s146
      %p148 = pneg %p35
      %p149 = pneg %p32
      %p150 = pneg %p56
      %p151 = pneg %p53
      %p152 = pneg %p77
      %p153 = pneg %p74
      %p154 = pneg %p103
      %p155 = pneg %p100
      %p156 = scmp.lt.s32.totalorder %s14, 1
      %s157 = scalar_select %p156, %s14, 1
      %s158 = smul.addr %s157, 32
      %s159 = smul.addr %s158, 8
      %s160 = scalar_lea.vmem %s3, %s159
      %p161 = scmp.lt.s32.totalorder %s14, 1
      %s162 = scalar_select %p161, %s14, 1
      %s163 = smul.addr %s162, 32
      %s164 = smul.addr %s163, 4
      %s165 = scalar_lea.vmem %s0, %s164
      %p166 = scmp.lt.s32.totalorder %s14, 1
      %s167 = scalar_select %p166, %s14, 1
      %s168 = smul.addr %s167, 32
      %s169 = smul.addr %s168, 8
      %s170 = scalar_lea.vmem %s3, %s169
      %v172 = vld [vmem:[%s165] sm:$0xf]
      %v173 = vld [vmem:[%s165 + $0x4] sm:$0xf]
      %v174 = vld [vmem:[%s165 + $0x8] sm:$0xf]
      %v175 = vld [vmem:[%s165 + $0xc] sm:$0xf]
      %v176 = vld [vmem:[%s165 + $0x10] sm:$0xf]
      %v177 = vld [vmem:[%s165 + $0x14] sm:$0xf]
      %v178 = vld [vmem:[%s165 + $0x18] sm:$0xf]
      %v179 = vld [vmem:[%s165 + $0x1c] sm:$0xf]
      %v180 = vld [vmem:[%s165 + $0x20] sm:$0xf]
      %v181 = vld [vmem:[%s165 + $0x24] sm:$0xf]
      %v182 = vld [vmem:[%s165 + $0x28] sm:$0xf]
      %v183 = vld [vmem:[%s165 + $0x2c] sm:$0xf]
      %v184 = vld [vmem:[%s165 + $0x30] sm:$0xf]
      %v185 = vld [vmem:[%s165 + $0x34] sm:$0xf]
      %v186 = vld [vmem:[%s165 + $0x38] sm:$0xf]
      %v187 = vld [vmem:[%s165 + $0x3c] sm:$0xf]
      %v188 = vld [vmem:[%s165 + $0x40] sm:$0xf]
      %v189 = vld [vmem:[%s165 + $0x44] sm:$0xf]
      %v190 = vld [vmem:[%s165 + $0x48] sm:$0xf]
      %v191 = vld [vmem:[%s165 + $0x4c] sm:$0xf]
      %v192 = vld [vmem:[%s165 + $0x50] sm:$0xf]
      %v193 = vld [vmem:[%s165 + $0x54] sm:$0xf]
      %v194 = vld [vmem:[%s165 + $0x58] sm:$0xf]
      %v195 = vld [vmem:[%s165 + $0x5c] sm:$0xf]
      %v196 = vld [vmem:[%s165 + $0x60] sm:$0xf]
      %v197 = vld [vmem:[%s165 + $0x64] sm:$0xf]
      %v198 = vld [vmem:[%s165 + $0x68] sm:$0xf]
      %v199 = vld [vmem:[%s165 + $0x6c] sm:$0xf]
      %v200 = vld [vmem:[%s165 + $0x70] sm:$0xf]
      %v201 = vld [vmem:[%s165 + $0x74] sm:$0xf]
      %v202 = vld [vmem:[%s165 + $0x78] sm:$0xf]
      %v203 = vld [vmem:[%s165 + $0x7c] sm:$0xf]
      %v204 = vld [vmem:[%s1] sm:$0xf]
      %v205 = vld [vmem:[%s1 + $0x4] sm:$0xf]
      %v206 = vld [vmem:[%s1 + $0x8] sm:$0xf]
      %v207 = vld [vmem:[%s1 + $0xc] sm:$0x3]
      %v208 = vld [vmem:[%s2] sm:$0x1]
      %v210 = vlaneseq
      %v211 = vshrl.u32 %v210, 7
      %v212 = vsub.s32 0, %v211
      %v213 = vrot.slane %v208, %v212
      %v247 = vunpack.c.l.b16 %v172
      %v248 = vunpack.c.l.b16 %v173
      %v249 = vunpack.c.l.b16 %v174
      %v250 = vunpack.c.l.b16 %v175
      %v251 = vunpack.c.l.b16 %v176
      %v252 = vunpack.c.l.b16 %v177
      %v253 = vunpack.c.l.b16 %v178
      %v254 = vunpack.c.l.b16 %v179
      %v255 = vunpack.c.l.b16 %v180
      %v256 = vunpack.c.l.b16 %v181
      %v257 = vunpack.c.l.b16 %v182
      %v258 = vunpack.c.l.b16 %v183
      %v259 = vunpack.c.l.b16 %v184
      %v260 = vunpack.c.l.b16 %v185
      %v261 = vunpack.c.l.b16 %v186
      %v262 = vunpack.c.l.b16 %v187
      %v263 = vunpack.c.l.b16 %v188
      %v264 = vunpack.c.l.b16 %v189
      %v265 = vunpack.c.l.b16 %v190
      %v266 = vunpack.c.l.b16 %v191
      %v267 = vunpack.c.l.b16 %v192
      %v268 = vunpack.c.l.b16 %v193
      %v269 = vunpack.c.l.b16 %v194
      %v270 = vunpack.c.l.b16 %v195
      %v271 = vunpack.c.l.b16 %v196
      %v272 = vunpack.c.l.b16 %v197
      %v273 = vunpack.c.l.b16 %v198
      %v274 = vunpack.c.l.b16 %v199
      %v275 = vunpack.c.l.b16 %v200
      %v276 = vunpack.c.l.b16 %v201
      %v277 = vunpack.c.l.b16 %v202
      %v278 = vunpack.c.l.b16 %v203
      %v279 = vpack.c.b16 %v248, %v247
      %v280 = vpack.c.b16 %v250, %v249
      %v281 = vpack.c.b16 %v252, %v251
      %v282 = vpack.c.b16 %v254, %v253
      %v283 = vpack.c.b16 %v256, %v255
      %v284 = vpack.c.b16 %v258, %v257
      %v285 = vpack.c.b16 %v260, %v259
      %v286 = vpack.c.b16 %v262, %v261
      %v287 = vpack.c.b16 %v264, %v263
      %v288 = vpack.c.b16 %v266, %v265
      %v289 = vpack.c.b16 %v268, %v267
      %v290 = vpack.c.b16 %v270, %v269
      %v291 = vpack.c.b16 %v272, %v271
      %v292 = vpack.c.b16 %v274, %v273
      %v293 = vpack.c.b16 %v276, %v275
      %v294 = vpack.c.b16 %v278, %v277
      %v299 = vunpack.c.l.b16 %v204
      %v300 = vunpack.c.l.b16 %v205
      %v301 = vunpack.c.l.b16 %v206
      %v302 = vunpack.c.l.b16 %v207
      %v303 = vpack.c.b16 %v300, %v299
      %v304 = vpack.c.b16 %v302, %v301
      %vm306 = vcmask 220160
      %v308 = vsel %vm306, %v279, 0
      %v311 = vsel %vm306, %v280, 0
      %v314 = vsel %vm306, %v281, 0
      %v317 = vsel %vm306, %v282, 0
      %v320 = vsel %vm306, %v283, 0
      %v323 = vsel %vm306, %v284, 0
      %v326 = vsel %vm306, %v285, 0
      %v329 = vsel %vm306, %v286, 0
      %v332 = vsel %vm306, %v287, 0
      %v335 = vsel %vm306, %v288, 0
      %v338 = vsel %vm306, %v289, 0
      %v341 = vsel %vm306, %v290, 0
      %v344 = vsel %vm306, %v291, 0
      %v347 = vsel %vm306, %v292, 0
      %v350 = vsel %vm306, %v293, 0
      %v353 = vsel %vm306, %v294, 0
      %vm355 = vcmask 1044480
      %vm356 = vcmask 1045504
      %v357 = vsel %vm355, 4294967295, 65535
      %v358 = vsel %vm356, %v357, 0
      %v360 = vand.u32 %v304, %v358
      %362 = vmatprep.subr.bf16.mxu0 0
      %363 = vmatpush1.bf16.msra.mxu0 %v303
      %364 = vmatprep.subr.bf16.mxu0 0
      %365 = vmatpush1.bf16.msra.mxu0 %v360
      %366 = vmatprep.subr.bf16.mxu0 0
      %367 = vmatpush1.bf16.msra.mxu0 0
      %368 = vmatprep.subr.bf16.mxu0 0
      %369 = vmatpush1.bf16.msra.mxu0 0
      %370 = vmatprep.subr.bf16.mxu0 0
      %371 = vmatpush1.bf16.msra.mxu0 0
      %372 = vmatprep.subr.bf16.mxu0 0
      %373 = vmatpush1.bf16.msra.mxu0 0
      %374 = vmatprep.subr.bf16.mxu0 0
      %375 = vmatpush1.bf16.msra.mxu0 0
      %376 = vmatprep.subr.bf16.mxu0 0
      %377 = vmatpush1.bf16.msra.mxu0 0
      %378 = vmatprep.subr.bf16.mxu0 0
      %379 = vmatpush1.bf16.msra.mxu0 0
      %380 = vmatprep.subr.bf16.mxu0 0
      %381 = vmatpush1.bf16.msra.mxu0 0
      %382 = vmatprep.subr.bf16.mxu0 0
      %383 = vmatpush1.bf16.msra.mxu0 0
      %384 = vmatprep.subr.bf16.mxu0 0
      %385 = vmatpush1.bf16.msra.mxu0 0
      %386 = vmatprep.subr.bf16.mxu0 0
      %387 = vmatpush1.bf16.msra.mxu0 0
      %388 = vmatprep.subr.bf16.mxu0 0
      %389 = vmatpush1.bf16.msra.mxu0 0
      %390 = vmatprep.subr.bf16.mxu0 0
      %391 = vmatpush1.bf16.msra.mxu0 0
      %392 = vmatprep.subr.bf16.mxu0 0
      %393 = vmatpush1.bf16.msra.mxu0 0
      %394 = vmatprep.mubr.bf16.mxu0 0
      %395 = vmatmul.mubr.bf16.gmra.mrb[0].mxu0 %v308
      %v396 = vpop.f32.mrb[0].mxu0
      %v397 = vadd.f32 %v213, %v396
      %v398 = vpop.f32.mrb[0].mxu0
      %v399 = vpop.f32.mrb[0].mxu0
      %v400 = vadd.f32 %v213, %v399
      %v401 = vpop.f32.mrb[0].mxu0
      %402 = vmatprep.mubr.bf16.mxu0 0
      %403 = vmatmul.mubr.bf16.gmra.mrb[0].mxu0 %v311
      %v404 = vpop.f32.mrb[0].mxu0
      %v405 = vadd.f32 %v213, %v404
      %v406 = vpop.f32.mrb[0].mxu0
      %v407 = vpop.f32.mrb[0].mxu0
      %v408 = vadd.f32 %v213, %v407
      %v409 = vpop.f32.mrb[0].mxu0
      %410 = vmatprep.mubr.bf16.mxu0 0
      %411 = vmatmul.mubr.bf16.gmra.mrb[0].mxu0 %v314
      %v412 = vpop.f32.mrb[0].mxu0
      %v413 = vadd.f32 %v213, %v412
      %v414 = vpop.f32.mrb[0].mxu0
      %v415 = vpop.f32.mrb[0].mxu0
      %v416 = vadd.f32 %v213, %v415
      %v417 = vpop.f32.mrb[0].mxu0
      %418 = vmatprep.mubr.bf16.mxu0 0
      %419 = vmatmul.mubr.bf16.gmra.mrb[0].mxu0 %v317
      %v420 = vpop.f32.mrb[0].mxu0
      %v421 = vadd.f32 %v213, %v420
      %v422 = vpop.f32.mrb[0].mxu0
      %v423 = vpop.f32.mrb[0].mxu0
      %v424 = vadd.f32 %v213, %v423
      %v425 = vpop.f32.mrb[0].mxu0
      %426 = vmatprep.mubr.bf16.mxu0 0
      %427 = vmatmul.mubr.bf16.gmra.mrb[0].mxu0 %v320
      %v428 = vpop.f32.mrb[0].mxu0
      %v429 = vadd.f32 %v213, %v428
      %v430 = vpop.f32.mrb[0].mxu0
      %v431 = vpop.f32.mrb[0].mxu0
      %v432 = vadd.f32 %v213, %v431
      %v433 = vpop.f32.mrb[0].mxu0
      %434 = vmatprep.mubr.bf16.mxu0 0
      %435 = vmatmul.mubr.bf16.gmra.mrb[0].mxu0 %v323
      %v436 = vpop.f32.mrb[0].mxu0
      %v437 = vadd.f32 %v213, %v436
      %v438 = vpop.f32.mrb[0].mxu0
      %v439 = vpop.f32.mrb[0].mxu0
      %v440 = vadd.f32 %v213, %v439
      %v441 = vpop.f32.mrb[0].mxu0
      %442 = vmatprep.mubr.bf16.mxu0 0
      %443 = vmatmul.mubr.bf16.gmra.mrb[0].mxu0 %v326
      %v444 = vpop.f32.mrb[0].mxu0
      %v445 = vadd.f32 %v213, %v444
      %v446 = vpop.f32.mrb[0].mxu0
      %v447 = vpop.f32.mrb[0].mxu0
      %v448 = vadd.f32 %v213, %v447
      %v449 = vpop.f32.mrb[0].mxu0
      %450 = vmatprep.mubr.bf16.mxu0 0
      %451 = vmatmul.mubr.bf16.gmra.mrb[0].mxu0 %v329
      %v452 = vpop.f32.mrb[0].mxu0
      %v453 = vadd.f32 %v213, %v452
      %v454 = vpop.f32.mrb[0].mxu0
      %v455 = vpop.f32.mrb[0].mxu0
      %v456 = vadd.f32 %v213, %v455
      %v457 = vpop.f32.mrb[0].mxu0
      %458 = vmatprep.mubr.bf16.mxu0 0
      %459 = vmatmul.mubr.bf16.gmra.mrb[0].mxu0 %v332
      %v460 = vpop.f32.mrb[0].mxu0
      %v461 = vadd.f32 %v213, %v460
      %v462 = vpop.f32.mrb[0].mxu0
      %v463 = vpop.f32.mrb[0].mxu0
      %v464 = vadd.f32 %v213, %v463
      %v465 = vpop.f32.mrb[0].mxu0
      %466 = vmatprep.mubr.bf16.mxu0 0
      %467 = vmatmul.mubr.bf16.gmra.mrb[0].mxu0 %v335
      %v468 = vpop.f32.mrb[0].mxu0
      %v469 = vadd.f32 %v213, %v468
      %v470 = vpop.f32.mrb[0].mxu0
      %v471 = vpop.f32.mrb[0].mxu0
      %v472 = vadd.f32 %v213, %v471
      %v473 = vpop.f32.mrb[0].mxu0
      %474 = vmatprep.mubr.bf16.mxu0 0
      %475 = vmatmul.mubr.bf16.gmra.mrb[0].mxu0 %v338
      %v476 = vpop.f32.mrb[0].mxu0
      %v477 = vadd.f32 %v213, %v476
      %v478 = vpop.f32.mrb[0].mxu0
      %v479 = vpop.f32.mrb[0].mxu0
      %v480 = vadd.f32 %v213, %v479
      %v481 = vpop.f32.mrb[0].mxu0
      %482 = vmatprep.mubr.bf16.mxu0 0
      %483 = vmatmul.mubr.bf16.gmra.mrb[0].mxu0 %v341
      %v484 = vpop.f32.mrb[0].mxu0
      %v485 = vadd.f32 %v213, %v484
      %v486 = vpop.f32.mrb[0].mxu0
      %v487 = vpop.f32.mrb[0].mxu0
      %v488 = vadd.f32 %v213, %v487
      %v489 = vpop.f32.mrb[0].mxu0
      %490 = vmatprep.mubr.bf16.mxu0 0
      %491 = vmatmul.mubr.bf16.gmra.mrb[0].mxu0 %v344
      %v492 = vpop.f32.mrb[0].mxu0
      %v493 = vadd.f32 %v213, %v492
      %v494 = vpop.f32.mrb[0].mxu0
      %v495 = vpop.f32.mrb[0].mxu0
      %v496 = vadd.f32 %v213, %v495
      %v497 = vpop.f32.mrb[0].mxu0
      %498 = vmatprep.mubr.bf16.mxu0 0
      %499 = vmatmul.mubr.bf16.gmra.mrb[0].mxu0 %v347
      %v500 = vpop.f32.mrb[0].mxu0
      %v501 = vadd.f32 %v213, %v500
      %v502 = vpop.f32.mrb[0].mxu0
      %v503 = vpop.f32.mrb[0].mxu0
      %v504 = vadd.f32 %v213, %v503
      %v505 = vpop.f32.mrb[0].mxu0
      %506 = vmatprep.mubr.bf16.mxu0 0
      %507 = vmatmul.mubr.bf16.gmra.mrb[0].mxu0 %v350
      %v508 = vpop.f32.mrb[0].mxu0
      %v509 = vadd.f32 %v213, %v508
      %v510 = vpop.f32.mrb[0].mxu0
      %v511 = vpop.f32.mrb[0].mxu0
      %v512 = vadd.f32 %v213, %v511
      %v513 = vpop.f32.mrb[0].mxu0
      %514 = vmatprep.mubr.bf16.mxu0 0
      %515 = vmatmul.mubr.bf16.gmra.mrb[0].mxu0 %v353
      %v516 = vpop.f32.mrb[0].mxu0
      %v517 = vadd.f32 %v213, %v516
      %v518 = vpop.f32.mrb[0].mxu0
      %v519 = vpop.f32.mrb[0].mxu0
      %v520 = vadd.f32 %v213, %v519
      %v521 = vpop.f32.mrb[0].mxu0
      %522 = vdwg.mxu0
      %v523 = vadd.f32 %v397, 3.0
      %v524 = vadd.f32 %v400, 3.0
      %v525 = vadd.f32 %v405, 3.0
      %v526 = vadd.f32 %v408, 3.0
      %v527 = vadd.f32 %v413, 3.0
      %v528 = vadd.f32 %v416, 3.0
      %v529 = vadd.f32 %v421, 3.0
      %v530 = vadd.f32 %v424, 3.0
      %v531 = vadd.f32 %v429, 3.0
      %v532 = vadd.f32 %v432, 3.0
      %v533 = vadd.f32 %v437, 3.0
      %v534 = vadd.f32 %v440, 3.0
      %v535 = vadd.f32 %v445, 3.0
      %v536 = vadd.f32 %v448, 3.0
      %v537 = vadd.f32 %v453, 3.0
      %v538 = vadd.f32 %v456, 3.0
      %v539 = vadd.f32 %v461, 3.0
      %v540 = vadd.f32 %v464, 3.0
      %v541 = vadd.f32 %v469, 3.0
      %v542 = vadd.f32 %v472, 3.0
      %v543 = vadd.f32 %v477, 3.0
      %v544 = vadd.f32 %v480, 3.0
      %v545 = vadd.f32 %v485, 3.0
      %v546 = vadd.f32 %v488, 3.0
      %v547 = vadd.f32 %v493, 3.0
      %v548 = vadd.f32 %v496, 3.0
      %v549 = vadd.f32 %v501, 3.0
      %v550 = vadd.f32 %v504, 3.0
      %v551 = vadd.f32 %v509, 3.0
      %v552 = vadd.f32 %v512, 3.0
      %v553 = vadd.f32 %v517, 3.0
      %v554 = vadd.f32 %v520, 3.0
      %v555 = vmax.f32 %v523, 0.0
      %v556 = vmax.f32 %v524, 0.0
      %v557 = vmax.f32 %v525, 0.0
      %v558 = vmax.f32 %v526, 0.0
      %v559 = vmax.f32 %v527, 0.0
      %v560 = vmax.f32 %v528, 0.0
      %v561 = vmax.f32 %v529, 0.0
      %v562 = vmax.f32 %v530, 0.0
      %v563 = vmax.f32 %v531, 0.0
      %v564 = vmax.f32 %v532, 0.0
      %v565 = vmax.f32 %v533, 0.0
      %v566 = vmax.f32 %v534, 0.0
      %v567 = vmax.f32 %v535, 0.0
      %v568 = vmax.f32 %v536, 0.0
      %v569 = vmax.f32 %v537, 0.0
      %v570 = vmax.f32 %v538, 0.0
      %v571 = vmax.f32 %v539, 0.0
      %v572 = vmax.f32 %v540, 0.0
      %v573 = vmax.f32 %v541, 0.0
      %v574 = vmax.f32 %v542, 0.0
      %v575 = vmax.f32 %v543, 0.0
      %v576 = vmax.f32 %v544, 0.0
      %v577 = vmax.f32 %v545, 0.0
      %v578 = vmax.f32 %v546, 0.0
      %v579 = vmax.f32 %v547, 0.0
      %v580 = vmax.f32 %v548, 0.0
      %v581 = vmax.f32 %v549, 0.0
      %v582 = vmax.f32 %v550, 0.0
      %v583 = vmax.f32 %v551, 0.0
      %v584 = vmax.f32 %v552, 0.0
      %v585 = vmax.f32 %v553, 0.0
      %v586 = vmax.f32 %v554, 0.0
      %v587 = vmin.f32 %v555, 6.0
      %v588 = vmin.f32 %v556, 6.0
      %v589 = vmin.f32 %v557, 6.0
      %v590 = vmin.f32 %v558, 6.0
      %v591 = vmin.f32 %v559, 6.0
      %v592 = vmin.f32 %v560, 6.0
      %v593 = vmin.f32 %v561, 6.0
      %v594 = vmin.f32 %v562, 6.0
      %v595 = vmin.f32 %v563, 6.0
      %v596 = vmin.f32 %v564, 6.0
      %v597 = vmin.f32 %v565, 6.0
      %v598 = vmin.f32 %v566, 6.0
      %v599 = vmin.f32 %v567, 6.0
      %v600 = vmin.f32 %v568, 6.0
      %v601 = vmin.f32 %v569, 6.0
      %v602 = vmin.f32 %v570, 6.0
      %v603 = vmin.f32 %v571, 6.0
      %v604 = vmin.f32 %v572, 6.0
      %v605 = vmin.f32 %v573, 6.0
      %v606 = vmin.f32 %v574, 6.0
      %v607 = vmin.f32 %v575, 6.0
      %v608 = vmin.f32 %v576, 6.0
      %v609 = vmin.f32 %v577, 6.0
      %v610 = vmin.f32 %v578, 6.0
      %v611 = vmin.f32 %v579, 6.0
      %v612 = vmin.f32 %v580, 6.0
      %v613 = vmin.f32 %v581, 6.0
      %v614 = vmin.f32 %v582, 6.0
      %v615 = vmin.f32 %v583, 6.0
      %v616 = vmin.f32 %v584, 6.0
      %v617 = vmin.f32 %v585, 6.0
      %v618 = vmin.f32 %v586, 6.0
      %v619 = vmul.f32 %v397, %v587
      %v620 = vmul.f32 %v400, %v588
      %v621 = vmul.f32 %v405, %v589
      %v622 = vmul.f32 %v408, %v590
      %v623 = vmul.f32 %v413, %v591
      %v624 = vmul.f32 %v416, %v592
      %v625 = vmul.f32 %v421, %v593
      %v626 = vmul.f32 %v424, %v594
      %v627 = vmul.f32 %v429, %v595
      %v628 = vmul.f32 %v432, %v596
      %v629 = vmul.f32 %v437, %v597
      %v630 = vmul.f32 %v440, %v598
      %v631 = vmul.f32 %v445, %v599
      %v632 = vmul.f32 %v448, %v600
      %v633 = vmul.f32 %v453, %v601
      %v634 = vmul.f32 %v456, %v602
      %v635 = vmul.f32 %v461, %v603
      %v636 = vmul.f32 %v464, %v604
      %v637 = vmul.f32 %v469, %v605
      %v638 = vmul.f32 %v472, %v606
      %v639 = vmul.f32 %v477, %v607
      %v640 = vmul.f32 %v480, %v608
      %v641 = vmul.f32 %v485, %v609
      %v642 = vmul.f32 %v488, %v610
      %v643 = vmul.f32 %v493, %v611
      %v644 = vmul.f32 %v496, %v612
      %v645 = vmul.f32 %v501, %v613
      %v646 = vmul.f32 %v504, %v614
      %v647 = vmul.f32 %v509, %v615
      %v648 = vmul.f32 %v512, %v616
      %v649 = vmul.f32 %v517, %v617
      %v650 = vmul.f32 %v520, %v618
      %v651 = vmul.f32 %v619, 0.16666667
      %v652 = vmul.f32 %v620, 0.16666667
      %v653 = vmul.f32 %v621, 0.16666667
      %v654 = vmul.f32 %v622, 0.16666667
      %v655 = vmul.f32 %v623, 0.16666667
      %v656 = vmul.f32 %v624, 0.16666667
      %v657 = vmul.f32 %v625, 0.16666667
      %v658 = vmul.f32 %v626, 0.16666667
      %v659 = vmul.f32 %v627, 0.16666667
      %v660 = vmul.f32 %v628, 0.16666667
      %v661 = vmul.f32 %v629, 0.16666667
      %v662 = vmul.f32 %v630, 0.16666667
      %v663 = vmul.f32 %v631, 0.16666667
      %v664 = vmul.f32 %v632, 0.16666667
      %v665 = vmul.f32 %v633, 0.16666667
      %v666 = vmul.f32 %v634, 0.16666667
      %v667 = vmul.f32 %v635, 0.16666667
      %v668 = vmul.f32 %v636, 0.16666667
      %v669 = vmul.f32 %v637, 0.16666667
      %v670 = vmul.f32 %v638, 0.16666667
      %v671 = vmul.f32 %v639, 0.16666667
      %v672 = vmul.f32 %v640, 0.16666667
      %v673 = vmul.f32 %v641, 0.16666667
      %v674 = vmul.f32 %v642, 0.16666667
      %v675 = vmul.f32 %v643, 0.16666667
      %v676 = vmul.f32 %v644, 0.16666667
      %v677 = vmul.f32 %v645, 0.16666667
      %v678 = vmul.f32 %v646, 0.16666667
      %v679 = vmul.f32 %v647, 0.16666667
      %v680 = vmul.f32 %v648, 0.16666667
      %v681 = vmul.f32 %v649, 0.16666667
      %v682 = vmul.f32 %v650, 0.16666667
      %vm683 = vcmask 130048
      %684 = vst.msk [vmem:[%s170] sm:$0xff] %vm683, %v651
      %685 = vst.msk [vmem:[%s170 + $0x8] sm:$0xff] %vm683, %v652
      %686 = vst.msk [vmem:[%s170 + $0x10] sm:$0xff] %vm683, %v653
      %687 = vst.msk [vmem:[%s170 + $0x18] sm:$0xff] %vm683, %v654
      %688 = vst.msk [vmem:[%s170 + $0x20] sm:$0xff] %vm683, %v655
      %689 = vst.msk [vmem:[%s170 + $0x28] sm:$0xff] %vm683, %v656
      %690 = vst.msk [vmem:[%s170 + $0x30] sm:$0xff] %vm683, %v657
      %691 = vst.msk [vmem:[%s170 + $0x38] sm:$0xff] %vm683, %v658
      %692 = vst.msk [vmem:[%s170 + $0x40] sm:$0xff] %vm683, %v659
      %693 = vst.msk [vmem:[%s170 + $0x48] sm:$0xff] %vm683, %v660
      %694 = vst.msk [vmem:[%s170 + $0x50] sm:$0xff] %vm683, %v661
      %695 = vst.msk [vmem:[%s170 + $0x58] sm:$0xff] %vm683, %v662
      %696 = vst.msk [vmem:[%s170 + $0x60] sm:$0xff] %vm683, %v663
      %697 = vst.msk [vmem:[%s170 + $0x68] sm:$0xff] %vm683, %v664
      %698 = vst.msk [vmem:[%s170 + $0x70] sm:$0xff] %vm683, %v665
      %699 = vst.msk [vmem:[%s170 + $0x78] sm:$0xff] %vm683, %v666
      %700 = vst.msk [vmem:[%s170 + $0x80] sm:$0xff] %vm683, %v667
      %701 = vst.msk [vmem:[%s170 + $0x88] sm:$0xff] %vm683, %v668
      %702 = vst.msk [vmem:[%s170 + $0x90] sm:$0xff] %vm683, %v669
      %703 = vst.msk [vmem:[%s170 + $0x98] sm:$0xff] %vm683, %v670
      %704 = vst.msk [vmem:[%s170 + $0xa0] sm:$0xff] %vm683, %v671
      %705 = vst.msk [vmem:[%s170 + $0xa8] sm:$0xff] %vm683, %v672
      %706 = vst.msk [vmem:[%s170 + $0xb0] sm:$0xff] %vm683, %v673
      %707 = vst.msk [vmem:[%s170 + $0xb8] sm:$0xff] %vm683, %v674
      %708 = vst.msk [vmem:[%s170 + $0xc0] sm:$0xff] %vm683, %v675
      %709 = vst.msk [vmem:[%s170 + $0xc8] sm:$0xff] %vm683, %v676
      %710 = vst.msk [vmem:[%s170 + $0xd0] sm:$0xff] %vm683, %v677
      %711 = vst.msk [vmem:[%s170 + $0xd8] sm:$0xff] %vm683, %v678
      %712 = vst.msk [vmem:[%s170 + $0xe0] sm:$0xff] %vm683, %v679
      %713 = vst.msk [vmem:[%s170 + $0xe8] sm:$0xff] %vm683, %v680
      %714 = vst.msk [vmem:[%s170 + $0xf0] sm:$0xff] %vm683, %v681
      %715 = vst.msk [vmem:[%s170 + $0xf8] sm:$0xff] %vm683, %v682
      %p716 = scmp.lt.s32.totalorder %s14, 1
      %s717 = scalar_select %p716, %s14, 1
      %s718 = smul.addr %s717, 32
      %s719 = smul.addr %s718, 8
      %s720 = scalar_lea.vmem %s3, %s719
      // Predicated region
      $region33: #{pose_mobilenetv3_forward.5} parent=31 // pred_check
        %p721 = pneg %p100
      $region34: #{pose_mobilenetv3_forward.5} parent=31 // pred_check_branch
        %723 = sbr.rel (%p721) target = $region36
      $region35: #{pose_mobilenetv3_forward.5} parent=31 // pred_region
        _
      $region36: #{pose_mobilenetv3_forward.5} parent=31 // pred_fallthru
        _
    $region32: #{pose_mobilenetv3_forward.5} parent=5 // pred_fallthru
      _
    %p724 = scmp.le.s32.totalorder 2, %s9
    // Predicated region
    $region37: #{pose_mobilenetv3_forward.5} parent=5 // pred_check
      %p725 = pneg %p724
    $region38: #{pose_mobilenetv3_forward.5} parent=5 // pred_check_branch
      %727 = sbr.rel (%p725) target = $region40
    $region39: #{pose_mobilenetv3_forward.5} parent=5 // pred_region
      %s728 = ssub.s32 %s9, 2
      // Predicated region
      $region41: #{pose_mobilenetv3_forward.5} parent=39 // pred_check
        %p729 = pneg %p106
      $region42: #{pose_mobilenetv3_forward.5} parent=39 // pred_check_branch
        %731 = sbr.rel (%p729) target = $region44
      $region43: #{pose_mobilenetv3_forward.5} parent=39 // pred_region
        %p732 = scmp.lt.s32.totalorder %s15, 1
        %s733 = scalar_select %p732, %s15, 1
        %s734 = smul.addr %s733, 32
        %s735 = smul.addr %s734, 8
        %s736 = scalar_lea.vmem %s3, %s735
      $region44: #{pose_mobilenetv3_forward.5} parent=39 // pred_fallthru
        _
    $region40: #{pose_mobilenetv3_forward.5} parent=5 // pred_fallthru
      _
  $region6: #{pose_mobilenetv3_forward.5} parent=0 // loop_footer
    %s13 = sadd.s32 1, %s9
  $region7: #{pose_mobilenetv3_forward.5} parent=0 // loop_footer_branch
    %8 = sbr.rel target = $region3
  $region8: #{pose_mobilenetv3_forward.5} parent=0 // loop_exit
    _

// kernel: pose_mobilenetv3_forward.6
$region0: #{pose_mobilenetv3_forward.6}
  #allocation0 [shape = 'u32[]', space=smem, size = 0x4, offset = 0x4, fixed_abs, tag = 'smem constant byte address 0x4 - core index']
  #allocation1 [shape = 'u32[144,128]{1,0:T(1,128)}', space=vmem, size = 0x12000, scoped, tag = 'internal scratch']
  %s0 = inlined_call_operand.vmem [shape: f32[8,9,9,16], index: 0, kind: input, shape index: {}]
  %s1 = inlined_call_operand.vmem [shape: f32[9,1,1,16], index: 1, kind: input, shape index: {}]
  %s2 = inlined_call_operand.vmem [shape: f32[1,1,16], index: 2, kind: input, shape index: {}]
  %s3 = inlined_call_operand.vmem [shape: f32[8,16], index: 3, kind: input, shape index: {}]
  %s4 = inlined_call_operand.vmem [shape: f32[8,1], index: 4, kind: input, shape index: {}]
  %s5 = inlined_call_operand.vmem [shape: f32[8,16], index: 5, kind: input, shape index: {}]
  %s6 = inlined_call_operand.vmem [shape: f32[1,16], index: 6, kind: input, shape index: {}]
  %s7 = inlined_call_operand.vmem [shape: bf16[16,32], index: 7, kind: input, shape index: {}]
  %s8 = inlined_call_operand.vmem [shape: f32[1,32], index: 8, kind: input, shape index: {}]
  %s9 = inlined_call_operand.vmem [shape: f32[2,8,8,32], index: 9, kind: output, shape index: {}]
  %s10 = sld [smem:[#allocation0]]
  $region69: #{pose_mobilenetv3_forward.6} parent=0
    _
  %s12 = ssub.s32 1, %s10
  %s13 = scalar_select 0, %s12, %s10
  loop: start=0, step=1, limit=4
  $region2: #{pose_mobilenetv3_forward.6} parent=0 // loop_pre_header
    _
  $region3: #{pose_mobilenetv3_forward.6} parent=0 // loop_header
    %s15 = sphi 0, %s19
    %p16 = scmp.ge.s32.totalorder %s15, 4
    %s25 = sphi 0, %s27
    %s28 = sphi 0, %s25
    %s29 = sphi 0, %s28
    %s45 = sphi 0, %s29
    %s49 = sphi 0, %s49
    %s51 = sphi 0, %s49
    %s52 = sphi 0, %s51
    %s66 = sphi 0, %s52
    %s70 = sphi 0, %s70
    %s72 = sphi 0, %s70
    %s73 = sphi 0, %s72
    %s87 = sphi 0, %s73
    %s91 = sphi 0, %s91
    %s93 = sphi 0, %s91
    %s94 = sphi 0, %s93
    %s108 = sphi 0, %s94
    %s112 = sphi 0, %s112
    %s114 = sphi 0, %s112
    %s115 = sphi 0, %s114
    %s129 = sphi 0, %s115
    %s133 = sphi 0, %s133
    %s135 = sphi 0, %s133
    %s136 = sphi 0, %s135
    %s150 = sphi 0, %s136
    %s154 = sphi 0, %s154
    %s156 = sphi 0, %s154
    %s157 = sphi 0, %s156
    %s171 = sphi 0, %s157
    %s175 = sphi 0, %s175
    %s177 = sphi 0, %s175
    %s178 = sphi 0, %s177
    %s192 = sphi 0, %s178
    %s196 = sphi 0, %s196
    %s198 = sphi 0, %s196
    %s199 = sphi 0, %s198
    %s213 = sphi 0, %s199
    %s219 = sphi 0, %s221
    %s222 = sphi 0, %s219
    %s223 = sphi 0, %s222
    %s239 = sphi 0, %s223
  $region4: #{pose_mobilenetv3_forward.6} parent=0 // loop_header_branch
    %18 = sbr.rel (%p16) target = $region8
  $region5: #{pose_mobilenetv3_forward.6} parent=0 // loop_body
    %s20 = ssub.s32 %s15, 1
    %s21 = ssub.s32 %s15, 2
    %s22 = sadd.s32 %s15, 1
    %s23 = ssub.s32 %s15, %s22
    %p24 = scmp.eq.s32.totalorder %s23, 0
    %s26 = sadd.s32 %s25, 1
    %s27 = scalar_select %p24, %s25, %s26
    %p30 = pneg %p24
    %p31 = scmp.eq.s32.totalorder %s15, 1
    %p32 = por %p30, %p31
    %p33 = scmp.ne.s32.totalorder %s25, %s28
    %p34 = scmp.eq.s32.totalorder %s15, 0
    %p35 = por %p33, %p34
    %p36 = scmp.ne.s32.totalorder %s25, %s28
    %p37 = scmp.eq.s32.totalorder %s20, 1
    %p38 = por %p36, %p37
    %p39 = scmp.ne.s32.totalorder %s28, %s29
    %p40 = scmp.eq.s32.totalorder %s20, 0
    %p41 = por %p39, %p40
    %p42 = scmp.ne.s32.totalorder %s28, %s29
    %p43 = scmp.eq.s32.totalorder %s21, 1
    %p44 = por %p42, %p43
    %p46 = scmp.ne.s32.totalorder %s29, %s45
    %p47 = scmp.eq.s32.totalorder %s21, 0
    %p48 = por %p46, %p47
    %s50 = sadd.s32 %s49, 1
    %p53 = scmp.eq.s32.totalorder %s15, 1
    %p54 = scmp.ne.s32.totalorder %s49, %s51
    %p55 = scmp.eq.s32.totalorder %s15, 0
    %p56 = por %p54, %p55
    %p57 = scmp.ne.s32.totalorder %s49, %s51
    %p58 = scmp.eq.s32.totalorder %s20, 1
    %p59 = por %p57, %p58
    %p60 = scmp.ne.s32.totalorder %s51, %s52
    %p61 = scmp.eq.s32.totalorder %s20, 0
    %p62 = por %p60, %p61
    %p63 = scmp.ne.s32.totalorder %s51, %s52
    %p64 = scmp.eq.s32.totalorder %s21, 1
    %p65 = por %p63, %p64
    %p67 = scmp.ne.s32.totalorder %s52, %s66
    %p68 = scmp.eq.s32.totalorder %s21, 0
    %p69 = por %p67, %p68
    %s71 = sadd.s32 %s70, 1
    %p74 = scmp.eq.s32.totalorder %s15, 1
    %p75 = scmp.ne.s32.totalorder %s70, %s72
    %p76 = scmp.eq.s32.totalorder %s15, 0
    %p77 = por %p75, %p76
    %p78 = scmp.ne.s32.totalorder %s70, %s72
    %p79 = scmp.eq.s32.totalorder %s20, 1
    %p80 = por %p78, %p79
    %p81 = scmp.ne.s32.totalorder %s72, %s73
    %p82 = scmp.eq.s32.totalorder %s20, 0
    %p83 = por %p81, %p82
    %p84 = scmp.ne.s32.totalorder %s72, %s73
    %p85 = scmp.eq.s32.totalorder %s21, 1
    %p86 = por %p84, %p85
    %p88 = scmp.ne.s32.totalorder %s73, %s87
    %p89 = scmp.eq.s32.totalorder %s21, 0
    %p90 = por %p88, %p89
    %s92 = sadd.s32 %s91, 1
    %p95 = scmp.eq.s32.totalorder %s15, 1
    %p96 = scmp.ne.s32.totalorder %s91, %s93
    %p97 = scmp.eq.s32.totalorder %s15, 0
    %p98 = por %p96, %p97
    %p99 = scmp.ne.s32.totalorder %s91, %s93
    %p100 = scmp.eq.s32.totalorder %s20, 1
    %p101 = por %p99, %p100
    %p102 = scmp.ne.s32.totalorder %s93, %s94
    %p103 = scmp.eq.s32.totalorder %s20, 0
    %p104 = por %p102, %p103
    %p105 = scmp.ne.s32.totalorder %s93, %s94
    %p106 = scmp.eq.s32.totalorder %s21, 1
    %p107 = por %p105, %p106
    %p109 = scmp.ne.s32.totalorder %s94, %s108
    %p110 = scmp.eq.s32.totalorder %s21, 0
    %p111 = por %p109, %p110
    %s113 = sadd.s32 %s112, 1
    %p116 = scmp.eq.s32.totalorder %s15, 1
    %p117 = scmp.ne.s32.totalorder %s112, %s114
    %p118 = scmp.eq.s32.totalorder %s15, 0
    %p119 = por %p117, %p118
    %p120 = scmp.ne.s32.totalorder %s112, %s114
    %p121 = scmp.eq.s32.totalorder %s20, 1
    %p122 = por %p120, %p121
    %p123 = scmp.ne.s32.totalorder %s114, %s115
    %p124 = scmp.eq.s32.totalorder %s20, 0
    %p125 = por %p123, %p124
    %p126 = scmp.ne.s32.totalorder %s114, %s115
    %p127 = scmp.eq.s32.totalorder %s21, 1
    %p128 = por %p126, %p127
    %p130 = scmp.ne.s32.totalorder %s115, %s129
    %p131 = scmp.eq.s32.totalorder %s21, 0
    %p132 = por %p130, %p131
    %s134 = sadd.s32 %s133, 1
    %p137 = scmp.eq.s32.totalorder %s15, 1
    %p138 = scmp.ne.s32.totalorder %s133, %s135
    %p139 = scmp.eq.s32.totalorder %s15, 0
    %p140 = por %p138, %p139
    %p141 = scmp.ne.s32.totalorder %s133, %s135
    %p142 = scmp.eq.s32.totalorder %s20, 1
    %p143 = por %p141, %p142
    %p144 = scmp.ne.s32.totalorder %s135, %s136
    %p145 = scmp.eq.s32.totalorder %s20, 0
    %p146 = por %p144, %p145
    %p147 = scmp.ne.s32.totalorder %s135, %s136
    %p148 = scmp.eq.s32.totalorder %s21, 1
    %p149 = por %p147, %p148
    %p151 = scmp.ne.s32.totalorder %s136, %s150
    %p152 = scmp.eq.s32.totalorder %s21, 0
    %p153 = por %p151, %p152
    %s155 = sadd.s32 %s154, 1
    %p158 = scmp.eq.s32.totalorder %s15, 1
    %p159 = scmp.ne.s32.totalorder %s154, %s156
    %p160 = scmp.eq.s32.totalorder %s15, 0
    %p161 = por %p159, %p160
    %p162 = scmp.ne.s32.totalorder %s154, %s156
    %p163 = scmp.eq.s32.totalorder %s20, 1
    %p164 = por %p162, %p163
    %p165 = scmp.ne.s32.totalorder %s156, %s157
    %p166 = scmp.eq.s32.totalorder %s20, 0
    %p167 = por %p165, %p166
    %p168 = scmp.ne.s32.totalorder %s156, %s157
    %p169 = scmp.eq.s32.totalorder %s21, 1
    %p170 = por %p168, %p169
    %p172 = scmp.ne.s32.totalorder %s157, %s171
    %p173 = scmp.eq.s32.totalorder %s21, 0
    %p174 = por %p172, %p173
    %s176 = sadd.s32 %s175, 1
    %p179 = scmp.eq.s32.totalorder %s15, 1
    %p180 = scmp.ne.s32.totalorder %s175, %s177
    %p181 = scmp.eq.s32.totalorder %s15, 0
    %p182 = por %p180, %p181
    %p183 = scmp.ne.s32.totalorder %s175, %s177
    %p184 = scmp.eq.s32.totalorder %s20, 1
    %p185 = por %p183, %p184
    %p186 = scmp.ne.s32.totalorder %s177, %s178
    %p187 = scmp.eq.s32.totalorder %s20, 0
    %p188 = por %p186, %p187
    %p189 = scmp.ne.s32.totalorder %s177, %s178
    %p190 = scmp.eq.s32.totalorder %s21, 1
    %p191 = por %p189, %p190
    %p193 = scmp.ne.s32.totalorder %s178, %s192
    %p194 = scmp.eq.s32.totalorder %s21, 0
    %p195 = por %p193, %p194
    %s197 = sadd.s32 %s196, 1
    %p200 = scmp.eq.s32.totalorder %s15, 1
    %p201 = scmp.ne.s32.totalorder %s196, %s198
    %p202 = scmp.eq.s32.totalorder %s15, 0
    %p203 = por %p201, %p202
    %p204 = scmp.ne.s32.totalorder %s196, %s198
    %p205 = scmp.eq.s32.totalorder %s20, 1
    %p206 = por %p204, %p205
    %p207 = scmp.ne.s32.totalorder %s198, %s199
    %p208 = scmp.eq.s32.totalorder %s20, 0
    %p209 = por %p207, %p208
    %p210 = scmp.ne.s32.totalorder %s198, %s199
    %p211 = scmp.eq.s32.totalorder %s21, 1
    %p212 = por %p210, %p211
    %p214 = scmp.ne.s32.totalorder %s199, %s213
    %p215 = scmp.eq.s32.totalorder %s21, 0
    %p216 = por %p214, %p215
    %s217 = ssub.s32 %s15, %s22
    %p218 = scmp.eq.s32.totalorder %s217, 0
    %s220 = sadd.s32 %s219, 1
    %s221 = scalar_select %p218, %s219, %s220
    %p224 = pneg %p218
    %p225 = scmp.eq.s32.totalorder %s15, 1
    %p226 = por %p224, %p225
    %p227 = scmp.ne.s32.totalorder %s219, %s222
    %p228 = scmp.eq.s32.totalorder %s15, 0
    %p229 = por %p227, %p228
    %p230 = scmp.ne.s32.totalorder %s219, %s222
    %p231 = scmp.eq.s32.totalorder %s20, 1
    %p232 = por %p230, %p231
    %p233 = scmp.ne.s32.totalorder %s222, %s223
    %p234 = scmp.eq.s32.totalorder %s20, 0
    %p235 = por %p233, %p234
    %p236 = scmp.ne.s32.totalorder %s222, %s223
    %p237 = scmp.eq.s32.totalorder %s21, 1
    %p238 = por %p236, %p237
    %p240 = scmp.ne.s32.totalorder %s223, %s239
    %p241 = scmp.eq.s32.totalorder %s21, 0
    %p242 = por %p240, %p241
    %p243 = scmp.le.s32.totalorder 1, %s15
    %p244 = scmp.lt.s32.totalorder %s15, 3
    %p245 = pnand %p243, %p244
    %p246 = pneg %p245
    // Predicated region
    $region9: #{pose_mobilenetv3_forward.6} parent=5 // pred_check
      _
    $region10: #{pose_mobilenetv3_forward.6} parent=5 // pred_check_branch
      %248 = sbr.rel (%p245) target = $region12
    $region11: #{pose_mobilenetv3_forward.6} parent=5 // pred_region
      %s249 = ssub.s32 %s15, 1
      // Predicated region
      $region13: #{pose_mobilenetv3_forward.6} parent=11 // pred_check
        %p250 = pneg %p62
      $region14: #{pose_mobilenetv3_forward.6} parent=11 // pred_check_branch
        %252 = sbr.rel (%p250) target = $region16
      $region15: #{pose_mobilenetv3_forward.6} parent=11 // pred_region
        _
      $region16: #{pose_mobilenetv3_forward.6} parent=11 // pred_fallthru
        _
      // Predicated region
      $region17: #{pose_mobilenetv3_forward.6} parent=11 // pred_check
        %p253 = pneg %p83
      $region18: #{pose_mobilenetv3_forward.6} parent=11 // pred_check_branch
        %255 = sbr.rel (%p253) target = $region20
      $region19: #{pose_mobilenetv3_forward.6} parent=11 // pred_region
        _
      $region20: #{pose_mobilenetv3_forward.6} parent=11 // pred_fallthru
        _
      // Predicated region
      $region21: #{pose_mobilenetv3_forward.6} parent=11 // pred_check
        %p256 = pneg %p104
      $region22: #{pose_mobilenetv3_forward.6} parent=11 // pred_check_branch
        %258 = sbr.rel (%p256) target = $region24
      $region23: #{pose_mobilenetv3_forward.6} parent=11 // pred_region
        _
      $region24: #{pose_mobilenetv3_forward.6} parent=11 // pred_fallthru
        _
      // Predicated region
      $region25: #{pose_mobilenetv3_forward.6} parent=11 // pred_check
        %p259 = pneg %p125
      $region26: #{pose_mobilenetv3_forward.6} parent=11 // pred_check_branch
        %261 = sbr.rel (%p259) target = $region28
      $region27: #{pose_mobilenetv3_forward.6} parent=11 // pred_region
        _
      $region28: #{pose_mobilenetv3_forward.6} parent=11 // pred_fallthru
        _
      // Predicated region
      $region29: #{pose_mobilenetv3_forward.6} parent=11 // pred_check
        %p262 = pneg %p146
      $region30: #{pose_mobilenetv3_forward.6} parent=11 // pred_check_branch
        %264 = sbr.rel (%p262) target = $region32
      $region31: #{pose_mobilenetv3_forward.6} parent=11 // pred_region
        _
      $region32: #{pose_mobilenetv3_forward.6} parent=11 // pred_fallthru
        _
      // Predicated region
      $region33: #{pose_mobilenetv3_forward.6} parent=11 // pred_check
        %p265 = pneg %p167
      $region34: #{pose_mobilenetv3_forward.6} parent=11 // pred_check_branch
        %267 = sbr.rel (%p265) target = $region36
      $region35: #{pose_mobilenetv3_forward.6} parent=11 // pred_region
        _
      $region36: #{pose_mobilenetv3_forward.6} parent=11 // pred_fallthru
        _
      // Predicated region
      $region37: #{pose_mobilenetv3_forward.6} parent=11 // pred_check
        %p268 = pneg %p188
      $region38: #{pose_mobilenetv3_forward.6} parent=11 // pred_check_branch
        %270 = sbr.rel (%p268) target = $region40
      $region39: #{pose_mobilenetv3_forward.6} parent=11 // pred_region
        _
      $region40: #{pose_mobilenetv3_forward.6} parent=11 // pred_fallthru
        _
      // Predicated region
      $region41: #{pose_mobilenetv3_forward.6} parent=11 // pred_check
        %p271 = pneg %p209
      $region42: #{pose_mobilenetv3_forward.6} parent=11 // pred_check_branch
        %273 = sbr.rel (%p271) target = $region44
      $region43: #{pose_mobilenetv3_forward.6} parent=11 // pred_region
        _
      $region44: #{pose_mobilenetv3_forward.6} parent=11 // pred_fallthru
        _
    $region12: #{pose_mobilenetv3_forward.6} parent=5 // pred_fallthru
      _
    %p274 = scmp.lt.s32.totalorder %s15, 2
    // Predicated region
    $region45: #{pose_mobilenetv3_forward.6} parent=5 // pred_check
      %p275 = pneg %p274
    $region46: #{pose_mobilenetv3_forward.6} parent=5 // pred_check_branch
      %277 = sbr.rel (%p275) target = $region48
    $region47: #{pose_mobilenetv3_forward.6} parent=5 // pred_region
      // Predicated region
      $region49: #{pose_mobilenetv3_forward.6} parent=47 // pred_check
        %p278 = pneg %p35
      $region50: #{pose_mobilenetv3_forward.6} parent=47 // pred_check_branch
        %280 = sbr.rel (%p278) target = $region52
      $region51: #{pose_mobilenetv3_forward.6} parent=47 // pred_region
        %s281 = smul.u32 4, %s15
        %p282 = scmp.lt.s32.totalorder %s281, 7
        %s283 = scalar_select %p282, %s281, 7
        %s284 = smul.addr %s283, 18
        %s285 = smul.addr %s284, 8
        %s286 = scalar_lea.vmem %s0, %s285
        %s287 = smul.u32 4, %s15
      $region52: #{pose_mobilenetv3_forward.6} parent=47 // pred_fallthru
        _
    $region48: #{pose_mobilenetv3_forward.6} parent=5 // pred_fallthru
      _
    %p288 = scmp.le.s32.totalorder 1, %s15
    %p289 = scmp.lt.s32.totalorder %s15, 3
    %p290 = pnand %p288, %p289
    %p291 = pneg %p290
    // Predicated region
    $region53: #{pose_mobilenetv3_forward.6} parent=5 // pred_check
      _
    $region54: #{pose_mobilenetv3_forward.6} parent=5 // pred_check_branch
      %293 = sbr.rel (%p290) target = $region56
    $region55: #{pose_mobilenetv3_forward.6} parent=5 // pred_region
      %s294 = ssub.s32 %s15, 1
      %s295 = smul.u32 4, %s20
      %p296 = scmp.lt.s32.totalorder %s295, 7
      %s297 = scalar_select %p296, %s295, 7
      %s298 = smul.addr %s297, 18
      %s299 = smul.addr %s298, 8
      %s300 = scalar_lea.vmem %s0, %s299
      %p301 = pneg %p41
      %p302 = pneg %p38
      %p303 = pneg %p62
      %p304 = pneg %p59
      %p305 = pneg %p83
      %p306 = pneg %p80
      %p307 = pneg %p104
      %p308 = pneg %p101
      %p309 = pneg %p125
      %p310 = pneg %p122
      %p311 = pneg %p146
      %p312 = pneg %p143
      %p313 = pneg %p167
      %p314 = pneg %p164
      %p315 = pneg %p188
      %p316 = pneg %p185
      %p317 = pneg %p209
      %p318 = pneg %p206
      %p319 = pneg %p235
      %p320 = pneg %p232
      %p321 = scmp.lt.s32.totalorder %s20, 1
      %s322 = scalar_select %p321, %s20, 1
      %s323 = smul.addr %s322, 8
      %s324 = smul.addr %s323, 8
      %s325 = scalar_lea.vmem %s9, %s324
      %s326 = smul.u32 4, %s20
      %p327 = scmp.lt.s32.totalorder %s326, 7
      %s328 = scalar_select %p327, %s326, 7
      %s329 = smul.addr %s328, 18
      %s330 = smul.addr %s329, 8
      %s331 = scalar_lea.vmem %s0, %s330
      %s332 = smul.u32 4, %s20
      %p333 = scmp.lt.s32.totalorder %s20, 1
      %s334 = scalar_select %p333, %s20, 1
      %s335 = smul.addr %s334, 8
      %s336 = smul.addr %s335, 8
      %s337 = scalar_lea.vmem %s9, %s336
      %v339 = vld [vmem:[%s331] sm:$0xff]
      %v340 = vld [vmem:[%s331 + $0x10] sm:$0xff]
      %v341 = vld [vmem:[%s331 + $0x20] sm:$0xff]
      %v342 = vld [vmem:[%s331 + $0x30] sm:$0xff]
      %v343 = vld [vmem:[%s331 + $0x40] sm:$0xff]
      %v344 = vld [vmem:[%s331 + $0x50] sm:$0xff]
      %v345 = vld [vmem:[%s331 + $0x60] sm:$0xff]
      %v346 = vld [vmem:[%s331 + $0x70] sm:$0xff]
      %v347 = vld [vmem:[%s1] sm:$0x1]
      %v349 = vlaneseq
      %v350 = vshrl.u32 %v349, 7
      %v351 = vsub.s32 0, %v350
      %v352 = vrot.slane %v347, %v351
      %v354 = vmul.f32 %v339, %v352
      %v355 = vmul.f32 %v340, %v352
      %v356 = vmul.f32 %v341, %v352
      %v357 = vmul.f32 %v342, %v352
      %v358 = vmul.f32 %v343, %v352
      %v359 = vmul.f32 %v344, %v352
      %v360 = vmul.f32 %v345, %v352
      %v361 = vmul.f32 %v346, %v352
      %v362 = vadd.f32 %v354, 0.0
      %v363 = vadd.f32 %v355, 0.0
      %v364 = vadd.f32 %v356, 0.0
      %v365 = vadd.f32 %v357, 0.0
      %v366 = vadd.f32 %v358, 0.0
      %v367 = vadd.f32 %v359, 0.0
      %v368 = vadd.f32 %v360, 0.0
      %v369 = vadd.f32 %v361, 0.0
      %s370 = scalar_lea.vmem %s331, 144
      %v371 = vld [vmem:[%s370] sm:$0xff]
      %v372 = vld [vmem:[%s370 + $0x10] sm:$0xff]
      %v373 = vld [vmem:[%s370 + $0x20] sm:$0xff]
      %v374 = vld [vmem:[%s370 + $0x30] sm:$0xff]
      %v375 = vld [vmem:[%s370 + $0x40] sm:$0xff]
      %v376 = vld [vmem:[%s370 + $0x50] sm:$0xff]
      %v377 = vld [vmem:[%s370 + $0x60] sm:$0xff]
      %v378 = vld [vmem:[%s370 + $0x70] sm:$0xff]
      %s379 = scalar_lea.vmem %s1, 1
      %v380 = vld [vmem:[%s379] sm:$0x1]
      %v382 = vlaneseq
      %v383 = vshrl.u32 %v382, 7
      %v384 = vsub.s32 0, %v383
      %v385 = vrot.slane %v380, %v384
      %v387 = vmul.f32 %v371, %v385
      %v388 = vmul.f32 %v372, %v385
      %v389 = vmul.f32 %v373, %v385
      %v390 = vmul.f32 %v374, %v385
      %v391 = vmul.f32 %v375, %v385
      %v392 = vmul.f32 %v376, %v385
      %v393 = vmul.f32 %v377, %v385
      %v394 = vmul.f32 %v378, %v385
      %v395 = vadd.f32 %v362, %v387
      %v396 = vadd.f32 %v363, %v388
      %v397 = vadd.f32 %v364, %v389
      %v398 = vadd.f32 %v365, %v390
      %v399 = vadd.f32 %v366, %v391
      %v400 = vadd.f32 %v367, %v392
      %v401 = vadd.f32 %v368, %v393
      %v402 = vadd.f32 %v369, %v394
      %v403 = vld [vmem:[%s331 + $0x1] sm:$0xff]
      %v404 = vld [vmem:[%s331 + $0x11] sm:$0xff]
      %v405 = vld [vmem:[%s331 + $0x21] sm:$0xff]
      %v406 = vld [vmem:[%s331 + $0x31] sm:$0xff]
      %v407 = vld [vmem:[%s331 + $0x41] sm:$0xff]
      %v408 = vld [vmem:[%s331 + $0x51] sm:$0xff]
      %v409 = vld [vmem:[%s331 + $0x61] sm:$0xff]
      %v410 = vld [vmem:[%s331 + $0x71] sm:$0xff]
      %s411 = scalar_lea.vmem %s1, 2
      %v412 = vld [vmem:[%s411] sm:$0x1]
      %v414 = vlaneseq
      %v415 = vshrl.u32 %v414, 7
      %v416 = vsub.s32 0, %v415
      %v417 = vrot.slane %v412, %v416
      %v419 = vmul.f32 %v403, %v417
      %v420 = vmul.f32 %v404, %v417
      %v421 = vmul.f32 %v405, %v417
      %v422 = vmul.f32 %v406, %v417
      %v423 = vmul.f32 %v407, %v417
      %v424 = vmul.f32 %v408, %v417
      %v425 = vmul.f32 %v409, %v417
      %v426 = vmul.f32 %v410, %v417
      %v427 = vadd.f32 %v395, %v419
      %v428 = vadd.f32 %v396, %v420
      %v429 = vadd.f32 %v397, %v421
      %v430 = vadd.f32 %v398, %v422
      %v431 = vadd.f32 %v399, %v423
      %v432 = vadd.f32 %v400, %v424
      %v433 = vadd.f32 %v401, %v425
      %v434 = vadd.f32 %v402, %v426
      %s435 = scalar_lea.vmem %s331, 288
      %v436 = vld [vmem:[%s435] sm:$0xff]
      %v437 = vld [vmem:[%s435 + $0x10] sm:$0xff]
      %v438 = vld [vmem:[%s435 + $0x20] sm:$0xff]
      %v439 = vld [vmem:[%s435 + $0x30] sm:$0xff]
      %v440 = vld [vmem:[%s435 + $0x40] sm:$0xff]
      %v441 = vld [vmem:[%s435 + $0x50] sm:$0xff]
      %v442 = vld [vmem:[%s435 + $0x60] sm:$0xff]
      %v443 = vld [vmem:[%s435 + $0x70] sm:$0xff]
      %s444 = scalar_lea.vmem %s1, 3
      %v445 = vld [vmem:[%s444] sm:$0x1]
      %v447 = vlaneseq
      %v448 = vshrl.u32 %v447, 7
      %v449 = vsub.s32 0, %v448
      %v450 = vrot.slane %v445, %v449
      %v452 = vmul.f32 %v436, %v450
      %v453 = vmul.f32 %v437, %v450
      %v454 = vmul.f32 %v438, %v450
      %v455 = vmul.f32 %v439, %v450
      %v456 = vmul.f32 %v440, %v450
      %v457 = vmul.f32 %v441, %v450
      %v458 = vmul.f32 %v442, %v450
      %v459 = vmul.f32 %v443, %v450
      %v460 = vadd.f32 %v427, %v452
      %v461 = vadd.f32 %v428, %v453
      %v462 = vadd.f32 %v429, %v454
      %v463 = vadd.f32 %v430, %v455
      %v464 = vadd.f32 %v431, %v456
      %v465 = vadd.f32 %v432, %v457
      %v466 = vadd.f32 %v433, %v458
      %v467 = vadd.f32 %v434, %v459
      %s468 = scalar_lea.vmem %s331, 432
      %v469 = vld [vmem:[%s468] sm:$0xff]
      %v470 = vld [vmem:[%s468 + $0x10] sm:$0xff]
      %v471 = vld [vmem:[%s468 + $0x20] sm:$0xff]
      %v472 = vld [vmem:[%s468 + $0x30] sm:$0xff]
      %v473 = vld [vmem:[%s468 + $0x40] sm:$0xff]
      %v474 = vld [vmem:[%s468 + $0x50] sm:$0xff]
      %v475 = vld [vmem:[%s468 + $0x60] sm:$0xff]
      %v476 = vld [vmem:[%s468 + $0x70] sm:$0xff]
      %s477 = scalar_lea.vmem %s1, 4
      %v478 = vld [vmem:[%s477] sm:$0x1]
      %v480 = vlaneseq
      %v481 = vshrl.u32 %v480, 7
      %v482 = vsub.s32 0, %v481
      %v483 = vrot.slane %v478, %v482
      %v485 = vmul.f32 %v469, %v483
      %v486 = vmul.f32 %v470, %v483
      %v487 = vmul.f32 %v471, %v483
      %v488 = vmul.f32 %v472, %v483
      %v489 = vmul.f32 %v473, %v483
      %v490 = vmul.f32 %v474, %v483
      %v491 = vmul.f32 %v475, %v483
      %v492 = vmul.f32 %v476, %v483
      %v493 = vadd.f32 %v460, %v485
      %v494 = vadd.f32 %v461, %v486
      %v495 = vadd.f32 %v462, %v487
      %v496 = vadd.f32 %v463, %v488
      %v497 = vadd.f32 %v464, %v489
      %v498 = vadd.f32 %v465, %v490
      %v499 = vadd.f32 %v466, %v491
      %v500 = vadd.f32 %v467, %v492
      %v501 = vld [vmem:[%s435 + $0x1] sm:$0xff]
      %v502 = vld [vmem:[%s435 + $0x11] sm:$0xff]
      %v503 = vld [vmem:[%s435 + $0x21] sm:$0xff]
      %v504 = vld [vmem:[%s435 + $0x31] sm:$0xff]
      %v505 = vld [vmem:[%s435 + $0x41] sm:$0xff]
      %v506 = vld [vmem:[%s435 + $0x51] sm:$0xff]
      %v507 = vld [vmem:[%s435 + $0x61] sm:$0xff]
      %v508 = vld [vmem:[%s435 + $0x71] sm:$0xff]
      %s509 = scalar_lea.vmem %s1, 5
      %v510 = vld [vmem:[%s509] sm:$0x1]
      %v512 = vlaneseq
      %v513 = vshrl.u32 %v512, 7
      %v514 = vsub.s32 0, %v513
      %v515 = vrot.slane %v510, %v514
      %v517 = vmul.f32 %v501, %v515
      %v518 = vmul.f32 %v502, %v515
      %v519 = vmul.f32 %v503, %v515
      %v520 = vmul.f32 %v504, %v515
      %v521 = vmul.f32 %v505, %v515
      %v522 = vmul.f32 %v506, %v515
      %v523 = vmul.f32 %v507, %v515
      %v524 = vmul.f32 %v508, %v515
      %v525 = vadd.f32 %v493, %v517
      %v526 = vadd.f32 %v494, %v518
      %v527 = vadd.f32 %v495, %v519
      %v528 = vadd.f32 %v496, %v520
      %v529 = vadd.f32 %v497, %v521
      %v530 = vadd.f32 %v498, %v522
      %v531 = vadd.f32 %v499, %v523
      %v532 = vadd.f32 %v500, %v524
      %s533 = scalar_lea.vmem %s331, 16
      %v534 = vld [vmem:[%s533] sm:$0xff]
      %v535 = vld [vmem:[%s533 + $0x10] sm:$0xff]
      %v536 = vld [vmem:[%s533 + $0x20] sm:$0xff]
      %v537 = vld [vmem:[%s533 + $0x30] sm:$0xff]
      %v538 = vld [vmem:[%s533 + $0x40] sm:$0xff]
      %v539 = vld [vmem:[%s533 + $0x50] sm:$0xff]
      %v540 = vld [vmem:[%s533 + $0x60] sm:$0xff]
      %v541 = vld [vmem:[%s533 + $0x70] sm:$0xff]
      %s542 = scalar_lea.vmem %s1, 6
      %v543 = vld [vmem:[%s542] sm:$0x1]
      %v545 = vlaneseq
      %v546 = vshrl.u32 %v545, 7
      %v547 = vsub.s32 0, %v546
      %v548 = vrot.slane %v543, %v547
      %v550 = vmul.f32 %v534, %v548
      %v551 = vmul.f32 %v535, %v548
      %v552 = vmul.f32 %v536, %v548
      %v553 = vmul.f32 %v537, %v548
      %v554 = vmul.f32 %v538, %v548
      %v555 = vmul.f32 %v539, %v548
      %v556 = vmul.f32 %v540, %v548
      %v557 = vmul.f32 %v541, %v548
      %v558 = vadd.f32 %v525, %v550
      %v559 = vadd.f32 %v526, %v551
      %v560 = vadd.f32 %v527, %v552
      %v561 = vadd.f32 %v528, %v553
      %v562 = vadd.f32 %v529, %v554
      %v563 = vadd.f32 %v530, %v555
      %v564 = vadd.f32 %v531, %v556
      %v565 = vadd.f32 %v532, %v557
      %s566 = scalar_lea.vmem %s331, 160
      %v567 = vld [vmem:[%s566] sm:$0xff]
      %v568 = vld [vmem:[%s566 + $0x10] sm:$0xff]
      %v569 = vld [vmem:[%s566 + $0x20] sm:$0xff]
      %v570 = vld [vmem:[%s566 + $0x30] sm:$0xff]
      %v571 = vld [vmem:[%s566 + $0x40] sm:$0xff]
      %v572 = vld [vmem:[%s566 + $0x50] sm:$0xff]
      %v573 = vld [vmem:[%s566 + $0x60] sm:$0xff]
      %v574 = vld [vmem:[%s566 + $0x70] sm:$0xff]
      %s575 = scalar_lea.vmem %s1, 7
      %v576 = vld [vmem:[%s575] sm:$0x1]
      %v578 = vlaneseq
      %v579 = vshrl.u32 %v578, 7
      %v580 = vsub.s32 0, %v579
      %v581 = vrot.slane %v576, %v580
      %v583 = vmul.f32 %v567, %v581
      %v584 = vmul.f32 %v568, %v581
      %v585 = vmul.f32 %v569, %v581
      %v586 = vmul.f32 %v570, %v581
      %v587 = vmul.f32 %v571, %v581
      %v588 = vmul.f32 %v572, %v581
      %v589 = vmul.f32 %v573, %v581
      %v590 = vmul.f32 %v574, %v581
      %v591 = vadd.f32 %v558, %v583
      %v592 = vadd.f32 %v559, %v584
      %v593 = vadd.f32 %v560, %v585
      %v594 = vadd.f32 %v561, %v586
      %v595 = vadd.f32 %v562, %v587
      %v596 = vadd.f32 %v563, %v588
      %v597 = vadd.f32 %v564, %v589
      %v598 = vadd.f32 %v565, %v590
      %v599 = vld [vmem:[%s533 + $0x1] sm:$0xff]
      %v600 = vld [vmem:[%s533 + $0x11] sm:$0xff]
      %v601 = vld [vmem:[%s533 + $0x21] sm:$0xff]
      %v602 = vld [vmem:[%s533 + $0x31] sm:$0xff]
      %v603 = vld [vmem:[%s533 + $0x41] sm:$0xff]
      %v604 = vld [vmem:[%s533 + $0x51] sm:$0xff]
      %v605 = vld [vmem:[%s533 + $0x61] sm:$0xff]
      %v606 = vld [vmem:[%s533 + $0x71] sm:$0xff]
      %s607 = scalar_lea.vmem %s1, 8
      %v608 = vld [vmem:[%s607] sm:$0x1]
      %v610 = vlaneseq
      %v611 = vshrl.u32 %v610, 7
      %v612 = vsub.s32 0, %v611
      %v613 = vrot.slane %v608, %v612
      %v615 = vmul.f32 %v599, %v613
      %v616 = vmul.f32 %v600, %v613
      %v617 = vmul.f32 %v601, %v613
      %v618 = vmul.f32 %v602, %v613
      %v619 = vmul.f32 %v603, %v613
      %v620 = vmul.f32 %v604, %v613
      %v621 = vmul.f32 %v605, %v613
      %v622 = vmul.f32 %v606, %v613
      %v623 = vadd.f32 %v591, %v615
      %v624 = vadd.f32 %v592, %v616
      %v625 = vadd.f32 %v593, %v617
      %v626 = vadd.f32 %v594, %v618
      %v627 = vadd.f32 %v595, %v619
      %v628 = vadd.f32 %v596, %v620
      %v629 = vadd.f32 %v597, %v621
      %v630 = vadd.f32 %v598, %v622
      %v631 = vld [vmem:[%s2] sm:$0x1]
      %v633 = vlaneseq
      %v634 = vshrl.u32 %v633, 7
      %v635 = vsub.s32 0, %v634
      %v636 = vrot.slane %v631, %v635
      %v638 = vadd.f32 %v623, %v636
      %v639 = vadd.f32 %v624, %v636
      %v640 = vadd.f32 %v625, %v636
      %v641 = vadd.f32 %v626, %v636
      %v642 = vadd.f32 %v627, %v636
      %v643 = vadd.f32 %v628, %v636
      %v644 = vadd.f32 %v629, %v636
      %v645 = vadd.f32 %v630, %v636
      %v646 = vmax.f32 %v638, 0.0
      %v647 = vmax.f32 %v639, 0.0
      %v648 = vmax.f32 %v640, 0.0
      %v649 = vmax.f32 %v641, 0.0
      %v650 = vmax.f32 %v642, 0.0
      %v651 = vmax.f32 %v643, 0.0
      %v652 = vmax.f32 %v644, 0.0
      %v653 = vmax.f32 %v645, 0.0
      %v654 = vld [vmem:[%s3] sm:$0xff]
      %v655 = vld [vmem:[%s4] sm:$0xff]
      %v656 = vld [vmem:[%s5] sm:$0xff]
      %v657 = vld [vmem:[%s6] sm:$0x1]
      %vm658 = vcmask 130048
      %v659 = vsel %vm658, %v646, 0.0
      %v660 = vsel %vm658, %v647, 0.0
      %v661 = vadd.f32 %v659, %v660
      %v662 = vsel %vm658, %v648, 0.0
      %v663 = vadd.f32 %v661, %v662
      %v664 = vsel %vm658, %v649, 0.0
      %v665 = vadd.f32 %v663, %v664
      %v666 = vsel %vm658, %v650, 0.0
      %v667 = vadd.f32 %v665, %v666
      %v668 = vsel %vm658, %v651, 0.0
      %v669 = vadd.f32 %v667, %v668
      %v670 = vsel %vm658, %v652, 0.0
      %v671 = vadd.f32 %v669, %v670
      %v672 = vsel %vm658, %v653, 0.0
      %v673 = vadd.f32 %v671, %v672
      %v674 = vrot.slane %v673, 4
      %v675 = vadd.f32 %v673, %v674
      %v676 = vrot.slane %v675, 2
      %v677 = vadd.f32 %v675, %v676
      %v678 = vrot.slane %v677, 1
      %v679 = vadd.f32 %v677, %v678
      %v680 = vrcp.pop 64.0
      %v681 = vmul.f32 %v679, %v680
      %v682 = vmul.f32 %v681, %v654
      %v683 = vsel %vm658, %v682, 0.0
      %684 = vadd.xlane.f32.xlu0 %v683
      %v685 = vpop.xlane.xlu0 %684
      %v686 = vadd.f32 %v685, %v655
      %v687 = vmax.f32 %v686, 0.0
      %689 = vset.pattern.permute.xlu0 0
      %690 = vperm.xlu0 %689, %v687
      %v691 = vpop.permute.xlu0 %690
      %v693 = vmul.f32 %v691, %v656
      %v694 = vsel %vm658, %v693, 0.0
      %v695 = vrot.slane %v694, 4
      %v696 = vadd.f32 %v694, %v695
      %v697 = vrot.slane %v696, 2
      %v698 = vadd.f32 %v696, %v697
      %v699 = vrot.slane %v698, 1
      %v700 = vadd.f32 %v698, %v699
      %v701 = vadd.f32 %v700, %v657
      %v702 = vadd.f32 %v701, 3.0
      %v703 = vmax.f32 %v702, 0.0
      %v704 = vmin.f32 %v703, 6.0
      %v705 = vmul.f32 %v704, 0.16666667
      %v706 = vlaneseq
      %v707 = vshrl.u32 %v706, 7
      %v708 = vsub.s32 0, %v707
      %v709 = vrot.slane %v705, %v708
      %v710 = vmul.f32 %v646, %v709
      %v711 = vmul.f32 %v647, %v709
      %v712 = vmul.f32 %v648, %v709
      %v713 = vmul.f32 %v649, %v709
      %v714 = vmul.f32 %v650, %v709
      %v715 = vmul.f32 %v651, %v709
      %v716 = vmul.f32 %v652, %v709
      %v717 = vmul.f32 %v653, %v709
      %v718 = vpack.c.bf16 %v711, %v710
      %v719 = vpack.c.bf16 %v713, %v712
      %v720 = vpack.c.bf16 %v715, %v714
      %v721 = vpack.c.bf16 %v717, %v716
      %v722 = vld [vmem:[%s7] sm:$0xf]
      %v723 = vld [vmem:[%s7 + $0x4] sm:$0xf]
      %v724 = vld [vmem:[%s8] sm:$0x1]
      %v726 = vlaneseq
      %v727 = vshrl.u32 %v726, 7
      %v728 = vsub.s32 0, %v727
      %v729 = vrot.slane %v724, %v728
      %v733 = vunpack.c.l.b16 %v722
      %v734 = vunpack.c.l.b16 %v723
      %v735 = vpack.c.b16 %v734, %v733
      %v738 = vsel %vm658, %v718, 0
      %v741 = vsel %vm658, %v719, 0
      %v744 = vsel %vm658, %v720, 0
      %v747 = vsel %vm658, %v721, 0
      %749 = vmatprep.subr.bf16.mxu0 0
      %750 = vmatpush1.bf16.msra.mxu0 %v735
      %751 = vmatprep.subr.bf16.mxu0 0
      %752 = vmatpush1.bf16.msra.mxu0 0
      %753 = vmatprep.subr.bf16.mxu0 0
      %754 = vmatpush1.bf16.msra.mxu0 0
      %755 = vmatprep.subr.bf16.mxu0 0
      %756 = vmatpush1.bf16.msra.mxu0 0
      %757 = vmatprep.subr.bf16.mxu0 0
      %758 = vmatpush1.bf16.msra.mxu0 0
      %759 = vmatprep.subr.bf16.mxu0 0
      %760 = vmatpush1.bf16.msra.mxu0 0
      %761 = vmatprep.subr.bf16.mxu0 0
      %762 = vmatpush1.bf16.msra.mxu0 0
      %763 = vmatprep.subr.bf16.mxu0 0
      %764 = vmatpush1.bf16.msra.mxu0 0
      %765 = vmatprep.subr.bf16.mxu0 0
      %766 = vmatpush1.bf16.msra.mxu0 0
      %767 = vmatprep.subr.bf16.mxu0 0
      %768 = vmatpush1.bf16.msra.mxu0 0
      %769 = vmatprep.subr.bf16.mxu0 0
      %770 = vmatpush1.bf16.msra.mxu0 0
      %771 = vmatprep.subr.bf16.mxu0 0
      %772 = vmatpush1.bf16.msra.mxu0 0
      %773 = vmatprep.subr.bf16.mxu0 0
      %774 = vmatpush1.bf16.msra.mxu0 0
      %775 = vmatprep.subr.bf16.mxu0 0
      %776 = vmatpush1.bf16.msra.mxu0 0
      %777 = vmatprep.subr.bf16.mxu0 0
      %778 = vmatpush1.bf16.msra.mxu0 0
      %779 = vmatprep.subr.bf16.mxu0 0
      %780 = vmatpush1.bf16.msra.mxu0 0
      %781 = vmatprep.mubr.bf16.mxu0 0
      %782 = vmatmul.mubr.bf16.gmra.mrb[0].mxu0 %v738
      %v783 = vpop.f32.mrb[0].mxu0
      %v784 = vadd.f32 %v729, %v783
      %v785 = vpop.f32.mrb[0].mxu0
      %v786 = vpop.f32.mrb[0].mxu0
      %v787 = vadd.f32 %v729, %v786
      %v788 = vpop.f32.mrb[0].mxu0
      %789 = vmatprep.mubr.bf16.mxu0 0
      %790 = vmatmul.mubr.bf16.gmra.mrb[0].mxu0 %v741
      %v791 = vpop.f32.mrb[0].mxu0
      %v792 = vadd.f32 %v729, %v791
      %v793 = vpop.f32.mrb[0].mxu0
      %v794 = vpop.f32.mrb[0].mxu0
      %v795 = vadd.f32 %v729, %v794
      %v796 = vpop.f32.mrb[0].mxu0
      %797 = vmatprep.mubr.bf16.mxu0 0
      %798 = vmatmul.mubr.bf16.gmra.mrb[0].mxu0 %v744
      %v799 = vpop.f32.mrb[0].mxu0
      %v800 = vadd.f32 %v729, %v799
      %v801 = vpop.f32.mrb[0].mxu0
      %v802 = vpop.f32.mrb[0].mxu0
      %v803 = vadd.f32 %v729, %v802
      %v804 = vpop.f32.mrb[0].mxu0
      %805 = vmatprep.mubr.bf16.mxu0 0
      %806 = vmatmul.mubr.bf16.gmra.mrb[0].mxu0 %v747
      %v807 = vpop.f32.mrb[0].mxu0
      %v808 = vadd.f32 %v729, %v807
      %v809 = vpop.f32.mrb[0].mxu0
      %v810 = vpop.f32.mrb[0].mxu0
      %v811 = vadd.f32 %v729, %v810
      %v812 = vpop.f32.mrb[0].mxu0
      %813 = vdwg.mxu0
      %v814 = vmax.f32 %v784, 0.0
      %v815 = vmax.f32 %v787, 0.0
      %v816 = vmax.f32 %v792, 0.0
      %v817 = vmax.f32 %v795, 0.0
      %v818 = vmax.f32 %v800, 0.0
      %v819 = vmax.f32 %v803, 0.0
      %v820 = vmax.f32 %v808, 0.0
      %v821 = vmax.f32 %v811, 0.0
      %vm822 = vcmask 261120
      %823 = vst.msk [vmem:[%s337] sm:$0xff] %vm822, %v814
      %824 = vst.msk [vmem:[%s337 + $0x8] sm:$0xff] %vm822, %v815
      %825 = vst.msk [vmem:[%s337 + $0x10] sm:$0xff] %vm822, %v816
      %826 = vst.msk [vmem:[%s337 + $0x18] sm:$0xff] %vm822, %v817
      %827 = vst.msk [vmem:[%s337 + $0x20] sm:$0xff] %vm822, %v818
      %828 = vst.msk [vmem:[%s337 + $0x28] sm:$0xff] %vm822, %v819
      %829 = vst.msk [vmem:[%s337 + $0x30] sm:$0xff] %vm822, %v820
      %830 = vst.msk [vmem:[%s337 + $0x38] sm:$0xff] %vm822, %v821
      %p831 = scmp.lt.s32.totalorder %s20, 1
      %s832 = scalar_select %p831, %s20, 1
      %s833 = smul.addr %s832, 8
      %s834 = smul.addr %s833, 8
      %s835 = scalar_lea.vmem %s9, %s834
      // Predicated region
      $region57: #{pose_mobilenetv3_forward.6} parent=55 // pred_check
        %p836 = pneg %p232
      $region58: #{pose_mobilenetv3_forward.6} parent=55 // pred_check_branch
        %838 = sbr.rel (%p836) target = $region60
      $region59: #{pose_mobilenetv3_forward.6} parent=55 // pred_region
        _
      $region60: #{pose_mobilenetv3_forward.6} parent=55 // pred_fallthru
        _
    $region56: #{pose_mobilenetv3_forward.6} parent=5 // pred_fallthru
      _
    %p839 = scmp.le.s32.totalorder 2, %s15
    // Predicated region
    $region61: #{pose_mobilenetv3_forward.6} parent=5 // pred_check
      %p840 = pneg %p839
    $region62: #{pose_mobilenetv3_forward.6} parent=5 // pred_check_branch
      %842 = sbr.rel (%p840) target = $region64
    $region63: #{pose_mobilenetv3_forward.6} parent=5 // pred_region
      %s843 = ssub.s32 %s15, 2
      // Predicated region
      $region65: #{pose_mobilenetv3_forward.6} parent=63 // pred_check
        %p844 = pneg %p238
      $region66: #{pose_mobilenetv3_forward.6} parent=63 // pred_check_branch
        %846 = sbr.rel (%p844) target = $region68
      $region67: #{pose_mobilenetv3_forward.6} parent=63 // pred_region
        %p847 = scmp.lt.s32.totalorder %s21, 1
        %s848 = scalar_select %p847, %s21, 1
        %s849 = smul.addr %s848, 8
        %s850 = smul.addr %s849, 8
        %s851 = scalar_lea.vmem %s9, %s850
      $region68: #{pose_mobilenetv3_forward.6} parent=63 // pred_fallthru
        _
    $region64: #{pose_mobilenetv3_forward.6} parent=5 // pred_fallthru
      _
  $region6: #{pose_mobilenetv3_forward.6} parent=0 // loop_footer
    %s19 = sadd.s32 1, %s15
  $region7: #{pose_mobilenetv3_forward.6} parent=0 // loop_footer_branch
    %14 = sbr.rel target = $region3
  $region8: #{pose_mobilenetv3_forward.6} parent=0 // loop_exit
    _

// kernel: pose_mobilenetv3_forward.7
$region0: #{pose_mobilenetv3_forward.7}
  #allocation0 [shape = 'u32[]', space=smem, size = 0x4, offset = 0x4, fixed_abs, tag = 'smem constant byte address 0x4 - core index']
  #allocation1 [shape = 'u32[144,128]{1,0:T(1,128)}', space=vmem, size = 0x12000, scoped, tag = 'internal scratch']
  #allocation2 [shape = 'f32[6,6,32]{2,1,0:T(8,128)}', space=vmem, size = 0x6000, scoped, tag = 'scratch operand']
  %s0 = inlined_call_operand.vmem [shape: f32[8,5,5,32], index: 0, kind: input, shape index: {}]
  %s1 = inlined_call_operand.vmem [shape: f32[9,1,1,32], index: 1, kind: input, shape index: {}]
  %s2 = inlined_call_operand.vmem [shape: f32[1,1,32], index: 2, kind: input, shape index: {}, may-alias: {2,8}]
  %s3 = inlined_call_operand.vmem [shape: bf16[32,24], index: 3, kind: input, shape index: {}]
  %s4 = inlined_call_operand.vmem [shape: f32[1,24], index: 4, kind: input, shape index: {}, may-alias: {4,14}]
  %s5 = inlined_call_operand.vmem [shape: bf16[32,32], index: 5, kind: input, shape index: {}]
  %s6 = inlined_call_operand.vmem [shape: f32[1,32], index: 6, kind: input, shape index: {}, may-alias: {6,12}]
  %s7 = inlined_call_operand.vmem [shape: f32[9,1,1,32], index: 7, kind: input, shape index: {}]
  %s8 = inlined_call_operand.vmem [shape: f32[1,1,32], index: 8, kind: input, shape index: {}, may-alias: {2,8}]
  %s9 = inlined_call_operand.vmem [shape: f32[8,32], index: 9, kind: input, shape index: {}]
  %s10 = inlined_call_operand.vmem [shape: f32[8,1], index: 10, kind: input, shape index: {}]
  %s11 = inlined_call_operand.vmem [shape: f32[8,32], index: 11, kind: input, shape index: {}]
  %s12 = inlined_call_operand.vmem [shape: f32[1,32], index: 12, kind: input, shape index: {}, may-alias: {6,12}]
  %s13 = inlined_call_operand.vmem [shape: bf16[32,24], index: 13, kind: input, shape index: {}]
  %s14 = inlined_call_operand.vmem [shape: f32[1,24], index: 14, kind: input, shape index: {}, may-alias: {4,14}]
  %s15 = inlined_call_operand.vmem [shape: bf16[24,144], index: 15, kind: input, shape index: {}]
  %s16 = inlined_call_operand.vmem [shape: f32[1,144], index: 16, kind: input, shape index: {}]
  %s17 = inlined_call_operand.vmem [shape: bf16[2,4,4,144], index: 17, kind: output, shape index: {}]
  %s18 = sld [smem:[#allocation0]]
  $region101: #{pose_mobilenetv3_forward.7} parent=0
    _
  %s20 = ssub.s32 1, %s18
  %s21 = scalar_select 0, %s20, %s18
  loop: start=0, step=1, limit=4
  $region2: #{pose_mobilenetv3_forward.7} parent=0 // loop_pre_header
    _
  $region3: #{pose_mobilenetv3_forward.7} parent=0 // loop_header
    %s23 = sphi 0, %s27
    %p24 = scmp.ge.s32.totalorder %s23, 4
    %s33 = sphi 0, %s35
    %s36 = sphi 0, %s33
    %s37 = sphi 0, %s36
    %s53 = sphi 0, %s37
    %s57 = sphi 0, %s57
    %s59 = sphi 0, %s57
    %s60 = sphi 0, %s59
    %s74 = sphi 0, %s60
    %s78 = sphi 0, %s78
    %s80 = sphi 0, %s78
    %s81 = sphi 0, %s80
    %s95 = sphi 0, %s81
    %s99 = sphi 0, %s99
    %s101 = sphi 0, %s99
    %s102 = sphi 0, %s101
    %s116 = sphi 0, %s102
    %s120 = sphi 0, %s120
    %s122 = sphi 0, %s120
    %s123 = sphi 0, %s122
    %s137 = sphi 0, %s123
    %s141 = sphi 0, %s141
    %s143 = sphi 0, %s141
    %s144 = sphi 0, %s143
    %s158 = sphi 0, %s144
    %s162 = sphi 0, %s162
    %s164 = sphi 0, %s162
    %s165 = sphi 0, %s164
    %s179 = sphi 0, %s165
    %s183 = sphi 0, %s183
    %s185 = sphi 0, %s183
    %s186 = sphi 0, %s185
    %s200 = sphi 0, %s186
    %s204 = sphi 0, %s204
    %s206 = sphi 0, %s204
    %s207 = sphi 0, %s206
    %s221 = sphi 0, %s207
    %s225 = sphi 0, %s225
    %s227 = sphi 0, %s225
    %s228 = sphi 0, %s227
    %s242 = sphi 0, %s228
    %s246 = sphi 0, %s246
    %s248 = sphi 0, %s246
    %s249 = sphi 0, %s248
    %s263 = sphi 0, %s249
    %s267 = sphi 0, %s267
    %s269 = sphi 0, %s267
    %s270 = sphi 0, %s269
    %s284 = sphi 0, %s270
    %s288 = sphi 0, %s288
    %s290 = sphi 0, %s288
    %s291 = sphi 0, %s290
    %s305 = sphi 0, %s291
    %s309 = sphi 0, %s309
    %s311 = sphi 0, %s309
    %s312 = sphi 0, %s311
    %s326 = sphi 0, %s312
    %s330 = sphi 0, %s330
    %s332 = sphi 0, %s330
    %s333 = sphi 0, %s332
    %s347 = sphi 0, %s333
    %s351 = sphi 0, %s351
    %s353 = sphi 0, %s351
    %s354 = sphi 0, %s353
    %s368 = sphi 0, %s354
    %s372 = sphi 0, %s372
    %s374 = sphi 0, %s372
    %s375 = sphi 0, %s374
    %s389 = sphi 0, %s375
    %s395 = sphi 0, %s397
    %s398 = sphi 0, %s395
    %s399 = sphi 0, %s398
    %s415 = sphi 0, %s399
  $region4: #{pose_mobilenetv3_forward.7} parent=0 // loop_header_branch
    %26 = sbr.rel (%p24) target = $region8
  $region5: #{pose_mobilenetv3_forward.7} parent=0 // loop_body
    %s28 = ssub.s32 %s23, 1
    %s29 = ssub.s32 %s23, 2
    %s30 = sadd.s32 %s23, 1
    %s31 = ssub.s32 %s23, %s30
    %p32 = scmp.eq.s32.totalorder %s31, 0
    %s34 = sadd.s32 %s33, 1
    %s35 = scalar_select %p32, %s33, %s34
    %p38 = pneg %p32
    %p39 = scmp.eq.s32.totalorder %s23, 1
    %p40 = por %p38, %p39
    %p41 = scmp.ne.s32.totalorder %s33, %s36
    %p42 = scmp.eq.s32.totalorder %s23, 0
    %p43 = por %p41, %p42
    %p44 = scmp.ne.s32.totalorder %s33, %s36
    %p45 = scmp.eq.s32.totalorder %s28, 1
    %p46 = por %p44, %p45
    %p47 = scmp.ne.s32.totalorder %s36, %s37
    %p48 = scmp.eq.s32.totalorder %s28, 0
    %p49 = por %p47, %p48
    %p50 = scmp.ne.s32.totalorder %s36, %s37
    %p51 = scmp.eq.s32.totalorder %s29, 1
    %p52 = por %p50, %p51
    %p54 = scmp.ne.s32.totalorder %s37, %s53
    %p55 = scmp.eq.s32.totalorder %s29, 0
    %p56 = por %p54, %p55
    %s58 = sadd.s32 %s57, 1
    %p61 = scmp.eq.s32.totalorder %s23, 1
    %p62 = scmp.ne.s32.totalorder %s57, %s59
    %p63 = scmp.eq.s32.totalorder %s23, 0
    %p64 = por %p62, %p63
    %p65 = scmp.ne.s32.totalorder %s57, %s59
    %p66 = scmp.eq.s32.totalorder %s28, 1
    %p67 = por %p65, %p66
    %p68 = scmp.ne.s32.totalorder %s59, %s60
    %p69 = scmp.eq.s32.totalorder %s28, 0
    %p70 = por %p68, %p69
    %p71 = scmp.ne.s32.totalorder %s59, %s60
    %p72 = scmp.eq.s32.totalorder %s29, 1
    %p73 = por %p71, %p72
    %p75 = scmp.ne.s32.totalorder %s60, %s74
    %p76 = scmp.eq.s32.totalorder %s29, 0
    %p77 = por %p75, %p76
    %s79 = sadd.s32 %s78, 1
    %p82 = scmp.eq.s32.totalorder %s23, 1
    %p83 = scmp.ne.s32.totalorder %s78, %s80
    %p84 = scmp.eq.s32.totalorder %s23, 0
    %p85 = por %p83, %p84
    %p86 = scmp.ne.s32.totalorder %s78, %s80
    %p87 = scmp.eq.s32.totalorder %s28, 1
    %p88 = por %p86, %p87
    %p89 = scmp.ne.s32.totalorder %s80, %s81
    %p90 = scmp.eq.s32.totalorder %s28, 0
    %p91 = por %p89, %p90
    %p92 = scmp.ne.s32.totalorder %s80, %s81
    %p93 = scmp.eq.s32.totalorder %s29, 1
    %p94 = por %p92, %p93
    %p96 = scmp.ne.s32.totalorder %s81, %s95
    %p97 = scmp.eq.s32.totalorder %s29, 0
    %p98 = por %p96, %p97
    %s100 = sadd.s32 %s99, 1
    %p103 = scmp.eq.s32.totalorder %s23, 1
    %p104 = scmp.ne.s32.totalorder %s99, %s101
    %p105 = scmp.eq.s32.totalorder %s23, 0
    %p106 = por %p104, %p105
    %p107 = scmp.ne.s32.totalorder %s99, %s101
    %p108 = scmp.eq.s32.totalorder %s28, 1
    %p109 = por %p107, %p108
    %p110 = scmp.ne.s32.totalorder %s101, %s102
    %p111 = scmp.eq.s32.totalorder %s28, 0
    %p112 = por %p110, %p111
    %p113 = scmp.ne.s32.totalorder %s101, %s102
    %p114 = scmp.eq.s32.totalorder %s29, 1
    %p115 = por %p113, %p114
    %p117 = scmp.ne.s32.totalorder %s102, %s116
    %p118 = scmp.eq.s32.totalorder %s29, 0
    %p119 = por %p117, %p118
    %s121 = sadd.s32 %s120, 1
    %p124 = scmp.eq.s32.totalorder %s23, 1
    %p125 = scmp.ne.s32.totalorder %s120, %s122
    %p126 = scmp.eq.s32.totalorder %s23, 0
    %p127 = por %p125, %p126
    %p128 = scmp.ne.s32.totalorder %s120, %s122
    %p129 = scmp.eq.s32.totalorder %s28, 1
    %p130 = por %p128, %p129
    %p131 = scmp.ne.s32.totalorder %s122, %s123
    %p132 = scmp.eq.s32.totalorder %s28, 0
    %p133 = por %p131, %p132
    %p134 = scmp.ne.s32.totalorder %s122, %s123
    %p135 = scmp.eq.s32.totalorder %s29, 1
    %p136 = por %p134, %p135
    %p138 = scmp.ne.s32.totalorder %s123, %s137
    %p139 = scmp.eq.s32.totalorder %s29, 0
    %p140 = por %p138, %p139
    %s142 = sadd.s32 %s141, 1
    %p145 = scmp.eq.s32.totalorder %s23, 1
    %p146 = scmp.ne.s32.totalorder %s141, %s143
    %p147 = scmp.eq.s32.totalorder %s23, 0
    %p148 = por %p146, %p147
    %p149 = scmp.ne.s32.totalorder %s141, %s143
    %p150 = scmp.eq.s32.totalorder %s28, 1
    %p151 = por %p149, %p150
    %p152 = scmp.ne.s32.totalorder %s143, %s144
    %p153 = scmp.eq.s32.totalorder %s28, 0
    %p154 = por %p152, %p153
    %p155 = scmp.ne.s32.totalorder %s143, %s144
    %p156 = scmp.eq.s32.totalorder %s29, 1
    %p157 = por %p155, %p156
    %p159 = scmp.ne.s32.totalorder %s144, %s158
    %p160 = scmp.eq.s32.totalorder %s29, 0
    %p161 = por %p159, %p160
    %s163 = sadd.s32 %s162, 1
    %p166 = scmp.eq.s32.totalorder %s23, 1
    %p167 = scmp.ne.s32.totalorder %s162, %s164
    %p168 = scmp.eq.s32.totalorder %s23, 0
    %p169 = por %p167, %p168
    %p170 = scmp.ne.s32.totalorder %s162, %s164
    %p171 = scmp.eq.s32.totalorder %s28, 1
    %p172 = por %p170, %p171
    %p173 = scmp.ne.s32.totalorder %s164, %s165
    %p174 = scmp.eq.s32.totalorder %s28, 0
    %p175 = por %p173, %p174
    %p176 = scmp.ne.s32.totalorder %s164, %s165
    %p177 = scmp.eq.s32.totalorder %s29, 1
    %p178 = por %p176, %p177
    %p180 = scmp.ne.s32.totalorder %s165, %s179
    %p181 = scmp.eq.s32.totalorder %s29, 0
    %p182 = por %p180, %p181
    %s184 = sadd.s32 %s183, 1
    %p187 = scmp.eq.s32.totalorder %s23, 1
    %p188 = scmp.ne.s32.totalorder %s183, %s185
    %p189 = scmp.eq.s32.totalorder %s23, 0
    %p190 = por %p188, %p189
    %p191 = scmp.ne.s32.totalorder %s183, %s185
    %p192 = scmp.eq.s32.totalorder %s28, 1
    %p193 = por %p191, %p192
    %p194 = scmp.ne.s32.totalorder %s185, %s186
    %p195 = scmp.eq.s32.totalorder %s28, 0
    %p196 = por %p194, %p195
    %p197 = scmp.ne.s32.totalorder %s185, %s186
    %p198 = scmp.eq.s32.totalorder %s29, 1
    %p199 = por %p197, %p198
    %p201 = scmp.ne.s32.totalorder %s186, %s200
    %p202 = scmp.eq.s32.totalorder %s29, 0
    %p203 = por %p201, %p202
    %s205 = sadd.s32 %s204, 1
    %p208 = scmp.eq.s32.totalorder %s23, 1
    %p209 = scmp.ne.s32.totalorder %s204, %s206
    %p210 = scmp.eq.s32.totalorder %s23, 0
    %p211 = por %p209, %p210
    %p212 = scmp.ne.s32.totalorder %s204, %s206
    %p213 = scmp.eq.s32.totalorder %s28, 1
    %p214 = por %p212, %p213
    %p215 = scmp.ne.s32.totalorder %s206, %s207
    %p216 = scmp.eq.s32.totalorder %s28, 0
    %p217 = por %p215, %p216
    %p218 = scmp.ne.s32.totalorder %s206, %s207
    %p219 = scmp.eq.s32.totalorder %s29, 1
    %p220 = por %p218, %p219
    %p222 = scmp.ne.s32.totalorder %s207, %s221
    %p223 = scmp.eq.s32.totalorder %s29, 0
    %p224 = por %p222, %p223
    %s226 = sadd.s32 %s225, 1
    %p229 = scmp.eq.s32.totalorder %s23, 1
    %p230 = scmp.ne.s32.totalorder %s225, %s227
    %p231 = scmp.eq.s32.totalorder %s23, 0
    %p232 = por %p230, %p231
    %p233 = scmp.ne.s32.totalorder %s225, %s227
    %p234 = scmp.eq.s32.totalorder %s28, 1
    %p235 = por %p233, %p234
    %p236 = scmp.ne.s32.totalorder %s227, %s228
    %p237 = scmp.eq.s32.totalorder %s28, 0
    %p238 = por %p236, %p237
    %p239 = scmp.ne.s32.totalorder %s227, %s228
    %p240 = scmp.eq.s32.totalorder %s29, 1
    %p241 = por %p239, %p240
    %p243 = scmp.ne.s32.totalorder %s228, %s242
    %p244 = scmp.eq.s32.totalorder %s29, 0
    %p245 = por %p243, %p244
    %s247 = sadd.s32 %s246, 1
    %p250 = scmp.eq.s32.totalorder %s23, 1
    %p251 = scmp.ne.s32.totalorder %s246, %s248
    %p252 = scmp.eq.s32.totalorder %s23, 0
    %p253 = por %p251, %p252
    %p254 = scmp.ne.s32.totalorder %s246, %s248
    %p255 = scmp.eq.s32.totalorder %s28, 1
    %p256 = por %p254, %p255
    %p257 = scmp.ne.s32.totalorder %s248, %s249
    %p258 = scmp.eq.s32.totalorder %s28, 0
    %p259 = por %p257, %p258
    %p260 = scmp.ne.s32.totalorder %s248, %s249
    %p261 = scmp.eq.s32.totalorder %s29, 1
    %p262 = por %p260, %p261
    %p264 = scmp.ne.s32.totalorder %s249, %s263
    %p265 = scmp.eq.s32.totalorder %s29, 0
    %p266 = por %p264, %p265
    %s268 = sadd.s32 %s267, 1
    %p271 = scmp.eq.s32.totalorder %s23, 1
    %p272 = scmp.ne.s32.totalorder %s267, %s269
    %p273 = scmp.eq.s32.totalorder %s23, 0
    %p274 = por %p272, %p273
    %p275 = scmp.ne.s32.totalorder %s267, %s269
    %p276 = scmp.eq.s32.totalorder %s28, 1
    %p277 = por %p275, %p276
    %p278 = scmp.ne.s32.totalorder %s269, %s270
    %p279 = scmp.eq.s32.totalorder %s28, 0
    %p280 = por %p278, %p279
    %p281 = scmp.ne.s32.totalorder %s269, %s270
    %p282 = scmp.eq.s32.totalorder %s29, 1
    %p283 = por %p281, %p282
    %p285 = scmp.ne.s32.totalorder %s270, %s284
    %p286 = scmp.eq.s32.totalorder %s29, 0
    %p287 = por %p285, %p286
    %s289 = sadd.s32 %s288, 1
    %p292 = scmp.eq.s32.totalorder %s23, 1
    %p293 = scmp.ne.s32.totalorder %s288, %s290
    %p294 = scmp.eq.s32.totalorder %s23, 0
    %p295 = por %p293, %p294
    %p296 = scmp.ne.s32.totalorder %s288, %s290
    %p297 = scmp.eq.s32.totalorder %s28, 1
    %p298 = por %p296, %p297
    %p299 = scmp.ne.s32.totalorder %s290, %s291
    %p300 = scmp.eq.s32.totalorder %s28, 0
    %p301 = por %p299, %p300
    %p302 = scmp.ne.s32.totalorder %s290, %s291
    %p303 = scmp.eq.s32.totalorder %s29, 1
    %p304 = por %p302, %p303
    %p306 = scmp.ne.s32.totalorder %s291, %s305
    %p307 = scmp.eq.s32.totalorder %s29, 0
    %p308 = por %p306, %p307
    %s310 = sadd.s32 %s309, 1
    %p313 = scmp.eq.s32.totalorder %s23, 1
    %p314 = scmp.ne.s32.totalorder %s309, %s311
    %p315 = scmp.eq.s32.totalorder %s23, 0
    %p316 = por %p314, %p315
    %p317 = scmp.ne.s32.totalorder %s309, %s311
    %p318 = scmp.eq.s32.totalorder %s28, 1
    %p319 = por %p317, %p318
    %p320 = scmp.ne.s32.totalorder %s311, %s312
    %p321 = scmp.eq.s32.totalorder %s28, 0
    %p322 = por %p320, %p321
    %p323 = scmp.ne.s32.totalorder %s311, %s312
    %p324 = scmp.eq.s32.totalorder %s29, 1
    %p325 = por %p323, %p324
    %p327 = scmp.ne.s32.totalorder %s312, %s326
    %p328 = scmp.eq.s32.totalorder %s29, 0
    %p329 = por %p327, %p328
    %s331 = sadd.s32 %s330, 1
    %p334 = scmp.eq.s32.totalorder %s23, 1
    %p335 = scmp.ne.s32.totalorder %s330, %s332
    %p336 = scmp.eq.s32.totalorder %s23, 0
    %p337 = por %p335, %p336
    %p338 = scmp.ne.s32.totalorder %s330, %s332
    %p339 = scmp.eq.s32.totalorder %s28, 1
    %p340 = por %p338, %p339
    %p341 = scmp.ne.s32.totalorder %s332, %s333
    %p342 = scmp.eq.s32.totalorder %s28, 0
    %p343 = por %p341, %p342
    %p344 = scmp.ne.s32.totalorder %s332, %s333
    %p345 = scmp.eq.s32.totalorder %s29, 1
    %p346 = por %p344, %p345
    %p348 = scmp.ne.s32.totalorder %s333, %s347
    %p349 = scmp.eq.s32.totalorder %s29, 0
    %p350 = por %p348, %p349
    %s352 = sadd.s32 %s351, 1
    %p355 = scmp.eq.s32.totalorder %s23, 1
    %p356 = scmp.ne.s32.totalorder %s351, %s353
    %p357 = scmp.eq.s32.totalorder %s23, 0
    %p358 = por %p356, %p357
    %p359 = scmp.ne.s32.totalorder %s351, %s353
    %p360 = scmp.eq.s32.totalorder %s28, 1
    %p361 = por %p359, %p360
    %p362 = scmp.ne.s32.totalorder %s353, %s354
    %p363 = scmp.eq.s32.totalorder %s28, 0
    %p364 = por %p362, %p363
    %p365 = scmp.ne.s32.totalorder %s353, %s354
    %p366 = scmp.eq.s32.totalorder %s29, 1
    %p367 = por %p365, %p366
    %p369 = scmp.ne.s32.totalorder %s354, %s368
    %p370 = scmp.eq.s32.totalorder %s29, 0
    %p371 = por %p369, %p370
    %s373 = sadd.s32 %s372, 1
    %p376 = scmp.eq.s32.totalorder %s23, 1
    %p377 = scmp.ne.s32.totalorder %s372, %s374
    %p378 = scmp.eq.s32.totalorder %s23, 0
    %p379 = por %p377, %p378
    %p380 = scmp.ne.s32.totalorder %s372, %s374
    %p381 = scmp.eq.s32.totalorder %s28, 1
    %p382 = por %p380, %p381
    %p383 = scmp.ne.s32.totalorder %s374, %s375
    %p384 = scmp.eq.s32.totalorder %s28, 0
    %p385 = por %p383, %p384
    %p386 = scmp.ne.s32.totalorder %s374, %s375
    %p387 = scmp.eq.s32.totalorder %s29, 1
    %p388 = por %p386, %p387
    %p390 = scmp.ne.s32.totalorder %s375, %s389
    %p391 = scmp.eq.s32.totalorder %s29, 0
    %p392 = por %p390, %p391
    %s393 = ssub.s32 %s23, %s30
    %p394 = scmp.eq.s32.totalorder %s393, 0
    %s396 = sadd.s32 %s395, 1
    %s397 = scalar_select %p394, %s395, %s396
    %p400 = pneg %p394
    %p401 = scmp.eq.s32.totalorder %s23, 1
    %p402 = por %p400, %p401
    %p403 = scmp.ne.s32.totalorder %s395, %s398
    %p404 = scmp.eq.s32.totalorder %s23, 0
    %p405 = por %p403, %p404
    %p406 = scmp.ne.s32.totalorder %s395, %s398
    %p407 = scmp.eq.s32.totalorder %s28, 1
    %p408 = por %p406, %p407
    %p409 = scmp.ne.s32.totalorder %s398, %s399
    %p410 = scmp.eq.s32.totalorder %s28, 0
    %p411 = por %p409, %p410
    %p412 = scmp.ne.s32.totalorder %s398, %s399
    %p413 = scmp.eq.s32.totalorder %s29, 1
    %p414 = por %p412, %p413
    %p416 = scmp.ne.s32.totalorder %s399, %s415
    %p417 = scmp.eq.s32.totalorder %s29, 0
    %p418 = por %p416, %p417
    %p419 = scmp.le.s32.totalorder 1, %s23
    %p420 = scmp.lt.s32.totalorder %s23, 3
    %p421 = pnand %p419, %p420
    %p422 = pneg %p421
    // Predicated region
    $region9: #{pose_mobilenetv3_forward.7} parent=5 // pred_check
      _
    $region10: #{pose_mobilenetv3_forward.7} parent=5 // pred_check_branch
      %424 = sbr.rel (%p421) target = $region12
    $region11: #{pose_mobilenetv3_forward.7} parent=5 // pred_region
      %s425 = ssub.s32 %s23, 1
      // Predicated region
      $region13: #{pose_mobilenetv3_forward.7} parent=11 // pred_check
        %p426 = pneg %p70
      $region14: #{pose_mobilenetv3_forward.7} parent=11 // pred_check_branch
        %428 = sbr.rel (%p426) target = $region16
      $region15: #{pose_mobilenetv3_forward.7} parent=11 // pred_region
        _
      $region16: #{pose_mobilenetv3_forward.7} parent=11 // pred_fallthru
        _
      // Predicated region
      $region17: #{pose_mobilenetv3_forward.7} parent=11 // pred_check
        %p429 = pneg %p91
      $region18: #{pose_mobilenetv3_forward.7} parent=11 // pred_check_branch
        %431 = sbr.rel (%p429) target = $region20
      $region19: #{pose_mobilenetv3_forward.7} parent=11 // pred_region
        _
      $region20: #{pose_mobilenetv3_forward.7} parent=11 // pred_fallthru
        _
      // Predicated region
      $region21: #{pose_mobilenetv3_forward.7} parent=11 // pred_check
        %p432 = pneg %p112
      $region22: #{pose_mobilenetv3_forward.7} parent=11 // pred_check_branch
        %434 = sbr.rel (%p432) target = $region24
      $region23: #{pose_mobilenetv3_forward.7} parent=11 // pred_region
        _
      $region24: #{pose_mobilenetv3_forward.7} parent=11 // pred_fallthru
        _
      // Predicated region
      $region25: #{pose_mobilenetv3_forward.7} parent=11 // pred_check
        %p435 = pneg %p133
      $region26: #{pose_mobilenetv3_forward.7} parent=11 // pred_check_branch
        %437 = sbr.rel (%p435) target = $region28
      $region27: #{pose_mobilenetv3_forward.7} parent=11 // pred_region
        _
      $region28: #{pose_mobilenetv3_forward.7} parent=11 // pred_fallthru
        _
      // Predicated region
      $region29: #{pose_mobilenetv3_forward.7} parent=11 // pred_check
        %p438 = pneg %p154
      $region30: #{pose_mobilenetv3_forward.7} parent=11 // pred_check_branch
        %440 = sbr.rel (%p438) target = $region32
      $region31: #{pose_mobilenetv3_forward.7} parent=11 // pred_region
        _
      $region32: #{pose_mobilenetv3_forward.7} parent=11 // pred_fallthru
        _
      // Predicated region
      $region33: #{pose_mobilenetv3_forward.7} parent=11 // pred_check
        %p441 = pneg %p175
      $region34: #{pose_mobilenetv3_forward.7} parent=11 // pred_check_branch
        %443 = sbr.rel (%p441) target = $region36
      $region35: #{pose_mobilenetv3_forward.7} parent=11 // pred_region
        _
      $region36: #{pose_mobilenetv3_forward.7} parent=11 // pred_fallthru
        _
      // Predicated region
      $region37: #{pose_mobilenetv3_forward.7} parent=11 // pred_check
        %p444 = pneg %p196
      $region38: #{pose_mobilenetv3_forward.7} parent=11 // pred_check_branch
        %446 = sbr.rel (%p444) target = $region40
      $region39: #{pose_mobilenetv3_forward.7} parent=11 // pred_region
        _
      $region40: #{pose_mobilenetv3_forward.7} parent=11 // pred_fallthru
        _
      // Predicated region
      $region41: #{pose_mobilenetv3_forward.7} parent=11 // pred_check
        %p447 = pneg %p217
      $region42: #{pose_mobilenetv3_forward.7} parent=11 // pred_check_branch
        %449 = sbr.rel (%p447) target = $region44
      $region43: #{pose_mobilenetv3_forward.7} parent=11 // pred_region
        _
      $region44: #{pose_mobilenetv3_forward.7} parent=11 // pred_fallthru
        _
      // Predicated region
      $region45: #{pose_mobilenetv3_forward.7} parent=11 // pred_check
        %p450 = pneg %p238
      $region46: #{pose_mobilenetv3_forward.7} parent=11 // pred_check_branch
        %452 = sbr.rel (%p450) target = $region48
      $region47: #{pose_mobilenetv3_forward.7} parent=11 // pred_region
        _
      $region48: #{pose_mobilenetv3_forward.7} parent=11 // pred_fallthru
        _
      // Predicated region
      $region49: #{pose_mobilenetv3_forward.7} parent=11 // pred_check
        %p453 = pneg %p259
      $region50: #{pose_mobilenetv3_forward.7} parent=11 // pred_check_branch
        %455 = sbr.rel (%p453) target = $region52
      $region51: #{pose_mobilenetv3_forward.7} parent=11 // pred_region
        _
      $region52: #{pose_mobilenetv3_forward.7} parent=11 // pred_fallthru
        _
      // Predicated region
      $region53: #{pose_mobilenetv3_forward.7} parent=11 // pred_check
        %p456 = pneg %p280
      $region54: #{pose_mobilenetv3_forward.7} parent=11 // pred_check_branch
        %458 = sbr.rel (%p456) target = $region56
      $region55: #{pose_mobilenetv3_forward.7} parent=11 // pred_region
        _
      $region56: #{pose_mobilenetv3_forward.7} parent=11 // pred_fallthru
        _
      // Predicated region
      $region57: #{pose_mobilenetv3_forward.7} parent=11 // pred_check
        %p459 = pneg %p301
      $region58: #{pose_mobilenetv3_forward.7} parent=11 // pred_check_branch
        %461 = sbr.rel (%p459) target = $region60
      $region59: #{pose_mobilenetv3_forward.7} parent=11 // pred_region
        _
      $region60: #{pose_mobilenetv3_forward.7} parent=11 // pred_fallthru
        _
      // Predicated region
      $region61: #{pose_mobilenetv3_forward.7} parent=11 // pred_check
        %p462 = pneg %p322
      $region62: #{pose_mobilenetv3_forward.7} parent=11 // pred_check_branch
        %464 = sbr.rel (%p462) target = $region64
      $region63: #{pose_mobilenetv3_forward.7} parent=11 // pred_region
        _
      $region64: #{pose_mobilenetv3_forward.7} parent=11 // pred_fallthru
        _
      // Predicated region
      $region65: #{pose_mobilenetv3_forward.7} parent=11 // pred_check
        %p465 = pneg %p343
      $region66: #{pose_mobilenetv3_forward.7} parent=11 // pred_check_branch
        %467 = sbr.rel (%p465) target = $region68
      $region67: #{pose_mobilenetv3_forward.7} parent=11 // pred_region
        _
      $region68: #{pose_mobilenetv3_forward.7} parent=11 // pred_fallthru
        _
      // Predicated region
      $region69: #{pose_mobilenetv3_forward.7} parent=11 // pred_check
        %p468 = pneg %p364
      $region70: #{pose_mobilenetv3_forward.7} parent=11 // pred_check_branch
        %470 = sbr.rel (%p468) target = $region72
      $region71: #{pose_mobilenetv3_forward.7} parent=11 // pred_region
        _
      $region72: #{pose_mobilenetv3_forward.7} parent=11 // pred_fallthru
        _
      // Predicated region
      $region73: #{pose_mobilenetv3_forward.7} parent=11 // pred_check
        %p471 = pneg %p385
      $region74: #{pose_mobilenetv3_forward.7} parent=11 // pred_check_branch
        %473 = sbr.rel (%p471) target = $region76
      $region75: #{pose_mobilenetv3_forward.7} parent=11 // pred_region
        _
      $region76: #{pose_mobilenetv3_forward.7} parent=11 // pred_fallthru
        _
    $region12: #{pose_mobilenetv3_forward.7} parent=5 // pred_fallthru
      _
    %p474 = scmp.lt.s32.totalorder %s23, 2
    // Predicated region
    $region77: #{pose_mobilenetv3_forward.7} parent=5 // pred_check
      %p475 = pneg %p474
    $region78: #{pose_mobilenetv3_forward.7} parent=5 // pred_check_branch
      %477 = sbr.rel (%p475) target = $region80
    $region79: #{pose_mobilenetv3_forward.7} parent=5 // pred_region
      // Predicated region
      $region81: #{pose_mobilenetv3_forward.7} parent=79 // pred_check
        %p478 = pneg %p43
      $region82: #{pose_mobilenetv3_forward.7} parent=79 // pred_check_branch
        %480 = sbr.rel (%p478) target = $region84
      $region83: #{pose_mobilenetv3_forward.7} parent=79 // pred_region
        %s481 = smul.u32 4, %s23
        %p482 = scmp.lt.s32.totalorder %s481, 7
        %s483 = scalar_select %p482, %s481, 7
        %s484 = smul.addr %s483, 5
        %s485 = smul.addr %s484, 8
        %s486 = scalar_lea.vmem %s0, %s485
        %s487 = smul.u32 4, %s23
      $region84: #{pose_mobilenetv3_forward.7} parent=79 // pred_fallthru
        _
    $region80: #{pose_mobilenetv3_forward.7} parent=5 // pred_fallthru
      _
    %p488 = scmp.le.s32.totalorder 1, %s23
    %p489 = scmp.lt.s32.totalorder %s23, 3
    %p490 = pnand %p488, %p489
    %p491 = pneg %p490
    // Predicated region
    $region85: #{pose_mobilenetv3_forward.7} parent=5 // pred_check
      _
    $region86: #{pose_mobilenetv3_forward.7} parent=5 // pred_check_branch
      %493 = sbr.rel (%p490) target = $region88
    $region87: #{pose_mobilenetv3_forward.7} parent=5 // pred_region
      %s494 = ssub.s32 %s23, 1
      %s495 = smul.u32 4, %s28
      %p496 = scmp.lt.s32.totalorder %s495, 7
      %s497 = scalar_select %p496, %s495, 7
      %s498 = smul.addr %s497, 5
      %s499 = smul.addr %s498, 8
      %s500 = scalar_lea.vmem %s0, %s499
      %p501 = pneg %p49
      %p502 = pneg %p46
      %p503 = pneg %p70
      %p504 = pneg %p67
      %p505 = pneg %p91
      %p506 = pneg %p88
      %p507 = pneg %p112
      %p508 = pneg %p109
      %p509 = pneg %p133
      %p510 = pneg %p130
      %p511 = pneg %p154
      %p512 = pneg %p151
      %p513 = pneg %p175
      %p514 = pneg %p172
      %p515 = pneg %p196
      %p516 = pneg %p193
      %p517 = pneg %p217
      %p518 = pneg %p214
      %p519 = pneg %p238
      %p520 = pneg %p235
      %p521 = pneg %p259
      %p522 = pneg %p256
      %p523 = pneg %p280
      %p524 = pneg %p277
      %p525 = pneg %p301
      %p526 = pneg %p298
      %p527 = pneg %p322
      %p528 = pneg %p319
      %p529 = pneg %p343
      %p530 = pneg %p340
      %p531 = pneg %p364
      %p532 = pneg %p361
      %p533 = pneg %p385
      %p534 = pneg %p382
      %p535 = pneg %p411
      %p536 = pneg %p408
      %p537 = scmp.lt.s32.totalorder %s28, 1
      %s538 = scalar_select %p537, %s28, 1
      %s539 = smul.addr %s538, 8
      %s540 = smul.addr %s539, 2
      %s541 = scalar_lea.vmem %s17, %s540
      %s542 = smul.u32 4, %s28
      %p543 = scmp.lt.s32.totalorder %s542, 7
      %s544 = scalar_select %p543, %s542, 7
      %s545 = smul.addr %s544, 5
      %s546 = smul.addr %s545, 8
      %s547 = scalar_lea.vmem %s0, %s546
      %s548 = smul.u32 4, %s28
      %p549 = scmp.lt.s32.totalorder %s28, 1
      %s550 = scalar_select %p549, %s28, 1
      %s551 = smul.addr %s550, 8
      %s552 = smul.addr %s551, 2
      %s553 = scalar_lea.vmem %s17, %s552
      %v555 = vld [vmem:[%s547] sm:$0xf]
      %v556 = vld [vmem:[%s547 + $0x8] sm:$0xf]
      %v557 = vld [vmem:[%s547 + $0x10] sm:$0xf]
      %v558 = vld [vmem:[%s547 + $0x18] sm:$0xf]
      %v559 = vld [vmem:[%s1] sm:$0x1]
      %v561 = vlaneseq
      %v562 = vshrl.u32 %v561, 7
      %v563 = vsub.s32 0, %v562
      %v564 = vrot.slane %v559, %v563
      %v566 = vmul.f32 %v555, %v564
      %v567 = vmul.f32 %v556, %v564
      %v568 = vmul.f32 %v557, %v564
      %v569 = vmul.f32 %v558, %v564
      %v570 = vadd.f32 %v566, 0.0
      %v571 = vadd.f32 %v567, 0.0
      %v572 = vadd.f32 %v568, 0.0
      %v573 = vadd.f32 %v569, 0.0
      %s574 = scalar_lea.vmem %s547, 40
      %v575 = vld [vmem:[%s574] sm:$0xf]
      %v576 = vld [vmem:[%s574 + $0x8] sm:$0xf]
      %v577 = vld [vmem:[%s574 + $0x10] sm:$0xf]
      %v578 = vld [vmem:[%s574 + $0x18] sm:$0xf]
      %s579 = scalar_lea.vmem %s1, 1
      %v580 = vld [vmem:[%s579] sm:$0x1]
      %v582 = vlaneseq
      %v583 = vshrl.u32 %v582, 7
      %v584 = vsub.s32 0, %v583
      %v585 = vrot.slane %v580, %v584
      %v587 = vmul.f32 %v575, %v585
      %v588 = vmul.f32 %v576, %v585
      %v589 = vmul.f32 %v577, %v585
      %v590 = vmul.f32 %v578, %v585
      %v591 = vadd.f32 %v570, %v587
      %v592 = vadd.f32 %v571, %v588
      %v593 = vadd.f32 %v572, %v589
      %v594 = vadd.f32 %v573, %v590
      %v595 = vld [vmem:[%s547 + $0x1] sm:$0xf]
      %v596 = vld [vmem:[%s547 + $0x9] sm:$0xf]
      %v597 = vld [vmem:[%s547 + $0x11] sm:$0xf]
      %v598 = vld [vmem:[%s547 + $0x19] sm:$0xf]
      %s599 = scalar_lea.vmem %s1, 2
      %v600 = vld [vmem:[%s599] sm:$0x1]
      %v602 = vlaneseq
      %v603 = vshrl.u32 %v602, 7
      %v604 = vsub.s32 0, %v603
      %v605 = vrot.slane %v600, %v604
      %v607 = vmul.f32 %v595, %v605
      %v608 = vmul.f32 %v596, %v605
      %v609 = vmul.f32 %v597, %v605
      %v610 = vmul.f32 %v598, %v605
      %v611 = vadd.f32 %v591, %v607
      %v612 = vadd.f32 %v592, %v608
      %v613 = vadd.f32 %v593, %v609
      %v614 = vadd.f32 %v594, %v610
      %s615 = scalar_lea.vmem %s547, 80
      %v616 = vld [vmem:[%s615] sm:$0xf]
      %v617 = vld [vmem:[%s615 + $0x8] sm:$0xf]
      %v618 = vld [vmem:[%s615 + $0x10] sm:$0xf]
      %v619 = vld [vmem:[%s615 + $0x18] sm:$0xf]
      %s620 = scalar_lea.vmem %s1, 3
      %v621 = vld [vmem:[%s620] sm:$0x1]
      %v623 = vlaneseq
      %v624 = vshrl.u32 %v623, 7
      %v625 = vsub.s32 0, %v624
      %v626 = vrot.slane %v621, %v625
      %v628 = vmul.f32 %v616, %v626
      %v629 = vmul.f32 %v617, %v626
      %v630 = vmul.f32 %v618, %v626
      %v631 = vmul.f32 %v619, %v626
      %v632 = vadd.f32 %v611, %v628
      %v633 = vadd.f32 %v612, %v629
      %v634 = vadd.f32 %v613, %v630
      %v635 = vadd.f32 %v614, %v631
      %s636 = scalar_lea.vmem %s547, 120
      %v637 = vld [vmem:[%s636] sm:$0xf]
      %v638 = vld [vmem:[%s636 + $0x8] sm:$0xf]
      %v639 = vld [vmem:[%s636 + $0x10] sm:$0xf]
      %v640 = vld [vmem:[%s636 + $0x18] sm:$0xf]
      %s641 = scalar_lea.vmem %s1, 4
      %v642 = vld [vmem:[%s641] sm:$0x1]
      %v644 = vlaneseq
      %v645 = vshrl.u32 %v644, 7
      %v646 = vsub.s32 0, %v645
      %v647 = vrot.slane %v642, %v646
      %v649 = vmul.f32 %v637, %v647
      %v650 = vmul.f32 %v638, %v647
      %v651 = vmul.f32 %v639, %v647
      %v652 = vmul.f32 %v640, %v647
      %v653 = vadd.f32 %v632, %v649
      %v654 = vadd.f32 %v633, %v650
      %v655 = vadd.f32 %v634, %v651
      %v656 = vadd.f32 %v635, %v652
      %v657 = vld [vmem:[%s615 + $0x1] sm:$0xf]
      %v658 = vld [vmem:[%s615 + $0x9] sm:$0xf]
      %v659 = vld [vmem:[%s615 + $0x11] sm:$0xf]
      %v660 = vld [vmem:[%s615 + $0x19] sm:$0xf]
      %s661 = scalar_lea.vmem %s1, 5
      %v662 = vld [vmem:[%s661] sm:$0x1]
      %v664 = vlaneseq
      %v665 = vshrl.u32 %v664, 7
      %v666 = vsub.s32 0, %v665
      %v667 = vrot.slane %v662, %v666
      %v669 = vmul.f32 %v657, %v667
      %v670 = vmul.f32 %v658, %v667
      %v671 = vmul.f32 %v659, %v667
      %v672 = vmul.f32 %v660, %v667
      %v673 = vadd.f32 %v653, %v669
      %v674 = vadd.f32 %v654, %v670
      %v675 = vadd.f32 %v655, %v671
      %v676 = vadd.f32 %v656, %v672
      %s677 = scalar_lea.vmem %s547, 8
      %v678 = vld [vmem:[%s677] sm:$0xf]
      %v679 = vld [vmem:[%s677 + $0x8] sm:$0xf]
      %v680 = vld [vmem:[%s677 + $0x10] sm:$0xf]
      %v681 = vld [vmem:[%s677 + $0x18] sm:$0xf]
      %s682 = scalar_lea.vmem %s1, 6
      %v683 = vld [vmem:[%s682] sm:$0x1]
      %v685 = vlaneseq
      %v686 = vshrl.u32 %v685, 7
      %v687 = vsub.s32 0, %v686
      %v688 = vrot.slane %v683, %v687
      %v690 = vmul.f32 %v678, %v688
      %v691 = vmul.f32 %v679, %v688
      %v692 = vmul.f32 %v680, %v688
      %v693 = vmul.f32 %v681, %v688
      %v694 = vadd.f32 %v673, %v690
      %v695 = vadd.f32 %v674, %v691
      %v696 = vadd.f32 %v675, %v692
      %v697 = vadd.f32 %v676, %v693
      %s698 = scalar_lea.vmem %s547, 48
      %v699 = vld [vmem:[%s698] sm:$0xf]
      %v700 = vld [vmem:[%s698 + $0x8] sm:$0xf]
      %v701 = vld [vmem:[%s698 + $0x10] sm:$0xf]
      %v702 = vld [vmem:[%s698 + $0x18] sm:$0xf]
      %s703 = scalar_lea.vmem %s1, 7
      %v704 = vld [vmem:[%s703] sm:$0x1]
      %v706 = vlaneseq
      %v707 = vshrl.u32 %v706, 7
      %v708 = vsub.s32 0, %v707
      %v709 = vrot.slane %v704, %v708
      %v711 = vmul.f32 %v699, %v709
      %v712 = vmul.f32 %v700, %v709
      %v713 = vmul.f32 %v701, %v709
      %v714 = vmul.f32 %v702, %v709
      %v715 = vadd.f32 %v694, %v711
      %v716 = vadd.f32 %v695, %v712
      %v717 = vadd.f32 %v696, %v713
      %v718 = vadd.f32 %v697, %v714
      %v719 = vld [vmem:[%s677 + $0x1] sm:$0xf]
      %v720 = vld [vmem:[%s677 + $0x9] sm:$0xf]
      %v721 = vld [vmem:[%s677 + $0x11] sm:$0xf]
      %v722 = vld [vmem:[%s677 + $0x19] sm:$0xf]
      %s723 = scalar_lea.vmem %s1, 8
      %v724 = vld [vmem:[%s723] sm:$0x1]
      %v726 = vlaneseq
      %v727 = vshrl.u32 %v726, 7
      %v728 = vsub.s32 0, %v727
      %v729 = vrot.slane %v724, %v728
      %v731 = vmul.f32 %v719, %v729
      %v732 = vmul.f32 %v720, %v729
      %v733 = vmul.f32 %v721, %v729
      %v734 = vmul.f32 %v722, %v729
      %v735 = vadd.f32 %v715, %v731
      %v736 = vadd.f32 %v716, %v732
      %v737 = vadd.f32 %v717, %v733
      %v738 = vadd.f32 %v718, %v734
      %v739 = vld [vmem:[%s2] sm:$0x1]
      %v741 = vlaneseq
      %v742 = vshrl.u32 %v741, 7
      %v743 = vsub.s32 0, %v742
      %v744 = vrot.slane %v739, %v743
      %v746 = vadd.f32 %v735, %v744
      %v747 = vadd.f32 %v736, %v744
      %v748 = vadd.f32 %v737, %v744
      %v749 = vadd.f32 %v738, %v744
      %v750 = vmax.f32 %v746, 0.0
      %v751 = vmax.f32 %v747, 0.0
      %v752 = vmax.f32 %v748, 0.0
      %v753 = vmax.f32 %v749, 0.0
      %v758 = vcombine.low %v750, %v751
      %v759 = vcombine.low %v752, %v753
      %v762 = vpack.c.bf16 %v759, %v758
      %v763 = vld [vmem:[%s3] sm:$0xf]
      %v764 = vld [vmem:[%s3 + $0x4] sm:$0xf]
      %v765 = vld [vmem:[%s3 + $0x8] sm:$0xf]
      %v766 = vld [vmem:[%s3 + $0xc] sm:$0xf]
      %v767 = vld [vmem:[%s4] sm:$0x1]
      %v769 = vlaneseq
      %v770 = vshrl.u32 %v769, 7
      %v771 = vsub.s32 0, %v770
      %v772 = vrot.slane %v767, %v771
      %v778 = vunpack.c.l.b16 %v763
      %v779 = vunpack.c.l.b16 %v764
      %v780 = vunpack.c.l.b16 %v765
      %v781 = vunpack.c.l.b16 %v766
      %v782 = vpack.c.b16 %v779, %v778
      %v783 = vpack.c.b16 %v781, %v780
      %vm786 = vcmask 261120
      %v788 = vsel %vm786, %v762, 0
      %790 = vmatprep.subr.bf16.mxu0 0
      %791 = vmatpush1.bf16.msra.mxu0 %v782
      %792 = vmatprep.subr.bf16.mxu0 0
      %793 = vmatpush1.bf16.msra.mxu0 %v783
      %794 = vmatprep.subr.bf16.mxu0 0
      %795 = vmatpush1.bf16.msra.mxu0 0
      %796 = vmatprep.subr.bf16.mxu0 0
      %797 = vmatpush1.bf16.msra.mxu0 0
      %798 = vmatprep.subr.bf16.mxu0 0
      %799 = vmatpush1.bf16.msra.mxu0 0
      %800 = vmatprep.subr.bf16.mxu0 0
      %801 = vmatpush1.bf16.msra.mxu0 0
      %802 = vmatprep.subr.bf16.mxu0 0
      %803 = vmatpush1.bf16.msra.mxu0 0
      %804 = vmatprep.subr.bf16.mxu0 0
      %805 = vmatpush1.bf16.msra.mxu0 0
      %806 = vmatprep.subr.bf16.mxu0 0
      %807 = vmatpush1.bf16.msra.mxu0 0
      %808 = vmatprep.subr.bf16.mxu0 0
      %809 = vmatpush1.bf16.msra.mxu0 0
      %810 = vmatprep.subr.bf16.mxu0 0
      %811 = vmatpush1.bf16.msra.mxu0 0
      %812 = vmatprep.subr.bf16.mxu0 0
      %813 = vmatpush1.bf16.msra.mxu0 0
      %814 = vmatprep.subr.bf16.mxu0 0
      %815 = vmatpush1.bf16.msra.mxu0 0
      %816 = vmatprep.subr.bf16.mxu0 0
      %817 = vmatpush1.bf16.msra.mxu0 0
      %818 = vmatprep.subr.bf16.mxu0 0
      %819 = vmatpush1.bf16.msra.mxu0 0
      %820 = vmatprep.subr.bf16.mxu0 0
      %821 = vmatpush1.bf16.msra.mxu0 0
      %822 = vmatprep.mubr.bf16.mxu0 0
      %823 = vmatmul.mubr.bf16.gmra.mrb[0].mxu0 %v788
      %v824 = vpop.f32.mrb[0].mxu0
      %v825 = vadd.f32 %v772, %v824
      %v826 = vpop.f32.mrb[0].mxu0
      %v827 = vpop.f32.mrb[0].mxu0
      %v828 = vadd.f32 %v772, %v827
      %v829 = vpop.f32.mrb[0].mxu0
      %830 = vdwg.mxu0
      %v831 = vld [vmem:[%s5] sm:$0xf]
      %v832 = vld [vmem:[%s5 + $0x4] sm:$0xf]
      %v833 = vld [vmem:[%s5 + $0x8] sm:$0xf]
      %v834 = vld [vmem:[%s5 + $0xc] sm:$0xf]
      %v835 = vld [vmem:[%s6] sm:$0x1]
      %v837 = vlaneseq
      %v838 = vshrl.u32 %v837, 7
      %v839 = vsub.s32 0, %v838
      %v840 = vrot.slane %v835, %v839
      %v846 = vunpack.c.l.b16 %v831
      %v847 = vunpack.c.l.b16 %v832
      %v848 = vunpack.c.l.b16 %v833
      %v849 = vunpack.c.l.b16 %v834
      %v850 = vpack.c.b16 %v847, %v846
      %v851 = vpack.c.b16 %v849, %v848
      %854 = vmatprep.subr.bf16.mxu0 0
      %855 = vmatpush1.bf16.msra.mxu0 %v850
      %856 = vmatprep.subr.bf16.mxu0 0
      %857 = vmatpush1.bf16.msra.mxu0 %v851
      %858 = vmatprep.subr.bf16.mxu0 0
      %859 = vmatpush1.bf16.msra.mxu0 0
      %860 = vmatprep.subr.bf16.mxu0 0
      %861 = vmatpush1.bf16.msra.mxu0 0
      %862 = vmatprep.subr.bf16.mxu0 0
      %863 = vmatpush1.bf16.msra.mxu0 0
      %864 = vmatprep.subr.bf16.mxu0 0
      %865 = vmatpush1.bf16.msra.mxu0 0
      %866 = vmatprep.subr.bf16.mxu0 0
      %867 = vmatpush1.bf16.msra.mxu0 0
      %868 = vmatprep.subr.bf16.mxu0 0
      %869 = vmatpush1.bf16.msra.mxu0 0
      %870 = vmatprep.subr.bf16.mxu0 0
      %871 = vmatpush1.bf16.msra.mxu0 0
      %872 = vmatprep.subr.bf16.mxu0 0
      %873 = vmatpush1.bf16.msra.mxu0 0
      %874 = vmatprep.subr.bf16.mxu0 0
      %875 = vmatpush1.bf16.msra.mxu0 0
      %876 = vmatprep.subr.bf16.mxu0 0
      %877 = vmatpush1.bf16.msra.mxu0 0
      %878 = vmatprep.subr.bf16.mxu0 0
      %879 = vmatpush1.bf16.msra.mxu0 0
      %880 = vmatprep.subr.bf16.mxu0 0
      %881 = vmatpush1.bf16.msra.mxu0 0
      %882 = vmatprep.subr.bf16.mxu0 0
      %883 = vmatpush1.bf16.msra.mxu0 0
      %884 = vmatprep.subr.bf16.mxu0 0
      %885 = vmatpush1.bf16.msra.mxu0 0
      %886 = vmatprep.mubr.bf16.mxu0 0
      %887 = vmatmul.mubr.bf16.gmra.mrb[0].mxu0 %v788
      %v888 = vpop.f32.mrb[0].mxu0
      %v889 = vadd.f32 %v840, %v888
      %v890 = vpop.f32.mrb[0].mxu0
      %v891 = vpop.f32.mrb[0].mxu0
      %v892 = vadd.f32 %v840, %v891
      %v893 = vpop.f32.mrb[0].mxu0
      %894 = vdwg.mxu0
      %v895 = vadd.f32 %v889, 3.0
      %v896 = vadd.f32 %v892, 3.0
      %v897 = vmax.f32 %v895, 0.0
      %v898 = vmax.f32 %v896, 0.0
      %v899 = vmin.f32 %v897, 6.0
      %v900 = vmin.f32 %v898, 6.0
      %v901 = vmul.f32 %v889, %v899
      %v902 = vmul.f32 %v892, %v900
      %v903 = vmul.f32 %v901, 0.16666667
      %v904 = vmul.f32 %v902, 0.16666667
      %vm905 = vcmask 259072
      %906 = vst.msk [vmem:[#allocation2] sm:$0x3f] %vm905, 0.0
      %s907 = scalar_lea.vmem [#allocation2], 40
      %908 = vst.msk [vmem:[%s907] sm:$0x3f] %vm905, 0.0
      %s909 = scalar_lea.vmem [#allocation2], 8
      %vm910 = vcmask 253952
      %911 = vst.msk [vmem:[%s909] sm:$0x1] %vm910, 0.0
      %912 = vst.msk [vmem:[%s909 + $0x8] sm:$0x1] %vm910, 0.0
      %913 = vst.msk [vmem:[%s909 + $0x10] sm:$0x1] %vm910, 0.0
      %914 = vst.msk [vmem:[%s909 + $0x18] sm:$0x1] %vm910, 0.0
      %915 = vst.msk [vmem:[%s909 + $0x5] sm:$0x1] %vm910, 0.0
      %916 = vst.msk [vmem:[%s909 + $0xd] sm:$0x1] %vm910, 0.0
      %917 = vst.msk [vmem:[%s909 + $0x15] sm:$0x1] %vm910, 0.0
      %918 = vst.msk [vmem:[%s909 + $0x1d] sm:$0x1] %vm910, 0.0
      %v921 = vcombine.high %v903, %v903
      %v922 = vcombine.high %v904, %v904
      %vm925 = vcmask 257024
      %926 = vst.msk [vmem:[%s909 + $0x1] sm:$0xf] %vm925, %v903
      %927 = vst.msk [vmem:[%s909 + $0x9] sm:$0xf] %vm925, %v921
      %928 = vst.msk [vmem:[%s909 + $0x11] sm:$0xf] %vm925, %v904
      %929 = vst.msk [vmem:[%s909 + $0x19] sm:$0xf] %vm925, %v922
      %v930 = vld [vmem:[#allocation2] sm:$0xf]
      %v931 = vld [vmem:[#allocation2 + $0x8] sm:$0xf]
      %v932 = vld [vmem:[#allocation2 + $0x10] sm:$0xf]
      %v933 = vld [vmem:[#allocation2 + $0x18] sm:$0xf]
      %v934 = vld [vmem:[%s7] sm:$0x1]
      %v936 = vlaneseq
      %v937 = vshrl.u32 %v936, 7
      %v938 = vsub.s32 0, %v937
      %v939 = vrot.slane %v934, %v938
      %v941 = vmul.f32 %v930, %v939
      %v942 = vmul.f32 %v931, %v939
      %v943 = vmul.f32 %v932, %v939
      %v944 = vmul.f32 %v933, %v939
      %v945 = vadd.f32 %v941, 0.0
      %v946 = vadd.f32 %v942, 0.0
      %v947 = vadd.f32 %v943, 0.0
      %v948 = vadd.f32 %v944, 0.0
      %v949 = vld [vmem:[#allocation2 + $0x1] sm:$0xf]
      %v950 = vld [vmem:[#allocation2 + $0x9] sm:$0xf]
      %v951 = vld [vmem:[#allocation2 + $0x11] sm:$0xf]
      %v952 = vld [vmem:[#allocation2 + $0x19] sm:$0xf]
      %s953 = scalar_lea.vmem %s7, 1
      %v954 = vld [vmem:[%s953] sm:$0x1]
      %v956 = vlaneseq
      %v957 = vshrl.u32 %v956, 7
      %v958 = vsub.s32 0, %v957
      %v959 = vrot.slane %v954, %v958
      %v961 = vmul.f32 %v949, %v959
      %v962 = vmul.f32 %v950, %v959
      %v963 = vmul.f32 %v951, %v959
      %v964 = vmul.f32 %v952, %v959
      %v965 = vadd.f32 %v945, %v961
      %v966 = vadd.f32 %v946, %v962
      %v967 = vadd.f32 %v947, %v963
      %v968 = vadd.f32 %v948, %v964
      %v969 = vld [vmem:[#allocation2 + $0x2] sm:$0xf]
      %v970 = vld [vmem:[#allocation2 + $0xa] sm:$0xf]
      %v971 = vld [vmem:[#allocation2 + $0x12] sm:$0xf]
      %v972 = vld [vmem:[#allocation2 + $0x1a] sm:$0xf]
      %s973 = scalar_lea.vmem %s7, 2
      %v974 = vld [vmem:[%s973] sm:$0x1]
      %v976 = vlaneseq
      %v977 = vshrl.u32 %v976, 7
      %v978 = vsub.s32 0, %v977
      %v979 = vrot.slane %v974, %v978
      %v981 = vmul.f32 %v969, %v979
      %v982 = vmul.f32 %v970, %v979
      %v983 = vmul.f32 %v971, %v979
      %v984 = vmul.f32 %v972, %v979
      %v985 = vadd.f32 %v965, %v981
      %v986 = vadd.f32 %v966, %v982
      %v987 = vadd.f32 %v967, %v983
      %v988 = vadd.f32 %v968, %v984
      %v989 = vld [vmem:[%s909] sm:$0xf]
      %v990 = vld [vmem:[%s909 + $0x8] sm:$0xf]
      %v991 = vld [vmem:[%s909 + $0x10] sm:$0xf]
      %v992 = vld [vmem:[%s909 + $0x18] sm:$0xf]
      %s993 = scalar_lea.vmem %s7, 3
      %v994 = vld [vmem:[%s993] sm:$0x1]
      %v996 = vlaneseq
      %v997 = vshrl.u32 %v996, 7
      %v998 = vsub.s32 0, %v997
      %v999 = vrot.slane %v994, %v998
      %v1001 = vmul.f32 %v989, %v999
      %v1002 = vmul.f32 %v990, %v999
      %v1003 = vmul.f32 %v991, %v999
      %v1004 = vmul.f32 %v992, %v999
      %v1005 = vadd.f32 %v985, %v1001
      %v1006 = vadd.f32 %v986, %v1002
      %v1007 = vadd.f32 %v987, %v1003
      %v1008 = vadd.f32 %v988, %v1004
      %v1009 = vld [vmem:[%s909 + $0x1] sm:$0xf]
      %v1010 = vld [vmem:[%s909 + $0x9] sm:$0xf]
      %v1011 = vld [vmem:[%s909 + $0x11] sm:$0xf]
      %v1012 = vld [vmem:[%s909 + $0x19] sm:$0xf]
      %s1013 = scalar_lea.vmem %s7, 4
      %v1014 = vld [vmem:[%s1013] sm:$0x1]
      %v1016 = vlaneseq
      %v1017 = vshrl.u32 %v1016, 7
      %v1018 = vsub.s32 0, %v1017
      %v1019 = vrot.slane %v1014, %v1018
      %v1021 = vmul.f32 %v1009, %v1019
      %v1022 = vmul.f32 %v1010, %v1019
      %v1023 = vmul.f32 %v1011, %v1019
      %v1024 = vmul.f32 %v1012, %v1019
      %v1025 = vadd.f32 %v1005, %v1021
      %v1026 = vadd.f32 %v1006, %v1022
      %v1027 = vadd.f32 %v1007, %v1023
      %v1028 = vadd.f32 %v1008, %v1024
      %v1029 = vld [vmem:[%s909 + $0x2] sm:$0xf]
      %v1030 = vld [vmem:[%s909 + $0xa] sm:$0xf]
      %v1031 = vld [vmem:[%s909 + $0x12] sm:$0xf]
      %v1032 = vld [vmem:[%s909 + $0x1a] sm:$0xf]
      %s1033 = scalar_lea.vmem %s7, 5
      %v1034 = vld [vmem:[%s1033] sm:$0x1]
      %v1036 = vlaneseq
      %v1037 = vshrl.u32 %v1036, 7
      %v1038 = vsub.s32 0, %v1037
      %v1039 = vrot.slane %v1034, %v1038
      %v1041 = vmul.f32 %v1029, %v1039
      %v1042 = vmul.f32 %v1030, %v1039
      %v1043 = vmul.f32 %v1031, %v1039
      %v1044 = vmul.f32 %v1032, %v1039
      %v1045 = vadd.f32 %v1025, %v1041
      %v1046 = vadd.f32 %v1026, %v1042
      %v1047 = vadd.f32 %v1027, %v1043
      %v1048 = vadd.f32 %v1028, %v1044
      %s1049 = scalar_lea.vmem [#allocation2], 16
      %v1050 = vld [vmem:[%s1049] sm:$0xf]
      %v1051 = vld [vmem:[%s1049 + $0x8] sm:$0xf]
      %v1052 = vld [vmem:[%s1049 + $0x10] sm:$0xf]
      %v1053 = vld [vmem:[%s1049 + $0x18] sm:$0xf]
      %s1054 = scalar_lea.vmem %s7, 6
      %v1055 = vld [vmem:[%s1054] sm:$0x1]
      %v1057 = vlaneseq
      %v1058 = vshrl.u32 %v1057, 7
      %v1059 = vsub.s32 0, %v1058
      %v1060 = vrot.slane %v1055, %v1059
      %v1062 = vmul.f32 %v1050, %v1060
      %v1063 = vmul.f32 %v1051, %v1060
      %v1064 = vmul.f32 %v1052, %v1060
      %v1065 = vmul.f32 %v1053, %v1060
      %v1066 = vadd.f32 %v1045, %v1062
      %v1067 = vadd.f32 %v1046, %v1063
      %v1068 = vadd.f32 %v1047, %v1064
      %v1069 = vadd.f32 %v1048, %v1065
      %v1070 = vld [vmem:[%s1049 + $0x1] sm:$0xf]
      %v1071 = vld [vmem:[%s1049 + $0x9] sm:$0xf]
      %v1072 = vld [vmem:[%s1049 + $0x11] sm:$0xf]
      %v1073 = vld [vmem:[%s1049 + $0x19] sm:$0xf]
      %s1074 = scalar_lea.vmem %s7, 7
      %v1075 = vld [vmem:[%s1074] sm:$0x1]
      %v1077 = vlaneseq
      %v1078 = vshrl.u32 %v1077, 7
      %v1079 = vsub.s32 0, %v1078
      %v1080 = vrot.slane %v1075, %v1079
      %v1082 = vmul.f32 %v1070, %v1080
      %v1083 = vmul.f32 %v1071, %v1080
      %v1084 = vmul.f32 %v1072, %v1080
      %v1085 = vmul.f32 %v1073, %v1080
      %v1086 = vadd.f32 %v1066, %v1082
      %v1087 = vadd.f32 %v1067, %v1083
      %v1088 = vadd.f32 %v1068, %v1084
      %v1089 = vadd.f32 %v1069, %v1085
      %v1090 = vld [vmem:[%s1049 + $0x2] sm:$0xf]
      %v1091 = vld [vmem:[%s1049 + $0xa] sm:$0xf]
      %v1092 = vld [vmem:[%s1049 + $0x12] sm:$0xf]
      %v1093 = vld [vmem:[%s1049 + $0x1a] sm:$0xf]
      %s1094 = scalar_lea.vmem %s7, 8
      %v1095 = vld [vmem:[%s1094] sm:$0x1]
      %v1097 = vlaneseq
      %v1098 = vshrl.u32 %v1097, 7
      %v1099 = vsub.s32 0, %v1098
      %v1100 = vrot.slane %v1095, %v1099
      %v1102 = vmul.f32 %v1090, %v1100
      %v1103 = vmul.f32 %v1091, %v1100
      %v1104 = vmul.f32 %v1092, %v1100
      %v1105 = vmul.f32 %v1093, %v1100
      %v1106 = vadd.f32 %v1086, %v1102
      %v1107 = vadd.f32 %v1087, %v1103
      %v1108 = vadd.f32 %v1088, %v1104
      %v1109 = vadd.f32 %v1089, %v1105
      %v1110 = vld [vmem:[%s8] sm:$0x1]
      %v1112 = vlaneseq
      %v1113 = vshrl.u32 %v1112, 7
      %v1114 = vsub.s32 0, %v1113
      %v1115 = vrot.slane %v1110, %v1114
      %v1117 = vadd.f32 %v1106, %v1115
      %v1118 = vadd.f32 %v1107, %v1115
      %v1119 = vadd.f32 %v1108, %v1115
      %v1120 = vadd.f32 %v1109, %v1115
      %v1121 = vadd.f32 %v1117, 3.0
      %v1122 = vadd.f32 %v1118, 3.0
      %v1123 = vadd.f32 %v1119, 3.0
      %v1124 = vadd.f32 %v1120, 3.0
      %v1125 = vmax.f32 %v1121, 0.0
      %v1126 = vmax.f32 %v1122, 0.0
      %v1127 = vmax.f32 %v1123, 0.0
      %v1128 = vmax.f32 %v1124, 0.0
      %v1129 = vmin.f32 %v1125, 6.0
      %v1130 = vmin.f32 %v1126, 6.0
      %v1131 = vmin.f32 %v1127, 6.0
      %v1132 = vmin.f32 %v1128, 6.0
      %v1133 = vmul.f32 %v1117, %v1129
      %v1134 = vmul.f32 %v1118, %v1130
      %v1135 = vmul.f32 %v1119, %v1131
      %v1136 = vmul.f32 %v1120, %v1132
      %v1137 = vmul.f32 %v1133, 0.16666667
      %v1138 = vmul.f32 %v1134, 0.16666667
      %v1139 = vmul.f32 %v1135, 0.16666667
      %v1140 = vmul.f32 %v1136, 0.16666667
      %v1141 = vld [vmem:[%s9] sm:$0xff]
      %v1142 = vld [vmem:[%s10] sm:$0xff]
      %v1143 = vld [vmem:[%s11] sm:$0xff]
      %v1144 = vld [vmem:[%s12] sm:$0x1]
      %v1149 = vcombine.low %v1137, %v1138
      %v1150 = vcombine.low %v1139, %v1140
      %v1153 = vsel %vm786, %v1149, 0.0
      %v1154 = vsel %vm786, %v1150, 0.0
      %v1155 = vadd.f32 %v1153, %v1154
      %v1156 = vrot.slane %v1155, 4
      %v1157 = vadd.f32 %v1155, %v1156
      %v1158 = vrot.slane %v1157, 2
      %v1159 = vadd.f32 %v1157, %v1158
      %v1160 = vrot.slane %v1159, 1
      %v1161 = vadd.f32 %v1159, %v1160
      %v1162 = vrcp.pop 16.0
      %v1163 = vmul.f32 %v1161, %v1162
      %v1164 = vmul.f32 %v1163, %v1141
      %v1165 = vsel %vm786, %v1164, 0.0
      %1166 = vadd.xlane.f32.xlu0 %v1165
      %v1167 = vpop.xlane.xlu0 %1166
      %v1168 = vadd.f32 %v1167, %v1142
      %v1169 = vmax.f32 %v1168, 0.0
      %1171 = vset.pattern.permute.xlu0 0
      %1172 = vperm.xlu0 %1171, %v1169
      %v1173 = vpop.permute.xlu0 %1172
      %v1175 = vmul.f32 %v1173, %v1143
      %v1176 = vsel %vm786, %v1175, 0.0
      %v1177 = vrot.slane %v1176, 4
      %v1178 = vadd.f32 %v1176, %v1177
      %v1179 = vrot.slane %v1178, 2
      %v1180 = vadd.f32 %v1178, %v1179
      %v1181 = vrot.slane %v1180, 1
      %v1182 = vadd.f32 %v1180, %v1181
      %v1183 = vadd.f32 %v1182, %v1144
      %v1184 = vadd.f32 %v1183, 3.0
      %v1185 = vmax.f32 %v1184, 0.0
      %v1186 = vmin.f32 %v1185, 6.0
      %v1187 = vmul.f32 %v1186, 0.16666667
      %v1188 = vlaneseq
      %v1189 = vshrl.u32 %v1188, 7
      %v1190 = vsub.s32 0, %v1189
      %v1191 = vrot.slane %v1187, %v1190
      %v1193 = vcombine.high %v1191, %v1191
      %v1195 = vmul.f32 %v1137, %v1191
      %v1196 = vmul.f32 %v1138, %v1193
      %v1197 = vmul.f32 %v1139, %v1191
      %v1198 = vmul.f32 %v1140, %v1193
      %v1203 = vcombine.low %v1195, %v1196
      %v1204 = vcombine.low %v1197, %v1198
      %v1207 = vpack.c.bf16 %v1204, %v1203
      %v1208 = vld [vmem:[%s13] sm:$0xf]
      %v1209 = vld [vmem:[%s13 + $0x4] sm:$0xf]
      %v1210 = vld [vmem:[%s13 + $0x8] sm:$0xf]
      %v1211 = vld [vmem:[%s13 + $0xc] sm:$0xf]
      %v1212 = vld [vmem:[%s14] sm:$0x1]
      %v1214 = vlaneseq
      %v1215 = vshrl.u32 %v1214, 7
      %v1216 = vsub.s32 0, %v1215
      %v1217 = vrot.slane %v1212, %v1216
      %v1223 = vunpack.c.l.b16 %v1208
      %v1224 = vunpack.c.l.b16 %v1209
      %v1225 = vunpack.c.l.b16 %v1210
      %v1226 = vunpack.c.l.b16 %v1211
      %v1227 = vpack.c.b16 %v1224, %v1223
      %v1228 = vpack.c.b16 %v1226, %v1225
      %v1232 = vsel %vm786, %v1207, 0
      %1234 = vmatprep.subr.bf16.mxu0 0
      %1235 = vmatpush1.bf16.msra.mxu0 %v1227
      %1236 = vmatprep.subr.bf16.mxu0 0
      %1237 = vmatpush1.bf16.msra.mxu0 %v1228
      %1238 = vmatprep.subr.bf16.mxu0 0
      %1239 = vmatpush1.bf16.msra.mxu0 0
      %1240 = vmatprep.subr.bf16.mxu0 0
      %1241 = vmatpush1.bf16.msra.mxu0 0
      %1242 = vmatprep.subr.bf16.mxu0 0
      %1243 = vmatpush1.bf16.msra.mxu0 0
      %1244 = vmatprep.subr.bf16.mxu0 0
      %1245 = vmatpush1.bf16.msra.mxu0 0
      %1246 = vmatprep.subr.bf16.mxu0 0
      %1247 = vmatpush1.bf16.msra.mxu0 0
      %1248 = vmatprep.subr.bf16.mxu0 0
      %1249 = vmatpush1.bf16.msra.mxu0 0
      %1250 = vmatprep.subr.bf16.mxu0 0
      %1251 = vmatpush1.bf16.msra.mxu0 0
      %1252 = vmatprep.subr.bf16.mxu0 0
      %1253 = vmatpush1.bf16.msra.mxu0 0
      %1254 = vmatprep.subr.bf16.mxu0 0
      %1255 = vmatpush1.bf16.msra.mxu0 0
      %1256 = vmatprep.subr.bf16.mxu0 0
      %1257 = vmatpush1.bf16.msra.mxu0 0
      %1258 = vmatprep.subr.bf16.mxu0 0
      %1259 = vmatpush1.bf16.msra.mxu0 0
      %1260 = vmatprep.subr.bf16.mxu0 0
      %1261 = vmatpush1.bf16.msra.mxu0 0
      %1262 = vmatprep.subr.bf16.mxu0 0
      %1263 = vmatpush1.bf16.msra.mxu0 0
      %1264 = vmatprep.subr.bf16.mxu0 0
      %1265 = vmatpush1.bf16.msra.mxu0 0
      %1266 = vmatprep.mubr.bf16.mxu0 0
      %1267 = vmatmul.mubr.bf16.gmra.mrb[0].mxu0 %v1232
      %v1268 = vpop.f32.mrb[0].mxu0
      %v1269 = vadd.f32 %v1217, %v1268
      %v1270 = vpop.f32.mrb[0].mxu0
      %v1271 = vpop.f32.mrb[0].mxu0
      %v1272 = vadd.f32 %v1217, %v1271
      %v1273 = vpop.f32.mrb[0].mxu0
      %1274 = vdwg.mxu0
      %v1275 = vadd.f32 %v1269, %v825
      %v1276 = vadd.f32 %v1272, %v828
      %v1277 = vpack.c.bf16 %v1276, %v1275
      %v1278 = vld [vmem:[%s15] sm:$0xff]
      %v1279 = vld [vmem:[%s15 + $0x8] sm:$0xff]
      %v1280 = vld [vmem:[%s15 + $0x10] sm:$0xff]
      %v1281 = vld [vmem:[%s16] sm:$0x3]
      %v1283 = vlaneseq
      %v1284 = vshrl.u32 %v1283, 7
      %v1285 = vsub.s32 0, %v1284
      %v1286 = vrot.slane %v1281, %v1285
      %v1287 = vlaneseq
      %v1288 = vshrl.u32 %v1287, 7
      %v1289 = vsub.s32 1, %v1288
      %v1290 = vrot.slane %v1281, %v1289
      %v1296 = vunpack.c.l.b16 %v1278
      %v1297 = vunpack.c.h.b16 %v1278
      %v1298 = vunpack.c.l.b16 %v1279
      %v1299 = vunpack.c.h.b16 %v1279
      %v1300 = vunpack.c.l.b16 %v1280
      %v1301 = vunpack.c.h.b16 %v1280
      %v1302 = vpack.c.b16 %v1298, %v1296
      %v1303 = vpack.c.b16 %v1299, %v1297
      %v1304 = vpack.c.b16 %v1300, %v1300
      %v1305 = vpack.c.b16 %v1301, %v1301
      %vm1308 = vcmask 195584
      %v1310 = vsel %vm1308, %v1277, 0
      %vm1312 = vcmask 1043456
      %v1314 = vsel %vm1312, %v1304, 0
      %v1317 = vsel %vm1312, %v1305, 0
      %1319 = vmatprep.subr.bf16.mxu0 %v1303
      %1320 = vmatpush1.bf16.msra.mxu0 %v1302
      %1321 = vmatprep.subr.bf16.mxu0 %v1317
      %1322 = vmatpush1.bf16.msra.mxu0 %v1314
      %1323 = vmatprep.subr.bf16.mxu0 0
      %1324 = vmatpush1.bf16.msra.mxu0 0
      %1325 = vmatprep.subr.bf16.mxu0 0
      %1326 = vmatpush1.bf16.msra.mxu0 0
      %1327 = vmatprep.subr.bf16.mxu0 0
      %1328 = vmatpush1.bf16.msra.mxu0 0
      %1329 = vmatprep.subr.bf16.mxu0 0
      %1330 = vmatpush1.bf16.msra.mxu0 0
      %1331 = vmatprep.subr.bf16.mxu0 0
      %1332 = vmatpush1.bf16.msra.mxu0 0
      %1333 = vmatprep.subr.bf16.mxu0 0
      %1334 = vmatpush1.bf16.msra.mxu0 0
      %1335 = vmatprep.subr.bf16.mxu0 0
      %1336 = vmatpush1.bf16.msra.mxu0 0
      %1337 = vmatprep.subr.bf16.mxu0 0
      %1338 = vmatpush1.bf16.msra.mxu0 0
      %1339 = vmatprep.subr.bf16.mxu0 0
      %1340 = vmatpush1.bf16.msra.mxu0 0
      %1341 = vmatprep.subr.bf16.mxu0 0
      %1342 = vmatpush1.bf16.msra.mxu0 0
      %1343 = vmatprep.subr.bf16.mxu0 0
      %1344 = vmatpush1.bf16.msra.mxu0 0
      %1345 = vmatprep.subr.bf16.mxu0 0
      %1346 = vmatpush1.bf16.msra.mxu0 0
      %1347 = vmatprep.subr.bf16.mxu0 0
      %1348 = vmatpush1.bf16.msra.mxu0 0
      %1349 = vmatprep.subr.bf16.mxu0 0
      %1350 = vmatpush1.bf16.msra.mxu0 0
      %1351 = vmatprep.mubr.bf16.mxu0 0
      %1352 = vmatmul.mubr.bf16.gmra.mrb[0].mxu0 %v1310
      %v1353 = vpop.f32.mrb[0].mxu0
      %v1354 = vadd.f32 %v1286, %v1353
      %v1355 = vpop.f32.mrb[0].mxu0
      %v1356 = vadd.f32 %v1290, %v1355
      %v1357 = vpop.f32.mrb[0].mxu0
      %v1358 = vadd.f32 %v1286, %v1357
      %v1359 = vpop.f32.mrb[0].mxu0
      %v1360 = vadd.f32 %v1290, %v1359
      %1361 = vdwg.mxu0
      %v1362 = vadd.f32 %v1354, 3.0
      %v1363 = vadd.f32 %v1356, 3.0
      %v1364 = vadd.f32 %v1358, 3.0
      %v1365 = vadd.f32 %v1360, 3.0
      %v1366 = vmax.f32 %v1362, 0.0
      %v1367 = vmax.f32 %v1363, 0.0
      %v1368 = vmax.f32 %v1364, 0.0
      %v1369 = vmax.f32 %v1365, 0.0
      %v1370 = vmin.f32 %v1366, 6.0
      %v1371 = vmin.f32 %v1367, 6.0
      %v1372 = vmin.f32 %v1368, 6.0
      %v1373 = vmin.f32 %v1369, 6.0
      %v1374 = vmul.f32 %v1354, %v1370
      %v1375 = vmul.f32 %v1356, %v1371
      %v1376 = vmul.f32 %v1358, %v1372
      %v1377 = vmul.f32 %v1360, %v1373
      %v1378 = vmul.f32 %v1374, 0.16666667
      %v1379 = vmul.f32 %v1375, 0.16666667
      %v1380 = vmul.f32 %v1376, 0.16666667
      %v1381 = vmul.f32 %v1377, 0.16666667
      %v1382 = vpack.c.bf16 %v1380, %v1378
      %v1383 = vpack.c.bf16 %v1381, %v1379
      %v1386 = vcombine.low %v1382, %v1383
      %v1387 = vcombine.high %v1382, %v1383
      %v1389 = vunpack.c.l.s4 1983009808
      %v1390 = vunpack.c.0.s8 %v1389
      %v1391 = vlaneseq
      %v1392 = vshrl.u32 %v1391, 7
      %v1393 = vsub.s32 %v1390, %v1392
      %v1394 = vrot.slane %v1386, %v1393
      %v1396 = vunpack.c.l.s4 1983009808
      %v1397 = vunpack.c.0.s8 %v1396
      %v1398 = vlaneseq
      %v1399 = vshrl.u32 %v1398, 7
      %v1400 = vsub.s32 %v1397, %v1399
      %v1401 = vrot.slane %v1387, %v1400
      %v1402 = vcombine.high %v1394, %v1394
      %v1403 = vcombine.high %v1401, %v1401
      %vm1408 = vcmask 1041408
      %vm1409 = vcmask 125954
      %vm1410 = vmor %vm1409, %vm1408
      %1411 = vst.msk [vmem:[%s553] sm:$0xf] %vm1410, %v1394
      %1412 = vst.msk [vmem:[%s553 + $0x4] sm:$0xf] %vm1410, %v1402
      %1413 = vst.msk [vmem:[%s553 + $0x8] sm:$0xf] %vm1410, %v1401
      %1414 = vst.msk [vmem:[%s553 + $0xc] sm:$0xf] %vm1410, %v1403
      %p1415 = scmp.lt.s32.totalorder %s28, 1
      %s1416 = scalar_select %p1415, %s28, 1
      %s1417 = smul.addr %s1416, 8
      %s1418 = smul.addr %s1417, 2
      %s1419 = scalar_lea.vmem %s17, %s1418
      // Predicated region
      $region89: #{pose_mobilenetv3_forward.7} parent=87 // pred_check
        %p1420 = pneg %p408
      $region90: #{pose_mobilenetv3_forward.7} parent=87 // pred_check_branch
        %1422 = sbr.rel (%p1420) target = $region92
      $region91: #{pose_mobilenetv3_forward.7} parent=87 // pred_region
        _
      $region92: #{pose_mobilenetv3_forward.7} parent=87 // pred_fallthru
        _
    $region88: #{pose_mobilenetv3_forward.7} parent=5 // pred_fallthru
      _
    %p1423 = scmp.le.s32.totalorder 2, %s23
    // Predicated region
    $region93: #{pose_mobilenetv3_forward.7} parent=5 // pred_check
      %p1424 = pneg %p1423
    $region94: #{pose_mobilenetv3_forward.7} parent=5 // pred_check_branch
      %1426 = sbr.rel (%p1424) target = $region96
    $region95: #{pose_mobilenetv3_forward.7} parent=5 // pred_region
      %s1427 = ssub.s32 %s23, 2
      // Predicated region
      $region97: #{pose_mobilenetv3_forward.7} parent=95 // pred_check
        %p1428 = pneg %p414
      $region98: #{pose_mobilenetv3_forward.7} parent=95 // pred_check_branch
        %1430 = sbr.rel (%p1428) target = $region100
      $region99: #{pose_mobilenetv3_forward.7} parent=95 // pred_region
        %p1431 = scmp.lt.s32.totalorder %s29, 1
        %s1432 = scalar_select %p1431, %s29, 1
        %s1433 = smul.addr %s1432, 8
        %s1434 = smul.addr %s1433, 2
        %s1435 = scalar_lea.vmem %s17, %s1434
      $region100: #{pose_mobilenetv3_forward.7} parent=95 // pred_fallthru
        _
    $region96: #{pose_mobilenetv3_forward.7} parent=5 // pred_fallthru
      _
  $region6: #{pose_mobilenetv3_forward.7} parent=0 // loop_footer
    %s27 = sadd.s32 1, %s23
  $region7: #{pose_mobilenetv3_forward.7} parent=0 // loop_footer_branch
    %22 = sbr.rel target = $region3
  $region8: #{pose_mobilenetv3_forward.7} parent=0 // loop_exit
    _

// kernel: pose_mobilenetv3_forward.8
$region0: #{pose_mobilenetv3_forward.8}
  #allocation0 [shape = 'u32[]', space=smem, size = 0x4, offset = 0x4, fixed_abs, tag = 'smem constant byte address 0x4 - core index']
  #allocation1 [shape = 'u32[144,128]{1,0:T(1,128)}', space=vmem, size = 0x12000, scoped, tag = 'internal scratch']
  #allocation2 [shape = 'bf16[4,4,1296]{2,1,0:T(4,128)(2,1)}', space=vmem, size = 0xb000, scoped, tag = 'scratch operand']
  %s0 = inlined_call_operand.vmem [shape: bf16[2,6,6,144], index: 0, kind: input, shape index: {}]
  %s1 = inlined_call_operand.vmem [shape: bf16[1296,128], index: 1, kind: input, shape index: {}]
  %s2 = inlined_call_operand.vmem [shape: f32[1,128], index: 2, kind: input, shape index: {}]
  %s3 = inlined_call_operand.vmem [shape: bf16[2,16,128], index: 3, kind: output, shape index: {}]
  %s4 = sld [smem:[#allocation0]]
  $region45: #{pose_mobilenetv3_forward.8} parent=0
    _
  %s6 = ssub.s32 1, %s4
  %s7 = scalar_select 0, %s6, %s4
  loop: start=0, step=1, limit=4
  $region2: #{pose_mobilenetv3_forward.8} parent=0 // loop_pre_header
    _
  $region3: #{pose_mobilenetv3_forward.8} parent=0 // loop_header
    %s9 = sphi 0, %s13
    %p10 = scmp.ge.s32.totalorder %s9, 4
    %s19 = sphi 0, %s21
    %s22 = sphi 0, %s19
    %s23 = sphi 0, %s22
    %s39 = sphi 0, %s23
    %s43 = sphi 0, %s43
    %s45 = sphi 0, %s43
    %s46 = sphi 0, %s45
    %s60 = sphi 0, %s46
    %s64 = sphi 0, %s64
    %s66 = sphi 0, %s64
    %s67 = sphi 0, %s66
    %s81 = sphi 0, %s67
    %s87 = sphi 0, %s89
    %s90 = sphi 0, %s87
    %s91 = sphi 0, %s90
    %s107 = sphi 0, %s91
  $region4: #{pose_mobilenetv3_forward.8} parent=0 // loop_header_branch
    %12 = sbr.rel (%p10) target = $region8
  $region5: #{pose_mobilenetv3_forward.8} parent=0 // loop_body
    %s14 = ssub.s32 %s9, 1
    %s15 = ssub.s32 %s9, 2
    %s16 = sadd.s32 %s9, 1
    %s17 = ssub.s32 %s9, %s16
    %p18 = scmp.eq.s32.totalorder %s17, 0
    %s20 = sadd.s32 %s19, 1
    %s21 = scalar_select %p18, %s19, %s20
    %p24 = pneg %p18
    %p25 = scmp.eq.s32.totalorder %s9, 1
    %p26 = por %p24, %p25
    %p27 = scmp.ne.s32.totalorder %s19, %s22
    %p28 = scmp.eq.s32.totalorder %s9, 0
    %p29 = por %p27, %p28
    %p30 = scmp.ne.s32.totalorder %s19, %s22
    %p31 = scmp.eq.s32.totalorder %s14, 1
    %p32 = por %p30, %p31
    %p33 = scmp.ne.s32.totalorder %s22, %s23
    %p34 = scmp.eq.s32.totalorder %s14, 0
    %p35 = por %p33, %p34
    %p36 = scmp.ne.s32.totalorder %s22, %s23
    %p37 = scmp.eq.s32.totalorder %s15, 1
    %p38 = por %p36, %p37
    %p40 = scmp.ne.s32.totalorder %s23, %s39
    %p41 = scmp.eq.s32.totalorder %s15, 0
    %p42 = por %p40, %p41
    %s44 = sadd.s32 %s43, 1
    %p47 = scmp.eq.s32.totalorder %s9, 1
    %p48 = scmp.ne.s32.totalorder %s43, %s45
    %p49 = scmp.eq.s32.totalorder %s9, 0
    %p50 = por %p48, %p49
    %p51 = scmp.ne.s32.totalorder %s43, %s45
    %p52 = scmp.eq.s32.totalorder %s14, 1
    %p53 = por %p51, %p52
    %p54 = scmp.ne.s32.totalorder %s45, %s46
    %p55 = scmp.eq.s32.totalorder %s14, 0
    %p56 = por %p54, %p55
    %p57 = scmp.ne.s32.totalorder %s45, %s46
    %p58 = scmp.eq.s32.totalorder %s15, 1
    %p59 = por %p57, %p58
    %p61 = scmp.ne.s32.totalorder %s46, %s60
    %p62 = scmp.eq.s32.totalorder %s15, 0
    %p63 = por %p61, %p62
    %s65 = sadd.s32 %s64, 1
    %p68 = scmp.eq.s32.totalorder %s9, 1
    %p69 = scmp.ne.s32.totalorder %s64, %s66
    %p70 = scmp.eq.s32.totalorder %s9, 0
    %p71 = por %p69, %p70
    %p72 = scmp.ne.s32.totalorder %s64, %s66
    %p73 = scmp.eq.s32.totalorder %s14, 1
    %p74 = por %p72, %p73
    %p75 = scmp.ne.s32.totalorder %s66, %s67
    %p76 = scmp.eq.s32.totalorder %s14, 0
    %p77 = por %p75, %p76
    %p78 = scmp.ne.s32.totalorder %s66, %s67
    %p79 = scmp.eq.s32.totalorder %s15, 1
    %p80 = por %p78, %p79
    %p82 = scmp.ne.s32.totalorder %s67, %s81
    %p83 = scmp.eq.s32.totalorder %s15, 0
    %p84 = por %p82, %p83
    %s85 = ssub.s32 %s9, %s16
    %p86 = scmp.eq.s32.totalorder %s85, 0
    %s88 = sadd.s32 %s87, 1
    %s89 = scalar_select %p86, %s87, %s88
    %p92 = pneg %p86
    %p93 = scmp.eq.s32.totalorder %s9, 1
    %p94 = por %p92, %p93
    %p95 = scmp.ne.s32.totalorder %s87, %s90
    %p96 = scmp.eq.s32.totalorder %s9, 0
    %p97 = por %p95, %p96
    %p98 = scmp.ne.s32.totalorder %s87, %s90
    %p99 = scmp.eq.s32.totalorder %s14, 1
    %p100 = por %p98, %p99
    %p101 = scmp.ne.s32.totalorder %s90, %s91
    %p102 = scmp.eq.s32.totalorder %s14, 0
    %p103 = por %p101, %p102
    %p104 = scmp.ne.s32.totalorder %s90, %s91
    %p105 = scmp.eq.s32.totalorder %s15, 1
    %p106 = por %p104, %p105
    %p108 = scmp.ne.s32.totalorder %s91, %s107
    %p109 = scmp.eq.s32.totalorder %s15, 0
    %p110 = por %p108, %p109
    %p111 = scmp.le.s32.totalorder 1, %s9
    %p112 = scmp.lt.s32.totalorder %s9, 3
    %p113 = pnand %p111, %p112
    %p114 = pneg %p113
    // Predicated region
    $region9: #{pose_mobilenetv3_forward.8} parent=5 // pred_check
      _
    $region10: #{pose_mobilenetv3_forward.8} parent=5 // pred_check_branch
      %116 = sbr.rel (%p113) target = $region12
    $region11: #{pose_mobilenetv3_forward.8} parent=5 // pred_region
      %s117 = ssub.s32 %s9, 1
      // Predicated region
      $region13: #{pose_mobilenetv3_forward.8} parent=11 // pred_check
        %p118 = pneg %p56
      $region14: #{pose_mobilenetv3_forward.8} parent=11 // pred_check_branch
        %120 = sbr.rel (%p118) target = $region16
      $region15: #{pose_mobilenetv3_forward.8} parent=11 // pred_region
        _
      $region16: #{pose_mobilenetv3_forward.8} parent=11 // pred_fallthru
        _
      // Predicated region
      $region17: #{pose_mobilenetv3_forward.8} parent=11 // pred_check
        %p121 = pneg %p77
      $region18: #{pose_mobilenetv3_forward.8} parent=11 // pred_check_branch
        %123 = sbr.rel (%p121) target = $region20
      $region19: #{pose_mobilenetv3_forward.8} parent=11 // pred_region
        _
      $region20: #{pose_mobilenetv3_forward.8} parent=11 // pred_fallthru
        _
    $region12: #{pose_mobilenetv3_forward.8} parent=5 // pred_fallthru
      _
    %p124 = scmp.lt.s32.totalorder %s9, 2
    // Predicated region
    $region21: #{pose_mobilenetv3_forward.8} parent=5 // pred_check
      %p125 = pneg %p124
    $region22: #{pose_mobilenetv3_forward.8} parent=5 // pred_check_branch
      %127 = sbr.rel (%p125) target = $region24
    $region23: #{pose_mobilenetv3_forward.8} parent=5 // pred_region
      // Predicated region
      $region25: #{pose_mobilenetv3_forward.8} parent=23 // pred_check
        %p128 = pneg %p29
      $region26: #{pose_mobilenetv3_forward.8} parent=23 // pred_check_branch
        %130 = sbr.rel (%p128) target = $region28
      $region27: #{pose_mobilenetv3_forward.8} parent=23 // pred_region
        %p131 = scmp.lt.s32.totalorder %s9, 1
        %s132 = scalar_select %p131, %s9, 1
        %s133 = smul.addr %s132, 12
        %s134 = smul.addr %s133, 4
        %s135 = scalar_lea.vmem %s0, %s134
      $region28: #{pose_mobilenetv3_forward.8} parent=23 // pred_fallthru
        _
    $region24: #{pose_mobilenetv3_forward.8} parent=5 // pred_fallthru
      _
    %p136 = scmp.le.s32.totalorder 1, %s9
    %p137 = scmp.lt.s32.totalorder %s9, 3
    %p138 = pnand %p136, %p137
    %p139 = pneg %p138
    // Predicated region
    $region29: #{pose_mobilenetv3_forward.8} parent=5 // pred_check
      _
    $region30: #{pose_mobilenetv3_forward.8} parent=5 // pred_check_branch
      %141 = sbr.rel (%p138) target = $region32
    $region31: #{pose_mobilenetv3_forward.8} parent=5 // pred_region
      %s142 = ssub.s32 %s9, 1
      %p143 = scmp.lt.s32.totalorder %s14, 1
      %s144 = scalar_select %p143, %s14, 1
      %s145 = smul.addr %s144, 12
      %s146 = smul.addr %s145, 4
      %s147 = scalar_lea.vmem %s0, %s146
      %p148 = pneg %p35
      %p149 = pneg %p32
      %p150 = pneg %p56
      %p151 = pneg %p53
      %p152 = pneg %p77
      %p153 = pneg %p74
      %p154 = pneg %p103
      %p155 = pneg %p100
      %p156 = scmp.lt.s32.totalorder %s14, 1
      %s157 = scalar_select %p156, %s14, 1
      %s158 = smul.addr %s157, 2
      %s159 = smul.addr %s158, 4
      %s160 = scalar_lea.vmem %s3, %s159
      %p161 = scmp.lt.s32.totalorder %s14, 1
      %s162 = scalar_select %p161, %s14, 1
      %s163 = smul.addr %s162, 12
      %s164 = smul.addr %s163, 4
      %s165 = scalar_lea.vmem %s0, %s164
      %p166 = scmp.lt.s32.totalorder %s14, 1
      %s167 = scalar_select %p166, %s14, 1
      %s168 = smul.addr %s167, 2
      %s169 = smul.addr %s168, 4
      %s170 = scalar_lea.vmem %s3, %s169
      %v172 = vld [vmem:[%s165] sm:$0x33]
      %v173 = vld [vmem:[%s165 + $0x8] sm:$0x33]
      %v174 = vld [vmem:[%s165 + $0x10] sm:$0x33]
      %v175 = vld [vmem:[%s165 + $0x18] sm:$0x33]
      %v181 = vunpack.c.l.s4 1983009808
      %v182 = vunpack.c.0.s8 %v181
      %v183 = vlaneseq
      %v184 = vshrl.u32 %v183, 7
      %v185 = vsub.s32 %v182, %v184
      %v186 = vrot.slane %v172, %v185
      %v188 = vunpack.c.l.s4 1983009808
      %v189 = vunpack.c.0.s8 %v188
      %v190 = vlaneseq
      %v191 = vshrl.u32 %v190, 7
      %v192 = vsub.s32 %v189, %v191
      %v193 = vrot.slane %v173, %v192
      %v195 = vunpack.c.l.s4 1983009808
      %v196 = vunpack.c.0.s8 %v195
      %v197 = vlaneseq
      %v198 = vshrl.u32 %v197, 7
      %v199 = vsub.s32 %v196, %v198
      %v200 = vrot.slane %v174, %v199
      %v202 = vunpack.c.l.s4 1983009808
      %v203 = vunpack.c.0.s8 %v202
      %v204 = vlaneseq
      %v205 = vshrl.u32 %v204, 7
      %v206 = vsub.s32 %v203, %v205
      %v207 = vrot.slane %v175, %v206
      %vm212 = vcmask 1041408
      %vm213 = vcmask 125954
      %vm214 = vmor %vm213, %vm212
      %215 = vst.msk [vmem:[#allocation2] sm:$0xf] %vm214, %v186
      %216 = vst.msk [vmem:[#allocation2 + $0x16] sm:$0xf] %vm214, %v193
      %217 = vst.msk [vmem:[#allocation2 + $0x2c] sm:$0xf] %vm214, %v200
      %218 = vst.msk [vmem:[#allocation2 + $0x42] sm:$0xf] %vm214, %v207
      %v219 = vld [vmem:[%s165] sm:$0x77]
      %v220 = vld [vmem:[%s165 + $0x8] sm:$0x77]
      %v221 = vld [vmem:[%s165 + $0x10] sm:$0x77]
      %v222 = vld [vmem:[%s165 + $0x18] sm:$0x77]
      %v228 = vunpack.c.l.s4 1983009808
      %v229 = vunpack.c.0.s8 %v228
      %v230 = vlaneseq
      %v231 = vshrl.u32 %v230, 7
      %v232 = vsub.s32 %v229, %v231
      %v233 = vrot.slane %v219, %v232
      %v234 = vcombine.high %v233, %v233
      %v236 = vunpack.c.l.s4 1983009808
      %v237 = vunpack.c.0.s8 %v236
      %v238 = vlaneseq
      %v239 = vshrl.u32 %v238, 7
      %v240 = vsub.s32 %v237, %v239
      %v241 = vrot.slane %v220, %v240
      %v242 = vcombine.high %v241, %v241
      %v244 = vunpack.c.l.s4 1983009808
      %v245 = vunpack.c.0.s8 %v244
      %v246 = vlaneseq
      %v247 = vshrl.u32 %v246, 7
      %v248 = vsub.s32 %v245, %v247
      %v249 = vrot.slane %v221, %v248
      %v250 = vcombine.high %v249, %v249
      %v252 = vunpack.c.l.s4 1983009808
      %v253 = vunpack.c.0.s8 %v252
      %v254 = vlaneseq
      %v255 = vshrl.u32 %v254, 7
      %v256 = vsub.s32 %v253, %v255
      %v257 = vrot.slane %v222, %v256
      %v258 = vcombine.high %v257, %v257
      %vm259 = vsmask.f32 1280
      %vm260 = vsmask.f32 3336
      %vm261 = vmor %vm259, %vm260
      %vm262 = vsmask.f32 5392
      %vm263 = vmor %vm261, %vm262
      %vm264 = vsmask.f32 7448
      %vm265 = vmor %vm263, %vm264
      %v267 = vshrl.u32 %v233, 16
      %v269 = vrot.slane %v267, 6
      %v270 = vshll.u32 %v233, 16
      %v272 = vrot.slane %v270, 7
      %v273 = vor.u32 %v269, %v272
      %v274 = vrot.slane %v273, 2
      %v276 = vshll.u32 %v234, 16
      %v278 = vrot.slane %v276, 7
      %v279 = vsel %vm265, %v274, %v278
      %v281 = vshrl.u32 %v241, 16
      %v283 = vrot.slane %v281, 6
      %v284 = vshll.u32 %v241, 16
      %v286 = vrot.slane %v284, 7
      %v287 = vor.u32 %v283, %v286
      %v288 = vrot.slane %v287, 2
      %v290 = vshll.u32 %v242, 16
      %v292 = vrot.slane %v290, 7
      %v293 = vsel %vm265, %v288, %v292
      %v295 = vshrl.u32 %v249, 16
      %v297 = vrot.slane %v295, 6
      %v298 = vshll.u32 %v249, 16
      %v300 = vrot.slane %v298, 7
      %v301 = vor.u32 %v297, %v300
      %v302 = vrot.slane %v301, 2
      %v304 = vshll.u32 %v250, 16
      %v306 = vrot.slane %v304, 7
      %v307 = vsel %vm265, %v302, %v306
      %v309 = vshrl.u32 %v257, 16
      %v311 = vrot.slane %v309, 6
      %v312 = vshll.u32 %v257, 16
      %v314 = vrot.slane %v312, 7
      %v315 = vor.u32 %v311, %v314
      %v316 = vrot.slane %v315, 2
      %v318 = vshll.u32 %v258, 16
      %v320 = vrot.slane %v318, 7
      %v321 = vsel %vm265, %v316, %v320
      %322 = vrot.lane.b32.xlu0 %v279, 16
      %v323 = vpop.permute.xlu0 %322
      %324 = vrot.lane.b32.xlu0 %v293, 16
      %v325 = vpop.permute.xlu0 %324
      %326 = vrot.lane.b32.xlu0 %v307, 16
      %v327 = vpop.permute.xlu0 %326
      %328 = vrot.lane.b32.xlu0 %v321, 16
      %v329 = vpop.permute.xlu0 %328
      %v330 = vrot.slane %v323, 6
      %v331 = vrot.slane %v325, 6
      %v332 = vrot.slane %v327, 6
      %v333 = vrot.slane %v329, 6
      %vm334 = vcmask 130048
      %v335 = vsel %vm334, %v330, %v323
      %v336 = vsel %vm334, %v331, %v325
      %v337 = vsel %vm334, %v332, %v327
      %v338 = vsel %vm334, %v333, %v329
      %vm343 = vcmask 1041536
      %vm344 = vcmask 257026
      %vm345 = vmor %vm344, %vm343
      %346 = vst.msk [vmem:[#allocation2 + $0x2] sm:$0xf] %vm345, %v335
      %347 = vst.msk [vmem:[#allocation2 + $0x18] sm:$0xf] %vm345, %v336
      %348 = vst.msk [vmem:[#allocation2 + $0x2e] sm:$0xf] %vm345, %v337
      %349 = vst.msk [vmem:[#allocation2 + $0x44] sm:$0xf] %vm345, %v338
      %v350 = vld [vmem:[%s165] sm:$0x66]
      %v351 = vld [vmem:[%s165 + $0x8] sm:$0x66]
      %v352 = vld [vmem:[%s165 + $0x10] sm:$0x66]
      %v353 = vld [vmem:[%s165 + $0x18] sm:$0x66]
      %v359 = vunpack.c.l.s4 1983009808
      %v360 = vunpack.c.0.s8 %v359
      %v361 = vlaneseq
      %v362 = vshrl.u32 %v361, 7
      %v363 = vsub.s32 %v360, %v362
      %v364 = vrot.slane %v350, %v363
      %v365 = vcombine.high %v364, %v364
      %v367 = vunpack.c.l.s4 1983009808
      %v368 = vunpack.c.0.s8 %v367
      %v369 = vlaneseq
      %v370 = vshrl.u32 %v369, 7
      %v371 = vsub.s32 %v368, %v370
      %v372 = vrot.slane %v351, %v371
      %v373 = vcombine.high %v372, %v372
      %v375 = vunpack.c.l.s4 1983009808
      %v376 = vunpack.c.0.s8 %v375
      %v377 = vlaneseq
      %v378 = vshrl.u32 %v377, 7
      %v379 = vsub.s32 %v376, %v378
      %v380 = vrot.slane %v352, %v379
      %v381 = vcombine.high %v380, %v380
      %v383 = vunpack.c.l.s4 1983009808
      %v384 = vunpack.c.0.s8 %v383
      %v385 = vlaneseq
      %v386 = vshrl.u32 %v385, 7
      %v387 = vsub.s32 %v384, %v386
      %v388 = vrot.slane %v353, %v387
      %v389 = vcombine.high %v388, %v388
      %vm390 = vcmask 1040384
      %vm391 = vcmask 1042434
      %vm392 = vmor %vm390, %vm391
      %vm393 = vcmask 1044484
      %vm394 = vmor %vm392, %vm393
      %vm395 = vcmask 1046534
      %vm396 = vmor %vm394, %vm395
      %v397 = vrot.slane %v364, 7
      %v398 = vrot.slane %v397, 2
      %v399 = vrot.slane %v365, 7
      %v400 = vsel %vm396, %v398, %v399
      %v401 = vrot.slane %v372, 7
      %v402 = vrot.slane %v401, 2
      %v403 = vrot.slane %v373, 7
      %v404 = vsel %vm396, %v402, %v403
      %v405 = vrot.slane %v380, 7
      %v406 = vrot.slane %v405, 2
      %v407 = vrot.slane %v381, 7
      %v408 = vsel %vm396, %v406, %v407
      %v409 = vrot.slane %v388, 7
      %v410 = vrot.slane %v409, 2
      %v411 = vrot.slane %v389, 7
      %v412 = vsel %vm396, %v410, %v411
      %413 = vrot.lane.b32.xlu0 %v400, 32
      %v414 = vpop.permute.xlu0 %413
      %415 = vrot.lane.b32.xlu0 %v404, 32
      %v416 = vpop.permute.xlu0 %415
      %417 = vrot.lane.b32.xlu0 %v408, 32
      %v418 = vpop.permute.xlu0 %417
      %419 = vrot.lane.b32.xlu0 %v412, 32
      %v420 = vpop.permute.xlu0 %419
      %v421 = vrot.slane %v414, 6
      %v422 = vrot.slane %v416, 6
      %v423 = vrot.slane %v418, 6
      %v424 = vrot.slane %v420, 6
      %vm425 = vcmask 261120
      %v426 = vsel %vm425, %v421, %v414
      %v427 = vsel %vm425, %v422, %v416
      %v428 = vsel %vm425, %v423, %v418
      %v429 = vsel %vm425, %v424, %v420
      %vm434 = vcmask 1041664
      %vm435 = vcmask 388098
      %vm436 = vmor %vm435, %vm434
      %437 = vst.msk [vmem:[#allocation2 + $0x4] sm:$0xf] %vm436, %v426
      %438 = vst.msk [vmem:[#allocation2 + $0x1a] sm:$0xf] %vm436, %v427
      %439 = vst.msk [vmem:[#allocation2 + $0x30] sm:$0xf] %vm436, %v428
      %440 = vst.msk [vmem:[#allocation2 + $0x46] sm:$0xf] %vm436, %v429
      %s441 = scalar_lea.vmem %s165, 8
      %v442 = vld [vmem:[%s441] sm:$0x33]
      %v443 = vld [vmem:[%s441 + $0x8] sm:$0x33]
      %v444 = vld [vmem:[%s441 + $0x10] sm:$0x33]
      %v445 = vld [vmem:[%s441 + $0x18] sm:$0x33]
      %v451 = vunpack.c.l.s4 1983009808
      %v452 = vunpack.c.0.s8 %v451
      %v453 = vlaneseq
      %v454 = vshrl.u32 %v453, 7
      %v455 = vsub.s32 %v452, %v454
      %v456 = vrot.slane %v442, %v455
      %v458 = vunpack.c.l.s4 1983009808
      %v459 = vunpack.c.0.s8 %v458
      %v460 = vlaneseq
      %v461 = vshrl.u32 %v460, 7
      %v462 = vsub.s32 %v459, %v461
      %v463 = vrot.slane %v443, %v462
      %v465 = vunpack.c.l.s4 1983009808
      %v466 = vunpack.c.0.s8 %v465
      %v467 = vlaneseq
      %v468 = vshrl.u32 %v467, 7
      %v469 = vsub.s32 %v466, %v468
      %v470 = vrot.slane %v444, %v469
      %v472 = vunpack.c.l.s4 1983009808
      %v473 = vunpack.c.0.s8 %v472
      %v474 = vlaneseq
      %v475 = vshrl.u32 %v474, 7
      %v476 = vsub.s32 %v473, %v475
      %v477 = vrot.slane %v445, %v476
      %478 = vrot.lane.b32.xlu0 %v456, 48
      %v479 = vpop.permute.xlu0 %478
      %480 = vrot.lane.b32.xlu0 %v463, 48
      %v481 = vpop.permute.xlu0 %480
      %482 = vrot.lane.b32.xlu0 %v470, 48
      %v483 = vpop.permute.xlu0 %482
      %484 = vrot.lane.b32.xlu0 %v477, 48
      %v485 = vpop.permute.xlu0 %484
      %v486 = vrot.slane %v479, 6
      %v487 = vrot.slane %v481, 6
      %v488 = vrot.slane %v483, 6
      %v489 = vrot.slane %v485, 6
      %vm490 = vcmask 392192
      %v491 = vsel %vm490, %v486, %v479
      %v492 = vsel %vm490, %v487, %v481
      %v493 = vsel %vm490, %v488, %v483
      %v494 = vsel %vm490, %v489, %v485
      %vm499 = vcmask 1041792
      %vm500 = vcmask 519170
      %vm501 = vmor %vm500, %vm499
      %502 = vst.msk [vmem:[#allocation2 + $0x6] sm:$0xf] %vm501, %v491
      %503 = vst.msk [vmem:[#allocation2 + $0x1c] sm:$0xf] %vm501, %v492
      %504 = vst.msk [vmem:[#allocation2 + $0x32] sm:$0xf] %vm501, %v493
      %505 = vst.msk [vmem:[#allocation2 + $0x48] sm:$0xf] %vm501, %v494
      %v506 = vld [vmem:[%s441] sm:$0x77]
      %v507 = vld [vmem:[%s441 + $0x8] sm:$0x77]
      %v508 = vld [vmem:[%s441 + $0x10] sm:$0x77]
      %v509 = vld [vmem:[%s441 + $0x18] sm:$0x77]
      %v515 = vunpack.c.l.s4 1983009808
      %v516 = vunpack.c.0.s8 %v515
      %v517 = vlaneseq
      %v518 = vshrl.u32 %v517, 7
      %v519 = vsub.s32 %v516, %v518
      %v520 = vrot.slane %v506, %v519
      %v521 = vcombine.high %v520, %v520
      %v523 = vunpack.c.l.s4 1983009808
      %v524 = vunpack.c.0.s8 %v523
      %v525 = vlaneseq
      %v526 = vshrl.u32 %v525, 7
      %v527 = vsub.s32 %v524, %v526
      %v528 = vrot.slane %v507, %v527
      %v529 = vcombine.high %v528, %v528
      %v531 = vunpack.c.l.s4 1983009808
      %v532 = vunpack.c.0.s8 %v531
      %v533 = vlaneseq
      %v534 = vshrl.u32 %v533, 7
      %v535 = vsub.s32 %v532, %v534
      %v536 = vrot.slane %v508, %v535
      %v537 = vcombine.high %v536, %v536
      %v539 = vunpack.c.l.s4 1983009808
      %v540 = vunpack.c.0.s8 %v539
      %v541 = vlaneseq
      %v542 = vshrl.u32 %v541, 7
      %v543 = vsub.s32 %v540, %v542
      %v544 = vrot.slane %v509, %v543
      %v545 = vcombine.high %v544, %v544
      %v547 = vshrl.u32 %v520, 16
      %v549 = vrot.slane %v547, 6
      %v550 = vshll.u32 %v520, 16
      %v552 = vrot.slane %v550, 7
      %v553 = vor.u32 %v549, %v552
      %v554 = vrot.slane %v553, 2
      %v556 = vshll.u32 %v521, 16
      %v558 = vrot.slane %v556, 7
      %v559 = vsel %vm265, %v554, %v558
      %v561 = vshrl.u32 %v528, 16
      %v563 = vrot.slane %v561, 6
      %v564 = vshll.u32 %v528, 16
      %v566 = vrot.slane %v564, 7
      %v567 = vor.u32 %v563, %v566
      %v568 = vrot.slane %v567, 2
      %v570 = vshll.u32 %v529, 16
      %v572 = vrot.slane %v570, 7
      %v573 = vsel %vm265, %v568, %v572
      %v575 = vshrl.u32 %v536, 16
      %v577 = vrot.slane %v575, 6
      %v578 = vshll.u32 %v536, 16
      %v580 = vrot.slane %v578, 7
      %v581 = vor.u32 %v577, %v580
      %v582 = vrot.slane %v581, 2
      %v584 = vshll.u32 %v537, 16
      %v586 = vrot.slane %v584, 7
      %v587 = vsel %vm265, %v582, %v586
      %v589 = vshrl.u32 %v544, 16
      %v591 = vrot.slane %v589, 6
      %v592 = vshll.u32 %v544, 16
      %v594 = vrot.slane %v592, 7
      %v595 = vor.u32 %v591, %v594
      %v596 = vrot.slane %v595, 2
      %v598 = vshll.u32 %v545, 16
      %v600 = vrot.slane %v598, 7
      %v601 = vsel %vm265, %v596, %v600
      %602 = vrot.lane.b32.xlu0 %v559, 64
      %v603 = vpop.permute.xlu0 %602
      %604 = vrot.lane.b32.xlu0 %v573, 64
      %v605 = vpop.permute.xlu0 %604
      %606 = vrot.lane.b32.xlu0 %v587, 64
      %v607 = vpop.permute.xlu0 %606
      %608 = vrot.lane.b32.xlu0 %v601, 64
      %v609 = vpop.permute.xlu0 %608
      %v610 = vrot.slane %v603, 6
      %v611 = vrot.slane %v605, 6
      %v612 = vrot.slane %v607, 6
      %v613 = vrot.slane %v609, 6
      %vm614 = vcmask 523264
      %v615 = vsel %vm614, %v610, %v603
      %v616 = vsel %vm614, %v611, %v605
      %v617 = vsel %vm614, %v612, %v607
      %v618 = vsel %vm614, %v613, %v609
      %vm623 = vcmask 1041920
      %vm624 = vcmask 650242
      %vm625 = vmor %vm624, %vm623
      %626 = vst.msk [vmem:[#allocation2 + $0x8] sm:$0xf] %vm625, %v615
      %627 = vst.msk [vmem:[#allocation2 + $0x1e] sm:$0xf] %vm625, %v616
      %628 = vst.msk [vmem:[#allocation2 + $0x34] sm:$0xf] %vm625, %v617
      %629 = vst.msk [vmem:[#allocation2 + $0x4a] sm:$0xf] %vm625, %v618
      %v630 = vld [vmem:[%s441] sm:$0x66]
      %v631 = vld [vmem:[%s441 + $0x8] sm:$0x66]
      %v632 = vld [vmem:[%s441 + $0x10] sm:$0x66]
      %v633 = vld [vmem:[%s441 + $0x18] sm:$0x66]
      %v639 = vunpack.c.l.s4 1983009808
      %v640 = vunpack.c.0.s8 %v639
      %v641 = vlaneseq
      %v642 = vshrl.u32 %v641, 7
      %v643 = vsub.s32 %v640, %v642
      %v644 = vrot.slane %v630, %v643
      %v645 = vcombine.high %v644, %v644
      %v647 = vunpack.c.l.s4 1983009808
      %v648 = vunpack.c.0.s8 %v647
      %v649 = vlaneseq
      %v650 = vshrl.u32 %v649, 7
      %v651 = vsub.s32 %v648, %v650
      %v652 = vrot.slane %v631, %v651
      %v653 = vcombine.high %v652, %v652
      %v655 = vunpack.c.l.s4 1983009808
      %v656 = vunpack.c.0.s8 %v655
      %v657 = vlaneseq
      %v658 = vshrl.u32 %v657, 7
      %v659 = vsub.s32 %v656, %v658
      %v660 = vrot.slane %v632, %v659
      %v661 = vcombine.high %v660, %v660
      %v663 = vunpack.c.l.s4 1983009808
      %v664 = vunpack.c.0.s8 %v663
      %v665 = vlaneseq
      %v666 = vshrl.u32 %v665, 7
      %v667 = vsub.s32 %v664, %v666
      %v668 = vrot.slane %v633, %v667
      %v669 = vcombine.high %v668, %v668
      %v670 = vrot.slane %v644, 7
      %v671 = vrot.slane %v670, 2
      %v672 = vrot.slane %v645, 7
      %v673 = vsel %vm396, %v671, %v672
      %v674 = vrot.slane %v652, 7
      %v675 = vrot.slane %v674, 2
      %v676 = vrot.slane %v653, 7
      %v677 = vsel %vm396, %v675, %v676
      %v678 = vrot.slane %v660, 7
      %v679 = vrot.slane %v678, 2
      %v680 = vrot.slane %v661, 7
      %v681 = vsel %vm396, %v679, %v680
      %v682 = vrot.slane %v668, 7
      %v683 = vrot.slane %v682, 2
      %v684 = vrot.slane %v669, 7
      %v685 = vsel %vm396, %v683, %v684
      %686 = vrot.lane.b32.xlu0 %v673, 80
      %v687 = vpop.permute.xlu0 %686
      %688 = vrot.lane.b32.xlu0 %v677, 80
      %v689 = vpop.permute.xlu0 %688
      %690 = vrot.lane.b32.xlu0 %v681, 80
      %v691 = vpop.permute.xlu0 %690
      %692 = vrot.lane.b32.xlu0 %v685, 80
      %v693 = vpop.permute.xlu0 %692
      %v694 = vrot.slane %v687, 6
      %v695 = vrot.slane %v689, 6
      %v696 = vrot.slane %v691, 6
      %v697 = vrot.slane %v693, 6
      %vm698 = vcmask 654336
      %v699 = vsel %vm698, %v694, %v687
      %v700 = vsel %vm698, %v695, %v689
      %v701 = vsel %vm698, %v696, %v691
      %v702 = vsel %vm698, %v697, %v693
      %vm707 = vcmask 1042048
      %vm708 = vcmask 781314
      %vm709 = vmor %vm708, %vm707
      %710 = vst.msk [vmem:[#allocation2 + $0xa] sm:$0xf] %vm709, %v699
      %711 = vst.msk [vmem:[#allocation2 + $0x20] sm:$0xf] %vm709, %v700
      %712 = vst.msk [vmem:[#allocation2 + $0x36] sm:$0xf] %vm709, %v701
      %713 = vst.msk [vmem:[#allocation2 + $0x4c] sm:$0xf] %vm709, %v702
      %s714 = scalar_lea.vmem %s165, 16
      %v715 = vld [vmem:[%s714] sm:$0x33]
      %v716 = vld [vmem:[%s714 + $0x8] sm:$0x33]
      %v717 = vld [vmem:[%s714 + $0x10] sm:$0x33]
      %v718 = vld [vmem:[%s714 + $0x18] sm:$0x33]
      %v724 = vunpack.c.l.s4 1983009808
      %v725 = vunpack.c.0.s8 %v724
      %v726 = vlaneseq
      %v727 = vshrl.u32 %v726, 7
      %v728 = vsub.s32 %v725, %v727
      %v729 = vrot.slane %v715, %v728
      %v731 = vunpack.c.l.s4 1983009808
      %v732 = vunpack.c.0.s8 %v731
      %v733 = vlaneseq
      %v734 = vshrl.u32 %v733, 7
      %v735 = vsub.s32 %v732, %v734
      %v736 = vrot.slane %v716, %v735
      %v738 = vunpack.c.l.s4 1983009808
      %v739 = vunpack.c.0.s8 %v738
      %v740 = vlaneseq
      %v741 = vshrl.u32 %v740, 7
      %v742 = vsub.s32 %v739, %v741
      %v743 = vrot.slane %v717, %v742
      %v745 = vunpack.c.l.s4 1983009808
      %v746 = vunpack.c.0.s8 %v745
      %v747 = vlaneseq
      %v748 = vshrl.u32 %v747, 7
      %v749 = vsub.s32 %v746, %v748
      %v750 = vrot.slane %v718, %v749
      %751 = vrot.lane.b32.xlu0 %v729, 96
      %v752 = vpop.permute.xlu0 %751
      %753 = vrot.lane.b32.xlu0 %v736, 96
      %v754 = vpop.permute.xlu0 %753
      %755 = vrot.lane.b32.xlu0 %v743, 96
      %v756 = vpop.permute.xlu0 %755
      %757 = vrot.lane.b32.xlu0 %v750, 96
      %v758 = vpop.permute.xlu0 %757
      %v759 = vrot.slane %v752, 6
      %v760 = vrot.slane %v754, 6
      %v761 = vrot.slane %v756, 6
      %v762 = vrot.slane %v758, 6
      %vm763 = vcmask 785408
      %v764 = vsel %vm763, %v759, %v752
      %v765 = vsel %vm763, %v760, %v754
      %v766 = vsel %vm763, %v761, %v756
      %v767 = vsel %vm763, %v762, %v758
      %vm772 = vcmask 1042176
      %vm773 = vcmask 912386
      %vm774 = vmor %vm773, %vm772
      %775 = vst.msk [vmem:[#allocation2 + $0xc] sm:$0xf] %vm774, %v764
      %776 = vst.msk [vmem:[#allocation2 + $0x22] sm:$0xf] %vm774, %v765
      %777 = vst.msk [vmem:[#allocation2 + $0x38] sm:$0xf] %vm774, %v766
      %778 = vst.msk [vmem:[#allocation2 + $0x4e] sm:$0xf] %vm774, %v767
      %v779 = vld [vmem:[%s714] sm:$0x77]
      %v780 = vld [vmem:[%s714 + $0x8] sm:$0x77]
      %v781 = vld [vmem:[%s714 + $0x10] sm:$0x77]
      %v782 = vld [vmem:[%s714 + $0x18] sm:$0x77]
      %v788 = vunpack.c.l.s4 1983009808
      %v789 = vunpack.c.0.s8 %v788
      %v790 = vlaneseq
      %v791 = vshrl.u32 %v790, 7
      %v792 = vsub.s32 %v789, %v791
      %v793 = vrot.slane %v779, %v792
      %v794 = vcombine.high %v793, %v793
      %v796 = vunpack.c.l.s4 1983009808
      %v797 = vunpack.c.0.s8 %v796
      %v798 = vlaneseq
      %v799 = vshrl.u32 %v798, 7
      %v800 = vsub.s32 %v797, %v799
      %v801 = vrot.slane %v780, %v800
      %v802 = vcombine.high %v801, %v801
      %v804 = vunpack.c.l.s4 1983009808
      %v805 = vunpack.c.0.s8 %v804
      %v806 = vlaneseq
      %v807 = vshrl.u32 %v806, 7
      %v808 = vsub.s32 %v805, %v807
      %v809 = vrot.slane %v781, %v808
      %v810 = vcombine.high %v809, %v809
      %v812 = vunpack.c.l.s4 1983009808
      %v813 = vunpack.c.0.s8 %v812
      %v814 = vlaneseq
      %v815 = vshrl.u32 %v814, 7
      %v816 = vsub.s32 %v813, %v815
      %v817 = vrot.slane %v782, %v816
      %v818 = vcombine.high %v817, %v817
      %v820 = vshrl.u32 %v793, 16
      %v822 = vrot.slane %v820, 6
      %v823 = vshll.u32 %v793, 16
      %v825 = vrot.slane %v823, 7
      %v826 = vor.u32 %v822, %v825
      %v827 = vrot.slane %v826, 2
      %v829 = vshll.u32 %v794, 16
      %v831 = vrot.slane %v829, 7
      %v832 = vsel %vm265, %v827, %v831
      %v834 = vshrl.u32 %v801, 16
      %v836 = vrot.slane %v834, 6
      %v837 = vshll.u32 %v801, 16
      %v839 = vrot.slane %v837, 7
      %v840 = vor.u32 %v836, %v839
      %v841 = vrot.slane %v840, 2
      %v843 = vshll.u32 %v802, 16
      %v845 = vrot.slane %v843, 7
      %v846 = vsel %vm265, %v841, %v845
      %v848 = vshrl.u32 %v809, 16
      %v850 = vrot.slane %v848, 6
      %v851 = vshll.u32 %v809, 16
      %v853 = vrot.slane %v851, 7
      %v854 = vor.u32 %v850, %v853
      %v855 = vrot.slane %v854, 2
      %v857 = vshll.u32 %v810, 16
      %v859 = vrot.slane %v857, 7
      %v860 = vsel %vm265, %v855, %v859
      %v862 = vshrl.u32 %v817, 16
      %v864 = vrot.slane %v862, 6
      %v865 = vshll.u32 %v817, 16
      %v867 = vrot.slane %v865, 7
      %v868 = vor.u32 %v864, %v867
      %v869 = vrot.slane %v868, 2
      %v871 = vshll.u32 %v818, 16
      %v873 = vrot.slane %v871, 7
      %v874 = vsel %vm265, %v869, %v873
      %875 = vrot.lane.b32.xlu0 %v832, 112
      %v876 = vpop.permute.xlu0 %875
      %877 = vrot.lane.b32.xlu0 %v846, 112
      %v878 = vpop.permute.xlu0 %877
      %879 = vrot.lane.b32.xlu0 %v860, 112
      %v880 = vpop.permute.xlu0 %879
      %881 = vrot.lane.b32.xlu0 %v874, 112
      %v882 = vpop.permute.xlu0 %881
      %v883 = vrot.slane %v876, 6
      %v884 = vrot.slane %v878, 6
      %v885 = vrot.slane %v880, 6
      %v886 = vrot.slane %v882, 6
      %vm887 = vcmask 916480
      %v888 = vsel %vm887, %v883, %v876
      %v889 = vsel %vm887, %v884, %v878
      %v890 = vsel %vm887, %v885, %v880
      %v891 = vsel %vm887, %v886, %v882
      %vm896 = vcmask 1042304
      %vm897 = vcmask 1043458
      %vm898 = vmor %vm897, %vm896
      %899 = vst.msk [vmem:[#allocation2 + $0xe] sm:$0xf] %vm898, %v888
      %900 = vst.msk [vmem:[#allocation2 + $0x24] sm:$0xf] %vm898, %v889
      %901 = vst.msk [vmem:[#allocation2 + $0x3a] sm:$0xf] %vm898, %v890
      %902 = vst.msk [vmem:[#allocation2 + $0x50] sm:$0xf] %vm898, %v891
      %v903 = vld [vmem:[%s714] sm:$0x66]
      %v904 = vld [vmem:[%s714 + $0x8] sm:$0x66]
      %v905 = vld [vmem:[%s714 + $0x10] sm:$0x66]
      %v906 = vld [vmem:[%s714 + $0x18] sm:$0x66]
      %v912 = vunpack.c.l.s4 1983009808
      %v913 = vunpack.c.0.s8 %v912
      %v914 = vlaneseq
      %v915 = vshrl.u32 %v914, 7
      %v916 = vsub.s32 %v913, %v915
      %v917 = vrot.slane %v903, %v916
      %v918 = vcombine.high %v917, %v917
      %v920 = vunpack.c.l.s4 1983009808
      %v921 = vunpack.c.0.s8 %v920
      %v922 = vlaneseq
      %v923 = vshrl.u32 %v922, 7
      %v924 = vsub.s32 %v921, %v923
      %v925 = vrot.slane %v904, %v924
      %v926 = vcombine.high %v925, %v925
      %v928 = vunpack.c.l.s4 1983009808
      %v929 = vunpack.c.0.s8 %v928
      %v930 = vlaneseq
      %v931 = vshrl.u32 %v930, 7
      %v932 = vsub.s32 %v929, %v931
      %v933 = vrot.slane %v905, %v932
      %v934 = vcombine.high %v933, %v933
      %v936 = vunpack.c.l.s4 1983009808
      %v937 = vunpack.c.0.s8 %v936
      %v938 = vlaneseq
      %v939 = vshrl.u32 %v938, 7
      %v940 = vsub.s32 %v937, %v939
      %v941 = vrot.slane %v906, %v940
      %v942 = vcombine.high %v941, %v941
      %v943 = vrot.slane %v917, 7
      %v944 = vrot.slane %v943, 2
      %v945 = vrot.slane %v918, 7
      %v946 = vsel %vm396, %v944, %v945
      %v947 = vrot.slane %v925, 7
      %v948 = vrot.slane %v947, 2
      %v949 = vrot.slane %v926, 7
      %v950 = vsel %vm396, %v948, %v949
      %v951 = vrot.slane %v933, 7
      %v952 = vrot.slane %v951, 2
      %v953 = vrot.slane %v934, 7
      %v954 = vsel %vm396, %v952, %v953
      %v955 = vrot.slane %v941, 7
      %v956 = vrot.slane %v955, 2
      %v957 = vrot.slane %v942, 7
      %v958 = vsel %vm396, %v956, %v957
      %963 = vst.msk [vmem:[#allocation2 + $0x12] sm:$0xf] %vm214, %v946
      %964 = vst.msk [vmem:[#allocation2 + $0x28] sm:$0xf] %vm214, %v950
      %965 = vst.msk [vmem:[#allocation2 + $0x3e] sm:$0xf] %vm214, %v954
      %966 = vst.msk [vmem:[#allocation2 + $0x54] sm:$0xf] %vm214, %v958
      %v967 = vld [vmem:[#allocation2] sm:$0xff]
      %v968 = vld [vmem:[#allocation2 + $0x8] sm:$0xff]
      %v969 = vld [vmem:[#allocation2 + $0x10] sm:$0x3f]
      %v970 = vld [vmem:[#allocation2 + $0x16] sm:$0xff]
      %v971 = vld [vmem:[#allocation2 + $0x1e] sm:$0xff]
      %v972 = vld [vmem:[#allocation2 + $0x26] sm:$0x3f]
      %v973 = vld [vmem:[#allocation2 + $0x2c] sm:$0xff]
      %v974 = vld [vmem:[#allocation2 + $0x34] sm:$0xff]
      %v975 = vld [vmem:[#allocation2 + $0x3c] sm:$0x3f]
      %v976 = vld [vmem:[#allocation2 + $0x42] sm:$0xff]
      %v977 = vld [vmem:[#allocation2 + $0x4a] sm:$0xff]
      %v978 = vld [vmem:[#allocation2 + $0x52] sm:$0x3f]
      %v979 = vld [vmem:[%s1] sm:$0xf]
      %v980 = vld [vmem:[%s1 + $0x4] sm:$0xf]
      %v981 = vld [vmem:[%s1 + $0x8] sm:$0xf]
      %v982 = vld [vmem:[%s1 + $0xc] sm:$0xf]
      %v983 = vld [vmem:[%s1 + $0x10] sm:$0xf]
      %v984 = vld [vmem:[%s1 + $0x14] sm:$0xf]
      %v985 = vld [vmem:[%s1 + $0x18] sm:$0xf]
      %v986 = vld [vmem:[%s1 + $0x1c] sm:$0xf]
      %v987 = vld [vmem:[%s1 + $0x20] sm:$0xf]
      %v988 = vld [vmem:[%s1 + $0x24] sm:$0xf]
      %v989 = vld [vmem:[%s1 + $0x28] sm:$0xf]
      %v990 = vld [vmem:[%s1 + $0x2c] sm:$0xf]
      %v991 = vld [vmem:[%s1 + $0x30] sm:$0xf]
      %v992 = vld [vmem:[%s1 + $0x34] sm:$0xf]
      %v993 = vld [vmem:[%s1 + $0x38] sm:$0xf]
      %v994 = vld [vmem:[%s1 + $0x3c] sm:$0xf]
      %v995 = vld [vmem:[%s1 + $0x40] sm:$0xf]
      %v996 = vld [vmem:[%s1 + $0x44] sm:$0xf]
      %v997 = vld [vmem:[%s1 + $0x48] sm:$0xf]
      %v998 = vld [vmem:[%s1 + $0x4c] sm:$0xf]
      %v999 = vld [vmem:[%s1 + $0x50] sm:$0xf]
      %v1000 = vld [vmem:[%s1 + $0x54] sm:$0xf]
      %v1001 = vld [vmem:[%s1 + $0x58] sm:$0xf]
      %v1002 = vld [vmem:[%s1 + $0x5c] sm:$0xf]
      %v1003 = vld [vmem:[%s1 + $0x60] sm:$0xf]
      %v1004 = vld [vmem:[%s1 + $0x64] sm:$0xf]
      %v1005 = vld [vmem:[%s1 + $0x68] sm:$0xf]
      %v1006 = vld [vmem:[%s1 + $0x6c] sm:$0xf]
      %v1007 = vld [vmem:[%s1 + $0x70] sm:$0xf]
      %v1008 = vld [vmem:[%s1 + $0x74] sm:$0xf]
      %v1009 = vld [vmem:[%s1 + $0x78] sm:$0xf]
      %v1010 = vld [vmem:[%s1 + $0x7c] sm:$0xf]
      %v1011 = vld [vmem:[%s1 + $0x80] sm:$0xf]
      %v1012 = vld [vmem:[%s1 + $0x84] sm:$0xf]
      %v1013 = vld [vmem:[%s1 + $0x88] sm:$0xf]
      %v1014 = vld [vmem:[%s1 + $0x8c] sm:$0xf]
      %v1015 = vld [vmem:[%s1 + $0x90] sm:$0xf]
      %v1016 = vld [vmem:[%s1 + $0x94] sm:$0xf]
      %v1017 = vld [vmem:[%s1 + $0x98] sm:$0xf]
      %v1018 = vld [vmem:[%s1 + $0x9c] sm:$0xf]
      %v1019 = vld [vmem:[%s1 + $0xa0] sm:$0xf]
      %v1020 = vld [vmem:[%s1 + $0xa4] sm:$0xf]
      %v1021 = vld [vmem:[%s1 + $0xa8] sm:$0xf]
      %v1022 = vld [vmem:[%s1 + $0xac] sm:$0xf]
      %v1023 = vld [vmem:[%s1 + $0xb0] sm:$0xf]
      %v1024 = vld [vmem:[%s1 + $0xb4] sm:$0xf]
      %v1025 = vld [vmem:[%s1 + $0xb8] sm:$0xf]
      %v1026 = vld [vmem:[%s1 + $0xbc] sm:$0xf]
      %v1027 = vld [vmem:[%s1 + $0xc0] sm:$0xf]
      %v1028 = vld [vmem:[%s1 + $0xc4] sm:$0xf]
      %v1029 = vld [vmem:[%s1 + $0xc8] sm:$0xf]
      %v1030 = vld [vmem:[%s1 + $0xcc] sm:$0xf]
      %v1031 = vld [vmem:[%s1 + $0xd0] sm:$0xf]
      %v1032 = vld [vmem:[%s1 + $0xd4] sm:$0xf]
      %v1033 = vld [vmem:[%s1 + $0xd8] sm:$0xf]
      %v1034 = vld [vmem:[%s1 + $0xdc] sm:$0xf]
      %v1035 = vld [vmem:[%s1 + $0xe0] sm:$0xf]
      %v1036 = vld [vmem:[%s1 + $0xe4] sm:$0xf]
      %v1037 = vld [vmem:[%s1 + $0xe8] sm:$0xf]
      %v1038 = vld [vmem:[%s1 + $0xec] sm:$0xf]
      %v1039 = vld [vmem:[%s1 + $0xf0] sm:$0xf]
      %v1040 = vld [vmem:[%s1 + $0xf4] sm:$0xf]
      %v1041 = vld [vmem:[%s1 + $0xf8] sm:$0xf]
      %v1042 = vld [vmem:[%s1 + $0xfc] sm:$0xf]
      %v1043 = vld [vmem:[%s1 + $0x100] sm:$0xf]
      %v1044 = vld [vmem:[%s1 + $0x104] sm:$0xf]
      %v1045 = vld [vmem:[%s1 + $0x108] sm:$0xf]
      %v1046 = vld [vmem:[%s1 + $0x10c] sm:$0xf]
      %v1047 = vld [vmem:[%s1 + $0x110] sm:$0xf]
      %v1048 = vld [vmem:[%s1 + $0x114] sm:$0xf]
      %v1049 = vld [vmem:[%s1 + $0x118] sm:$0xf]
      %v1050 = vld [vmem:[%s1 + $0x11c] sm:$0xf]
      %v1051 = vld [vmem:[%s1 + $0x120] sm:$0xf]
      %v1052 = vld [vmem:[%s1 + $0x124] sm:$0xf]
      %v1053 = vld [vmem:[%s1 + $0x128] sm:$0xf]
      %v1054 = vld [vmem:[%s1 + $0x12c] sm:$0xf]
      %v1055 = vld [vmem:[%s1 + $0x130] sm:$0xf]
      %v1056 = vld [vmem:[%s1 + $0x134] sm:$0xf]
      %v1057 = vld [vmem:[%s1 + $0x138] sm:$0xf]
      %v1058 = vld [vmem:[%s1 + $0x13c] sm:$0xf]
      %v1059 = vld [vmem:[%s1 + $0x140] sm:$0xf]
      %v1060 = vld [vmem:[%s1 + $0x144] sm:$0xf]
      %v1061 = vld [vmem:[%s1 + $0x148] sm:$0xf]
      %v1062 = vld [vmem:[%s1 + $0x14c] sm:$0xf]
      %v1063 = vld [vmem:[%s1 + $0x150] sm:$0xf]
      %v1064 = vld [vmem:[%s1 + $0x154] sm:$0xf]
      %v1065 = vld [vmem:[%s1 + $0x158] sm:$0xf]
      %v1066 = vld [vmem:[%s1 + $0x15c] sm:$0xf]
      %v1067 = vld [vmem:[%s1 + $0x160] sm:$0xf]
      %v1068 = vld [vmem:[%s1 + $0x164] sm:$0xf]
      %v1069 = vld [vmem:[%s1 + $0x168] sm:$0xf]
      %v1070 = vld [vmem:[%s1 + $0x16c] sm:$0xf]
      %v1071 = vld [vmem:[%s1 + $0x170] sm:$0xf]
      %v1072 = vld [vmem:[%s1 + $0x174] sm:$0xf]
      %v1073 = vld [vmem:[%s1 + $0x178] sm:$0xf]
      %v1074 = vld [vmem:[%s1 + $0x17c] sm:$0xf]
      %v1075 = vld [vmem:[%s1 + $0x180] sm:$0xf]
      %v1076 = vld [vmem:[%s1 + $0x184] sm:$0xf]
      %v1077 = vld [vmem:[%s1 + $0x188] sm:$0xf]
      %v1078 = vld [vmem:[%s1 + $0x18c] sm:$0xf]
      %v1079 = vld [vmem:[%s1 + $0x190] sm:$0xf]
      %v1080 = vld [vmem:[%s1 + $0x194] sm:$0xf]
      %v1081 = vld [vmem:[%s1 + $0x198] sm:$0xf]
      %v1082 = vld [vmem:[%s1 + $0x19c] sm:$0xf]
      %v1083 = vld [vmem:[%s1 + $0x1a0] sm:$0xf]
      %v1084 = vld [vmem:[%s1 + $0x1a4] sm:$0xf]
      %v1085 = vld [vmem:[%s1 + $0x1a8] sm:$0xf]
      %v1086 = vld [vmem:[%s1 + $0x1ac] sm:$0xf]
      %v1087 = vld [vmem:[%s1 + $0x1b0] sm:$0xf]
      %v1088 = vld [vmem:[%s1 + $0x1b4] sm:$0xf]
      %v1089 = vld [vmem:[%s1 + $0x1b8] sm:$0xf]
      %v1090 = vld [vmem:[%s1 + $0x1bc] sm:$0xf]
      %v1091 = vld [vmem:[%s1 + $0x1c0] sm:$0xf]
      %v1092 = vld [vmem:[%s1 + $0x1c4] sm:$0xf]
      %v1093 = vld [vmem:[%s1 + $0x1c8] sm:$0xf]
      %v1094 = vld [vmem:[%s1 + $0x1cc] sm:$0xf]
      %v1095 = vld [vmem:[%s1 + $0x1d0] sm:$0xf]
      %v1096 = vld [vmem:[%s1 + $0x1d4] sm:$0xf]
      %v1097 = vld [vmem:[%s1 + $0x1d8] sm:$0xf]
      %v1098 = vld [vmem:[%s1 + $0x1dc] sm:$0xf]
      %v1099 = vld [vmem:[%s1 + $0x1e0] sm:$0xf]
      %v1100 = vld [vmem:[%s1 + $0x1e4] sm:$0xf]
      %v1101 = vld [vmem:[%s1 + $0x1e8] sm:$0xf]
      %v1102 = vld [vmem:[%s1 + $0x1ec] sm:$0xf]
      %v1103 = vld [vmem:[%s1 + $0x1f0] sm:$0xf]
      %v1104 = vld [vmem:[%s1 + $0x1f4] sm:$0xf]
      %v1105 = vld [vmem:[%s1 + $0x1f8] sm:$0xf]
      %v1106 = vld [vmem:[%s1 + $0x1fc] sm:$0xf]
      %v1107 = vld [vmem:[%s1 + $0x200] sm:$0xf]
      %v1108 = vld [vmem:[%s1 + $0x204] sm:$0xf]
      %v1109 = vld [vmem:[%s1 + $0x208] sm:$0xf]
      %v1110 = vld [vmem:[%s1 + $0x20c] sm:$0xf]
      %v1111 = vld [vmem:[%s1 + $0x210] sm:$0xf]
      %v1112 = vld [vmem:[%s1 + $0x214] sm:$0xf]
      %v1113 = vld [vmem:[%s1 + $0x218] sm:$0xf]
      %v1114 = vld [vmem:[%s1 + $0x21c] sm:$0xf]
      %v1115 = vld [vmem:[%s1 + $0x220] sm:$0xf]
      %v1116 = vld [vmem:[%s1 + $0x224] sm:$0xf]
      %v1117 = vld [vmem:[%s1 + $0x228] sm:$0xf]
      %v1118 = vld [vmem:[%s1 + $0x22c] sm:$0xf]
      %v1119 = vld [vmem:[%s1 + $0x230] sm:$0xf]
      %v1120 = vld [vmem:[%s1 + $0x234] sm:$0xf]
      %v1121 = vld [vmem:[%s1 + $0x238] sm:$0xf]
      %v1122 = vld [vmem:[%s1 + $0x23c] sm:$0xf]
      %v1123 = vld [vmem:[%s1 + $0x240] sm:$0xf]
      %v1124 = vld [vmem:[%s1 + $0x244] sm:$0xf]
      %v1125 = vld [vmem:[%s1 + $0x248] sm:$0xf]
      %v1126 = vld [vmem:[%s1 + $0x24c] sm:$0xf]
      %v1127 = vld [vmem:[%s1 + $0x250] sm:$0xf]
      %v1128 = vld [vmem:[%s1 + $0x254] sm:$0xf]
      %v1129 = vld [vmem:[%s1 + $0x258] sm:$0xf]
      %v1130 = vld [vmem:[%s1 + $0x25c] sm:$0xf]
      %v1131 = vld [vmem:[%s1 + $0x260] sm:$0xf]
      %v1132 = vld [vmem:[%s1 + $0x264] sm:$0xf]
      %v1133 = vld [vmem:[%s1 + $0x268] sm:$0xf]
      %v1134 = vld [vmem:[%s1 + $0x26c] sm:$0xf]
      %v1135 = vld [vmem:[%s1 + $0x270] sm:$0xf]
      %v1136 = vld [vmem:[%s1 + $0x274] sm:$0xf]
      %v1137 = vld [vmem:[%s1 + $0x278] sm:$0xf]
      %v1138 = vld [vmem:[%s1 + $0x27c] sm:$0xf]
      %v1139 = vld [vmem:[%s1 + $0x280] sm:$0xf]
      %v1140 = vld [vmem:[%s1 + $0x284] sm:$0xf]
      %v1141 = vld [vmem:[%s2] sm:$0x1]
      %v1143 = vlaneseq
      %v1144 = vshrl.u32 %v1143, 7
      %v1145 = vsub.s32 0, %v1144
      %v1146 = vrot.slane %v1141, %v1145
      %v1160 = vcombine.low %v967, %v970
      %v1161 = vcombine.high %v967, %v970
      %v1162 = vcombine.low %v973, %v976
      %v1163 = vcombine.high %v973, %v976
      %v1165 = vunpack.c.l.s4 1983009808
      %v1166 = vunpack.c.0.s8 %v1165
      %v1167 = vlaneseq
      %v1168 = vshrl.u32 %v1167, 7
      %v1169 = vsub.s32 %v1166, %v1168
      %v1170 = vrot.slane %v1160, %v1169
      %v1172 = vunpack.c.l.s4 1983009808
      %v1173 = vunpack.c.0.s8 %v1172
      %v1174 = vlaneseq
      %v1175 = vshrl.u32 %v1174, 7
      %v1176 = vsub.s32 %v1173, %v1175
      %v1177 = vrot.slane %v1161, %v1176
      %v1179 = vunpack.c.l.s4 1983009808
      %v1180 = vunpack.c.0.s8 %v1179
      %v1181 = vlaneseq
      %v1182 = vshrl.u32 %v1181, 7
      %v1183 = vsub.s32 %v1180, %v1182
      %v1184 = vrot.slane %v1162, %v1183
      %v1186 = vunpack.c.l.s4 1983009808
      %v1187 = vunpack.c.0.s8 %v1186
      %v1188 = vlaneseq
      %v1189 = vshrl.u32 %v1188, 7
      %v1190 = vsub.s32 %v1187, %v1189
      %v1191 = vrot.slane %v1163, %v1190
      %v1192 = vcombine.low %v1170, %v1184
      %v1193 = vcombine.high %v1170, %v1184
      %v1194 = vcombine.low %v1177, %v1191
      %v1195 = vcombine.high %v1177, %v1191
      %v1196 = vcombine.low %v968, %v971
      %v1197 = vcombine.high %v968, %v971
      %v1198 = vcombine.low %v974, %v977
      %v1199 = vcombine.high %v974, %v977
      %v1201 = vunpack.c.l.s4 1983009808
      %v1202 = vunpack.c.0.s8 %v1201
      %v1203 = vlaneseq
      %v1204 = vshrl.u32 %v1203, 7
      %v1205 = vsub.s32 %v1202, %v1204
      %v1206 = vrot.slane %v1196, %v1205
      %v1208 = vunpack.c.l.s4 1983009808
      %v1209 = vunpack.c.0.s8 %v1208
      %v1210 = vlaneseq
      %v1211 = vshrl.u32 %v1210, 7
      %v1212 = vsub.s32 %v1209, %v1211
      %v1213 = vrot.slane %v1197, %v1212
      %v1215 = vunpack.c.l.s4 1983009808
      %v1216 = vunpack.c.0.s8 %v1215
      %v1217 = vlaneseq
      %v1218 = vshrl.u32 %v1217, 7
      %v1219 = vsub.s32 %v1216, %v1218
      %v1220 = vrot.slane %v1198, %v1219
      %v1222 = vunpack.c.l.s4 1983009808
      %v1223 = vunpack.c.0.s8 %v1222
      %v1224 = vlaneseq
      %v1225 = vshrl.u32 %v1224, 7
      %v1226 = vsub.s32 %v1223, %v1225
      %v1227 = vrot.slane %v1199, %v1226
      %v1228 = vcombine.low %v1206, %v1220
      %v1229 = vcombine.high %v1206, %v1220
      %v1230 = vcombine.low %v1213, %v1227
      %v1231 = vcombine.high %v1213, %v1227
      %v1232 = vcombine.low %v969, %v972
      %v1233 = vcombine.high %v969, %v972
      %v1234 = vcombine.low %v975, %v978
      %v1235 = vcombine.high %v975, %v978
      %v1237 = vunpack.c.l.s4 1983009808
      %v1238 = vunpack.c.0.s8 %v1237
      %v1239 = vlaneseq
      %v1240 = vshrl.u32 %v1239, 7
      %v1241 = vsub.s32 %v1238, %v1240
      %v1242 = vrot.slane %v1232, %v1241
      %v1244 = vunpack.c.l.s4 1983009808
      %v1245 = vunpack.c.0.s8 %v1244
      %v1246 = vlaneseq
      %v1247 = vshrl.u32 %v1246, 7
      %v1248 = vsub.s32 %v1245, %v1247
      %v1249 = vrot.slane %v1233, %v1248
      %v1251 = vunpack.c.l.s4 1983009808
      %v1252 = vunpack.c.0.s8 %v1251
      %v1253 = vlaneseq
      %v1254 = vshrl.u32 %v1253, 7
      %v1255 = vsub.s32 %v1252, %v1254
      %v1256 = vrot.slane %v1234, %v1255
      %v1258 = vunpack.c.l.s4 1983009808
      %v1259 = vunpack.c.0.s8 %v1258
      %v1260 = vlaneseq
      %v1261 = vshrl.u32 %v1260, 7
      %v1262 = vsub.s32 %v1259, %v1261
      %v1263 = vrot.slane %v1235, %v1262
      %v1264 = vcombine.low %v1242, %v1256
      %v1265 = vcombine.high %v1242, %v1256
      %v1266 = vcombine.low %v1249, %v1263
      %v1439 = vunpack.c.l.b16 %v979
      %v1440 = vunpack.c.l.b16 %v980
      %v1441 = vunpack.c.l.b16 %v981
      %v1442 = vunpack.c.l.b16 %v982
      %v1443 = vunpack.c.l.b16 %v983
      %v1444 = vunpack.c.l.b16 %v984
      %v1445 = vunpack.c.l.b16 %v985
      %v1446 = vunpack.c.l.b16 %v986
      %v1447 = vunpack.c.l.b16 %v987
      %v1448 = vunpack.c.l.b16 %v988
      %v1449 = vunpack.c.l.b16 %v989
      %v1450 = vunpack.c.l.b16 %v990
      %v1451 = vunpack.c.l.b16 %v991
      %v1452 = vunpack.c.l.b16 %v992
      %v1453 = vunpack.c.l.b16 %v993
      %v1454 = vunpack.c.l.b16 %v994
      %v1455 = vunpack.c.l.b16 %v995
      %v1456 = vunpack.c.l.b16 %v996
      %v1457 = vunpack.c.l.b16 %v997
      %v1458 = vunpack.c.l.b16 %v998
      %v1459 = vunpack.c.l.b16 %v999
      %v1460 = vunpack.c.l.b16 %v1000
      %v1461 = vunpack.c.l.b16 %v1001
      %v1462 = vunpack.c.l.b16 %v1002
      %v1463 = vunpack.c.l.b16 %v1003
      %v1464 = vunpack.c.l.b16 %v1004
      %v1465 = vunpack.c.l.b16 %v1005
      %v1466 = vunpack.c.l.b16 %v1006
      %v1467 = vunpack.c.l.b16 %v1007
      %v1468 = vunpack.c.l.b16 %v1008
      %v1469 = vunpack.c.l.b16 %v1009
      %v1470 = vunpack.c.l.b16 %v1010
      %v1471 = vunpack.c.l.b16 %v1011
      %v1472 = vunpack.c.l.b16 %v1012
      %v1473 = vunpack.c.l.b16 %v1013
      %v1474 = vunpack.c.l.b16 %v1014
      %v1475 = vunpack.c.l.b16 %v1015
      %v1476 = vunpack.c.l.b16 %v1016
      %v1477 = vunpack.c.l.b16 %v1017
      %v1478 = vunpack.c.l.b16 %v1018
      %v1479 = vunpack.c.l.b16 %v1019
      %v1480 = vunpack.c.l.b16 %v1020
      %v1481 = vunpack.c.l.b16 %v1021
      %v1482 = vunpack.c.l.b16 %v1022
      %v1483 = vunpack.c.l.b16 %v1023
      %v1484 = vunpack.c.l.b16 %v1024
      %v1485 = vunpack.c.l.b16 %v1025
      %v1486 = vunpack.c.l.b16 %v1026
      %v1487 = vunpack.c.l.b16 %v1027
      %v1488 = vunpack.c.l.b16 %v1028
      %v1489 = vunpack.c.l.b16 %v1029
      %v1490 = vunpack.c.l.b16 %v1030
      %v1491 = vunpack.c.l.b16 %v1031
      %v1492 = vunpack.c.l.b16 %v1032
      %v1493 = vunpack.c.l.b16 %v1033
      %v1494 = vunpack.c.l.b16 %v1034
      %v1495 = vunpack.c.l.b16 %v1035
      %v1496 = vunpack.c.l.b16 %v1036
      %v1497 = vunpack.c.l.b16 %v1037
      %v1498 = vunpack.c.l.b16 %v1038
      %v1499 = vunpack.c.l.b16 %v1039
      %v1500 = vunpack.c.l.b16 %v1040
      %v1501 = vunpack.c.l.b16 %v1041
      %v1502 = vunpack.c.l.b16 %v1042
      %v1503 = vunpack.c.l.b16 %v1043
      %v1504 = vunpack.c.l.b16 %v1044
      %v1505 = vunpack.c.l.b16 %v1045
      %v1506 = vunpack.c.l.b16 %v1046
      %v1507 = vunpack.c.l.b16 %v1047
      %v1508 = vunpack.c.l.b16 %v1048
      %v1509 = vunpack.c.l.b16 %v1049
      %v1510 = vunpack.c.l.b16 %v1050
      %v1511 = vunpack.c.l.b16 %v1051
      %v1512 = vunpack.c.l.b16 %v1052
      %v1513 = vunpack.c.l.b16 %v1053
      %v1514 = vunpack.c.l.b16 %v1054
      %v1515 = vunpack.c.l.b16 %v1055
      %v1516 = vunpack.c.l.b16 %v1056
      %v1517 = vunpack.c.l.b16 %v1057
      %v1518 = vunpack.c.l.b16 %v1058
      %v1519 = vunpack.c.l.b16 %v1059
      %v1520 = vunpack.c.l.b16 %v1060
      %v1521 = vunpack.c.l.b16 %v1061
      %v1522 = vunpack.c.l.b16 %v1062
      %v1523 = vunpack.c.l.b16 %v1063
      %v1524 = vunpack.c.l.b16 %v1064
      %v1525 = vunpack.c.l.b16 %v1065
      %v1526 = vunpack.c.l.b16 %v1066
      %v1527 = vunpack.c.l.b16 %v1067
      %v1528 = vunpack.c.l.b16 %v1068
      %v1529 = vunpack.c.l.b16 %v1069
      %v1530 = vunpack.c.l.b16 %v1070
      %v1531 = vunpack.c.l.b16 %v1071
      %v1532 = vunpack.c.l.b16 %v1072
      %v1533 = vunpack.c.l.b16 %v1073
      %v1534 = vunpack.c.l.b16 %v1074
      %v1535 = vunpack.c.l.b16 %v1075
      %v1536 = vunpack.c.l.b16 %v1076
      %v1537 = vunpack.c.l.b16 %v1077
      %v1538 = vunpack.c.l.b16 %v1078
      %v1539 = vunpack.c.l.b16 %v1079
      %v1540 = vunpack.c.l.b16 %v1080
      %v1541 = vunpack.c.l.b16 %v1081
      %v1542 = vunpack.c.l.b16 %v1082
      %v1543 = vunpack.c.l.b16 %v1083
      %v1544 = vunpack.c.l.b16 %v1084
      %v1545 = vunpack.c.l.b16 %v1085
      %v1546 = vunpack.c.l.b16 %v1086
      %v1547 = vunpack.c.l.b16 %v1087
      %v1548 = vunpack.c.l.b16 %v1088
      %v1549 = vunpack.c.l.b16 %v1089
      %v1550 = vunpack.c.l.b16 %v1090
      %v1551 = vunpack.c.l.b16 %v1091
      %v1552 = vunpack.c.l.b16 %v1092
      %v1553 = vunpack.c.l.b16 %v1093
      %v1554 = vunpack.c.l.b16 %v1094
      %v1555 = vunpack.c.l.b16 %v1095
      %v1556 = vunpack.c.l.b16 %v1096
      %v1557 = vunpack.c.l.b16 %v1097
      %v1558 = vunpack.c.l.b16 %v1098
      %v1559 = vunpack.c.l.b16 %v1099
      %v1560 = vunpack.c.l.b16 %v1100
      %v1561 = vunpack.c.l.b16 %v1101
      %v1562 = vunpack.c.l.b16 %v1102
      %v1563 = vunpack.c.l.b16 %v1103
      %v1564 = vunpack.c.l.b16 %v1104
      %v1565 = vunpack.c.l.b16 %v1105
      %v1566 = vunpack.c.l.b16 %v1106
      %v1567 = vunpack.c.l.b16 %v1107
      %v1568 = vunpack.c.l.b16 %v1108
      %v1569 = vunpack.c.l.b16 %v1109
      %v1570 = vunpack.c.l.b16 %v1110
      %v1571 = vunpack.c.l.b16 %v1111
      %v1572 = vunpack.c.l.b16 %v1112
      %v1573 = vunpack.c.l.b16 %v1113
      %v1574 = vunpack.c.l.b16 %v1114
      %v1575 = vunpack.c.l.b16 %v1115
      %v1576 = vunpack.c.l.b16 %v1116
      %v1577 = vunpack.c.l.b16 %v1117
      %v1578 = vunpack.c.l.b16 %v1118
      %v1579 = vunpack.c.l.b16 %v1119
      %v1580 = vunpack.c.l.b16 %v1120
      %v1581 = vunpack.c.l.b16 %v1121
      %v1582 = vunpack.c.l.b16 %v1122
      %v1583 = vunpack.c.l.b16 %v1123
      %v1584 = vunpack.c.l.b16 %v1124
      %v1585 = vunpack.c.l.b16 %v1125
      %v1586 = vunpack.c.l.b16 %v1126
      %v1587 = vunpack.c.l.b16 %v1127
      %v1588 = vunpack.c.l.b16 %v1128
      %v1589 = vunpack.c.l.b16 %v1129
      %v1590 = vunpack.c.l.b16 %v1130
      %v1591 = vunpack.c.l.b16 %v1131
      %v1592 = vunpack.c.l.b16 %v1132
      %v1593 = vunpack.c.l.b16 %v1133
      %v1594 = vunpack.c.l.b16 %v1134
      %v1595 = vunpack.c.l.b16 %v1135
      %v1596 = vunpack.c.l.b16 %v1136
      %v1597 = vunpack.c.l.b16 %v1137
      %v1598 = vunpack.c.l.b16 %v1138
      %v1599 = vunpack.c.l.b16 %v1139
      %v1600 = vunpack.c.l.b16 %v1140
      %v1601 = vpack.c.b16 %v1440, %v1439
      %v1602 = vpack.c.b16 %v1442, %v1441
      %v1603 = vpack.c.b16 %v1444, %v1443
      %v1604 = vpack.c.b16 %v1446, %v1445
      %v1605 = vpack.c.b16 %v1448, %v1447
      %v1606 = vpack.c.b16 %v1450, %v1449
      %v1607 = vpack.c.b16 %v1452, %v1451
      %v1608 = vpack.c.b16 %v1454, %v1453
      %v1609 = vpack.c.b16 %v1456, %v1455
      %v1610 = vpack.c.b16 %v1458, %v1457
      %v1611 = vpack.c.b16 %v1460, %v1459
      %v1612 = vpack.c.b16 %v1462, %v1461
      %v1613 = vpack.c.b16 %v1464, %v1463
      %v1614 = vpack.c.b16 %v1466, %v1465
      %v1615 = vpack.c.b16 %v1468, %v1467
      %v1616 = vpack.c.b16 %v1470, %v1469
      %v1617 = vpack.c.b16 %v1472, %v1471
      %v1618 = vpack.c.b16 %v1474, %v1473
      %v1619 = vpack.c.b16 %v1476, %v1475
      %v1620 = vpack.c.b16 %v1478, %v1477
      %v1621 = vpack.c.b16 %v1480, %v1479
      %v1622 = vpack.c.b16 %v1482, %v1481
      %v1623 = vpack.c.b16 %v1484, %v1483
      %v1624 = vpack.c.b16 %v1486, %v1485
      %v1625 = vpack.c.b16 %v1488, %v1487
      %v1626 = vpack.c.b16 %v1490, %v1489
      %v1627 = vpack.c.b16 %v1492, %v1491
      %v1628 = vpack.c.b16 %v1494, %v1493
      %v1629 = vpack.c.b16 %v1496, %v1495
      %v1630 = vpack.c.b16 %v1498, %v1497
      %v1631 = vpack.c.b16 %v1500, %v1499
      %v1632 = vpack.c.b16 %v1502, %v1501
      %v1633 = vpack.c.b16 %v1504, %v1503
      %v1634 = vpack.c.b16 %v1506, %v1505
      %v1635 = vpack.c.b16 %v1508, %v1507
      %v1636 = vpack.c.b16 %v1510, %v1509
      %v1637 = vpack.c.b16 %v1512, %v1511
      %v1638 = vpack.c.b16 %v1514, %v1513
      %v1639 = vpack.c.b16 %v1516, %v1515
      %v1640 = vpack.c.b16 %v1518, %v1517
      %v1641 = vpack.c.b16 %v1520, %v1519
      %v1642 = vpack.c.b16 %v1522, %v1521
      %v1643 = vpack.c.b16 %v1524, %v1523
      %v1644 = vpack.c.b16 %v1526, %v1525
      %v1645 = vpack.c.b16 %v1528, %v1527
      %v1646 = vpack.c.b16 %v1530, %v1529
      %v1647 = vpack.c.b16 %v1532, %v1531
      %v1648 = vpack.c.b16 %v1534, %v1533
      %v1649 = vpack.c.b16 %v1536, %v1535
      %v1650 = vpack.c.b16 %v1538, %v1537
      %v1651 = vpack.c.b16 %v1540, %v1539
      %v1652 = vpack.c.b16 %v1542, %v1541
      %v1653 = vpack.c.b16 %v1544, %v1543
      %v1654 = vpack.c.b16 %v1546, %v1545
      %v1655 = vpack.c.b16 %v1548, %v1547
      %v1656 = vpack.c.b16 %v1550, %v1549
      %v1657 = vpack.c.b16 %v1552, %v1551
      %v1658 = vpack.c.b16 %v1554, %v1553
      %v1659 = vpack.c.b16 %v1556, %v1555
      %v1660 = vpack.c.b16 %v1558, %v1557
      %v1661 = vpack.c.b16 %v1560, %v1559
      %v1662 = vpack.c.b16 %v1562, %v1561
      %v1663 = vpack.c.b16 %v1564, %v1563
      %v1664 = vpack.c.b16 %v1566, %v1565
      %v1665 = vpack.c.b16 %v1568, %v1567
      %v1666 = vpack.c.b16 %v1570, %v1569
      %v1667 = vpack.c.b16 %v1572, %v1571
      %v1668 = vpack.c.b16 %v1574, %v1573
      %v1669 = vpack.c.b16 %v1576, %v1575
      %v1670 = vpack.c.b16 %v1578, %v1577
      %v1671 = vpack.c.b16 %v1580, %v1579
      %v1672 = vpack.c.b16 %v1582, %v1581
      %v1673 = vpack.c.b16 %v1584, %v1583
      %v1674 = vpack.c.b16 %v1586, %v1585
      %v1675 = vpack.c.b16 %v1588, %v1587
      %v1676 = vpack.c.b16 %v1590, %v1589
      %v1677 = vpack.c.b16 %v1592, %v1591
      %v1678 = vpack.c.b16 %v1594, %v1593
      %v1679 = vpack.c.b16 %v1596, %v1595
      %v1680 = vpack.c.b16 %v1598, %v1597
      %v1681 = vpack.c.b16 %v1600, %v1599
      %vm1763 = vcmask 130048
      %v1765 = vsel %vm1763, %v1266, 0
      %1767 = vmatprep.subr.bf16.mxu0 0
      %1768 = vmatpush1.bf16.msra.mxu0 %v1601
      %1769 = vmatprep.subr.bf16.mxu0 0
      %1770 = vmatpush1.bf16.msra.mxu0 %v1602
      %1771 = vmatprep.subr.bf16.mxu0 0
      %1772 = vmatpush1.bf16.msra.mxu0 %v1603
      %1773 = vmatprep.subr.bf16.mxu0 0
      %1774 = vmatpush1.bf16.msra.mxu0 %v1604
      %1775 = vmatprep.subr.bf16.mxu0 0
      %1776 = vmatpush1.bf16.msra.mxu0 %v1605
      %1777 = vmatprep.subr.bf16.mxu0 0
      %1778 = vmatpush1.bf16.msra.mxu0 %v1606
      %1779 = vmatprep.subr.bf16.mxu0 0
      %1780 = vmatpush1.bf16.msra.mxu0 %v1607
      %1781 = vmatprep.subr.bf16.mxu0 0
      %1782 = vmatpush1.bf16.msra.mxu0 %v1608
      %1783 = vmatprep.subr.bf16.mxu0 0
      %1784 = vmatpush1.bf16.msra.mxu0 %v1609
      %1785 = vmatprep.subr.bf16.mxu0 0
      %1786 = vmatpush1.bf16.msra.mxu0 %v1610
      %1787 = vmatprep.subr.bf16.mxu0 0
      %1788 = vmatpush1.bf16.msra.mxu0 %v1611
      %1789 = vmatprep.subr.bf16.mxu0 0
      %1790 = vmatpush1.bf16.msra.mxu0 %v1612
      %1791 = vmatprep.subr.bf16.mxu0 0
      %1792 = vmatpush1.bf16.msra.mxu0 %v1613
      %1793 = vmatprep.subr.bf16.mxu0 0
      %1794 = vmatpush1.bf16.msra.mxu0 %v1614
      %1795 = vmatprep.subr.bf16.mxu0 0
      %1796 = vmatpush1.bf16.msra.mxu0 %v1615
      %1797 = vmatprep.subr.bf16.mxu0 0
      %1798 = vmatpush1.bf16.msra.mxu0 %v1616
      %1799 = vmatprep.mubr.bf16.mxu0 %v1193
      %1800 = vmatmul.mubr.bf16.gmra.mrb[0].mxu0 %v1192
      %v1801 = vpop.f32.mrb[0].mxu0
      %v1802 = vadd.f32 %v1146, %v1801
      %v1803 = vpop.f32.mrb[0].mxu0
      %v1804 = vpop.f32.mrb[0].mxu0
      %v1805 = vadd.f32 %v1146, %v1804
      %v1806 = vpop.f32.mrb[0].mxu0
      %1807 = vdwg.mxu0
      %1808 = vmatprep.subr.bf16.mxu0 0
      %1809 = vmatpush1.bf16.msra.mxu0 %v1617
      %1810 = vmatprep.subr.bf16.mxu0 0
      %1811 = vmatpush1.bf16.msra.mxu0 %v1618
      %1812 = vmatprep.subr.bf16.mxu0 0
      %1813 = vmatpush1.bf16.msra.mxu0 %v1619
      %1814 = vmatprep.subr.bf16.mxu0 0
      %1815 = vmatpush1.bf16.msra.mxu0 %v1620
      %1816 = vmatprep.subr.bf16.mxu0 0
      %1817 = vmatpush1.bf16.msra.mxu0 %v1621
      %1818 = vmatprep.subr.bf16.mxu0 0
      %1819 = vmatpush1.bf16.msra.mxu0 %v1622
      %1820 = vmatprep.subr.bf16.mxu0 0
      %1821 = vmatpush1.bf16.msra.mxu0 %v1623
      %1822 = vmatprep.subr.bf16.mxu0 0
      %1823 = vmatpush1.bf16.msra.mxu0 %v1624
      %1824 = vmatprep.subr.bf16.mxu0 0
      %1825 = vmatpush1.bf16.msra.mxu0 %v1625
      %1826 = vmatprep.subr.bf16.mxu0 0
      %1827 = vmatpush1.bf16.msra.mxu0 %v1626
      %1828 = vmatprep.subr.bf16.mxu0 0
      %1829 = vmatpush1.bf16.msra.mxu0 %v1627
      %1830 = vmatprep.subr.bf16.mxu0 0
      %1831 = vmatpush1.bf16.msra.mxu0 %v1628
      %1832 = vmatprep.subr.bf16.mxu0 0
      %1833 = vmatpush1.bf16.msra.mxu0 %v1629
      %1834 = vmatprep.subr.bf16.mxu0 0
      %1835 = vmatpush1.bf16.msra.mxu0 %v1630
      %1836 = vmatprep.subr.bf16.mxu0 0
      %1837 = vmatpush1.bf16.msra.mxu0 %v1631
      %1838 = vmatprep.subr.bf16.mxu0 0
      %1839 = vmatpush1.bf16.msra.mxu0 %v1632
      %1840 = vmatprep.mubr.bf16.mxu0 %v1195
      %1841 = vmatmul.mubr.bf16.gmra.mrb[0].mxu0 %v1194
      %v1842 = vpop.f32.mrb[0].mxu0
      %v1843 = vadd.f32 %v1802, %v1842
      %v1844 = vpop.f32.mrb[0].mxu0
      %v1845 = vpop.f32.mrb[0].mxu0
      %v1846 = vadd.f32 %v1805, %v1845
      %v1847 = vpop.f32.mrb[0].mxu0
      %1848 = vdwg.mxu0
      %1849 = vmatprep.subr.bf16.mxu0 0
      %1850 = vmatpush1.bf16.msra.mxu0 %v1633
      %1851 = vmatprep.subr.bf16.mxu0 0
      %1852 = vmatpush1.bf16.msra.mxu0 %v1634
      %1853 = vmatprep.subr.bf16.mxu0 0
      %1854 = vmatpush1.bf16.msra.mxu0 %v1635
      %1855 = vmatprep.subr.bf16.mxu0 0
      %1856 = vmatpush1.bf16.msra.mxu0 %v1636
      %1857 = vmatprep.subr.bf16.mxu0 0
      %1858 = vmatpush1.bf16.msra.mxu0 %v1637
      %1859 = vmatprep.subr.bf16.mxu0 0
      %1860 = vmatpush1.bf16.msra.mxu0 %v1638
      %1861 = vmatprep.subr.bf16.mxu0 0
      %1862 = vmatpush1.bf16.msra.mxu0 %v1639
      %1863 = vmatprep.subr.bf16.mxu0 0
      %1864 = vmatpush1.bf16.msra.mxu0 %v1640
      %1865 = vmatprep.subr.bf16.mxu0 0
      %1866 = vmatpush1.bf16.msra.mxu0 %v1641
      %1867 = vmatprep.subr.bf16.mxu0 0
      %1868 = vmatpush1.bf16.msra.mxu0 %v1642
      %1869 = vmatprep.subr.bf16.mxu0 0
      %1870 = vmatpush1.bf16.msra.mxu0 %v1643
      %1871 = vmatprep.subr.bf16.mxu0 0
      %1872 = vmatpush1.bf16.msra.mxu0 %v1644
      %1873 = vmatprep.subr.bf16.mxu0 0
      %1874 = vmatpush1.bf16.msra.mxu0 %v1645
      %1875 = vmatprep.subr.bf16.mxu0 0
      %1876 = vmatpush1.bf16.msra.mxu0 %v1646
      %1877 = vmatprep.subr.bf16.mxu0 0
      %1878 = vmatpush1.bf16.msra.mxu0 %v1647
      %1879 = vmatprep.subr.bf16.mxu0 0
      %1880 = vmatpush1.bf16.msra.mxu0 %v1648
      %1881 = vmatprep.mubr.bf16.mxu0 %v1229
      %1882 = vmatmul.mubr.bf16.gmra.mrb[0].mxu0 %v1228
      %v1883 = vpop.f32.mrb[0].mxu0
      %v1884 = vadd.f32 %v1843, %v1883
      %v1885 = vpop.f32.mrb[0].mxu0
      %v1886 = vpop.f32.mrb[0].mxu0
      %v1887 = vadd.f32 %v1846, %v1886
      %v1888 = vpop.f32.mrb[0].mxu0
      %1889 = vdwg.mxu0
      %1890 = vmatprep.subr.bf16.mxu0 0
      %1891 = vmatpush1.bf16.msra.mxu0 %v1649
      %1892 = vmatprep.subr.bf16.mxu0 0
      %1893 = vmatpush1.bf16.msra.mxu0 %v1650
      %1894 = vmatprep.subr.bf16.mxu0 0
      %1895 = vmatpush1.bf16.msra.mxu0 %v1651
      %1896 = vmatprep.subr.bf16.mxu0 0
      %1897 = vmatpush1.bf16.msra.mxu0 %v1652
      %1898 = vmatprep.subr.bf16.mxu0 0
      %1899 = vmatpush1.bf16.msra.mxu0 %v1653
      %1900 = vmatprep.subr.bf16.mxu0 0
      %1901 = vmatpush1.bf16.msra.mxu0 %v1654
      %1902 = vmatprep.subr.bf16.mxu0 0
      %1903 = vmatpush1.bf16.msra.mxu0 %v1655
      %1904 = vmatprep.subr.bf16.mxu0 0
      %1905 = vmatpush1.bf16.msra.mxu0 %v1656
      %1906 = vmatprep.subr.bf16.mxu0 0
      %1907 = vmatpush1.bf16.msra.mxu0 %v1657
      %1908 = vmatprep.subr.bf16.mxu0 0
      %1909 = vmatpush1.bf16.msra.mxu0 %v1658
      %1910 = vmatprep.subr.bf16.mxu0 0
      %1911 = vmatpush1.bf16.msra.mxu0 %v1659
      %1912 = vmatprep.subr.bf16.mxu0 0
      %1913 = vmatpush1.bf16.msra.mxu0 %v1660
      %1914 = vmatprep.subr.bf16.mxu0 0
      %1915 = vmatpush1.bf16.msra.mxu0 %v1661
      %1916 = vmatprep.subr.bf16.mxu0 0
      %1917 = vmatpush1.bf16.msra.mxu0 %v1662
      %1918 = vmatprep.subr.bf16.mxu0 0
      %1919 = vmatpush1.bf16.msra.mxu0 %v1663
      %1920 = vmatprep.subr.bf16.mxu0 0
      %1921 = vmatpush1.bf16.msra.mxu0 %v1664
      %1922 = vmatprep.mubr.bf16.mxu0 %v1231
      %1923 = vmatmul.mubr.bf16.gmra.mrb[0].mxu0 %v1230
      %v1924 = vpop.f32.mrb[0].mxu0
      %v1925 = vadd.f32 %v1884, %v1924
      %v1926 = vpop.f32.mrb[0].mxu0
      %v1927 = vpop.f32.mrb[0].mxu0
      %v1928 = vadd.f32 %v1887, %v1927
      %v1929 = vpop.f32.mrb[0].mxu0
      %1930 = vdwg.mxu0
      %1931 = vmatprep.subr.bf16.mxu0 0
      %1932 = vmatpush1.bf16.msra.mxu0 %v1665
      %1933 = vmatprep.subr.bf16.mxu0 0
      %1934 = vmatpush1.bf16.msra.mxu0 %v1666
      %1935 = vmatprep.subr.bf16.mxu0 0
      %1936 = vmatpush1.bf16.msra.mxu0 %v1667
      %1937 = vmatprep.subr.bf16.mxu0 0
      %1938 = vmatpush1.bf16.msra.mxu0 %v1668
      %1939 = vmatprep.subr.bf16.mxu0 0
      %1940 = vmatpush1.bf16.msra.mxu0 %v1669
      %1941 = vmatprep.subr.bf16.mxu0 0
      %1942 = vmatpush1.bf16.msra.mxu0 %v1670
      %1943 = vmatprep.subr.bf16.mxu0 0
      %1944 = vmatpush1.bf16.msra.mxu0 %v1671
      %1945 = vmatprep.subr.bf16.mxu0 0
      %1946 = vmatpush1.bf16.msra.mxu0 %v1672
      %1947 = vmatprep.subr.bf16.mxu0 0
      %1948 = vmatpush1.bf16.msra.mxu0 %v1673
      %1949 = vmatprep.subr.bf16.mxu0 0
      %1950 = vmatpush1.bf16.msra.mxu0 %v1674
      %1951 = vmatprep.subr.bf16.mxu0 0
      %1952 = vmatpush1.bf16.msra.mxu0 %v1675
      %1953 = vmatprep.subr.bf16.mxu0 0
      %1954 = vmatpush1.bf16.msra.mxu0 %v1676
      %1955 = vmatprep.subr.bf16.mxu0 0
      %1956 = vmatpush1.bf16.msra.mxu0 %v1677
      %1957 = vmatprep.subr.bf16.mxu0 0
      %1958 = vmatpush1.bf16.msra.mxu0 %v1678
      %1959 = vmatprep.subr.bf16.mxu0 0
      %1960 = vmatpush1.bf16.msra.mxu0 %v1679
      %1961 = vmatprep.subr.bf16.mxu0 0
      %1962 = vmatpush1.bf16.msra.mxu0 %v1680
      %1963 = vmatprep.mubr.bf16.mxu0 %v1265
      %1964 = vmatmul.mubr.bf16.gmra.mrb[0].mxu0 %v1264
      %v1965 = vpop.f32.mrb[0].mxu0
      %v1966 = vadd.f32 %v1925, %v1965
      %v1967 = vpop.f32.mrb[0].mxu0
      %v1968 = vpop.f32.mrb[0].mxu0
      %v1969 = vadd.f32 %v1928, %v1968
      %v1970 = vpop.f32.mrb[0].mxu0
      %1971 = vdwg.mxu0
      %1972 = vmatprep.subr.bf16.mxu0 0
      %1973 = vmatpush1.bf16.msra.mxu0 %v1681
      %1974 = vmatprep.subr.bf16.mxu0 0
      %1975 = vmatpush1.bf16.msra.mxu0 0
      %1976 = vmatprep.subr.bf16.mxu0 0
      %1977 = vmatpush1.bf16.msra.mxu0 0
      %1978 = vmatprep.subr.bf16.mxu0 0
      %1979 = vmatpush1.bf16.msra.mxu0 0
      %1980 = vmatprep.subr.bf16.mxu0 0
      %1981 = vmatpush1.bf16.msra.mxu0 0
      %1982 = vmatprep.subr.bf16.mxu0 0
      %1983 = vmatpush1.bf16.msra.mxu0 0
      %1984 = vmatprep.subr.bf16.mxu0 0
      %1985 = vmatpush1.bf16.msra.mxu0 0
      %1986 = vmatprep.subr.bf16.mxu0 0
      %1987 = vmatpush1.bf16.msra.mxu0 0
      %1988 = vmatprep.subr.bf16.mxu0 0
      %1989 = vmatpush1.bf16.msra.mxu0 0
      %1990 = vmatprep.subr.bf16.mxu0 0
      %1991 = vmatpush1.bf16.msra.mxu0 0
      %1992 = vmatprep.subr.bf16.mxu0 0
      %1993 = vmatpush1.bf16.msra.mxu0 0
      %1994 = vmatprep.subr.bf16.mxu0 0
      %1995 = vmatpush1.bf16.msra.mxu0 0
      %1996 = vmatprep.subr.bf16.mxu0 0
      %1997 = vmatpush1.bf16.msra.mxu0 0
      %1998 = vmatprep.subr.bf16.mxu0 0
      %1999 = vmatpush1.bf16.msra.mxu0 0
      %2000 = vmatprep.subr.bf16.mxu0 0
      %2001 = vmatpush1.bf16.msra.mxu0 0
      %2002 = vmatprep.subr.bf16.mxu0 0
      %2003 = vmatpush1.bf16.msra.mxu0 0
      %2004 = vmatprep.mubr.bf16.mxu0 0
      %2005 = vmatmul.mubr.bf16.gmra.mrb[0].mxu0 %v1765
      %v2006 = vpop.f32.mrb[0].mxu0
      %v2007 = vadd.f32 %v1966, %v2006
      %v2008 = vpop.f32.mrb[0].mxu0
      %v2009 = vpop.f32.mrb[0].mxu0
      %v2010 = vadd.f32 %v1969, %v2009
      %v2011 = vpop.f32.mrb[0].mxu0
      %2012 = vdwg.mxu0
      %v2013 = vmax.f32 %v2007, 0.0
      %v2014 = vmax.f32 %v2010, 0.0
      %v2015 = vpack.c.bf16 %v2014, %v2013
      %v2017 = vunpack.c.l.b16 %v2015
      %v2018 = vunpack.c.h.b16 %v2015
      %v2019 = vpack.c.b16 %v2017, %v2017
      %v2020 = vpack.c.b16 %v2018, %v2018
      %2023 = vst [vmem:[%s170] sm:$0xf] %v2019
      %2024 = vst [vmem:[%s170 + $0x4] sm:$0xf] %v2020
      %p2025 = scmp.lt.s32.totalorder %s14, 1
      %s2026 = scalar_select %p2025, %s14, 1
      %s2027 = smul.addr %s2026, 2
      %s2028 = smul.addr %s2027, 4
      %s2029 = scalar_lea.vmem %s3, %s2028
      // Predicated region
      $region33: #{pose_mobilenetv3_forward.8} parent=31 // pred_check
        %p2030 = pneg %p100
      $region34: #{pose_mobilenetv3_forward.8} parent=31 // pred_check_branch
        %2032 = sbr.rel (%p2030) target = $region36
      $region35: #{pose_mobilenetv3_forward.8} parent=31 // pred_region
        _
      $region36: #{pose_mobilenetv3_forward.8} parent=31 // pred_fallthru
        _
    $region32: #{pose_mobilenetv3_forward.8} parent=5 // pred_fallthru
      _
    %p2033 = scmp.le.s32.totalorder 2, %s9
    // Predicated region
    $region37: #{pose_mobilenetv3_forward.8} parent=5 // pred_check
      %p2034 = pneg %p2033
    $region38: #{pose_mobilenetv3_forward.8} parent=5 // pred_check_branch
      %2036 = sbr.rel (%p2034) target = $region40
    $region39: #{pose_mobilenetv3_forward.8} parent=5 // pred_region
      %s2037 = ssub.s32 %s9, 2
      // Predicated region
      $region41: #{pose_mobilenetv3_forward.8} parent=39 // pred_check
        %p2038 = pneg %p106
      $region42: #{pose_mobilenetv3_forward.8} parent=39 // pred_check_branch
        %2040 = sbr.rel (%p2038) target = $region44
      $region43: #{pose_mobilenetv3_forward.8} parent=39 // pred_region
        %p2041 = scmp.lt.s32.totalorder %s15, 1
        %s2042 = scalar_select %p2041, %s15, 1
        %s2043 = smul.addr %s2042, 2
        %s2044 = smul.addr %s2043, 4
        %s2045 = scalar_lea.vmem %s3, %s2044
      $region44: #{pose_mobilenetv3_forward.8} parent=39 // pred_fallthru
        _
    $region40: #{pose_mobilenetv3_forward.8} parent=5 // pred_fallthru
      _
  $region6: #{pose_mobilenetv3_forward.8} parent=0 // loop_footer
    %s13 = sadd.s32 1, %s9
  $region7: #{pose_mobilenetv3_forward.8} parent=0 // loop_footer_branch
    %8 = sbr.rel target = $region3
  $region8: #{pose_mobilenetv3_forward.8} parent=0 // loop_exit
    _

// kernel: pose_mobilenetv3_forward.9
$region0: #{pose_mobilenetv3_forward.9}
  #allocation0 [shape = 'u32[]', space=smem, size = 0x4, offset = 0x4, fixed_abs, tag = 'smem constant byte address 0x4 - core index']
  #allocation1 [shape = 'u32[144,128]{1,0:T(1,128)}', space=vmem, size = 0x12000, scoped, tag = 'internal scratch']
  #allocation2 [shape = 'bf16[8,8,288]{2,1,0:T(8,128)(2,1)}', space=vmem, size = 0xc000, scoped, tag = 'scratch operand']
  %s0 = inlined_call_operand.vmem [shape: bf16[2,10,10,32], index: 0, kind: input, shape index: {}]
  %s1 = inlined_call_operand.vmem [shape: bf16[288,128], index: 1, kind: input, shape index: {}]
  %s2 = inlined_call_operand.vmem [shape: f32[1,128], index: 2, kind: input, shape index: {}]
  %s3 = inlined_call_operand.vmem [shape: bf16[128,32], index: 3, kind: input, shape index: {}]
  %s4 = inlined_call_operand.vmem [shape: f32[1,32], index: 4, kind: input, shape index: {}]
  %s5 = inlined_call_operand.vmem [shape: f32[2,64,32], index: 5, kind: output, shape index: {}]
  %s6 = sld [smem:[#allocation0]]
  $region53: #{pose_mobilenetv3_forward.9} parent=0
    _
  %s8 = ssub.s32 1, %s6
  %s9 = scalar_select 0, %s8, %s6
  loop: start=0, step=1, limit=4
  $region2: #{pose_mobilenetv3_forward.9} parent=0 // loop_pre_header
    _
  $region3: #{pose_mobilenetv3_forward.9} parent=0 // loop_header
    %s11 = sphi 0, %s15
    %p12 = scmp.ge.s32.totalorder %s11, 4
    %s21 = sphi 0, %s23
    %s24 = sphi 0, %s21
    %s25 = sphi 0, %s24
    %s41 = sphi 0, %s25
    %s45 = sphi 0, %s45
    %s47 = sphi 0, %s45
    %s48 = sphi 0, %s47
    %s62 = sphi 0, %s48
    %s66 = sphi 0, %s66
    %s68 = sphi 0, %s66
    %s69 = sphi 0, %s68
    %s83 = sphi 0, %s69
    %s87 = sphi 0, %s87
    %s89 = sphi 0, %s87
    %s90 = sphi 0, %s89
    %s104 = sphi 0, %s90
    %s108 = sphi 0, %s108
    %s110 = sphi 0, %s108
    %s111 = sphi 0, %s110
    %s125 = sphi 0, %s111
    %s131 = sphi 0, %s133
    %s134 = sphi 0, %s131
    %s135 = sphi 0, %s134
    %s151 = sphi 0, %s135
  $region4: #{pose_mobilenetv3_forward.9} parent=0 // loop_header_branch
    %14 = sbr.rel (%p12) target = $region8
  $region5: #{pose_mobilenetv3_forward.9} parent=0 // loop_body
    %s16 = ssub.s32 %s11, 1
    %s17 = ssub.s32 %s11, 2
    %s18 = sadd.s32 %s11, 1
    %s19 = ssub.s32 %s11, %s18
    %p20 = scmp.eq.s32.totalorder %s19, 0
    %s22 = sadd.s32 %s21, 1
    %s23 = scalar_select %p20, %s21, %s22
    %p26 = pneg %p20
    %p27 = scmp.eq.s32.totalorder %s11, 1
    %p28 = por %p26, %p27
    %p29 = scmp.ne.s32.totalorder %s21, %s24
    %p30 = scmp.eq.s32.totalorder %s11, 0
    %p31 = por %p29, %p30
    %p32 = scmp.ne.s32.totalorder %s21, %s24
    %p33 = scmp.eq.s32.totalorder %s16, 1
    %p34 = por %p32, %p33
    %p35 = scmp.ne.s32.totalorder %s24, %s25
    %p36 = scmp.eq.s32.totalorder %s16, 0
    %p37 = por %p35, %p36
    %p38 = scmp.ne.s32.totalorder %s24, %s25
    %p39 = scmp.eq.s32.totalorder %s17, 1
    %p40 = por %p38, %p39
    %p42 = scmp.ne.s32.totalorder %s25, %s41
    %p43 = scmp.eq.s32.totalorder %s17, 0
    %p44 = por %p42, %p43
    %s46 = sadd.s32 %s45, 1
    %p49 = scmp.eq.s32.totalorder %s11, 1
    %p50 = scmp.ne.s32.totalorder %s45, %s47
    %p51 = scmp.eq.s32.totalorder %s11, 0
    %p52 = por %p50, %p51
    %p53 = scmp.ne.s32.totalorder %s45, %s47
    %p54 = scmp.eq.s32.totalorder %s16, 1
    %p55 = por %p53, %p54
    %p56 = scmp.ne.s32.totalorder %s47, %s48
    %p57 = scmp.eq.s32.totalorder %s16, 0
    %p58 = por %p56, %p57
    %p59 = scmp.ne.s32.totalorder %s47, %s48
    %p60 = scmp.eq.s32.totalorder %s17, 1
    %p61 = por %p59, %p60
    %p63 = scmp.ne.s32.totalorder %s48, %s62
    %p64 = scmp.eq.s32.totalorder %s17, 0
    %p65 = por %p63, %p64
    %s67 = sadd.s32 %s66, 1
    %p70 = scmp.eq.s32.totalorder %s11, 1
    %p71 = scmp.ne.s32.totalorder %s66, %s68
    %p72 = scmp.eq.s32.totalorder %s11, 0
    %p73 = por %p71, %p72
    %p74 = scmp.ne.s32.totalorder %s66, %s68
    %p75 = scmp.eq.s32.totalorder %s16, 1
    %p76 = por %p74, %p75
    %p77 = scmp.ne.s32.totalorder %s68, %s69
    %p78 = scmp.eq.s32.totalorder %s16, 0
    %p79 = por %p77, %p78
    %p80 = scmp.ne.s32.totalorder %s68, %s69
    %p81 = scmp.eq.s32.totalorder %s17, 1
    %p82 = por %p80, %p81
    %p84 = scmp.ne.s32.totalorder %s69, %s83
    %p85 = scmp.eq.s32.totalorder %s17, 0
    %p86 = por %p84, %p85
    %s88 = sadd.s32 %s87, 1
    %p91 = scmp.eq.s32.totalorder %s11, 1
    %p92 = scmp.ne.s32.totalorder %s87, %s89
    %p93 = scmp.eq.s32.totalorder %s11, 0
    %p94 = por %p92, %p93
    %p95 = scmp.ne.s32.totalorder %s87, %s89
    %p96 = scmp.eq.s32.totalorder %s16, 1
    %p97 = por %p95, %p96
    %p98 = scmp.ne.s32.totalorder %s89, %s90
    %p99 = scmp.eq.s32.totalorder %s16, 0
    %p100 = por %p98, %p99
    %p101 = scmp.ne.s32.totalorder %s89, %s90
    %p102 = scmp.eq.s32.totalorder %s17, 1
    %p103 = por %p101, %p102
    %p105 = scmp.ne.s32.totalorder %s90, %s104
    %p106 = scmp.eq.s32.totalorder %s17, 0
    %p107 = por %p105, %p106
    %s109 = sadd.s32 %s108, 1
    %p112 = scmp.eq.s32.totalorder %s11, 1
    %p113 = scmp.ne.s32.totalorder %s108, %s110
    %p114 = scmp.eq.s32.totalorder %s11, 0
    %p115 = por %p113, %p114
    %p116 = scmp.ne.s32.totalorder %s108, %s110
    %p117 = scmp.eq.s32.totalorder %s16, 1
    %p118 = por %p116, %p117
    %p119 = scmp.ne.s32.totalorder %s110, %s111
    %p120 = scmp.eq.s32.totalorder %s16, 0
    %p121 = por %p119, %p120
    %p122 = scmp.ne.s32.totalorder %s110, %s111
    %p123 = scmp.eq.s32.totalorder %s17, 1
    %p124 = por %p122, %p123
    %p126 = scmp.ne.s32.totalorder %s111, %s125
    %p127 = scmp.eq.s32.totalorder %s17, 0
    %p128 = por %p126, %p127
    %s129 = ssub.s32 %s11, %s18
    %p130 = scmp.eq.s32.totalorder %s129, 0
    %s132 = sadd.s32 %s131, 1
    %s133 = scalar_select %p130, %s131, %s132
    %p136 = pneg %p130
    %p137 = scmp.eq.s32.totalorder %s11, 1
    %p138 = por %p136, %p137
    %p139 = scmp.ne.s32.totalorder %s131, %s134
    %p140 = scmp.eq.s32.totalorder %s11, 0
    %p141 = por %p139, %p140
    %p142 = scmp.ne.s32.totalorder %s131, %s134
    %p143 = scmp.eq.s32.totalorder %s16, 1
    %p144 = por %p142, %p143
    %p145 = scmp.ne.s32.totalorder %s134, %s135
    %p146 = scmp.eq.s32.totalorder %s16, 0
    %p147 = por %p145, %p146
    %p148 = scmp.ne.s32.totalorder %s134, %s135
    %p149 = scmp.eq.s32.totalorder %s17, 1
    %p150 = por %p148, %p149
    %p152 = scmp.ne.s32.totalorder %s135, %s151
    %p153 = scmp.eq.s32.totalorder %s17, 0
    %p154 = por %p152, %p153
    %p155 = scmp.le.s32.totalorder 1, %s11
    %p156 = scmp.lt.s32.totalorder %s11, 3
    %p157 = pnand %p155, %p156
    %p158 = pneg %p157
    // Predicated region
    $region9: #{pose_mobilenetv3_forward.9} parent=5 // pred_check
      _
    $region10: #{pose_mobilenetv3_forward.9} parent=5 // pred_check_branch
      %160 = sbr.rel (%p157) target = $region12
    $region11: #{pose_mobilenetv3_forward.9} parent=5 // pred_region
      %s161 = ssub.s32 %s11, 1
      // Predicated region
      $region13: #{pose_mobilenetv3_forward.9} parent=11 // pred_check
        %p162 = pneg %p58
      $region14: #{pose_mobilenetv3_forward.9} parent=11 // pred_check_branch
        %164 = sbr.rel (%p162) target = $region16
      $region15: #{pose_mobilenetv3_forward.9} parent=11 // pred_region
        _
      $region16: #{pose_mobilenetv3_forward.9} parent=11 // pred_fallthru
        _
      // Predicated region
      $region17: #{pose_mobilenetv3_forward.9} parent=11 // pred_check
        %p165 = pneg %p79
      $region18: #{pose_mobilenetv3_forward.9} parent=11 // pred_check_branch
        %167 = sbr.rel (%p165) target = $region20
      $region19: #{pose_mobilenetv3_forward.9} parent=11 // pred_region
        _
      $region20: #{pose_mobilenetv3_forward.9} parent=11 // pred_fallthru
        _
      // Predicated region
      $region21: #{pose_mobilenetv3_forward.9} parent=11 // pred_check
        %p168 = pneg %p100
      $region22: #{pose_mobilenetv3_forward.9} parent=11 // pred_check_branch
        %170 = sbr.rel (%p168) target = $region24
      $region23: #{pose_mobilenetv3_forward.9} parent=11 // pred_region
        _
      $region24: #{pose_mobilenetv3_forward.9} parent=11 // pred_fallthru
        _
      // Predicated region
      $region25: #{pose_mobilenetv3_forward.9} parent=11 // pred_check
        %p171 = pneg %p121
      $region26: #{pose_mobilenetv3_forward.9} parent=11 // pred_check_branch
        %173 = sbr.rel (%p171) target = $region28
      $region27: #{pose_mobilenetv3_forward.9} parent=11 // pred_region
        _
      $region28: #{pose_mobilenetv3_forward.9} parent=11 // pred_fallthru
        _
    $region12: #{pose_mobilenetv3_forward.9} parent=5 // pred_fallthru
      _
    %p174 = scmp.lt.s32.totalorder %s11, 2
    // Predicated region
    $region29: #{pose_mobilenetv3_forward.9} parent=5 // pred_check
      %p175 = pneg %p174
    $region30: #{pose_mobilenetv3_forward.9} parent=5 // pred_check_branch
      %177 = sbr.rel (%p175) target = $region32
    $region31: #{pose_mobilenetv3_forward.9} parent=5 // pred_region
      // Predicated region
      $region33: #{pose_mobilenetv3_forward.9} parent=31 // pred_check
        %p178 = pneg %p31
      $region34: #{pose_mobilenetv3_forward.9} parent=31 // pred_check_branch
        %180 = sbr.rel (%p178) target = $region36
      $region35: #{pose_mobilenetv3_forward.9} parent=31 // pred_region
        %p181 = scmp.lt.s32.totalorder %s11, 1
        %s182 = scalar_select %p181, %s11, 1
        %s183 = smul.addr %s182, 20
        %s184 = smul.addr %s183, 4
        %s185 = scalar_lea.vmem %s0, %s184
      $region36: #{pose_mobilenetv3_forward.9} parent=31 // pred_fallthru
        _
    $region32: #{pose_mobilenetv3_forward.9} parent=5 // pred_fallthru
      _
    %p186 = scmp.le.s32.totalorder 1, %s11
    %p187 = scmp.lt.s32.totalorder %s11, 3
    %p188 = pnand %p186, %p187
    %p189 = pneg %p188
    // Predicated region
    $region37: #{pose_mobilenetv3_forward.9} parent=5 // pred_check
      _
    $region38: #{pose_mobilenetv3_forward.9} parent=5 // pred_check_branch
      %191 = sbr.rel (%p188) target = $region40
    $region39: #{pose_mobilenetv3_forward.9} parent=5 // pred_region
      %s192 = ssub.s32 %s11, 1
      %p193 = scmp.lt.s32.totalorder %s16, 1
      %s194 = scalar_select %p193, %s16, 1
      %s195 = smul.addr %s194, 20
      %s196 = smul.addr %s195, 4
      %s197 = scalar_lea.vmem %s0, %s196
      %p198 = pneg %p37
      %p199 = pneg %p34
      %p200 = pneg %p58
      %p201 = pneg %p55
      %p202 = pneg %p79
      %p203 = pneg %p76
      %p204 = pneg %p100
      %p205 = pneg %p97
      %p206 = pneg %p121
      %p207 = pneg %p118
      %p208 = pneg %p147
      %p209 = pneg %p144
      %p210 = scmp.lt.s32.totalorder %s16, 1
      %s211 = scalar_select %p210, %s16, 1
      %s212 = smul.addr %s211, 8
      %s213 = smul.addr %s212, 8
      %s214 = scalar_lea.vmem %s5, %s213
      %p215 = scmp.lt.s32.totalorder %s16, 1
      %s216 = scalar_select %p215, %s16, 1
      %s217 = smul.addr %s216, 20
      %s218 = smul.addr %s217, 4
      %s219 = scalar_lea.vmem %s0, %s218
      %p220 = scmp.lt.s32.totalorder %s16, 1
      %s221 = scalar_select %p220, %s16, 1
      %s222 = smul.addr %s221, 8
      %s223 = smul.addr %s222, 8
      %s224 = scalar_lea.vmem %s5, %s223
      %v226 = vld [vmem:[%s219] sm:$0xf]
      %v227 = vld [vmem:[%s219 + $0x8] sm:$0xf]
      %v228 = vld [vmem:[%s219 + $0x10] sm:$0xf]
      %v229 = vld [vmem:[%s219 + $0x18] sm:$0xf]
      %v230 = vld [vmem:[%s219 + $0x20] sm:$0xf]
      %v231 = vld [vmem:[%s219 + $0x28] sm:$0xf]
      %v232 = vld [vmem:[%s219 + $0x30] sm:$0xf]
      %v233 = vld [vmem:[%s219 + $0x38] sm:$0xf]
      %vm234 = vcmask 257024
      %235 = vst.msk [vmem:[#allocation2] sm:$0xf] %vm234, %v226
      %236 = vst.msk [vmem:[#allocation2 + $0xc] sm:$0xf] %vm234, %v227
      %237 = vst.msk [vmem:[#allocation2 + $0x18] sm:$0xf] %vm234, %v228
      %238 = vst.msk [vmem:[#allocation2 + $0x24] sm:$0xf] %vm234, %v229
      %239 = vst.msk [vmem:[#allocation2 + $0x30] sm:$0xf] %vm234, %v230
      %240 = vst.msk [vmem:[#allocation2 + $0x3c] sm:$0xf] %vm234, %v231
      %241 = vst.msk [vmem:[#allocation2 + $0x48] sm:$0xf] %vm234, %v232
      %242 = vst.msk [vmem:[#allocation2 + $0x54] sm:$0xf] %vm234, %v233
      %v243 = vld [vmem:[%s219] sm:$0xf]
      %v244 = vld [vmem:[%s219 + $0x4] sm:$0x1]
      %v245 = vld [vmem:[%s219 + $0x8] sm:$0xf]
      %v246 = vld [vmem:[%s219 + $0xc] sm:$0x1]
      %v247 = vld [vmem:[%s219 + $0x10] sm:$0xf]
      %v248 = vld [vmem:[%s219 + $0x14] sm:$0x1]
      %v249 = vld [vmem:[%s219 + $0x18] sm:$0xf]
      %v250 = vld [vmem:[%s219 + $0x1c] sm:$0x1]
      %v251 = vld [vmem:[%s219 + $0x20] sm:$0xf]
      %v252 = vld [vmem:[%s219 + $0x24] sm:$0x1]
      %v253 = vld [vmem:[%s219 + $0x28] sm:$0xf]
      %v254 = vld [vmem:[%s219 + $0x2c] sm:$0x1]
      %v255 = vld [vmem:[%s219 + $0x30] sm:$0xf]
      %v256 = vld [vmem:[%s219 + $0x34] sm:$0x1]
      %v257 = vld [vmem:[%s219 + $0x38] sm:$0xf]
      %v258 = vld [vmem:[%s219 + $0x3c] sm:$0x1]
      %vm259 = vsmask.f32 3328
      %vm260 = vsmask.f32 7440
      %vm261 = vmor %vm259, %vm260
      %v263 = vshrl.u32 %v243, 16
      %v265 = vrot.slane %v263, 4
      %v266 = vshll.u32 %v243, 16
      %v268 = vrot.slane %v266, 5
      %v269 = vor.u32 %v265, %v268
      %v270 = vrot.slane %v269, 4
      %v272 = vshll.u32 %v244, 16
      %v274 = vrot.slane %v272, 5
      %v275 = vsel %vm261, %v270, %v274
      %v277 = vshrl.u32 %v245, 16
      %v279 = vrot.slane %v277, 4
      %v280 = vshll.u32 %v245, 16
      %v282 = vrot.slane %v280, 5
      %v283 = vor.u32 %v279, %v282
      %v284 = vrot.slane %v283, 4
      %v286 = vshll.u32 %v246, 16
      %v288 = vrot.slane %v286, 5
      %v289 = vsel %vm261, %v284, %v288
      %v291 = vshrl.u32 %v247, 16
      %v293 = vrot.slane %v291, 4
      %v294 = vshll.u32 %v247, 16
      %v296 = vrot.slane %v294, 5
      %v297 = vor.u32 %v293, %v296
      %v298 = vrot.slane %v297, 4
      %v300 = vshll.u32 %v248, 16
      %v302 = vrot.slane %v300, 5
      %v303 = vsel %vm261, %v298, %v302
      %v305 = vshrl.u32 %v249, 16
      %v307 = vrot.slane %v305, 4
      %v308 = vshll.u32 %v249, 16
      %v310 = vrot.slane %v308, 5
      %v311 = vor.u32 %v307, %v310
      %v312 = vrot.slane %v311, 4
      %v314 = vshll.u32 %v250, 16
      %v316 = vrot.slane %v314, 5
      %v317 = vsel %vm261, %v312, %v316
      %v319 = vshrl.u32 %v251, 16
      %v321 = vrot.slane %v319, 4
      %v322 = vshll.u32 %v251, 16
      %v324 = vrot.slane %v322, 5
      %v325 = vor.u32 %v321, %v324
      %v326 = vrot.slane %v325, 4
      %v328 = vshll.u32 %v252, 16
      %v330 = vrot.slane %v328, 5
      %v331 = vsel %vm261, %v326, %v330
      %v333 = vshrl.u32 %v253, 16
      %v335 = vrot.slane %v333, 4
      %v336 = vshll.u32 %v253, 16
      %v338 = vrot.slane %v336, 5
      %v339 = vor.u32 %v335, %v338
      %v340 = vrot.slane %v339, 4
      %v342 = vshll.u32 %v254, 16
      %v344 = vrot.slane %v342, 5
      %v345 = vsel %vm261, %v340, %v344
      %v347 = vshrl.u32 %v255, 16
      %v349 = vrot.slane %v347, 4
      %v350 = vshll.u32 %v255, 16
      %v352 = vrot.slane %v350, 5
      %v353 = vor.u32 %v349, %v352
      %v354 = vrot.slane %v353, 4
      %v356 = vshll.u32 %v256, 16
      %v358 = vrot.slane %v356, 5
      %v359 = vsel %vm261, %v354, %v358
      %v361 = vshrl.u32 %v257, 16
      %v363 = vrot.slane %v361, 4
      %v364 = vshll.u32 %v257, 16
      %v366 = vrot.slane %v364, 5
      %v367 = vor.u32 %v363, %v366
      %v368 = vrot.slane %v367, 4
      %v370 = vshll.u32 %v258, 16
      %v372 = vrot.slane %v370, 5
      %v373 = vsel %vm261, %v368, %v372
      %374 = vrot.lane.b32.xlu0 %v275, 32
      %v375 = vpop.permute.xlu0 %374
      %376 = vrot.lane.b32.xlu0 %v289, 32
      %v377 = vpop.permute.xlu0 %376
      %378 = vrot.lane.b32.xlu0 %v303, 32
      %v379 = vpop.permute.xlu0 %378
      %380 = vrot.lane.b32.xlu0 %v317, 32
      %v381 = vpop.permute.xlu0 %380
      %382 = vrot.lane.b32.xlu0 %v331, 32
      %v383 = vpop.permute.xlu0 %382
      %384 = vrot.lane.b32.xlu0 %v345, 32
      %v385 = vpop.permute.xlu0 %384
      %386 = vrot.lane.b32.xlu0 %v359, 32
      %v387 = vpop.permute.xlu0 %386
      %388 = vrot.lane.b32.xlu0 %v373, 32
      %v389 = vpop.permute.xlu0 %388
      %vm398 = vcmask 519424
      %399 = vst.msk [vmem:[#allocation2] sm:$0xf] %vm398, %v375
      %400 = vst.msk [vmem:[#allocation2 + $0xc] sm:$0xf] %vm398, %v377
      %401 = vst.msk [vmem:[#allocation2 + $0x18] sm:$0xf] %vm398, %v379
      %402 = vst.msk [vmem:[#allocation2 + $0x24] sm:$0xf] %vm398, %v381
      %403 = vst.msk [vmem:[#allocation2 + $0x30] sm:$0xf] %vm398, %v383
      %404 = vst.msk [vmem:[#allocation2 + $0x3c] sm:$0xf] %vm398, %v385
      %405 = vst.msk [vmem:[#allocation2 + $0x48] sm:$0xf] %vm398, %v387
      %406 = vst.msk [vmem:[#allocation2 + $0x54] sm:$0xf] %vm398, %v389
      %v407 = vld [vmem:[%s219] sm:$0xe]
      %v408 = vld [vmem:[%s219 + $0x4] sm:$0x1]
      %v409 = vld [vmem:[%s219 + $0x8] sm:$0xe]
      %v410 = vld [vmem:[%s219 + $0xc] sm:$0x1]
      %v411 = vld [vmem:[%s219 + $0x10] sm:$0xe]
      %v412 = vld [vmem:[%s219 + $0x14] sm:$0x1]
      %v413 = vld [vmem:[%s219 + $0x18] sm:$0xe]
      %v414 = vld [vmem:[%s219 + $0x1c] sm:$0x1]
      %v415 = vld [vmem:[%s219 + $0x20] sm:$0xe]
      %v416 = vld [vmem:[%s219 + $0x24] sm:$0x1]
      %v417 = vld [vmem:[%s219 + $0x28] sm:$0xe]
      %v418 = vld [vmem:[%s219 + $0x2c] sm:$0x1]
      %v419 = vld [vmem:[%s219 + $0x30] sm:$0xe]
      %v420 = vld [vmem:[%s219 + $0x34] sm:$0x1]
      %v421 = vld [vmem:[%s219 + $0x38] sm:$0xe]
      %v422 = vld [vmem:[%s219 + $0x3c] sm:$0x1]
      %vm439 = vcmask 1042432
      %vm440 = vcmask 1046532
      %vm441 = vmor %vm439, %vm440
      %v442 = vrot.slane %v407, 5
      %v443 = vrot.slane %v442, 4
      %v444 = vrot.slane %v408, 5
      %v445 = vsel %vm441, %v443, %v444
      %v446 = vrot.slane %v409, 5
      %v447 = vrot.slane %v446, 4
      %v448 = vrot.slane %v410, 5
      %v449 = vsel %vm441, %v447, %v448
      %v450 = vrot.slane %v411, 5
      %v451 = vrot.slane %v450, 4
      %v452 = vrot.slane %v412, 5
      %v453 = vsel %vm441, %v451, %v452
      %v454 = vrot.slane %v413, 5
      %v455 = vrot.slane %v454, 4
      %v456 = vrot.slane %v414, 5
      %v457 = vsel %vm441, %v455, %v456
      %v458 = vrot.slane %v415, 5
      %v459 = vrot.slane %v458, 4
      %v460 = vrot.slane %v416, 5
      %v461 = vsel %vm441, %v459, %v460
      %v462 = vrot.slane %v417, 5
      %v463 = vrot.slane %v462, 4
      %v464 = vrot.slane %v418, 5
      %v465 = vsel %vm441, %v463, %v464
      %v466 = vrot.slane %v419, 5
      %v467 = vrot.slane %v466, 4
      %v468 = vrot.slane %v420, 5
      %v469 = vsel %vm441, %v467, %v468
      %v470 = vrot.slane %v421, 5
      %v471 = vrot.slane %v470, 4
      %v472 = vrot.slane %v422, 5
      %v473 = vsel %vm441, %v471, %v472
      %474 = vrot.lane.b32.xlu0 %v445, 64
      %v475 = vpop.permute.xlu0 %474
      %476 = vrot.lane.b32.xlu0 %v449, 64
      %v477 = vpop.permute.xlu0 %476
      %478 = vrot.lane.b32.xlu0 %v453, 64
      %v479 = vpop.permute.xlu0 %478
      %480 = vrot.lane.b32.xlu0 %v457, 64
      %v481 = vpop.permute.xlu0 %480
      %482 = vrot.lane.b32.xlu0 %v461, 64
      %v483 = vpop.permute.xlu0 %482
      %484 = vrot.lane.b32.xlu0 %v465, 64
      %v485 = vpop.permute.xlu0 %484
      %486 = vrot.lane.b32.xlu0 %v469, 64
      %v487 = vpop.permute.xlu0 %486
      %488 = vrot.lane.b32.xlu0 %v473, 64
      %v489 = vpop.permute.xlu0 %488
      %vm498 = vcmask 781824
      %499 = vst.msk [vmem:[#allocation2] sm:$0xf] %vm498, %v475
      %500 = vst.msk [vmem:[#allocation2 + $0xc] sm:$0xf] %vm498, %v477
      %501 = vst.msk [vmem:[#allocation2 + $0x18] sm:$0xf] %vm498, %v479
      %502 = vst.msk [vmem:[#allocation2 + $0x24] sm:$0xf] %vm498, %v481
      %503 = vst.msk [vmem:[#allocation2 + $0x30] sm:$0xf] %vm498, %v483
      %504 = vst.msk [vmem:[#allocation2 + $0x3c] sm:$0xf] %vm498, %v485
      %505 = vst.msk [vmem:[#allocation2 + $0x48] sm:$0xf] %vm498, %v487
      %506 = vst.msk [vmem:[#allocation2 + $0x54] sm:$0xf] %vm498, %v489
      %s507 = scalar_lea.vmem %s219, 8
      %v508 = vld [vmem:[%s507] sm:$0xf]
      %v509 = vld [vmem:[%s507 + $0x8] sm:$0xf]
      %v510 = vld [vmem:[%s507 + $0x10] sm:$0xf]
      %v511 = vld [vmem:[%s507 + $0x18] sm:$0xf]
      %v512 = vld [vmem:[%s507 + $0x20] sm:$0xf]
      %v513 = vld [vmem:[%s507 + $0x28] sm:$0xf]
      %v514 = vld [vmem:[%s507 + $0x30] sm:$0xf]
      %v515 = vld [vmem:[%s507 + $0x38] sm:$0xf]
      %524 = vrot.lane.b32.xlu0 %v508, 96
      %v525 = vpop.permute.xlu0 %524
      %526 = vrot.lane.b32.xlu0 %v509, 96
      %v527 = vpop.permute.xlu0 %526
      %528 = vrot.lane.b32.xlu0 %v510, 96
      %v529 = vpop.permute.xlu0 %528
      %530 = vrot.lane.b32.xlu0 %v511, 96
      %v531 = vpop.permute.xlu0 %530
      %532 = vrot.lane.b32.xlu0 %v512, 96
      %v533 = vpop.permute.xlu0 %532
      %534 = vrot.lane.b32.xlu0 %v513, 96
      %v535 = vpop.permute.xlu0 %534
      %536 = vrot.lane.b32.xlu0 %v514, 96
      %v537 = vpop.permute.xlu0 %536
      %538 = vrot.lane.b32.xlu0 %v515, 96
      %v539 = vpop.permute.xlu0 %538
      %vm548 = vcmask 1044224
      %549 = vst.msk [vmem:[#allocation2] sm:$0xf] %vm548, %v525
      %550 = vst.msk [vmem:[#allocation2 + $0xc] sm:$0xf] %vm548, %v527
      %551 = vst.msk [vmem:[#allocation2 + $0x18] sm:$0xf] %vm548, %v529
      %552 = vst.msk [vmem:[#allocation2 + $0x24] sm:$0xf] %vm548, %v531
      %553 = vst.msk [vmem:[#allocation2 + $0x30] sm:$0xf] %vm548, %v533
      %554 = vst.msk [vmem:[#allocation2 + $0x3c] sm:$0xf] %vm548, %v535
      %555 = vst.msk [vmem:[#allocation2 + $0x48] sm:$0xf] %vm548, %v537
      %556 = vst.msk [vmem:[#allocation2 + $0x54] sm:$0xf] %vm548, %v539
      %v557 = vld [vmem:[%s507] sm:$0xf]
      %v558 = vld [vmem:[%s507 + $0x4] sm:$0x1]
      %v559 = vld [vmem:[%s507 + $0x8] sm:$0xf]
      %v560 = vld [vmem:[%s507 + $0xc] sm:$0x1]
      %v561 = vld [vmem:[%s507 + $0x10] sm:$0xf]
      %v562 = vld [vmem:[%s507 + $0x14] sm:$0x1]
      %v563 = vld [vmem:[%s507 + $0x18] sm:$0xf]
      %v564 = vld [vmem:[%s507 + $0x1c] sm:$0x1]
      %v565 = vld [vmem:[%s507 + $0x20] sm:$0xf]
      %v566 = vld [vmem:[%s507 + $0x24] sm:$0x1]
      %v567 = vld [vmem:[%s507 + $0x28] sm:$0xf]
      %v568 = vld [vmem:[%s507 + $0x2c] sm:$0x1]
      %v569 = vld [vmem:[%s507 + $0x30] sm:$0xf]
      %v570 = vld [vmem:[%s507 + $0x34] sm:$0x1]
      %v571 = vld [vmem:[%s507 + $0x38] sm:$0xf]
      %v572 = vld [vmem:[%s507 + $0x3c] sm:$0x1]
      %v574 = vshrl.u32 %v557, 16
      %v576 = vrot.slane %v574, 4
      %v577 = vshll.u32 %v557, 16
      %v579 = vrot.slane %v577, 5
      %v580 = vor.u32 %v576, %v579
      %v581 = vrot.slane %v580, 4
      %v583 = vshll.u32 %v558, 16
      %v585 = vrot.slane %v583, 5
      %v586 = vsel %vm261, %v581, %v585
      %v588 = vshrl.u32 %v559, 16
      %v590 = vrot.slane %v588, 4
      %v591 = vshll.u32 %v559, 16
      %v593 = vrot.slane %v591, 5
      %v594 = vor.u32 %v590, %v593
      %v595 = vrot.slane %v594, 4
      %v597 = vshll.u32 %v560, 16
      %v599 = vrot.slane %v597, 5
      %v600 = vsel %vm261, %v595, %v599
      %v602 = vshrl.u32 %v561, 16
      %v604 = vrot.slane %v602, 4
      %v605 = vshll.u32 %v561, 16
      %v607 = vrot.slane %v605, 5
      %v608 = vor.u32 %v604, %v607
      %v609 = vrot.slane %v608, 4
      %v611 = vshll.u32 %v562, 16
      %v613 = vrot.slane %v611, 5
      %v614 = vsel %vm261, %v609, %v613
      %v616 = vshrl.u32 %v563, 16
      %v618 = vrot.slane %v616, 4
      %v619 = vshll.u32 %v563, 16
      %v621 = vrot.slane %v619, 5
      %v622 = vor.u32 %v618, %v621
      %v623 = vrot.slane %v622, 4
      %v625 = vshll.u32 %v564, 16
      %v627 = vrot.slane %v625, 5
      %v628 = vsel %vm261, %v623, %v627
      %v630 = vshrl.u32 %v565, 16
      %v632 = vrot.slane %v630, 4
      %v633 = vshll.u32 %v565, 16
      %v635 = vrot.slane %v633, 5
      %v636 = vor.u32 %v632, %v635
      %v637 = vrot.slane %v636, 4
      %v639 = vshll.u32 %v566, 16
      %v641 = vrot.slane %v639, 5
      %v642 = vsel %vm261, %v637, %v641
      %v644 = vshrl.u32 %v567, 16
      %v646 = vrot.slane %v644, 4
      %v647 = vshll.u32 %v567, 16
      %v649 = vrot.slane %v647, 5
      %v650 = vor.u32 %v646, %v649
      %v651 = vrot.slane %v650, 4
      %v653 = vshll.u32 %v568, 16
      %v655 = vrot.slane %v653, 5
      %v656 = vsel %vm261, %v651, %v655
      %v658 = vshrl.u32 %v569, 16
      %v660 = vrot.slane %v658, 4
      %v661 = vshll.u32 %v569, 16
      %v663 = vrot.slane %v661, 5
      %v664 = vor.u32 %v660, %v663
      %v665 = vrot.slane %v664, 4
      %v667 = vshll.u32 %v570, 16
      %v669 = vrot.slane %v667, 5
      %v670 = vsel %vm261, %v665, %v669
      %v672 = vshrl.u32 %v571, 16
      %v674 = vrot.slane %v672, 4
      %v675 = vshll.u32 %v571, 16
      %v677 = vrot.slane %v675, 5
      %v678 = vor.u32 %v674, %v677
      %v679 = vrot.slane %v678, 4
      %v681 = vshll.u32 %v572, 16
      %v683 = vrot.slane %v681, 5
      %v684 = vsel %vm261, %v679, %v683
      %693 = vst.msk [vmem:[#allocation2 + $0x4] sm:$0xf] %vm234, %v586
      %694 = vst.msk [vmem:[#allocation2 + $0x10] sm:$0xf] %vm234, %v600
      %695 = vst.msk [vmem:[#allocation2 + $0x1c] sm:$0xf] %vm234, %v614
      %696 = vst.msk [vmem:[#allocation2 + $0x28] sm:$0xf] %vm234, %v628
      %697 = vst.msk [vmem:[#allocation2 + $0x34] sm:$0xf] %vm234, %v642
      %698 = vst.msk [vmem:[#allocation2 + $0x40] sm:$0xf] %vm234, %v656
      %699 = vst.msk [vmem:[#allocation2 + $0x4c] sm:$0xf] %vm234, %v670
      %700 = vst.msk [vmem:[#allocation2 + $0x58] sm:$0xf] %vm234, %v684
      %v701 = vld [vmem:[%s507] sm:$0xe]
      %v702 = vld [vmem:[%s507 + $0x4] sm:$0x1]
      %v703 = vld [vmem:[%s507 + $0x8] sm:$0xe]
      %v704 = vld [vmem:[%s507 + $0xc] sm:$0x1]
      %v705 = vld [vmem:[%s507 + $0x10] sm:$0xe]
      %v706 = vld [vmem:[%s507 + $0x14] sm:$0x1]
      %v707 = vld [vmem:[%s507 + $0x18] sm:$0xe]
      %v708 = vld [vmem:[%s507 + $0x1c] sm:$0x1]
      %v709 = vld [vmem:[%s507 + $0x20] sm:$0xe]
      %v710 = vld [vmem:[%s507 + $0x24] sm:$0x1]
      %v711 = vld [vmem:[%s507 + $0x28] sm:$0xe]
      %v712 = vld [vmem:[%s507 + $0x2c] sm:$0x1]
      %v713 = vld [vmem:[%s507 + $0x30] sm:$0xe]
      %v714 = vld [vmem:[%s507 + $0x34] sm:$0x1]
      %v715 = vld [vmem:[%s507 + $0x38] sm:$0xe]
      %v716 = vld [vmem:[%s507 + $0x3c] sm:$0x1]
      %v733 = vrot.slane %v701, 5
      %v734 = vrot.slane %v733, 4
      %v735 = vrot.slane %v702, 5
      %v736 = vsel %vm441, %v734, %v735
      %v737 = vrot.slane %v703, 5
      %v738 = vrot.slane %v737, 4
      %v739 = vrot.slane %v704, 5
      %v740 = vsel %vm441, %v738, %v739
      %v741 = vrot.slane %v705, 5
      %v742 = vrot.slane %v741, 4
      %v743 = vrot.slane %v706, 5
      %v744 = vsel %vm441, %v742, %v743
      %v745 = vrot.slane %v707, 5
      %v746 = vrot.slane %v745, 4
      %v747 = vrot.slane %v708, 5
      %v748 = vsel %vm441, %v746, %v747
      %v749 = vrot.slane %v709, 5
      %v750 = vrot.slane %v749, 4
      %v751 = vrot.slane %v710, 5
      %v752 = vsel %vm441, %v750, %v751
      %v753 = vrot.slane %v711, 5
      %v754 = vrot.slane %v753, 4
      %v755 = vrot.slane %v712, 5
      %v756 = vsel %vm441, %v754, %v755
      %v757 = vrot.slane %v713, 5
      %v758 = vrot.slane %v757, 4
      %v759 = vrot.slane %v714, 5
      %v760 = vsel %vm441, %v758, %v759
      %v761 = vrot.slane %v715, 5
      %v762 = vrot.slane %v761, 4
      %v763 = vrot.slane %v716, 5
      %v764 = vsel %vm441, %v762, %v763
      %765 = vrot.lane.b32.xlu0 %v736, 32
      %v766 = vpop.permute.xlu0 %765
      %767 = vrot.lane.b32.xlu0 %v740, 32
      %v768 = vpop.permute.xlu0 %767
      %769 = vrot.lane.b32.xlu0 %v744, 32
      %v770 = vpop.permute.xlu0 %769
      %771 = vrot.lane.b32.xlu0 %v748, 32
      %v772 = vpop.permute.xlu0 %771
      %773 = vrot.lane.b32.xlu0 %v752, 32
      %v774 = vpop.permute.xlu0 %773
      %775 = vrot.lane.b32.xlu0 %v756, 32
      %v776 = vpop.permute.xlu0 %775
      %777 = vrot.lane.b32.xlu0 %v760, 32
      %v778 = vpop.permute.xlu0 %777
      %779 = vrot.lane.b32.xlu0 %v764, 32
      %v780 = vpop.permute.xlu0 %779
      %789 = vst.msk [vmem:[#allocation2 + $0x4] sm:$0xf] %vm398, %v766
      %790 = vst.msk [vmem:[#allocation2 + $0x10] sm:$0xf] %vm398, %v768
      %791 = vst.msk [vmem:[#allocation2 + $0x1c] sm:$0xf] %vm398, %v770
      %792 = vst.msk [vmem:[#allocation2 + $0x28] sm:$0xf] %vm398, %v772
      %793 = vst.msk [vmem:[#allocation2 + $0x34] sm:$0xf] %vm398, %v774
      %794 = vst.msk [vmem:[#allocation2 + $0x40] sm:$0xf] %vm398, %v776
      %795 = vst.msk [vmem:[#allocation2 + $0x4c] sm:$0xf] %vm398, %v778
      %796 = vst.msk [vmem:[#allocation2 + $0x58] sm:$0xf] %vm398, %v780
      %s797 = scalar_lea.vmem %s219, 16
      %v798 = vld [vmem:[%s797] sm:$0xf]
      %v799 = vld [vmem:[%s797 + $0x8] sm:$0xf]
      %v800 = vld [vmem:[%s797 + $0x10] sm:$0xf]
      %v801 = vld [vmem:[%s797 + $0x18] sm:$0xf]
      %v802 = vld [vmem:[%s797 + $0x20] sm:$0xf]
      %v803 = vld [vmem:[%s797 + $0x28] sm:$0xf]
      %v804 = vld [vmem:[%s797 + $0x30] sm:$0xf]
      %v805 = vld [vmem:[%s797 + $0x38] sm:$0xf]
      %814 = vrot.lane.b32.xlu0 %v798, 64
      %v815 = vpop.permute.xlu0 %814
      %816 = vrot.lane.b32.xlu0 %v799, 64
      %v817 = vpop.permute.xlu0 %816
      %818 = vrot.lane.b32.xlu0 %v800, 64
      %v819 = vpop.permute.xlu0 %818
      %820 = vrot.lane.b32.xlu0 %v801, 64
      %v821 = vpop.permute.xlu0 %820
      %822 = vrot.lane.b32.xlu0 %v802, 64
      %v823 = vpop.permute.xlu0 %822
      %824 = vrot.lane.b32.xlu0 %v803, 64
      %v825 = vpop.permute.xlu0 %824
      %826 = vrot.lane.b32.xlu0 %v804, 64
      %v827 = vpop.permute.xlu0 %826
      %828 = vrot.lane.b32.xlu0 %v805, 64
      %v829 = vpop.permute.xlu0 %828
      %838 = vst.msk [vmem:[#allocation2 + $0x4] sm:$0xf] %vm498, %v815
      %839 = vst.msk [vmem:[#allocation2 + $0x10] sm:$0xf] %vm498, %v817
      %840 = vst.msk [vmem:[#allocation2 + $0x1c] sm:$0xf] %vm498, %v819
      %841 = vst.msk [vmem:[#allocation2 + $0x28] sm:$0xf] %vm498, %v821
      %842 = vst.msk [vmem:[#allocation2 + $0x34] sm:$0xf] %vm498, %v823
      %843 = vst.msk [vmem:[#allocation2 + $0x40] sm:$0xf] %vm498, %v825
      %844 = vst.msk [vmem:[#allocation2 + $0x4c] sm:$0xf] %vm498, %v827
      %845 = vst.msk [vmem:[#allocation2 + $0x58] sm:$0xf] %vm498, %v829
      %v846 = vld [vmem:[%s797] sm:$0xf]
      %v847 = vld [vmem:[%s797 + $0x4] sm:$0x1]
      %v848 = vld [vmem:[%s797 + $0x8] sm:$0xf]
      %v849 = vld [vmem:[%s797 + $0xc] sm:$0x1]
      %v850 = vld [vmem:[%s797 + $0x10] sm:$0xf]
      %v851 = vld [vmem:[%s797 + $0x14] sm:$0x1]
      %v852 = vld [vmem:[%s797 + $0x18] sm:$0xf]
      %v853 = vld [vmem:[%s797 + $0x1c] sm:$0x1]
      %v854 = vld [vmem:[%s797 + $0x20] sm:$0xf]
      %v855 = vld [vmem:[%s797 + $0x24] sm:$0x1]
      %v856 = vld [vmem:[%s797 + $0x28] sm:$0xf]
      %v857 = vld [vmem:[%s797 + $0x2c] sm:$0x1]
      %v858 = vld [vmem:[%s797 + $0x30] sm:$0xf]
      %v859 = vld [vmem:[%s797 + $0x34] sm:$0x1]
      %v860 = vld [vmem:[%s797 + $0x38] sm:$0xf]
      %v861 = vld [vmem:[%s797 + $0x3c] sm:$0x1]
      %v863 = vshrl.u32 %v846, 16
      %v865 = vrot.slane %v863, 4
      %v866 = vshll.u32 %v846, 16
      %v868 = vrot.slane %v866, 5
      %v869 = vor.u32 %v865, %v868
      %v870 = vrot.slane %v869, 4
      %v872 = vshll.u32 %v847, 16
      %v874 = vrot.slane %v872, 5
      %v875 = vsel %vm261, %v870, %v874
      %v877 = vshrl.u32 %v848, 16
      %v879 = vrot.slane %v877, 4
      %v880 = vshll.u32 %v848, 16
      %v882 = vrot.slane %v880, 5
      %v883 = vor.u32 %v879, %v882
      %v884 = vrot.slane %v883, 4
      %v886 = vshll.u32 %v849, 16
      %v888 = vrot.slane %v886, 5
      %v889 = vsel %vm261, %v884, %v888
      %v891 = vshrl.u32 %v850, 16
      %v893 = vrot.slane %v891, 4
      %v894 = vshll.u32 %v850, 16
      %v896 = vrot.slane %v894, 5
      %v897 = vor.u32 %v893, %v896
      %v898 = vrot.slane %v897, 4
      %v900 = vshll.u32 %v851, 16
      %v902 = vrot.slane %v900, 5
      %v903 = vsel %vm261, %v898, %v902
      %v905 = vshrl.u32 %v852, 16
      %v907 = vrot.slane %v905, 4
      %v908 = vshll.u32 %v852, 16
      %v910 = vrot.slane %v908, 5
      %v911 = vor.u32 %v907, %v910
      %v912 = vrot.slane %v911, 4
      %v914 = vshll.u32 %v853, 16
      %v916 = vrot.slane %v914, 5
      %v917 = vsel %vm261, %v912, %v916
      %v919 = vshrl.u32 %v854, 16
      %v921 = vrot.slane %v919, 4
      %v922 = vshll.u32 %v854, 16
      %v924 = vrot.slane %v922, 5
      %v925 = vor.u32 %v921, %v924
      %v926 = vrot.slane %v925, 4
      %v928 = vshll.u32 %v855, 16
      %v930 = vrot.slane %v928, 5
      %v931 = vsel %vm261, %v926, %v930
      %v933 = vshrl.u32 %v856, 16
      %v935 = vrot.slane %v933, 4
      %v936 = vshll.u32 %v856, 16
      %v938 = vrot.slane %v936, 5
      %v939 = vor.u32 %v935, %v938
      %v940 = vrot.slane %v939, 4
      %v942 = vshll.u32 %v857, 16
      %v944 = vrot.slane %v942, 5
      %v945 = vsel %vm261, %v940, %v944
      %v947 = vshrl.u32 %v858, 16
      %v949 = vrot.slane %v947, 4
      %v950 = vshll.u32 %v858, 16
      %v952 = vrot.slane %v950, 5
      %v953 = vor.u32 %v949, %v952
      %v954 = vrot.slane %v953, 4
      %v956 = vshll.u32 %v859, 16
      %v958 = vrot.slane %v956, 5
      %v959 = vsel %vm261, %v954, %v958
      %v961 = vshrl.u32 %v860, 16
      %v963 = vrot.slane %v961, 4
      %v964 = vshll.u32 %v860, 16
      %v966 = vrot.slane %v964, 5
      %v967 = vor.u32 %v963, %v966
      %v968 = vrot.slane %v967, 4
      %v970 = vshll.u32 %v861, 16
      %v972 = vrot.slane %v970, 5
      %v973 = vsel %vm261, %v968, %v972
      %974 = vrot.lane.b32.xlu0 %v875, 96
      %v975 = vpop.permute.xlu0 %974
      %976 = vrot.lane.b32.xlu0 %v889, 96
      %v977 = vpop.permute.xlu0 %976
      %978 = vrot.lane.b32.xlu0 %v903, 96
      %v979 = vpop.permute.xlu0 %978
      %980 = vrot.lane.b32.xlu0 %v917, 96
      %v981 = vpop.permute.xlu0 %980
      %982 = vrot.lane.b32.xlu0 %v931, 96
      %v983 = vpop.permute.xlu0 %982
      %984 = vrot.lane.b32.xlu0 %v945, 96
      %v985 = vpop.permute.xlu0 %984
      %986 = vrot.lane.b32.xlu0 %v959, 96
      %v987 = vpop.permute.xlu0 %986
      %988 = vrot.lane.b32.xlu0 %v973, 96
      %v989 = vpop.permute.xlu0 %988
      %998 = vst.msk [vmem:[#allocation2 + $0x4] sm:$0xf] %vm548, %v975
      %999 = vst.msk [vmem:[#allocation2 + $0x10] sm:$0xf] %vm548, %v977
      %1000 = vst.msk [vmem:[#allocation2 + $0x1c] sm:$0xf] %vm548, %v979
      %1001 = vst.msk [vmem:[#allocation2 + $0x28] sm:$0xf] %vm548, %v981
      %1002 = vst.msk [vmem:[#allocation2 + $0x34] sm:$0xf] %vm548, %v983
      %1003 = vst.msk [vmem:[#allocation2 + $0x40] sm:$0xf] %vm548, %v985
      %1004 = vst.msk [vmem:[#allocation2 + $0x4c] sm:$0xf] %vm548, %v987
      %1005 = vst.msk [vmem:[#allocation2 + $0x58] sm:$0xf] %vm548, %v989
      %v1006 = vld [vmem:[%s797] sm:$0xe]
      %v1007 = vld [vmem:[%s797 + $0x4] sm:$0x1]
      %v1008 = vld [vmem:[%s797 + $0x8] sm:$0xe]
      %v1009 = vld [vmem:[%s797 + $0xc] sm:$0x1]
      %v1010 = vld [vmem:[%s797 + $0x10] sm:$0xe]
      %v1011 = vld [vmem:[%s797 + $0x14] sm:$0x1]
      %v1012 = vld [vmem:[%s797 + $0x18] sm:$0xe]
      %v1013 = vld [vmem:[%s797 + $0x1c] sm:$0x1]
      %v1014 = vld [vmem:[%s797 + $0x20] sm:$0xe]
      %v1015 = vld [vmem:[%s797 + $0x24] sm:$0x1]
      %v1016 = vld [vmem:[%s797 + $0x28] sm:$0xe]
      %v1017 = vld [vmem:[%s797 + $0x2c] sm:$0x1]
      %v1018 = vld [vmem:[%s797 + $0x30] sm:$0xe]
      %v1019 = vld [vmem:[%s797 + $0x34] sm:$0x1]
      %v1020 = vld [vmem:[%s797 + $0x38] sm:$0xe]
      %v1021 = vld [vmem:[%s797 + $0x3c] sm:$0x1]
      %v1038 = vrot.slane %v1006, 5
      %v1039 = vrot.slane %v1038, 4
      %v1040 = vrot.slane %v1007, 5
      %v1041 = vsel %vm441, %v1039, %v1040
      %v1042 = vrot.slane %v1008, 5
      %v1043 = vrot.slane %v1042, 4
      %v1044 = vrot.slane %v1009, 5
      %v1045 = vsel %vm441, %v1043, %v1044
      %v1046 = vrot.slane %v1010, 5
      %v1047 = vrot.slane %v1046, 4
      %v1048 = vrot.slane %v1011, 5
      %v1049 = vsel %vm441, %v1047, %v1048
      %v1050 = vrot.slane %v1012, 5
      %v1051 = vrot.slane %v1050, 4
      %v1052 = vrot.slane %v1013, 5
      %v1053 = vsel %vm441, %v1051, %v1052
      %v1054 = vrot.slane %v1014, 5
      %v1055 = vrot.slane %v1054, 4
      %v1056 = vrot.slane %v1015, 5
      %v1057 = vsel %vm441, %v1055, %v1056
      %v1058 = vrot.slane %v1016, 5
      %v1059 = vrot.slane %v1058, 4
      %v1060 = vrot.slane %v1017, 5
      %v1061 = vsel %vm441, %v1059, %v1060
      %v1062 = vrot.slane %v1018, 5
      %v1063 = vrot.slane %v1062, 4
      %v1064 = vrot.slane %v1019, 5
      %v1065 = vsel %vm441, %v1063, %v1064
      %v1066 = vrot.slane %v1020, 5
      %v1067 = vrot.slane %v1066, 4
      %v1068 = vrot.slane %v1021, 5
      %v1069 = vsel %vm441, %v1067, %v1068
      %1078 = vst.msk [vmem:[#allocation2 + $0x8] sm:$0xf] %vm234, %v1041
      %1079 = vst.msk [vmem:[#allocation2 + $0x14] sm:$0xf] %vm234, %v1045
      %1080 = vst.msk [vmem:[#allocation2 + $0x20] sm:$0xf] %vm234, %v1049
      %1081 = vst.msk [vmem:[#allocation2 + $0x2c] sm:$0xf] %vm234, %v1053
      %1082 = vst.msk [vmem:[#allocation2 + $0x38] sm:$0xf] %vm234, %v1057
      %1083 = vst.msk [vmem:[#allocation2 + $0x44] sm:$0xf] %vm234, %v1061
      %1084 = vst.msk [vmem:[#allocation2 + $0x50] sm:$0xf] %vm234, %v1065
      %1085 = vst.msk [vmem:[#allocation2 + $0x5c] sm:$0xf] %vm234, %v1069
      %v1086 = vld [vmem:[#allocation2] sm:$0xff]
      %v1087 = vld [vmem:[#allocation2 + $0x8] sm:$0xf]
      %v1088 = vld [vmem:[#allocation2 + $0xc] sm:$0xff]
      %v1089 = vld [vmem:[#allocation2 + $0x14] sm:$0xf]
      %v1090 = vld [vmem:[#allocation2 + $0x18] sm:$0xff]
      %v1091 = vld [vmem:[#allocation2 + $0x20] sm:$0xf]
      %v1092 = vld [vmem:[#allocation2 + $0x24] sm:$0xff]
      %v1093 = vld [vmem:[#allocation2 + $0x2c] sm:$0xf]
      %v1094 = vld [vmem:[#allocation2 + $0x30] sm:$0xff]
      %v1095 = vld [vmem:[#allocation2 + $0x38] sm:$0xf]
      %v1096 = vld [vmem:[#allocation2 + $0x3c] sm:$0xff]
      %v1097 = vld [vmem:[#allocation2 + $0x44] sm:$0xf]
      %v1098 = vld [vmem:[#allocation2 + $0x48] sm:$0xff]
      %v1099 = vld [vmem:[#allocation2 + $0x50] sm:$0xf]
      %v1100 = vld [vmem:[#allocation2 + $0x54] sm:$0xff]
      %v1101 = vld [vmem:[#allocation2 + $0x5c] sm:$0xf]
      %v1102 = vld [vmem:[%s1] sm:$0xf]
      %v1103 = vld [vmem:[%s1 + $0x4] sm:$0xf]
      %v1104 = vld [vmem:[%s1 + $0x8] sm:$0xf]
      %v1105 = vld [vmem:[%s1 + $0xc] sm:$0xf]
      %v1106 = vld [vmem:[%s1 + $0x10] sm:$0xf]
      %v1107 = vld [vmem:[%s1 + $0x14] sm:$0xf]
      %v1108 = vld [vmem:[%s1 + $0x18] sm:$0xf]
      %v1109 = vld [vmem:[%s1 + $0x1c] sm:$0xf]
      %v1110 = vld [vmem:[%s1 + $0x20] sm:$0xf]
      %v1111 = vld [vmem:[%s1 + $0x24] sm:$0xf]
      %v1112 = vld [vmem:[%s1 + $0x28] sm:$0xf]
      %v1113 = vld [vmem:[%s1 + $0x2c] sm:$0xf]
      %v1114 = vld [vmem:[%s1 + $0x30] sm:$0xf]
      %v1115 = vld [vmem:[%s1 + $0x34] sm:$0xf]
      %v1116 = vld [vmem:[%s1 + $0x38] sm:$0xf]
      %v1117 = vld [vmem:[%s1 + $0x3c] sm:$0xf]
      %v1118 = vld [vmem:[%s1 + $0x40] sm:$0xf]
      %v1119 = vld [vmem:[%s1 + $0x44] sm:$0xf]
      %v1120 = vld [vmem:[%s1 + $0x48] sm:$0xf]
      %v1121 = vld [vmem:[%s1 + $0x4c] sm:$0xf]
      %v1122 = vld [vmem:[%s1 + $0x50] sm:$0xf]
      %v1123 = vld [vmem:[%s1 + $0x54] sm:$0xf]
      %v1124 = vld [vmem:[%s1 + $0x58] sm:$0xf]
      %v1125 = vld [vmem:[%s1 + $0x5c] sm:$0xf]
      %v1126 = vld [vmem:[%s1 + $0x60] sm:$0xf]
      %v1127 = vld [vmem:[%s1 + $0x64] sm:$0xf]
      %v1128 = vld [vmem:[%s1 + $0x68] sm:$0xf]
      %v1129 = vld [vmem:[%s1 + $0x6c] sm:$0xf]
      %v1130 = vld [vmem:[%s1 + $0x70] sm:$0xf]
      %v1131 = vld [vmem:[%s1 + $0x74] sm:$0xf]
      %v1132 = vld [vmem:[%s1 + $0x78] sm:$0xf]
      %v1133 = vld [vmem:[%s1 + $0x7c] sm:$0xf]
      %v1134 = vld [vmem:[%s1 + $0x80] sm:$0xf]
      %v1135 = vld [vmem:[%s1 + $0x84] sm:$0xf]
      %v1136 = vld [vmem:[%s1 + $0x88] sm:$0xf]
      %v1137 = vld [vmem:[%s1 + $0x8c] sm:$0xf]
      %v1138 = vld [vmem:[%s2] sm:$0x1]
      %v1140 = vlaneseq
      %v1141 = vshrl.u32 %v1140, 7
      %v1142 = vsub.s32 0, %v1141
      %v1143 = vrot.slane %v1138, %v1142
      %v1161 = vunpack.c.l.b16 %v1086
      %v1162 = vunpack.c.h.b16 %v1086
      %v1163 = vunpack.c.l.b16 %v1087
      %v1164 = vunpack.c.l.b16 %v1088
      %v1165 = vunpack.c.h.b16 %v1088
      %v1166 = vunpack.c.l.b16 %v1089
      %v1167 = vunpack.c.l.b16 %v1090
      %v1168 = vunpack.c.h.b16 %v1090
      %v1169 = vunpack.c.l.b16 %v1091
      %v1170 = vunpack.c.l.b16 %v1092
      %v1171 = vunpack.c.h.b16 %v1092
      %v1172 = vunpack.c.l.b16 %v1093
      %v1173 = vunpack.c.l.b16 %v1094
      %v1174 = vunpack.c.h.b16 %v1094
      %v1175 = vunpack.c.l.b16 %v1095
      %v1176 = vunpack.c.l.b16 %v1096
      %v1177 = vunpack.c.h.b16 %v1096
      %v1178 = vunpack.c.l.b16 %v1097
      %v1179 = vunpack.c.l.b16 %v1098
      %v1180 = vunpack.c.h.b16 %v1098
      %v1181 = vunpack.c.l.b16 %v1099
      %v1182 = vunpack.c.l.b16 %v1100
      %v1183 = vunpack.c.h.b16 %v1100
      %v1184 = vunpack.c.l.b16 %v1101
      %v1185 = vpack.c.b16 %v1164, %v1161
      %v1186 = vpack.c.b16 %v1165, %v1162
      %v1187 = vpack.c.b16 %v1166, %v1163
      %v1188 = vpack.c.b16 %v1170, %v1167
      %v1189 = vpack.c.b16 %v1171, %v1168
      %v1190 = vpack.c.b16 %v1172, %v1169
      %v1191 = vpack.c.b16 %v1176, %v1173
      %v1192 = vpack.c.b16 %v1177, %v1174
      %v1193 = vpack.c.b16 %v1178, %v1175
      %v1194 = vpack.c.b16 %v1182, %v1179
      %v1195 = vpack.c.b16 %v1183, %v1180
      %v1196 = vpack.c.b16 %v1184, %v1181
      %v1241 = vunpack.c.l.b16 %v1102
      %v1242 = vunpack.c.l.b16 %v1103
      %v1243 = vunpack.c.l.b16 %v1104
      %v1244 = vunpack.c.l.b16 %v1105
      %v1245 = vunpack.c.l.b16 %v1106
      %v1246 = vunpack.c.l.b16 %v1107
      %v1247 = vunpack.c.l.b16 %v1108
      %v1248 = vunpack.c.l.b16 %v1109
      %v1249 = vunpack.c.l.b16 %v1110
      %v1250 = vunpack.c.l.b16 %v1111
      %v1251 = vunpack.c.l.b16 %v1112
      %v1252 = vunpack.c.l.b16 %v1113
      %v1253 = vunpack.c.l.b16 %v1114
      %v1254 = vunpack.c.l.b16 %v1115
      %v1255 = vunpack.c.l.b16 %v1116
      %v1256 = vunpack.c.l.b16 %v1117
      %v1257 = vunpack.c.l.b16 %v1118
      %v1258 = vunpack.c.l.b16 %v1119
      %v1259 = vunpack.c.l.b16 %v1120
      %v1260 = vunpack.c.l.b16 %v1121
      %v1261 = vunpack.c.l.b16 %v1122
      %v1262 = vunpack.c.l.b16 %v1123
      %v1263 = vunpack.c.l.b16 %v1124
      %v1264 = vunpack.c.l.b16 %v1125
      %v1265 = vunpack.c.l.b16 %v1126
      %v1266 = vunpack.c.l.b16 %v1127
      %v1267 = vunpack.c.l.b16 %v1128
      %v1268 = vunpack.c.l.b16 %v1129
      %v1269 = vunpack.c.l.b16 %v1130
      %v1270 = vunpack.c.l.b16 %v1131
      %v1271 = vunpack.c.l.b16 %v1132
      %v1272 = vunpack.c.l.b16 %v1133
      %v1273 = vunpack.c.l.b16 %v1134
      %v1274 = vunpack.c.l.b16 %v1135
      %v1275 = vunpack.c.l.b16 %v1136
      %v1276 = vunpack.c.l.b16 %v1137
      %v1277 = vpack.c.b16 %v1242, %v1241
      %v1278 = vpack.c.b16 %v1244, %v1243
      %v1279 = vpack.c.b16 %v1246, %v1245
      %v1280 = vpack.c.b16 %v1248, %v1247
      %v1281 = vpack.c.b16 %v1250, %v1249
      %v1282 = vpack.c.b16 %v1252, %v1251
      %v1283 = vpack.c.b16 %v1254, %v1253
      %v1284 = vpack.c.b16 %v1256, %v1255
      %v1285 = vpack.c.b16 %v1258, %v1257
      %v1286 = vpack.c.b16 %v1260, %v1259
      %v1287 = vpack.c.b16 %v1262, %v1261
      %v1288 = vpack.c.b16 %v1264, %v1263
      %v1289 = vpack.c.b16 %v1266, %v1265
      %v1290 = vpack.c.b16 %v1268, %v1267
      %v1291 = vpack.c.b16 %v1270, %v1269
      %v1292 = vpack.c.b16 %v1272, %v1271
      %v1293 = vpack.c.b16 %v1274, %v1273
      %v1294 = vpack.c.b16 %v1276, %v1275
      %vm1313 = vcmask 261120
      %v1315 = vsel %vm1313, %v1187, 0
      %v1318 = vsel %vm1313, %v1190, 0
      %v1321 = vsel %vm1313, %v1193, 0
      %v1324 = vsel %vm1313, %v1196, 0
      %1326 = vmatprep.subr.bf16.mxu0 0
      %1327 = vmatpush1.bf16.msra.mxu0 %v1277
      %1328 = vmatprep.subr.bf16.mxu0 0
      %1329 = vmatpush1.bf16.msra.mxu0 %v1278
      %1330 = vmatprep.subr.bf16.mxu0 0
      %1331 = vmatpush1.bf16.msra.mxu0 %v1279
      %1332 = vmatprep.subr.bf16.mxu0 0
      %1333 = vmatpush1.bf16.msra.mxu0 %v1280
      %1334 = vmatprep.subr.bf16.mxu0 0
      %1335 = vmatpush1.bf16.msra.mxu0 %v1281
      %1336 = vmatprep.subr.bf16.mxu0 0
      %1337 = vmatpush1.bf16.msra.mxu0 %v1282
      %1338 = vmatprep.subr.bf16.mxu0 0
      %1339 = vmatpush1.bf16.msra.mxu0 %v1283
      %1340 = vmatprep.subr.bf16.mxu0 0
      %1341 = vmatpush1.bf16.msra.mxu0 %v1284
      %1342 = vmatprep.subr.bf16.mxu0 0
      %1343 = vmatpush1.bf16.msra.mxu0 %v1285
      %1344 = vmatprep.subr.bf16.mxu0 0
      %1345 = vmatpush1.bf16.msra.mxu0 %v1286
      %1346 = vmatprep.subr.bf16.mxu0 0
      %1347 = vmatpush1.bf16.msra.mxu0 %v1287
      %1348 = vmatprep.subr.bf16.mxu0 0
      %1349 = vmatpush1.bf16.msra.mxu0 %v1288
      %1350 = vmatprep.subr.bf16.mxu0 0
      %1351 = vmatpush1.bf16.msra.mxu0 %v1289
      %1352 = vmatprep.subr.bf16.mxu0 0
      %1353 = vmatpush1.bf16.msra.mxu0 %v1290
      %1354 = vmatprep.subr.bf16.mxu0 0
      %1355 = vmatpush1.bf16.msra.mxu0 %v1291
      %1356 = vmatprep.subr.bf16.mxu0 0
      %1357 = vmatpush1.bf16.msra.mxu0 %v1292
      %1358 = vmatprep.mubr.bf16.mxu0 %v1186
      %1359 = vmatmul.mubr.bf16.gmra.mrb[0].mxu0 %v1185
      %v1360 = vpop.f32.mrb[0].mxu0
      %v1361 = vadd.f32 %v1143, %v1360
      %v1362 = vpop.f32.mrb[0].mxu0
      %v1363 = vpop.f32.mrb[0].mxu0
      %v1364 = vadd.f32 %v1143, %v1363
      %v1365 = vpop.f32.mrb[0].mxu0
      %1366 = vmatprep.mubr.bf16.mxu0 %v1189
      %1367 = vmatmul.mubr.bf16.gmra.mrb[0].mxu0 %v1188
      %v1368 = vpop.f32.mrb[0].mxu0
      %v1369 = vadd.f32 %v1143, %v1368
      %v1370 = vpop.f32.mrb[0].mxu0
      %v1371 = vpop.f32.mrb[0].mxu0
      %v1372 = vadd.f32 %v1143, %v1371
      %v1373 = vpop.f32.mrb[0].mxu0
      %1374 = vmatprep.mubr.bf16.mxu0 %v1192
      %1375 = vmatmul.mubr.bf16.gmra.mrb[0].mxu0 %v1191
      %v1376 = vpop.f32.mrb[0].mxu0
      %v1377 = vadd.f32 %v1143, %v1376
      %v1378 = vpop.f32.mrb[0].mxu0
      %v1379 = vpop.f32.mrb[0].mxu0
      %v1380 = vadd.f32 %v1143, %v1379
      %v1381 = vpop.f32.mrb[0].mxu0
      %1382 = vmatprep.mubr.bf16.mxu0 %v1195
      %1383 = vmatmul.mubr.bf16.gmra.mrb[0].mxu0 %v1194
      %v1384 = vpop.f32.mrb[0].mxu0
      %v1385 = vadd.f32 %v1143, %v1384
      %v1386 = vpop.f32.mrb[0].mxu0
      %v1387 = vpop.f32.mrb[0].mxu0
      %v1388 = vadd.f32 %v1143, %v1387
      %v1389 = vpop.f32.mrb[0].mxu0
      %1390 = vdwg.mxu0
      %1391 = vmatprep.subr.bf16.mxu0 0
      %1392 = vmatpush1.bf16.msra.mxu0 %v1293
      %1393 = vmatprep.subr.bf16.mxu0 0
      %1394 = vmatpush1.bf16.msra.mxu0 %v1294
      %1395 = vmatprep.subr.bf16.mxu0 0
      %1396 = vmatpush1.bf16.msra.mxu0 0
      %1397 = vmatprep.subr.bf16.mxu0 0
      %1398 = vmatpush1.bf16.msra.mxu0 0
      %1399 = vmatprep.subr.bf16.mxu0 0
      %1400 = vmatpush1.bf16.msra.mxu0 0
      %1401 = vmatprep.subr.bf16.mxu0 0
      %1402 = vmatpush1.bf16.msra.mxu0 0
      %1403 = vmatprep.subr.bf16.mxu0 0
      %1404 = vmatpush1.bf16.msra.mxu0 0
      %1405 = vmatprep.subr.bf16.mxu0 0
      %1406 = vmatpush1.bf16.msra.mxu0 0
      %1407 = vmatprep.subr.bf16.mxu0 0
      %1408 = vmatpush1.bf16.msra.mxu0 0
      %1409 = vmatprep.subr.bf16.mxu0 0
      %1410 = vmatpush1.bf16.msra.mxu0 0
      %1411 = vmatprep.subr.bf16.mxu0 0
      %1412 = vmatpush1.bf16.msra.mxu0 0
      %1413 = vmatprep.subr.bf16.mxu0 0
      %1414 = vmatpush1.bf16.msra.mxu0 0
      %1415 = vmatprep.subr.bf16.mxu0 0
      %1416 = vmatpush1.bf16.msra.mxu0 0
      %1417 = vmatprep.subr.bf16.mxu0 0
      %1418 = vmatpush1.bf16.msra.mxu0 0
      %1419 = vmatprep.subr.bf16.mxu0 0
      %1420 = vmatpush1.bf16.msra.mxu0 0
      %1421 = vmatprep.subr.bf16.mxu0 0
      %1422 = vmatpush1.bf16.msra.mxu0 0
      %1423 = vmatprep.mubr.bf16.mxu0 0
      %1424 = vmatmul.mubr.bf16.gmra.mrb[0].mxu0 %v1315
      %v1425 = vpop.f32.mrb[0].mxu0
      %v1426 = vadd.f32 %v1361, %v1425
      %v1427 = vpop.f32.mrb[0].mxu0
      %v1428 = vpop.f32.mrb[0].mxu0
      %v1429 = vadd.f32 %v1364, %v1428
      %v1430 = vpop.f32.mrb[0].mxu0
      %1431 = vmatprep.mubr.bf16.mxu0 0
      %1432 = vmatmul.mubr.bf16.gmra.mrb[0].mxu0 %v1318
      %v1433 = vpop.f32.mrb[0].mxu0
      %v1434 = vadd.f32 %v1369, %v1433
      %v1435 = vpop.f32.mrb[0].mxu0
      %v1436 = vpop.f32.mrb[0].mxu0
      %v1437 = vadd.f32 %v1372, %v1436
      %v1438 = vpop.f32.mrb[0].mxu0
      %1439 = vmatprep.mubr.bf16.mxu0 0
      %1440 = vmatmul.mubr.bf16.gmra.mrb[0].mxu0 %v1321
      %v1441 = vpop.f32.mrb[0].mxu0
      %v1442 = vadd.f32 %v1377, %v1441
      %v1443 = vpop.f32.mrb[0].mxu0
      %v1444 = vpop.f32.mrb[0].mxu0
      %v1445 = vadd.f32 %v1380, %v1444
      %v1446 = vpop.f32.mrb[0].mxu0
      %1447 = vmatprep.mubr.bf16.mxu0 0
      %1448 = vmatmul.mubr.bf16.gmra.mrb[0].mxu0 %v1324
      %v1449 = vpop.f32.mrb[0].mxu0
      %v1450 = vadd.f32 %v1385, %v1449
      %v1451 = vpop.f32.mrb[0].mxu0
      %v1452 = vpop.f32.mrb[0].mxu0
      %v1453 = vadd.f32 %v1388, %v1452
      %v1454 = vpop.f32.mrb[0].mxu0
      %1455 = vdwg.mxu0
      %v1456 = vmax.f32 %v1426, 0.0
      %v1457 = vmax.f32 %v1429, 0.0
      %v1458 = vmax.f32 %v1434, 0.0
      %v1459 = vmax.f32 %v1437, 0.0
      %v1460 = vmax.f32 %v1442, 0.0
      %v1461 = vmax.f32 %v1445, 0.0
      %v1462 = vmax.f32 %v1450, 0.0
      %v1463 = vmax.f32 %v1453, 0.0
      %v1464 = vpack.c.bf16 %v1457, %v1456
      %v1465 = vpack.c.bf16 %v1459, %v1458
      %v1466 = vpack.c.bf16 %v1461, %v1460
      %v1467 = vpack.c.bf16 %v1463, %v1462
      %v1468 = vld [vmem:[%s3] sm:$0xf]
      %v1469 = vld [vmem:[%s3 + $0x4] sm:$0xf]
      %v1470 = vld [vmem:[%s3 + $0x8] sm:$0xf]
      %v1471 = vld [vmem:[%s3 + $0xc] sm:$0xf]
      %v1472 = vld [vmem:[%s3 + $0x10] sm:$0xf]
      %v1473 = vld [vmem:[%s3 + $0x14] sm:$0xf]
      %v1474 = vld [vmem:[%s3 + $0x18] sm:$0xf]
      %v1475 = vld [vmem:[%s3 + $0x1c] sm:$0xf]
      %v1476 = vld [vmem:[%s3 + $0x20] sm:$0xf]
      %v1477 = vld [vmem:[%s3 + $0x24] sm:$0xf]
      %v1478 = vld [vmem:[%s3 + $0x28] sm:$0xf]
      %v1479 = vld [vmem:[%s3 + $0x2c] sm:$0xf]
      %v1480 = vld [vmem:[%s3 + $0x30] sm:$0xf]
      %v1481 = vld [vmem:[%s3 + $0x34] sm:$0xf]
      %v1482 = vld [vmem:[%s3 + $0x38] sm:$0xf]
      %v1483 = vld [vmem:[%s3 + $0x3c] sm:$0xf]
      %v1484 = vld [vmem:[%s4] sm:$0x1]
      %v1486 = vlaneseq
      %v1487 = vshrl.u32 %v1486, 7
      %v1488 = vsub.s32 0, %v1487
      %v1489 = vrot.slane %v1484, %v1488
      %v1507 = vunpack.c.l.b16 %v1468
      %v1508 = vunpack.c.l.b16 %v1469
      %v1509 = vunpack.c.l.b16 %v1470
      %v1510 = vunpack.c.l.b16 %v1471
      %v1511 = vunpack.c.l.b16 %v1472
      %v1512 = vunpack.c.l.b16 %v1473
      %v1513 = vunpack.c.l.b16 %v1474
      %v1514 = vunpack.c.l.b16 %v1475
      %v1515 = vunpack.c.l.b16 %v1476
      %v1516 = vunpack.c.l.b16 %v1477
      %v1517 = vunpack.c.l.b16 %v1478
      %v1518 = vunpack.c.l.b16 %v1479
      %v1519 = vunpack.c.l.b16 %v1480
      %v1520 = vunpack.c.l.b16 %v1481
      %v1521 = vunpack.c.l.b16 %v1482
      %v1522 = vunpack.c.l.b16 %v1483
      %v1523 = vpack.c.b16 %v1508, %v1507
      %v1524 = vpack.c.b16 %v1510, %v1509
      %v1525 = vpack.c.b16 %v1512, %v1511
      %v1526 = vpack.c.b16 %v1514, %v1513
      %v1527 = vpack.c.b16 %v1516, %v1515
      %v1528 = vpack.c.b16 %v1518, %v1517
      %v1529 = vpack.c.b16 %v1520, %v1519
      %v1530 = vpack.c.b16 %v1522, %v1521
      %1539 = vmatprep.subr.bf16.mxu0 0
      %1540 = vmatpush1.bf16.msra.mxu0 %v1523
      %1541 = vmatprep.subr.bf16.mxu0 0
      %1542 = vmatpush1.bf16.msra.mxu0 %v1524
      %1543 = vmatprep.subr.bf16.mxu0 0
      %1544 = vmatpush1.bf16.msra.mxu0 %v1525
      %1545 = vmatprep.subr.bf16.mxu0 0
      %1546 = vmatpush1.bf16.msra.mxu0 %v1526
      %1547 = vmatprep.subr.bf16.mxu0 0
      %1548 = vmatpush1.bf16.msra.mxu0 %v1527
      %1549 = vmatprep.subr.bf16.mxu0 0
      %1550 = vmatpush1.bf16.msra.mxu0 %v1528
      %1551 = vmatprep.subr.bf16.mxu0 0
      %1552 = vmatpush1.bf16.msra.mxu0 %v1529
      %1553 = vmatprep.subr.bf16.mxu0 0
      %1554 = vmatpush1.bf16.msra.mxu0 %v1530
      %1555 = vmatprep.subr.bf16.mxu0 0
      %1556 = vmatpush1.bf16.msra.mxu0 0
      %1557 = vmatprep.subr.bf16.mxu0 0
      %1558 = vmatpush1.bf16.msra.mxu0 0
      %1559 = vmatprep.subr.bf16.mxu0 0
      %1560 = vmatpush1.bf16.msra.mxu0 0
      %1561 = vmatprep.subr.bf16.mxu0 0
      %1562 = vmatpush1.bf16.msra.mxu0 0
      %1563 = vmatprep.subr.bf16.mxu0 0
      %1564 = vmatpush1.bf16.msra.mxu0 0
      %1565 = vmatprep.subr.bf16.mxu0 0
      %1566 = vmatpush1.bf16.msra.mxu0 0
      %1567 = vmatprep.subr.bf16.mxu0 0
      %1568 = vmatpush1.bf16.msra.mxu0 0
      %1569 = vmatprep.subr.bf16.mxu0 0
      %1570 = vmatpush1.bf16.msra.mxu0 0
      %1571 = vmatprep.mubr.bf16.mxu0 0
      %1572 = vmatmul.mubr.bf16.gmra.mrb[0].mxu0 %v1464
      %v1573 = vpop.f32.mrb[0].mxu0
      %v1574 = vadd.f32 %v1489, %v1573
      %v1575 = vpop.f32.mrb[0].mxu0
      %v1576 = vpop.f32.mrb[0].mxu0
      %v1577 = vadd.f32 %v1489, %v1576
      %v1578 = vpop.f32.mrb[0].mxu0
      %1579 = vmatprep.mubr.bf16.mxu0 0
      %1580 = vmatmul.mubr.bf16.gmra.mrb[0].mxu0 %v1465
      %v1581 = vpop.f32.mrb[0].mxu0
      %v1582 = vadd.f32 %v1489, %v1581
      %v1583 = vpop.f32.mrb[0].mxu0
      %v1584 = vpop.f32.mrb[0].mxu0
      %v1585 = vadd.f32 %v1489, %v1584
      %v1586 = vpop.f32.mrb[0].mxu0
      %1587 = vmatprep.mubr.bf16.mxu0 0
      %1588 = vmatmul.mubr.bf16.gmra.mrb[0].mxu0 %v1466
      %v1589 = vpop.f32.mrb[0].mxu0
      %v1590 = vadd.f32 %v1489, %v1589
      %v1591 = vpop.f32.mrb[0].mxu0
      %v1592 = vpop.f32.mrb[0].mxu0
      %v1593 = vadd.f32 %v1489, %v1592
      %v1594 = vpop.f32.mrb[0].mxu0
      %1595 = vmatprep.mubr.bf16.mxu0 0
      %1596 = vmatmul.mubr.bf16.gmra.mrb[0].mxu0 %v1467
      %v1597 = vpop.f32.mrb[0].mxu0
      %v1598 = vadd.f32 %v1489, %v1597
      %v1599 = vpop.f32.mrb[0].mxu0
      %v1600 = vpop.f32.mrb[0].mxu0
      %v1601 = vadd.f32 %v1489, %v1600
      %v1602 = vpop.f32.mrb[0].mxu0
      %1603 = vdwg.mxu0
      %1604 = vst.msk [vmem:[%s224] sm:$0xff] %vm1313, %v1574
      %1605 = vst.msk [vmem:[%s224 + $0x8] sm:$0xff] %vm1313, %v1577
      %1606 = vst.msk [vmem:[%s224 + $0x10] sm:$0xff] %vm1313, %v1582
      %1607 = vst.msk [vmem:[%s224 + $0x18] sm:$0xff] %vm1313, %v1585
      %1608 = vst.msk [vmem:[%s224 + $0x20] sm:$0xff] %vm1313, %v1590
      %1609 = vst.msk [vmem:[%s224 + $0x28] sm:$0xff] %vm1313, %v1593
      %1610 = vst.msk [vmem:[%s224 + $0x30] sm:$0xff] %vm1313, %v1598
      %1611 = vst.msk [vmem:[%s224 + $0x38] sm:$0xff] %vm1313, %v1601
      %p1612 = scmp.lt.s32.totalorder %s16, 1
      %s1613 = scalar_select %p1612, %s16, 1
      %s1614 = smul.addr %s1613, 8
      %s1615 = smul.addr %s1614, 8
      %s1616 = scalar_lea.vmem %s5, %s1615
      // Predicated region
      $region41: #{pose_mobilenetv3_forward.9} parent=39 // pred_check
        %p1617 = pneg %p144
      $region42: #{pose_mobilenetv3_forward.9} parent=39 // pred_check_branch
        %1619 = sbr.rel (%p1617) target = $region44
      $region43: #{pose_mobilenetv3_forward.9} parent=39 // pred_region
        _
      $region44: #{pose_mobilenetv3_forward.9} parent=39 // pred_fallthru
        _
    $region40: #{pose_mobilenetv3_forward.9} parent=5 // pred_fallthru
      _
    %p1620 = scmp.le.s32.totalorder 2, %s11
    // Predicated region
    $region45: #{pose_mobilenetv3_forward.9} parent=5 // pred_check
      %p1621 = pneg %p1620
    $region46: #{pose_mobilenetv3_forward.9} parent=5 // pred_check_branch
      %1623 = sbr.rel (%p1621) target = $region48
    $region47: #{pose_mobilenetv3_forward.9} parent=5 // pred_region
      %s1624 = ssub.s32 %s11, 2
      // Predicated region
      $region49: #{pose_mobilenetv3_forward.9} parent=47 // pred_check
        %p1625 = pneg %p150
      $region50: #{pose_mobilenetv3_forward.9} parent=47 // pred_check_branch
        %1627 = sbr.rel (%p1625) target = $region52
      $region51: #{pose_mobilenetv3_forward.9} parent=47 // pred_region
        %p1628 = scmp.lt.s32.totalorder %s17, 1
        %s1629 = scalar_select %p1628, %s17, 1
        %s1630 = smul.addr %s1629, 8
        %s1631 = smul.addr %s1630, 8
        %s1632 = scalar_lea.vmem %s5, %s1631
      $region52: #{pose_mobilenetv3_forward.9} parent=47 // pred_fallthru
        _
    $region48: #{pose_mobilenetv3_forward.9} parent=5 // pred_fallthru
      _
  $region6: #{pose_mobilenetv3_forward.9} parent=0 // loop_footer
    %s15 = sadd.s32 1, %s11
  $region7: #{pose_mobilenetv3_forward.9} parent=0 // loop_footer_branch
    %10 = sbr.rel target = $region3
  $region8: #{pose_mobilenetv3_forward.9} parent=0 // loop_exit
    _

</llo_original>
